<compile_context>
chip_gen: v7x
topology: tpu7x:2x2x1
jax: 0.10.0
libtpu: 0.0.40
codegen_flags: <defaults>
</compile_context>

<pallas_src>
import functools

import jax
import jax.numpy as jnp
from jax.experimental import pallas as pl
from jax.experimental.pallas import tpu as pltpu

NEG_SLOPE = 0.2
BN_EPS = 1e-5
LANE = 128
TILE_M_MAX = 512                      # rows per M tile (multiple of 8)
VMEM_LIMIT = 48 * 1024 * 1024         # sized with headroom for v7x's 64 MiB


def _round_up(x, m):
    return ((x + m - 1) // m) * m


def _pad_rows(m):
    """Return (m_pad, tile_m): m_pad % tile_m == 0, tile_m % 8 == 0."""
    m8 = _round_up(m, 8)
    if m8 <= TILE_M_MAX:
        return m8, m8
    return _round_up(m, TILE_M_MAX), TILE_M_MAX


def _vmem():
    return pl.BlockSpec(memory_space=pltpu.MemorySpace.VMEM)


def _compiler_params():
    return pltpu.CompilerParams(
        dimension_semantics=("parallel", "parallel"),
        vmem_limit_bytes=VMEM_LIMIT)


# ---------------------------------------------------------------------------
# Kernel bodies
# ---------------------------------------------------------------------------
def fc_embed_kernel(y1_ref, y2_ref, w1_ref, w2_ref, o_ref):
    # Both embedding Linears + LeakyReLU fused into one call.
    z1 = jnp.dot(y1_ref[...], w1_ref[...], preferred_element_type=jnp.float32)
    z2 = jnp.dot(y2_ref[...], w2_ref[...], preferred_element_type=jnp.float32)
    e1 = jnp.where(z1 > 0, z1, NEG_SLOPE * z1)
    e2 = jnp.where(z2 > 0, z2, NEG_SLOPE * z2)
    o_ref[...] = jnp.concatenate([e1, e2], axis=1).astype(o_ref.dtype)


def conv_stats_kernel(p_ref, w_ref, raw_ref, st_ref):
    # (TILE_M, K) x (K, C) bf16 matmul, f32 accumulate; also emit per-tile
    # per-channel sum / sum-of-squares for the global BN statistics.
    acc = jnp.dot(p_ref[...], w_ref[...], preferred_element_type=jnp.float32)
    raw_ref[...] = acc
    s = jnp.sum(acc, axis=0, keepdims=True)
    ss = jnp.sum(acc * acc, axis=0, keepdims=True)
    st_ref[...] = jnp.concatenate([s, ss], axis=0)


def conv_tanh_kernel(p_ref, w_ref, o_ref):
    acc = jnp.dot(p_ref[...], w_ref[...], preferred_element_type=jnp.float32)
    o_ref[...] = jnp.tanh(acc)


def bn_lrelu_kernel(raw_ref, mu_ref, inv_ref, o_ref):
    x = raw_ref[...]
    y = (x - mu_ref[...]) * inv_ref[...]
    o_ref[...] = jnp.where(y > 0, y, NEG_SLOPE * y).astype(o_ref.dtype)


# ---------------------------------------------------------------------------
# pallas_call builders
# ---------------------------------------------------------------------------
def _conv_pass(patches, weights, tile_m, *, with_stats, shared_patch=False):
    """patches: (n_ph, M_pad, K_pad) bf16  (or (M_pad, K_pad) if shared_patch)
       weights: (n_ph, K_pad, C_pad) bf16
       Returns raw (n_ph, M_pad, C_pad) f32 [, stats (n_ph, n_mt, 2, C_pad)]."""
    n_ph, k_pad, c_pad = weights.shape
    m_pad = patches.shape[-2]
    n_mt = m_pad // tile_m

    if shared_patch:
        p_spec = pl.BlockSpec((tile_m, k_pad), lambda ph, m: (m, 0))
    else:
        p_spec = pl.BlockSpec((None, tile_m, k_pad), lambda ph, m: (ph, m, 0))
    # Weight block index is constant across the M axis -> VMEM resident.
    w_spec = pl.BlockSpec((None, k_pad, c_pad), lambda ph, m: (ph, 0, 0))
    raw_spec = pl.BlockSpec((None, tile_m, c_pad), lambda ph, m: (ph, m, 0))

    if with_stats:
        out_specs = (raw_spec,
                     pl.BlockSpec((None, None, 2, c_pad),
                                  lambda ph, m: (ph, m, 0, 0)))
        out_shape = (jax.ShapeDtypeStruct((n_ph, m_pad, c_pad), jnp.float32),
                     jax.ShapeDtypeStruct((n_ph, n_mt, 2, c_pad), jnp.float32))
        kernel = conv_stats_kernel
    else:
        out_specs = raw_spec
        out_shape = jax.ShapeDtypeStruct((n_ph, m_pad, c_pad), jnp.float32)
        kernel = conv_tanh_kernel

    return pl.pallas_call(
        kernel,
        grid=(n_ph, n_mt),
        in_specs=[p_spec, w_spec],
        out_specs=out_specs,
        out_shape=out_shape,
        compiler_params=_compiler_params(),
    )(patches, weights)


def _bn_lrelu_apply(raw, mean, inv, tile_m):
    n_ph, m_pad, c_pad = raw.shape
    n_mt = m_pad // tile_m
    return pl.pallas_call(
        bn_lrelu_kernel,
        grid=(n_ph, n_mt),
        in_specs=[pl.BlockSpec((None, tile_m, c_pad), lambda ph, m: (ph, m, 0)),
                  pl.BlockSpec((1, c_pad), lambda ph, m: (0, 0)),
                  pl.BlockSpec((1, c_pad), lambda ph, m: (0, 0))],
        out_specs=pl.BlockSpec((None, tile_m, c_pad), lambda ph, m: (ph, m, 0)),
        out_shape=jax.ShapeDtypeStruct((n_ph, m_pad, c_pad), jnp.bfloat16),
        compiler_params=_compiler_params(),
    )(raw, mean.reshape(1, c_pad), inv.reshape(1, c_pad))


def _fc_embed(y1, y2, w1, w2):
    n = y1.shape[0]
    return pl.pallas_call(
        fc_embed_kernel,
        out_shape=jax.ShapeDtypeStruct((n, 256), jnp.bfloat16),
        in_specs=[_vmem()] * 4,
        out_specs=_vmem(),
    )(y1, y2, w1, w2)


# ---------------------------------------------------------------------------
# Layout glue (pure data movement, stays in XLA)
# ---------------------------------------------------------------------------
def _bn_stats(stats, count):
    s = jnp.sum(stats[:, :, 0, :], axis=(0, 1))
    ss = jnp.sum(stats[:, :, 1, :], axis=(0, 1))
    mean = s / count
    var = jnp.maximum(ss / count - mean * mean, 0.0)
    return mean, jax.lax.rsqrt(var + BN_EPS)


def _phase_patches(act):
    """act: (N,H,W,Cp) -> (4, N*H*W, 4*Cp). Phase order r*2+s, tap order dh*2+dw."""
    n, h, w, cp = act.shape
    xp = jnp.pad(act, ((0, 0), (1, 1), (1, 1), (0, 0)))
    phases = []
    for r in (0, 1):
        for s in (0, 1):
            taps = [xp[:, r + dh:r + dh + h, s + dw:s + dw + w, :]
                    for dh in (0, 1) for dw in (0, 1)]
            phases.append(jnp.concatenate(taps, axis=-1).reshape(n * h * w, 4 * cp))
    return jnp.stack(phases, axis=0)


def _interleave_phases(act, n, h, w):
    """act: (4, N*H*W, C) phase-major -> (N, 2H, 2W, C)."""
    c = act.shape[-1]
    x = act.reshape(2, 2, n, h, w, c)
    x = jnp.transpose(x, (2, 3, 0, 4, 1, 5))
    return x.reshape(n, 2 * h, 2 * w, c)


# ---------------------------------------------------------------------------
# Layers
# ---------------------------------------------------------------------------
def _head_fc_deconv_bn(x_flat, y1, y2, prep):
    """FC embeds + concat + tconv1(4x4, stride1, pad0) + BN1 + LeakyReLU."""
    n = x_flat.shape[0]
    e = _fc_embed(y1.astype(jnp.bfloat16), y2.astype(jnp.bfloat16),
                  prep["fc1"], prep["fc2"])
    h = jnp.concatenate([x_flat.astype(jnp.bfloat16), e], axis=1)
    w16 = prep["tconv1"]                        # (16, K1_pad, C1_pad)
    k1p, c1p = w16.shape[1], w16.shape[2]
    m_pad, tile_m = _pad_rows(n)
    h = jnp.pad(h, ((0, m_pad - n), (0, k1p - h.shape[1])))
    raw, stats = _conv_pass(h, w16, tile_m, with_stats=True, shared_patch=True)
    mean, inv = _bn_stats(stats, 16.0 * n)      # BN over N*4*4 elements/channel
    act = _bn_lrelu_apply(raw, mean, inv, tile_m)[:, :n, :]
    return jnp.transpose(act, (1, 0, 2)).reshape(n, 4, 4, c1p)


def _deconv_bn_lrelu(act, w_ph):
    """ConvTranspose2d(k=4,s=2,p=1) + BN(train) + LeakyReLU via 4 phase convs."""
    n, h, w, _ = act.shape
    m = n * h * w
    m_pad, tile_m = _pad_rows(m)
    patches = _phase_patches(act)
    patches = jnp.pad(patches, ((0, 0), (0, m_pad - m), (0, 0)))
    raw, stats = _conv_pass(patches, w_ph, tile_m, with_stats=True)
    mean, inv = _bn_stats(stats, 4.0 * m)       # N*(2H)*(2W) elements/channel
    out = _bn_lrelu_apply(raw, mean, inv, tile_m)[:, :m, :]
    return _interleave_phases(out, n, h, w)


def _deconv_tanh(act, w_ph, nc):
    n, h, w, _ = act.shape
    m = n * h * w
    m_pad, tile_m = _pad_rows(m)
    patches = _phase_patches(act)
    patches = jnp.pad(patches, ((0, 0), (0, m_pad - m), (0, 0)))
    out = _conv_pass(patches, w_ph, tile_m, with_stats=False)
    out = _interleave_phases(out[:, :m, :nc], n, h, w)
    return jnp.transpose(out, (0, 3, 1, 2))     # NCHW


def generator_forward(prep, x, y1, y2, *, nc):
    n = x.shape[0]
    act = _head_fc_deconv_bn(x.reshape(n, -1), y1.reshape(n, -1),
                             y2.reshape(n, -1), prep)          # (N,4,4,·)
    act = _deconv_bn_lrelu(act, prep["tconv2"])                # -> 8x8
    act = _deconv_bn_lrelu(act, prep["tconv3"])                # -> 16x16
    act = _deconv_bn_lrelu(act, prep["tconv4"])                # -> 32x32
    return _deconv_tanh(act, prep["tconv5"], nc)               # -> (N,nc,64,64)


# ---------------------------------------------------------------------------
# Parameters (PyTorch layout) + one-time prep into MXU-friendly bf16 matrices
# ---------------------------------------------------------------------------
def init_params(key, embedding_size, nz, ngf, nc):
    keys = jax.random.split(key, 7)

    def rnd(k, shape):
        return jax.random.normal(k, shape, jnp.float32) * 0.05

    return {
        "fc1": rnd(keys[0], (128, embedding_size)),            # nn.Linear (out,in)
        "fc2": rnd(keys[1], (128, embedding_size)),
        "tconv1": rnd(keys[2], (nz + 256, ngf * 8, 4, 4)),     # (Cin,Cout,kH,kW)
        "tconv2": rnd(keys[3], (ngf * 8, ngf * 4, 4, 4)),
        "tconv3": rnd(keys[4], (ngf * 4, ngf * 2, 4, 4)),
        "tconv4": rnd(keys[5], (ngf * 2, ngf, 4, 4)),
        "tconv5": rnd(keys[6], (ngf, nc, 4, 4)),
    }


def _tconv1_matrix(w, cin_pad, cout_pad):
    cin, cout = w.shape[0], w.shape[1]
    pos = []
    for kh in range(4):
        for kw in range(4):
            blk = jnp.pad(w[:, :, kh, kw],
                          ((0, cin_pad - cin), (0, cout_pad - cout)))
            pos.append(blk)
    return jnp.stack(pos, axis=0).astype(jnp.bfloat16)         # (16, Kp, Cp)


def _phase_matrix(w, cin_pad, cout_pad):
    """Sub-pixel 2x2 phase kernels of a 4x4 stride-2 pad-1 ConvTranspose2d."""
    cin, cout = w.shape[0], w.shape[1]
    phases = []
    for r in (0, 1):
        for s in (0, 1):
            blocks = []
            for dh in (0, 1):
                for dw in (0, 1):
                    blk = w[:, :, 3 - r - 2 * dh, 3 - s - 2 * dw]
                    blocks.append(jnp.pad(blk, ((0, cin_pad - cin),
                                                (0, cout_pad - cout))))
            phases.append(jnp.concatenate(blocks, axis=0))
    return jnp.stack(phases, axis=0).astype(jnp.bfloat16)      # (4, 4*Kp, Cp)


def prepare_params(params, *, nz, ngf, nc):
    c1 = _round_up(ngf * 8, LANE)
    c2 = _round_up(ngf * 4, LANE)
    c3 = _round_up(ngf * 2, LANE)
    c4 = _round_up(ngf, LANE)
    c5 = _round_up(nc, LANE)
    k1 = _round_up(nz + 256, LANE)
    return {
        "fc1": params["fc1"].T.astype(jnp.bfloat16),           # (E, 128)
        "fc2": params["fc2"].T.astype(jnp.bfloat16),
        "tconv1": _tconv1_matrix(params["tconv1"], k1, c1),
        "tconv2": _phase_matrix(params["tconv2"], c1, c2),
        "tconv3": _phase_matrix(params["tconv3"], c2, c3),
        "tconv4": _phase_matrix(params["tconv4"], c3, c4),
        "tconv5": _phase_matrix(params["tconv5"], c4, c5),
    }


if __name__ == "__main__":
    batch, embedding_size, nz, ngf, nc = 2, 8, 16, 8, 3

    key = jax.random.PRNGKey(0)
    k_p, k_x, k_y1, k_y2 = jax.random.split(key, 4)

    params = init_params(k_p, embedding_size, nz, ngf, nc)
    prep = prepare_params(params, nz=nz, ngf=ngf, nc=nc)   # hoisted weight prep

    x = jax.random.normal(k_x, (batch, nz, 1, 1), jnp.float32)
    y1 = jax.random.normal(k_y1, (batch, embedding_size, 1, 1), jnp.float32)
    y2 = jax.random.normal(k_y2, (batch, embedding_size, 1, 1), jnp.float32)

    fwd = jax.jit(functools.partial(generator_forward, nc=nc))
    out = fwd(prep, x, y1, y2)
    jax.block_until_ready(out)

    assert out.shape == (batch, nc, 64, 64), out.shape
    assert bool(jnp.all(jnp.isfinite(out)))
    print("KERNEL_OK")
</pallas_src>

<mosaic_0001>
module attributes {stable_mosaic.version = 11 : i64} {
  func.func @fc_embed_kernel(%arg0: memref<2x8xbf16, #tpu.memory_space<vmem>>, %arg1: memref<2x8xbf16, #tpu.memory_space<vmem>>, %arg2: memref<8x128xbf16, #tpu.memory_space<vmem>>, %arg3: memref<8x128xbf16, #tpu.memory_space<vmem>>, %arg4: memref<2x256xbf16, #tpu.memory_space<vmem>>) attributes {dimension_semantics = [], scalar_prefetch = 0 : i64, scratch_operands = 0 : i64, tpu.core_type = #tpu.core_type<tc>} {
    %c0 = arith.constant 0 : index
    %c0_0 = arith.constant 0 : index
    %0 = vector.load %arg0[%c0, %c0_0] : memref<2x8xbf16, #tpu.memory_space<vmem>>, vector<2x8xbf16>
    %c0_1 = arith.constant 0 : index
    %c0_2 = arith.constant 0 : index
    %1 = vector.load %arg2[%c0_1, %c0_2] : memref<8x128xbf16, #tpu.memory_space<vmem>>, vector<8x128xbf16>
    %cst = arith.constant dense<0.000000e+00> : vector<2x128xf32>
    %2 = tpu.matmul %0, %1, %cst {dimension_numbers = #tpu.dot_dimension_numbers<[1], [0], [0], [1], [0, 0, 1, 1], [], []>} : vector<2x8xbf16>, vector<8x128xbf16>, vector<2x128xf32> -> vector<2x128xf32>
    %c0_3 = arith.constant 0 : index
    %c0_4 = arith.constant 0 : index
    %3 = vector.load %arg1[%c0_3, %c0_4] : memref<2x8xbf16, #tpu.memory_space<vmem>>, vector<2x8xbf16>
    %c0_5 = arith.constant 0 : index
    %c0_6 = arith.constant 0 : index
    %4 = vector.load %arg3[%c0_5, %c0_6] : memref<8x128xbf16, #tpu.memory_space<vmem>>, vector<8x128xbf16>
    %cst_7 = arith.constant dense<0.000000e+00> : vector<2x128xf32>
    %5 = tpu.matmul %3, %4, %cst_7 {dimension_numbers = #tpu.dot_dimension_numbers<[1], [0], [0], [1], [0, 0, 1, 1], [], []>} : vector<2x8xbf16>, vector<8x128xbf16>, vector<2x128xf32> -> vector<2x128xf32>
    %cst_8 = arith.constant 0.000000e+00 : f32
    %6 = vector.broadcast %cst_8 : f32 to vector<2x128xf32>
    %7 = arith.cmpf ogt, %2, %6 : vector<2x128xf32>
    %cst_9 = arith.constant 2.000000e-01 : f32
    %8 = vector.broadcast %cst_9 : f32 to vector<2x128xf32>
    %9 = arith.mulf %8, %2 : vector<2x128xf32>
    %10 = arith.select %7, %2, %9 : vector<2x128xi1>, vector<2x128xf32>
    %cst_10 = arith.constant 0.000000e+00 : f32
    %11 = vector.broadcast %cst_10 : f32 to vector<2x128xf32>
    %12 = arith.cmpf ogt, %5, %11 : vector<2x128xf32>
    %cst_11 = arith.constant 2.000000e-01 : f32
    %13 = vector.broadcast %cst_11 : f32 to vector<2x128xf32>
    %14 = arith.mulf %13, %5 : vector<2x128xf32>
    %15 = arith.select %12, %5, %14 : vector<2x128xi1>, vector<2x128xf32>
    %16 = tpu.concatenate %10, %15 in 1 : vector<2x128xf32>, vector<2x128xf32> -> vector<2x256xf32>
    %17 = arith.truncf %16 : vector<2x256xf32> to vector<2x256xbf16>
    %c0_12 = arith.constant 0 : index
    %c0_13 = arith.constant 0 : index
    %18 = vector.load %arg4[%c0_12, %c0_13] : memref<2x256xbf16, #tpu.memory_space<vmem>>, vector<2x256xbf16>
    tpu.vector_store %arg4[%c0_12, %c0_13], %17 {strides = array<i32>} : memref<2x256xbf16, #tpu.memory_space<vmem>>, vector<2x256xbf16>,
    return
  }
}

module attributes {stable_mosaic.version = 11 : i64} {
  func.func @conv_stats_kernel(%arg0: i32, %arg1: i32, %arg2: memref<8x384xbf16, #tpu.memory_space<vmem>>, %arg3: memref<1x384x128xbf16, #tpu.memory_space<vmem>>, %arg4: memref<1x8x128xf32, #tpu.memory_space<vmem>>, %arg5: memref<1x1x2x128xf32, #tpu.memory_space<vmem>>) attributes {dimension_semantics = [#tpu.dimension_semantics<parallel>, #tpu.dimension_semantics<parallel>], iteration_bounds = array<i64: 16, 1>, scalar_prefetch = 0 : i64, scratch_operands = 0 : i64, tpu.core_type = #tpu.core_type<tc>, window_params = [{transform_indices = @transform_0, window_bounds = array<i64: 8, 384>}, {transform_indices = @transform_1, window_bounds = array<i64: 1, 384, 128>}, {transform_indices = @transform_2, window_bounds = array<i64: 1, 8, 128>}, {transform_indices = @transform_3, window_bounds = array<i64: 1, 1, 2, 128>}]} {
    %c0 = arith.constant 0 : index
    %c0_0 = arith.constant 0 : index
    %0 = vector.load %arg2[%c0, %c0_0] : memref<8x384xbf16, #tpu.memory_space<vmem>>, vector<8x384xbf16>
    %c0_1 = arith.constant 0 : index
    %c0_2 = arith.constant 0 : index
    %c0_3 = arith.constant 0 : index
    %1 = vector.load %arg3[%c0_1, %c0_2, %c0_3] : memref<1x384x128xbf16, #tpu.memory_space<vmem>>, vector<1x384x128xbf16>
    %2 = vector.shape_cast %1 : vector<1x384x128xbf16> to vector<384x128xbf16>
    %cst = arith.constant dense<0.000000e+00> : vector<8x128xf32>
    %3 = tpu.matmul %0, %2, %cst {dimension_numbers = #tpu.dot_dimension_numbers<[1], [0], [0], [1], [0, 0, 1, 1], [], []>} : vector<8x384xbf16>, vector<384x128xbf16>, vector<8x128xf32> -> vector<8x128xf32>
    %c0_4 = arith.constant 0 : index
    %c0_5 = arith.constant 0 : index
    %c0_6 = arith.constant 0 : index
    %4 = vector.load %arg4[%c0_4, %c0_5, %c0_6] : memref<1x8x128xf32, #tpu.memory_space<vmem>>, vector<1x8x128xf32>
    %5 = vector.shape_cast %4 : vector<1x8x128xf32> to vector<8x128xf32>
    %6 = vector.shape_cast %3 : vector<8x128xf32> to vector<1x8x128xf32>
    tpu.vector_store %arg4[%c0_4, %c0_5, %c0_6], %6 {strides = array<i32>} : memref<1x8x128xf32, #tpu.memory_space<vmem>>, vector<1x8x128xf32>,
    %cst_7 = arith.constant dense<0.000000e+00> : vector<128xf32>
    %7 = vector.multi_reduction <add>, %3, %cst_7 [0] : vector<8x128xf32> to vector<128xf32>
    %8 = vector.shape_cast %7 : vector<128xf32> to vector<1x128xf32>
    %9 = arith.mulf %3, %3 : vector<8x128xf32>
    %cst_8 = arith.constant dense<0.000000e+00> : vector<128xf32>
    %10 = vector.multi_reduction <add>, %9, %cst_8 [0] : vector<8x128xf32> to vector<128xf32>
    %11 = vector.shape_cast %10 : vector<128xf32> to vector<1x128xf32>
    %12 = tpu.concatenate %8, %11 in 0 : vector<1x128xf32>, vector<1x128xf32> -> vector<2x128xf32>
    %c0_9 = arith.constant 0 : index
    %c0_10 = arith.constant 0 : index
    %c0_11 = arith.constant 0 : index
    %c0_12 = arith.constant 0 : index
    %13 = vector.load %arg5[%c0_9, %c0_10, %c0_11, %c0_12] : memref<1x1x2x128xf32, #tpu.memory_space<vmem>>, vector<1x1x2x128xf32>
    %14 = vector.shape_cast %13 : vector<1x1x2x128xf32> to vector<2x128xf32>
    %15 = vector.shape_cast %12 : vector<2x128xf32> to vector<1x1x2x128xf32>
    tpu.vector_store %arg5[%c0_9, %c0_10, %c0_11, %c0_12], %15 {strides = array<i32>} : memref<1x1x2x128xf32, #tpu.memory_space<vmem>>, vector<1x1x2x128xf32>,
    return
  }
  func.func @transform_0(%arg0: i32, %arg1: i32) -> (i32, i32) {
    %c0_i32 = arith.constant 0 : i32
    %c0_i32_0 = arith.constant 0 : i32
    return %arg1, %c0_i32 : i32, i32
  }
  func.func @transform_1(%arg0: i32, %arg1: i32) -> (i32, i32, i32) {
    %c0_i32 = arith.constant 0 : i32
    %c0_i32_0 = arith.constant 0 : i32
    %c0_i32_1 = arith.constant 0 : i32
    return %arg0, %c0_i32, %c0_i32_0 : i32, i32, i32
  }
  func.func @transform_2(%arg0: i32, %arg1: i32) -> (i32, i32, i32) {
    %c0_i32 = arith.constant 0 : i32
    %c0_i32_0 = arith.constant 0 : i32
    return %arg0, %arg1, %c0_i32 : i32, i32, i32
  }
  func.func @transform_3(%arg0: i32, %arg1: i32) -> (i32, i32, i32, i32) {
    %c0_i32 = arith.constant 0 : i32
    %c0_i32_0 = arith.constant 0 : i32
    %c0_i32_1 = arith.constant 0 : i32
    return %arg0, %arg1, %c0_i32, %c0_i32_0 : i32, i32, i32, i32
  }
}

module attributes {stable_mosaic.version = 11 : i64} {
  func.func @bn_lrelu_kernel(%arg0: i32, %arg1: i32, %arg2: memref<1x8x128xf32, #tpu.memory_space<vmem>>, %arg3: memref<1x128xf32, #tpu.memory_space<vmem>>, %arg4: memref<1x128xf32, #tpu.memory_space<vmem>>, %arg5: memref<1x8x128xbf16, #tpu.memory_space<vmem>>) attributes {dimension_semantics = [#tpu.dimension_semantics<parallel>, #tpu.dimension_semantics<parallel>], iteration_bounds = array<i64: 16, 1>, scalar_prefetch = 0 : i64, scratch_operands = 0 : i64, tpu.core_type = #tpu.core_type<tc>, window_params = [{transform_indices = @transform_0, window_bounds = array<i64: 1, 8, 128>}, {pipeline_mode = #tpu.pipeline_mode<synchronous>, transform_indices = @transform_1, window_bounds = array<i64: 1, 128>}, {pipeline_mode = #tpu.pipeline_mode<synchronous>, transform_indices = @transform_2, window_bounds = array<i64: 1, 128>}, {transform_indices = @transform_3, window_bounds = array<i64: 1, 8, 128>}]} {
    %c0 = arith.constant 0 : index
    %c0_0 = arith.constant 0 : index
    %c0_1 = arith.constant 0 : index
    %0 = vector.load %arg2[%c0, %c0_0, %c0_1] : memref<1x8x128xf32, #tpu.memory_space<vmem>>, vector<1x8x128xf32>
    %1 = vector.shape_cast %0 : vector<1x8x128xf32> to vector<8x128xf32>
    %c0_2 = arith.constant 0 : index
    %c0_3 = arith.constant 0 : index
    %2 = vector.load %arg3[%c0_2, %c0_3] : memref<1x128xf32, #tpu.memory_space<vmem>>, vector<1x128xf32>
    %3 = vector.broadcast %2 : vector<1x128xf32> to vector<8x128xf32>
    %4 = arith.subf %1, %3 : vector<8x128xf32>
    %c0_4 = arith.constant 0 : index
    %c0_5 = arith.constant 0 : index
    %5 = vector.load %arg4[%c0_4, %c0_5] : memref<1x128xf32, #tpu.memory_space<vmem>>, vector<1x128xf32>
    %6 = vector.broadcast %5 : vector<1x128xf32> to vector<8x128xf32>
    %7 = arith.mulf %4, %6 : vector<8x128xf32>
    %cst = arith.constant 0.000000e+00 : f32
    %8 = vector.broadcast %cst : f32 to vector<8x128xf32>
    %9 = arith.cmpf ogt, %7, %8 : vector<8x128xf32>
    %cst_6 = arith.constant 2.000000e-01 : f32
    %10 = vector.broadcast %cst_6 : f32 to vector<8x128xf32>
    %11 = arith.mulf %10, %7 : vector<8x128xf32>
    %12 = arith.select %9, %7, %11 : vector<8x128xi1>, vector<8x128xf32>
    %13 = arith.truncf %12 : vector<8x128xf32> to vector<8x128xbf16>
    %c0_7 = arith.constant 0 : index
    %c0_8 = arith.constant 0 : index
    %c0_9 = arith.constant 0 : index
    %14 = vector.load %arg5[%c0_7, %c0_8, %c0_9] : memref<1x8x128xbf16, #tpu.memory_space<vmem>>, vector<1x8x128xbf16>
    %15 = vector.shape_cast %14 : vector<1x8x128xbf16> to vector<8x128xbf16>
    %16 = vector.shape_cast %13 : vector<8x128xbf16> to vector<1x8x128xbf16>
    tpu.vector_store %arg5[%c0_7, %c0_8, %c0_9], %16 {strides = array<i32>} : memref<1x8x128xbf16, #tpu.memory_space<vmem>>, vector<1x8x128xbf16>,
    return
  }
  func.func @transform_0(%arg0: i32, %arg1: i32) -> (i32, i32, i32) {
    %c0_i32 = arith.constant 0 : i32
    %c0_i32_0 = arith.constant 0 : i32
    return %arg0, %arg1, %c0_i32 : i32, i32, i32
  }
  func.func @transform_1(%arg0: i32, %arg1: i32) -> (i32, i32) {
    %c0_i32 = arith.constant 0 : i32
    %c0_i32_0 = arith.constant 0 : i32
    %c0_i32_1 = arith.constant 0 : i32
    return %c0_i32, %c0_i32_0 : i32, i32
  }
  func.func @transform_2(%arg0: i32, %arg1: i32) -> (i32, i32) {
    %c0_i32 = arith.constant 0 : i32
    %c0_i32_0 = arith.constant 0 : i32
    %c0_i32_1 = arith.constant 0 : i32
    return %c0_i32, %c0_i32_0 : i32, i32
  }
  func.func @transform_3(%arg0: i32, %arg1: i32) -> (i32, i32, i32) {
    %c0_i32 = arith.constant 0 : i32
    %c0_i32_0 = arith.constant 0 : i32
    return %arg0, %arg1, %c0_i32 : i32, i32, i32
  }
}

module attributes {stable_mosaic.version = 11 : i64} {
  func.func @conv_stats_kernel(%arg0: i32, %arg1: i32, %arg2: memref<1x32x512xbf16, #tpu.memory_space<vmem>>, %arg3: memref<1x512x128xbf16, #tpu.memory_space<vmem>>, %arg4: memref<1x32x128xf32, #tpu.memory_space<vmem>>, %arg5: memref<1x1x2x128xf32, #tpu.memory_space<vmem>>) attributes {dimension_semantics = [#tpu.dimension_semantics<parallel>, #tpu.dimension_semantics<parallel>], iteration_bounds = array<i64: 4, 1>, scalar_prefetch = 0 : i64, scratch_operands = 0 : i64, tpu.core_type = #tpu.core_type<tc>, window_params = [{transform_indices = @transform_0, window_bounds = array<i64: 1, 32, 512>}, {transform_indices = @transform_1, window_bounds = array<i64: 1, 512, 128>}, {transform_indices = @transform_2, window_bounds = array<i64: 1, 32, 128>}, {transform_indices = @transform_3, window_bounds = array<i64: 1, 1, 2, 128>}]} {
    %c0 = arith.constant 0 : index
    %c0_0 = arith.constant 0 : index
    %c0_1 = arith.constant 0 : index
    %0 = vector.load %arg2[%c0, %c0_0, %c0_1] : memref<1x32x512xbf16, #tpu.memory_space<vmem>>, vector<1x32x512xbf16>
    %1 = vector.shape_cast %0 : vector<1x32x512xbf16> to vector<32x512xbf16>
    %c0_2 = arith.constant 0 : index
    %c0_3 = arith.constant 0 : index
    %c0_4 = arith.constant 0 : index
    %2 = vector.load %arg3[%c0_2, %c0_3, %c0_4] : memref<1x512x128xbf16, #tpu.memory_space<vmem>>, vector<1x512x128xbf16>
    %3 = vector.shape_cast %2 : vector<1x512x128xbf16> to vector<512x128xbf16>
    %cst = arith.constant dense<0.000000e+00> : vector<32x128xf32>
    %4 = tpu.matmul %1, %3, %cst {dimension_numbers = #tpu.dot_dimension_numbers<[1], [0], [0], [1], [0, 0, 1, 1], [], []>} : vector<32x512xbf16>, vector<512x128xbf16>, vector<32x128xf32> -> vector<32x128xf32>
    %c0_5 = arith.constant 0 : index
    %c0_6 = arith.constant 0 : index
    %c0_7 = arith.constant 0 : index
    %5 = vector.load %arg4[%c0_5, %c0_6, %c0_7] : memref<1x32x128xf32, #tpu.memory_space<vmem>>, vector<1x32x128xf32>
    %6 = vector.shape_cast %5 : vector<1x32x128xf32> to vector<32x128xf32>
    %7 = vector.shape_cast %4 : vector<32x128xf32> to vector<1x32x128xf32>
    tpu.vector_store %arg4[%c0_5, %c0_6, %c0_7], %7 {strides = array<i32>} : memref<1x32x128xf32, #tpu.memory_space<vmem>>, vector<1x32x128xf32>,
    %cst_8 = arith.constant dense<0.000000e+00> : vector<128xf32>
    %8 = vector.multi_reduction <add>, %4, %cst_8 [0] : vector<32x128xf32> to vector<128xf32>
    %9 = vector.shape_cast %8 : vector<128xf32> to vector<1x128xf32>
    %10 = arith.mulf %4, %4 : vector<32x128xf32>
    %cst_9 = arith.constant dense<0.000000e+00> : vector<128xf32>
    %11 = vector.multi_reduction <add>, %10, %cst_9 [0] : vector<32x128xf32> to vector<128xf32>
    %12 = vector.shape_cast %11 : vector<128xf32> to vector<1x128xf32>
    %13 = tpu.concatenate %9, %12 in 0 : vector<1x128xf32>, vector<1x128xf32> -> vector<2x128xf32>
    %c0_10 = arith.constant 0 : index
    %c0_11 = arith.constant 0 : index
    %c0_12 = arith.constant 0 : index
    %c0_13 = arith.constant 0 : index
    %14 = vector.load %arg5[%c0_10, %c0_11, %c0_12, %c0_13] : memref<1x1x2x128xf32, #tpu.memory_space<vmem>>, vector<1x1x2x128xf32>
    %15 = vector.shape_cast %14 : vector<1x1x2x128xf32> to vector<2x128xf32>
    %16 = vector.shape_cast %13 : vector<2x128xf32> to vector<1x1x2x128xf32>
    tpu.vector_store %arg5[%c0_10, %c0_11, %c0_12, %c0_13], %16 {strides = array<i32>} : memref<1x1x2x128xf32, #tpu.memory_space<vmem>>, vector<1x1x2x128xf32>,
    return
  }
  func.func @transform_0(%arg0: i32, %arg1: i32) -> (i32, i32, i32) {
    %c0_i32 = arith.constant 0 : i32
    %c0_i32_0 = arith.constant 0 : i32
    return %arg0, %arg1, %c0_i32 : i32, i32, i32
  }
  func.func @transform_1(%arg0: i32, %arg1: i32) -> (i32, i32, i32) {
    %c0_i32 = arith.constant 0 : i32
    %c0_i32_0 = arith.constant 0 : i32
    %c0_i32_1 = arith.constant 0 : i32
    return %arg0, %c0_i32, %c0_i32_0 : i32, i32, i32
  }
  func.func @transform_2(%arg0: i32, %arg1: i32) -> (i32, i32, i32) {
    %c0_i32 = arith.constant 0 : i32
    %c0_i32_0 = arith.constant 0 : i32
    return %arg0, %arg1, %c0_i32 : i32, i32, i32
  }
  func.func @transform_3(%arg0: i32, %arg1: i32) -> (i32, i32, i32, i32) {
    %c0_i32 = arith.constant 0 : i32
    %c0_i32_0 = arith.constant 0 : i32
    %c0_i32_1 = arith.constant 0 : i32
    return %arg0, %arg1, %c0_i32, %c0_i32_0 : i32, i32, i32, i32
  }
}

module attributes {stable_mosaic.version = 11 : i64} {
  func.func @bn_lrelu_kernel(%arg0: i32, %arg1: i32, %arg2: memref<1x32x128xf32, #tpu.memory_space<vmem>>, %arg3: memref<1x128xf32, #tpu.memory_space<vmem>>, %arg4: memref<1x128xf32, #tpu.memory_space<vmem>>, %arg5: memref<1x32x128xbf16, #tpu.memory_space<vmem>>) attributes {dimension_semantics = [#tpu.dimension_semantics<parallel>, #tpu.dimension_semantics<parallel>], iteration_bounds = array<i64: 4, 1>, scalar_prefetch = 0 : i64, scratch_operands = 0 : i64, tpu.core_type = #tpu.core_type<tc>, window_params = [{transform_indices = @transform_0, window_bounds = array<i64: 1, 32, 128>}, {pipeline_mode = #tpu.pipeline_mode<synchronous>, transform_indices = @transform_1, window_bounds = array<i64: 1, 128>}, {pipeline_mode = #tpu.pipeline_mode<synchronous>, transform_indices = @transform_2, window_bounds = array<i64: 1, 128>}, {transform_indices = @transform_3, window_bounds = array<i64: 1, 32, 128>}]} {
    %c0 = arith.constant 0 : index
    %c0_0 = arith.constant 0 : index
    %c0_1 = arith.constant 0 : index
    %0 = vector.load %arg2[%c0, %c0_0, %c0_1] : memref<1x32x128xf32, #tpu.memory_space<vmem>>, vector<1x32x128xf32>
    %1 = vector.shape_cast %0 : vector<1x32x128xf32> to vector<32x128xf32>
    %c0_2 = arith.constant 0 : index
    %c0_3 = arith.constant 0 : index
    %2 = vector.load %arg3[%c0_2, %c0_3] : memref<1x128xf32, #tpu.memory_space<vmem>>, vector<1x128xf32>
    %3 = vector.broadcast %2 : vector<1x128xf32> to vector<32x128xf32>
    %4 = arith.subf %1, %3 : vector<32x128xf32>
    %c0_4 = arith.constant 0 : index
    %c0_5 = arith.constant 0 : index
    %5 = vector.load %arg4[%c0_4, %c0_5] : memref<1x128xf32, #tpu.memory_space<vmem>>, vector<1x128xf32>
    %6 = vector.broadcast %5 : vector<1x128xf32> to vector<32x128xf32>
    %7 = arith.mulf %4, %6 : vector<32x128xf32>
    %cst = arith.constant 0.000000e+00 : f32
    %8 = vector.broadcast %cst : f32 to vector<32x128xf32>
    %9 = arith.cmpf ogt, %7, %8 : vector<32x128xf32>
    %cst_6 = arith.constant 2.000000e-01 : f32
    %10 = vector.broadcast %cst_6 : f32 to vector<32x128xf32>
    %11 = arith.mulf %10, %7 : vector<32x128xf32>
    %12 = arith.select %9, %7, %11 : vector<32x128xi1>, vector<32x128xf32>
    %13 = arith.truncf %12 : vector<32x128xf32> to vector<32x128xbf16>
    %c0_7 = arith.constant 0 : index
    %c0_8 = arith.constant 0 : index
    %c0_9 = arith.constant 0 : index
    %14 = vector.load %arg5[%c0_7, %c0_8, %c0_9] : memref<1x32x128xbf16, #tpu.memory_space<vmem>>, vector<1x32x128xbf16>
    %15 = vector.shape_cast %14 : vector<1x32x128xbf16> to vector<32x128xbf16>
    %16 = vector.shape_cast %13 : vector<32x128xbf16> to vector<1x32x128xbf16>
    tpu.vector_store %arg5[%c0_7, %c0_8, %c0_9], %16 {strides = array<i32>} : memref<1x32x128xbf16, #tpu.memory_space<vmem>>, vector<1x32x128xbf16>,
    return
  }
  func.func @transform_0(%arg0: i32, %arg1: i32) -> (i32, i32, i32) {
    %c0_i32 = arith.constant 0 : i32
    %c0_i32_0 = arith.constant 0 : i32
    return %arg0, %arg1, %c0_i32 : i32, i32, i32
  }
  func.func @transform_1(%arg0: i32, %arg1: i32) -> (i32, i32) {
    %c0_i32 = arith.constant 0 : i32
    %c0_i32_0 = arith.constant 0 : i32
    %c0_i32_1 = arith.constant 0 : i32
    return %c0_i32, %c0_i32_0 : i32, i32
  }
  func.func @transform_2(%arg0: i32, %arg1: i32) -> (i32, i32) {
    %c0_i32 = arith.constant 0 : i32
    %c0_i32_0 = arith.constant 0 : i32
    %c0_i32_1 = arith.constant 0 : i32
    return %c0_i32, %c0_i32_0 : i32, i32
  }
  func.func @transform_3(%arg0: i32, %arg1: i32) -> (i32, i32, i32) {
    %c0_i32 = arith.constant 0 : i32
    %c0_i32_0 = arith.constant 0 : i32
    return %arg0, %arg1, %c0_i32 : i32, i32, i32
  }
}

module attributes {stable_mosaic.version = 11 : i64} {
  func.func @conv_stats_kernel(%arg0: i32, %arg1: i32, %arg2: memref<1x128x512xbf16, #tpu.memory_space<vmem>>, %arg3: memref<1x512x128xbf16, #tpu.memory_space<vmem>>, %arg4: memref<1x128x128xf32, #tpu.memory_space<vmem>>, %arg5: memref<1x1x2x128xf32, #tpu.memory_space<vmem>>) attributes {dimension_semantics = [#tpu.dimension_semantics<parallel>, #tpu.dimension_semantics<parallel>], iteration_bounds = array<i64: 4, 1>, scalar_prefetch = 0 : i64, scratch_operands = 0 : i64, tpu.core_type = #tpu.core_type<tc>, window_params = [{transform_indices = @transform_0, window_bounds = array<i64: 1, 128, 512>}, {transform_indices = @transform_1, window_bounds = array<i64: 1, 512, 128>}, {transform_indices = @transform_2, window_bounds = array<i64: 1, 128, 128>}, {transform_indices = @transform_3, window_bounds = array<i64: 1, 1, 2, 128>}]} {
    %c0 = arith.constant 0 : index
    %c0_0 = arith.constant 0 : index
    %c0_1 = arith.constant 0 : index
    %0 = vector.load %arg2[%c0, %c0_0, %c0_1] : memref<1x128x512xbf16, #tpu.memory_space<vmem>>, vector<1x128x512xbf16>
    %1 = vector.shape_cast %0 : vector<1x128x512xbf16> to vector<128x512xbf16>
    %c0_2 = arith.constant 0 : index
    %c0_3 = arith.constant 0 : index
    %c0_4 = arith.constant 0 : index
    %2 = vector.load %arg3[%c0_2, %c0_3, %c0_4] : memref<1x512x128xbf16, #tpu.memory_space<vmem>>, vector<1x512x128xbf16>
    %3 = vector.shape_cast %2 : vector<1x512x128xbf16> to vector<512x128xbf16>
    %cst = arith.constant dense<0.000000e+00> : vector<128x128xf32>
    %4 = tpu.matmul %1, %3, %cst {dimension_numbers = #tpu.dot_dimension_numbers<[1], [0], [0], [1], [0, 0, 1, 1], [], []>} : vector<128x512xbf16>, vector<512x128xbf16>, vector<128x128xf32> -> vector<128x128xf32>
    %c0_5 = arith.constant 0 : index
    %c0_6 = arith.constant 0 : index
    %c0_7 = arith.constant 0 : index
    %5 = vector.load %arg4[%c0_5, %c0_6, %c0_7] : memref<1x128x128xf32, #tpu.memory_space<vmem>>, vector<1x128x128xf32>
    %6 = vector.shape_cast %5 : vector<1x128x128xf32> to vector<128x128xf32>
    %7 = vector.shape_cast %4 : vector<128x128xf32> to vector<1x128x128xf32>
    tpu.vector_store %arg4[%c0_5, %c0_6, %c0_7], %7 {strides = array<i32>} : memref<1x128x128xf32, #tpu.memory_space<vmem>>, vector<1x128x128xf32>,
    %cst_8 = arith.constant dense<0.000000e+00> : vector<128xf32>
    %8 = vector.multi_reduction <add>, %4, %cst_8 [0] : vector<128x128xf32> to vector<128xf32>
    %9 = vector.shape_cast %8 : vector<128xf32> to vector<1x128xf32>
    %10 = arith.mulf %4, %4 : vector<128x128xf32>
    %cst_9 = arith.constant dense<0.000000e+00> : vector<128xf32>
    %11 = vector.multi_reduction <add>, %10, %cst_9 [0] : vector<128x128xf32> to vector<128xf32>
    %12 = vector.shape_cast %11 : vector<128xf32> to vector<1x128xf32>
    %13 = tpu.concatenate %9, %12 in 0 : vector<1x128xf32>, vector<1x128xf32> -> vector<2x128xf32>
    %c0_10 = arith.constant 0 : index
    %c0_11 = arith.constant 0 : index
    %c0_12 = arith.constant 0 : index
    %c0_13 = arith.constant 0 : index
    %14 = vector.load %arg5[%c0_10, %c0_11, %c0_12, %c0_13] : memref<1x1x2x128xf32, #tpu.memory_space<vmem>>, vector<1x1x2x128xf32>
    %15 = vector.shape_cast %14 : vector<1x1x2x128xf32> to vector<2x128xf32>
    %16 = vector.shape_cast %13 : vector<2x128xf32> to vector<1x1x2x128xf32>
    tpu.vector_store %arg5[%c0_10, %c0_11, %c0_12, %c0_13], %16 {strides = array<i32>} : memref<1x1x2x128xf32, #tpu.memory_space<vmem>>, vector<1x1x2x128xf32>,
    return
  }
  func.func @transform_0(%arg0: i32, %arg1: i32) -> (i32, i32, i32) {
    %c0_i32 = arith.constant 0 : i32
    %c0_i32_0 = arith.constant 0 : i32
    return %arg0, %arg1, %c0_i32 : i32, i32, i32
  }
  func.func @transform_1(%arg0: i32, %arg1: i32) -> (i32, i32, i32) {
    %c0_i32 = arith.constant 0 : i32
    %c0_i32_0 = arith.constant 0 : i32
    %c0_i32_1 = arith.constant 0 : i32
    return %arg0, %c0_i32, %c0_i32_0 : i32, i32, i32
  }
  func.func @transform_2(%arg0: i32, %arg1: i32) -> (i32, i32, i32) {
    %c0_i32 = arith.constant 0 : i32
    %c0_i32_0 = arith.constant 0 : i32
    return %arg0, %arg1, %c0_i32 : i32, i32, i32
  }
  func.func @transform_3(%arg0: i32, %arg1: i32) -> (i32, i32, i32, i32) {
    %c0_i32 = arith.constant 0 : i32
    %c0_i32_0 = arith.constant 0 : i32
    %c0_i32_1 = arith.constant 0 : i32
    return %arg0, %arg1, %c0_i32, %c0_i32_0 : i32, i32, i32, i32
  }
}

module attributes {stable_mosaic.version = 11 : i64} {
  func.func @bn_lrelu_kernel(%arg0: i32, %arg1: i32, %arg2: memref<1x128x128xf32, #tpu.memory_space<vmem>>, %arg3: memref<1x128xf32, #tpu.memory_space<vmem>>, %arg4: memref<1x128xf32, #tpu.memory_space<vmem>>, %arg5: memref<1x128x128xbf16, #tpu.memory_space<vmem>>) attributes {dimension_semantics = [#tpu.dimension_semantics<parallel>, #tpu.dimension_semantics<parallel>], iteration_bounds = array<i64: 4, 1>, scalar_prefetch = 0 : i64, scratch_operands = 0 : i64, tpu.core_type = #tpu.core_type<tc>, window_params = [{transform_indices = @transform_0, window_bounds = array<i64: 1, 128, 128>}, {pipeline_mode = #tpu.pipeline_mode<synchronous>, transform_indices = @transform_1, window_bounds = array<i64: 1, 128>}, {pipeline_mode = #tpu.pipeline_mode<synchronous>, transform_indices = @transform_2, window_bounds = array<i64: 1, 128>}, {transform_indices = @transform_3, window_bounds = array<i64: 1, 128, 128>}]} {
    %c0 = arith.constant 0 : index
    %c0_0 = arith.constant 0 : index
    %c0_1 = arith.constant 0 : index
    %0 = vector.load %arg2[%c0, %c0_0, %c0_1] : memref<1x128x128xf32, #tpu.memory_space<vmem>>, vector<1x128x128xf32>
    %1 = vector.shape_cast %0 : vector<1x128x128xf32> to vector<128x128xf32>
    %c0_2 = arith.constant 0 : index
    %c0_3 = arith.constant 0 : index
    %2 = vector.load %arg3[%c0_2, %c0_3] : memref<1x128xf32, #tpu.memory_space<vmem>>, vector<1x128xf32>
    %3 = vector.broadcast %2 : vector<1x128xf32> to vector<128x128xf32>
    %4 = arith.subf %1, %3 : vector<128x128xf32>
    %c0_4 = arith.constant 0 : index
    %c0_5 = arith.constant 0 : index
    %5 = vector.load %arg4[%c0_4, %c0_5] : memref<1x128xf32, #tpu.memory_space<vmem>>, vector<1x128xf32>
    %6 = vector.broadcast %5 : vector<1x128xf32> to vector<128x128xf32>
    %7 = arith.mulf %4, %6 : vector<128x128xf32>
    %cst = arith.constant 0.000000e+00 : f32
    %8 = vector.broadcast %cst : f32 to vector<128x128xf32>
    %9 = arith.cmpf ogt, %7, %8 : vector<128x128xf32>
    %cst_6 = arith.constant 2.000000e-01 : f32
    %10 = vector.broadcast %cst_6 : f32 to vector<128x128xf32>
    %11 = arith.mulf %10, %7 : vector<128x128xf32>
    %12 = arith.select %9, %7, %11 : vector<128x128xi1>, vector<128x128xf32>
    %13 = arith.truncf %12 : vector<128x128xf32> to vector<128x128xbf16>
    %c0_7 = arith.constant 0 : index
    %c0_8 = arith.constant 0 : index
    %c0_9 = arith.constant 0 : index
    %14 = vector.load %arg5[%c0_7, %c0_8, %c0_9] : memref<1x128x128xbf16, #tpu.memory_space<vmem>>, vector<1x128x128xbf16>
    %15 = vector.shape_cast %14 : vector<1x128x128xbf16> to vector<128x128xbf16>
    %16 = vector.shape_cast %13 : vector<128x128xbf16> to vector<1x128x128xbf16>
    tpu.vector_store %arg5[%c0_7, %c0_8, %c0_9], %16 {strides = array<i32>} : memref<1x128x128xbf16, #tpu.memory_space<vmem>>, vector<1x128x128xbf16>,
    return
  }
  func.func @transform_0(%arg0: i32, %arg1: i32) -> (i32, i32, i32) {
    %c0_i32 = arith.constant 0 : i32
    %c0_i32_0 = arith.constant 0 : i32
    return %arg0, %arg1, %c0_i32 : i32, i32, i32
  }
  func.func @transform_1(%arg0: i32, %arg1: i32) -> (i32, i32) {
    %c0_i32 = arith.constant 0 : i32
    %c0_i32_0 = arith.constant 0 : i32
    %c0_i32_1 = arith.constant 0 : i32
    return %c0_i32, %c0_i32_0 : i32, i32
  }
  func.func @transform_2(%arg0: i32, %arg1: i32) -> (i32, i32) {
    %c0_i32 = arith.constant 0 : i32
    %c0_i32_0 = arith.constant 0 : i32
    %c0_i32_1 = arith.constant 0 : i32
    return %c0_i32, %c0_i32_0 : i32, i32
  }
  func.func @transform_3(%arg0: i32, %arg1: i32) -> (i32, i32, i32) {
    %c0_i32 = arith.constant 0 : i32
    %c0_i32_0 = arith.constant 0 : i32
    return %arg0, %arg1, %c0_i32 : i32, i32, i32
  }
}

module attributes {stable_mosaic.version = 11 : i64} {
  func.func @conv_stats_kernel(%arg0: i32, %arg1: i32, %arg2: memref<1x512x512xbf16, #tpu.memory_space<vmem>>, %arg3: memref<1x512x128xbf16, #tpu.memory_space<vmem>>, %arg4: memref<1x512x128xf32, #tpu.memory_space<vmem>>, %arg5: memref<1x1x2x128xf32, #tpu.memory_space<vmem>>) attributes {dimension_semantics = [#tpu.dimension_semantics<parallel>, #tpu.dimension_semantics<parallel>], iteration_bounds = array<i64: 4, 1>, scalar_prefetch = 0 : i64, scratch_operands = 0 : i64, tpu.core_type = #tpu.core_type<tc>, window_params = [{transform_indices = @transform_0, window_bounds = array<i64: 1, 512, 512>}, {transform_indices = @transform_1, window_bounds = array<i64: 1, 512, 128>}, {transform_indices = @transform_2, window_bounds = array<i64: 1, 512, 128>}, {transform_indices = @transform_3, window_bounds = array<i64: 1, 1, 2, 128>}]} {
    %c0 = arith.constant 0 : index
    %c0_0 = arith.constant 0 : index
    %c0_1 = arith.constant 0 : index
    %0 = vector.load %arg2[%c0, %c0_0, %c0_1] : memref<1x512x512xbf16, #tpu.memory_space<vmem>>, vector<1x512x512xbf16>
    %1 = vector.shape_cast %0 : vector<1x512x512xbf16> to vector<512x512xbf16>
    %c0_2 = arith.constant 0 : index
    %c0_3 = arith.constant 0 : index
    %c0_4 = arith.constant 0 : index
    %2 = vector.load %arg3[%c0_2, %c0_3, %c0_4] : memref<1x512x128xbf16, #tpu.memory_space<vmem>>, vector<1x512x128xbf16>
    %3 = vector.shape_cast %2 : vector<1x512x128xbf16> to vector<512x128xbf16>
    %cst = arith.constant dense<0.000000e+00> : vector<512x128xf32>
    %4 = tpu.matmul %1, %3, %cst {dimension_numbers = #tpu.dot_dimension_numbers<[1], [0], [0], [1], [0, 0, 1, 1], [], []>} : vector<512x512xbf16>, vector<512x128xbf16>, vector<512x128xf32> -> vector<512x128xf32>
    %c0_5 = arith.constant 0 : index
    %c0_6 = arith.constant 0 : index
    %c0_7 = arith.constant 0 : index
    %5 = vector.load %arg4[%c0_5, %c0_6, %c0_7] : memref<1x512x128xf32, #tpu.memory_space<vmem>>, vector<1x512x128xf32>
    %6 = vector.shape_cast %5 : vector<1x512x128xf32> to vector<512x128xf32>
    %7 = vector.shape_cast %4 : vector<512x128xf32> to vector<1x512x128xf32>
    tpu.vector_store %arg4[%c0_5, %c0_6, %c0_7], %7 {strides = array<i32>} : memref<1x512x128xf32, #tpu.memory_space<vmem>>, vector<1x512x128xf32>,
    %cst_8 = arith.constant dense<0.000000e+00> : vector<128xf32>
    %8 = vector.multi_reduction <add>, %4, %cst_8 [0] : vector<512x128xf32> to vector<128xf32>
    %9 = vector.shape_cast %8 : vector<128xf32> to vector<1x128xf32>
    %10 = arith.mulf %4, %4 : vector<512x128xf32>
    %cst_9 = arith.constant dense<0.000000e+00> : vector<128xf32>
    %11 = vector.multi_reduction <add>, %10, %cst_9 [0] : vector<512x128xf32> to vector<128xf32>
    %12 = vector.shape_cast %11 : vector<128xf32> to vector<1x128xf32>
    %13 = tpu.concatenate %9, %12 in 0 : vector<1x128xf32>, vector<1x128xf32> -> vector<2x128xf32>
    %c0_10 = arith.constant 0 : index
    %c0_11 = arith.constant 0 : index
    %c0_12 = arith.constant 0 : index
    %c0_13 = arith.constant 0 : index
    %14 = vector.load %arg5[%c0_10, %c0_11, %c0_12, %c0_13] : memref<1x1x2x128xf32, #tpu.memory_space<vmem>>, vector<1x1x2x128xf32>
    %15 = vector.shape_cast %14 : vector<1x1x2x128xf32> to vector<2x128xf32>
    %16 = vector.shape_cast %13 : vector<2x128xf32> to vector<1x1x2x128xf32>
    tpu.vector_store %arg5[%c0_10, %c0_11, %c0_12, %c0_13], %16 {strides = array<i32>} : memref<1x1x2x128xf32, #tpu.memory_space<vmem>>, vector<1x1x2x128xf32>,
    return
  }
  func.func @transform_0(%arg0: i32, %arg1: i32) -> (i32, i32, i32) {
    %c0_i32 = arith.constant 0 : i32
    %c0_i32_0 = arith.constant 0 : i32
    return %arg0, %arg1, %c0_i32 : i32, i32, i32
  }
  func.func @transform_1(%arg0: i32, %arg1: i32) -> (i32, i32, i32) {
    %c0_i32 = arith.constant 0 : i32
    %c0_i32_0 = arith.constant 0 : i32
    %c0_i32_1 = arith.constant 0 : i32
    return %arg0, %c0_i32, %c0_i32_0 : i32, i32, i32
  }
  func.func @transform_2(%arg0: i32, %arg1: i32) -> (i32, i32, i32) {
    %c0_i32 = arith.constant 0 : i32
    %c0_i32_0 = arith.constant 0 : i32
    return %arg0, %arg1, %c0_i32 : i32, i32, i32
  }
  func.func @transform_3(%arg0: i32, %arg1: i32) -> (i32, i32, i32, i32) {
    %c0_i32 = arith.constant 0 : i32
    %c0_i32_0 = arith.constant 0 : i32
    %c0_i32_1 = arith.constant 0 : i32
    return %arg0, %arg1, %c0_i32, %c0_i32_0 : i32, i32, i32, i32
  }
}

module attributes {stable_mosaic.version = 11 : i64} {
  func.func @bn_lrelu_kernel(%arg0: i32, %arg1: i32, %arg2: memref<1x512x128xf32, #tpu.memory_space<vmem>>, %arg3: memref<1x128xf32, #tpu.memory_space<vmem>>, %arg4: memref<1x128xf32, #tpu.memory_space<vmem>>, %arg5: memref<1x512x128xbf16, #tpu.memory_space<vmem>>) attributes {dimension_semantics = [#tpu.dimension_semantics<parallel>, #tpu.dimension_semantics<parallel>], iteration_bounds = array<i64: 4, 1>, scalar_prefetch = 0 : i64, scratch_operands = 0 : i64, tpu.core_type = #tpu.core_type<tc>, window_params = [{transform_indices = @transform_0, window_bounds = array<i64: 1, 512, 128>}, {pipeline_mode = #tpu.pipeline_mode<synchronous>, transform_indices = @transform_1, window_bounds = array<i64: 1, 128>}, {pipeline_mode = #tpu.pipeline_mode<synchronous>, transform_indices = @transform_2, window_bounds = array<i64: 1, 128>}, {transform_indices = @transform_3, window_bounds = array<i64: 1, 512, 128>}]} {
    %c0 = arith.constant 0 : index
    %c0_0 = arith.constant 0 : index
    %c0_1 = arith.constant 0 : index
    %0 = vector.load %arg2[%c0, %c0_0, %c0_1] : memref<1x512x128xf32, #tpu.memory_space<vmem>>, vector<1x512x128xf32>
    %1 = vector.shape_cast %0 : vector<1x512x128xf32> to vector<512x128xf32>
    %c0_2 = arith.constant 0 : index
    %c0_3 = arith.constant 0 : index
    %2 = vector.load %arg3[%c0_2, %c0_3] : memref<1x128xf32, #tpu.memory_space<vmem>>, vector<1x128xf32>
    %3 = vector.broadcast %2 : vector<1x128xf32> to vector<512x128xf32>
    %4 = arith.subf %1, %3 : vector<512x128xf32>
    %c0_4 = arith.constant 0 : index
    %c0_5 = arith.constant 0 : index
    %5 = vector.load %arg4[%c0_4, %c0_5] : memref<1x128xf32, #tpu.memory_space<vmem>>, vector<1x128xf32>
    %6 = vector.broadcast %5 : vector<1x128xf32> to vector<512x128xf32>
    %7 = arith.mulf %4, %6 : vector<512x128xf32>
    %cst = arith.constant 0.000000e+00 : f32
    %8 = vector.broadcast %cst : f32 to vector<512x128xf32>
    %9 = arith.cmpf ogt, %7, %8 : vector<512x128xf32>
    %cst_6 = arith.constant 2.000000e-01 : f32
    %10 = vector.broadcast %cst_6 : f32 to vector<512x128xf32>
    %11 = arith.mulf %10, %7 : vector<512x128xf32>
    %12 = arith.select %9, %7, %11 : vector<512x128xi1>, vector<512x128xf32>
    %13 = arith.truncf %12 : vector<512x128xf32> to vector<512x128xbf16>
    %c0_7 = arith.constant 0 : index
    %c0_8 = arith.constant 0 : index
    %c0_9 = arith.constant 0 : index
    %14 = vector.load %arg5[%c0_7, %c0_8, %c0_9] : memref<1x512x128xbf16, #tpu.memory_space<vmem>>, vector<1x512x128xbf16>
    %15 = vector.shape_cast %14 : vector<1x512x128xbf16> to vector<512x128xbf16>
    %16 = vector.shape_cast %13 : vector<512x128xbf16> to vector<1x512x128xbf16>
    tpu.vector_store %arg5[%c0_7, %c0_8, %c0_9], %16 {strides = array<i32>} : memref<1x512x128xbf16, #tpu.memory_space<vmem>>, vector<1x512x128xbf16>,
    return
  }
  func.func @transform_0(%arg0: i32, %arg1: i32) -> (i32, i32, i32) {
    %c0_i32 = arith.constant 0 : i32
    %c0_i32_0 = arith.constant 0 : i32
    return %arg0, %arg1, %c0_i32 : i32, i32, i32
  }
  func.func @transform_1(%arg0: i32, %arg1: i32) -> (i32, i32) {
    %c0_i32 = arith.constant 0 : i32
    %c0_i32_0 = arith.constant 0 : i32
    %c0_i32_1 = arith.constant 0 : i32
    return %c0_i32, %c0_i32_0 : i32, i32
  }
  func.func @transform_2(%arg0: i32, %arg1: i32) -> (i32, i32) {
    %c0_i32 = arith.constant 0 : i32
    %c0_i32_0 = arith.constant 0 : i32
    %c0_i32_1 = arith.constant 0 : i32
    return %c0_i32, %c0_i32_0 : i32, i32
  }
  func.func @transform_3(%arg0: i32, %arg1: i32) -> (i32, i32, i32) {
    %c0_i32 = arith.constant 0 : i32
    %c0_i32_0 = arith.constant 0 : i32
    return %arg0, %arg1, %c0_i32 : i32, i32, i32
  }
}

module attributes {stable_mosaic.version = 11 : i64} {
  func.func @conv_tanh_kernel(%arg0: i32, %arg1: i32, %arg2: memref<1x512x512xbf16, #tpu.memory_space<vmem>>, %arg3: memref<1x512x128xbf16, #tpu.memory_space<vmem>>, %arg4: memref<1x512x128xf32, #tpu.memory_space<vmem>>) attributes {dimension_semantics = [#tpu.dimension_semantics<parallel>, #tpu.dimension_semantics<parallel>], iteration_bounds = array<i64: 4, 4>, scalar_prefetch = 0 : i64, scratch_operands = 0 : i64, tpu.core_type = #tpu.core_type<tc>, window_params = [{transform_indices = @transform_0, window_bounds = array<i64: 1, 512, 512>}, {transform_indices = @transform_1, window_bounds = array<i64: 1, 512, 128>}, {transform_indices = @transform_2, window_bounds = array<i64: 1, 512, 128>}]} {
    %c0 = arith.constant 0 : index
    %c0_0 = arith.constant 0 : index
    %c0_1 = arith.constant 0 : index
    %0 = vector.load %arg2[%c0, %c0_0, %c0_1] : memref<1x512x512xbf16, #tpu.memory_space<vmem>>, vector<1x512x512xbf16>
    %1 = vector.shape_cast %0 : vector<1x512x512xbf16> to vector<512x512xbf16>
    %c0_2 = arith.constant 0 : index
    %c0_3 = arith.constant 0 : index
    %c0_4 = arith.constant 0 : index
    %2 = vector.load %arg3[%c0_2, %c0_3, %c0_4] : memref<1x512x128xbf16, #tpu.memory_space<vmem>>, vector<1x512x128xbf16>
    %3 = vector.shape_cast %2 : vector<1x512x128xbf16> to vector<512x128xbf16>
    %cst = arith.constant dense<0.000000e+00> : vector<512x128xf32>
    %4 = tpu.matmul %1, %3, %cst {dimension_numbers = #tpu.dot_dimension_numbers<[1], [0], [0], [1], [0, 0, 1, 1], [], []>} : vector<512x512xbf16>, vector<512x128xbf16>, vector<512x128xf32> -> vector<512x128xf32>
    %5 = math.tanh %4 : vector<512x128xf32>
    %c0_5 = arith.constant 0 : index
    %c0_6 = arith.constant 0 : index
    %c0_7 = arith.constant 0 : index
    %6 = vector.load %arg4[%c0_5, %c0_6, %c0_7] : memref<1x512x128xf32, #tpu.memory_space<vmem>>, vector<1x512x128xf32>
    %7 = vector.shape_cast %6 : vector<1x512x128xf32> to vector<512x128xf32>
    %8 = vector.shape_cast %5 : vector<512x128xf32> to vector<1x512x128xf32>
    tpu.vector_store %arg4[%c0_5, %c0_6, %c0_7], %8 {strides = array<i32>} : memref<1x512x128xf32, #tpu.memory_space<vmem>>, vector<1x512x128xf32>,
    return
  }
  func.func @transform_0(%arg0: i32, %arg1: i32) -> (i32, i32, i32) {
    %c0_i32 = arith.constant 0 : i32
    %c0_i32_0 = arith.constant 0 : i32
    return %arg0, %arg1, %c0_i32 : i32, i32, i32
  }
  func.func @transform_1(%arg0: i32, %arg1: i32) -> (i32, i32, i32) {
    %c0_i32 = arith.constant 0 : i32
    %c0_i32_0 = arith.constant 0 : i32
    %c0_i32_1 = arith.constant 0 : i32
    return %arg0, %c0_i32, %c0_i32_0 : i32, i32, i32
  }
  func.func @transform_2(%arg0: i32, %arg1: i32) -> (i32, i32, i32) {
    %c0_i32 = arith.constant 0 : i32
    %c0_i32_0 = arith.constant 0 : i32
    return %arg0, %arg1, %c0_i32 : i32, i32, i32
  }
}

</mosaic_0001>

<llo_original>
// kernel: generator_forward.12
$region0: #{generator_forward.12}
  #allocation0 [shape = 'u32[]', space=smem, size = 0x4, offset = 0x4, fixed_abs, tag = 'smem constant byte address 0x4 - core index']
  #allocation1 [shape = 'u32[144,128]{1,0:T(1,128)}', space=vmem, size = 0x12000, scoped, tag = 'internal scratch']
  %s0 = inlined_call_operand.vmem [shape: f32[16,8,128], index: 0, kind: input, shape index: {}]
  %s1 = inlined_call_operand.vmem [shape: f32[1,128], index: 1, kind: input, shape index: {}]
  %s2 = inlined_call_operand.vmem [shape: f32[1,128], index: 2, kind: input, shape index: {}]
  %s3 = inlined_call_operand.vmem [shape: bf16[16,8,128], index: 3, kind: output, shape index: {}]
  %s4 = sld [smem:[#allocation0]]
  $region45: #{generator_forward.12} parent=0
    _
  %s6 = ssub.s32 1, %s4
  %s7 = scalar_select 0, %s6, %s4
  loop: start=0, step=1, limit=18
  $region2: #{generator_forward.12} parent=0 // loop_pre_header
    _
  $region3: #{generator_forward.12} parent=0 // loop_header
    %s9 = sphi 0, %s13
    %p10 = scmp.ge.s32.totalorder %s9, 18
    %s16 = sphi 0, %s28
    %s17 = sphi 0, %s24
    %s18 = sphi 0, %s16
    %s19 = sphi 0, %s17
    %s20 = sphi 0, %s18
    %s21 = sphi 0, %s19
    %s33 = sphi 0, %s35
    %s36 = sphi 0, %s33
    %s37 = sphi 0, %s36
    %s53 = sphi 0, %s37
    %s57 = sphi 0, %s57
    %s59 = sphi 0, %s57
    %s60 = sphi 0, %s59
    %s74 = sphi 0, %s60
    %s78 = sphi 0, %s78
    %s80 = sphi 0, %s78
    %s81 = sphi 0, %s80
    %s95 = sphi 0, %s81
    %s103 = sphi 0, %s105
    %s106 = sphi 0, %s103
    %s107 = sphi 0, %s106
    %s123 = sphi 0, %s107
  $region4: #{generator_forward.12} parent=0 // loop_header_branch
    %12 = sbr.rel (%p10) target = $region8
  $region5: #{generator_forward.12} parent=0 // loop_body
    %s14 = ssub.s32 %s9, 1
    %s15 = ssub.s32 %s9, 2
    %s22 = sadd.s32 1, %s17
    %p23 = scmp.ge.s32.totalorder %s22, 1
    %s24 = scalar_select %p23, 0, %s22
    %s25 = sadd.s32 1, %s16
    %s26 = scalar_select %p23, %s25, %s16
    %p27 = scmp.ge.s32.totalorder %s26, 16
    %s28 = scalar_select %p27, 0, %s26
    %s29 = ssub.s32 %s16, %s28
    %s30 = ssub.s32 %s17, %s24
    %s31 = sor.u32 %s29, %s30
    %p32 = scmp.eq.s32.totalorder %s31, 0
    %s34 = sadd.s32 %s33, 1
    %s35 = scalar_select %p32, %s33, %s34
    %p38 = pneg %p32
    %p39 = scmp.eq.s32.totalorder %s9, 15
    %p40 = por %p38, %p39
    %p41 = scmp.ne.s32.totalorder %s33, %s36
    %p42 = scmp.eq.s32.totalorder %s9, 0
    %p43 = por %p41, %p42
    %p44 = scmp.ne.s32.totalorder %s33, %s36
    %p45 = scmp.eq.s32.totalorder %s14, 15
    %p46 = por %p44, %p45
    %p47 = scmp.ne.s32.totalorder %s36, %s37
    %p48 = scmp.eq.s32.totalorder %s14, 0
    %p49 = por %p47, %p48
    %p50 = scmp.ne.s32.totalorder %s36, %s37
    %p51 = scmp.eq.s32.totalorder %s15, 15
    %p52 = por %p50, %p51
    %p54 = scmp.ne.s32.totalorder %s37, %s53
    %p55 = scmp.eq.s32.totalorder %s15, 0
    %p56 = por %p54, %p55
    %s58 = sadd.s32 %s57, 1
    %p61 = scmp.eq.s32.totalorder %s9, 15
    %p62 = scmp.ne.s32.totalorder %s57, %s59
    %p63 = scmp.eq.s32.totalorder %s9, 0
    %p64 = por %p62, %p63
    %p65 = scmp.ne.s32.totalorder %s57, %s59
    %p66 = scmp.eq.s32.totalorder %s14, 15
    %p67 = por %p65, %p66
    %p68 = scmp.ne.s32.totalorder %s59, %s60
    %p69 = scmp.eq.s32.totalorder %s14, 0
    %p70 = por %p68, %p69
    %p71 = scmp.ne.s32.totalorder %s59, %s60
    %p72 = scmp.eq.s32.totalorder %s15, 15
    %p73 = por %p71, %p72
    %p75 = scmp.ne.s32.totalorder %s60, %s74
    %p76 = scmp.eq.s32.totalorder %s15, 0
    %p77 = por %p75, %p76
    %s79 = sadd.s32 %s78, 1
    %p82 = scmp.eq.s32.totalorder %s9, 15
    %p83 = scmp.ne.s32.totalorder %s78, %s80
    %p84 = scmp.eq.s32.totalorder %s9, 0
    %p85 = por %p83, %p84
    %p86 = scmp.ne.s32.totalorder %s78, %s80
    %p87 = scmp.eq.s32.totalorder %s14, 15
    %p88 = por %p86, %p87
    %p89 = scmp.ne.s32.totalorder %s80, %s81
    %p90 = scmp.eq.s32.totalorder %s14, 0
    %p91 = por %p89, %p90
    %p92 = scmp.ne.s32.totalorder %s80, %s81
    %p93 = scmp.eq.s32.totalorder %s15, 15
    %p94 = por %p92, %p93
    %p96 = scmp.ne.s32.totalorder %s81, %s95
    %p97 = scmp.eq.s32.totalorder %s15, 0
    %p98 = por %p96, %p97
    %s99 = ssub.s32 %s16, %s28
    %s100 = ssub.s32 %s17, %s24
    %s101 = sor.u32 %s99, %s100
    %p102 = scmp.eq.s32.totalorder %s101, 0
    %s104 = sadd.s32 %s103, 1
    %s105 = scalar_select %p102, %s103, %s104
    %p108 = pneg %p102
    %p109 = scmp.eq.s32.totalorder %s9, 15
    %p110 = por %p108, %p109
    %p111 = scmp.ne.s32.totalorder %s103, %s106
    %p112 = scmp.eq.s32.totalorder %s9, 0
    %p113 = por %p111, %p112
    %p114 = scmp.ne.s32.totalorder %s103, %s106
    %p115 = scmp.eq.s32.totalorder %s14, 15
    %p116 = por %p114, %p115
    %p117 = scmp.ne.s32.totalorder %s106, %s107
    %p118 = scmp.eq.s32.totalorder %s14, 0
    %p119 = por %p117, %p118
    %p120 = scmp.ne.s32.totalorder %s106, %s107
    %p121 = scmp.eq.s32.totalorder %s15, 15
    %p122 = por %p120, %p121
    %p124 = scmp.ne.s32.totalorder %s107, %s123
    %p125 = scmp.eq.s32.totalorder %s15, 0
    %p126 = por %p124, %p125
    %p127 = scmp.le.s32.totalorder 1, %s9
    %p128 = scmp.lt.s32.totalorder %s9, 17
    %p129 = pnand %p127, %p128
    %p130 = pneg %p129
    // Predicated region
    $region9: #{generator_forward.12} parent=5 // pred_check
      _
    $region10: #{generator_forward.12} parent=5 // pred_check_branch
      %132 = sbr.rel (%p129) target = $region12
    $region11: #{generator_forward.12} parent=5 // pred_region
      %s133 = ssub.s32 %s9, 1
      // Predicated region
      $region13: #{generator_forward.12} parent=11 // pred_check
        %p134 = pneg %p70
      $region14: #{generator_forward.12} parent=11 // pred_check_branch
        %136 = sbr.rel (%p134) target = $region16
      $region15: #{generator_forward.12} parent=11 // pred_region
        _
      $region16: #{generator_forward.12} parent=11 // pred_fallthru
        _
      // Predicated region
      $region17: #{generator_forward.12} parent=11 // pred_check
        %p137 = pneg %p91
      $region18: #{generator_forward.12} parent=11 // pred_check_branch
        %139 = sbr.rel (%p137) target = $region20
      $region19: #{generator_forward.12} parent=11 // pred_region
        _
      $region20: #{generator_forward.12} parent=11 // pred_fallthru
        _
    $region12: #{generator_forward.12} parent=5 // pred_fallthru
      _
    %p140 = scmp.lt.s32.totalorder %s9, 16
    // Predicated region
    $region21: #{generator_forward.12} parent=5 // pred_check
      %p141 = pneg %p140
    $region22: #{generator_forward.12} parent=5 // pred_check_branch
      %143 = sbr.rel (%p141) target = $region24
    $region23: #{generator_forward.12} parent=5 // pred_region
      // Predicated region
      $region25: #{generator_forward.12} parent=23 // pred_check
        %p144 = pneg %p43
      $region26: #{generator_forward.12} parent=23 // pred_check_branch
        %146 = sbr.rel (%p144) target = $region28
      $region27: #{generator_forward.12} parent=23 // pred_region
        %p147 = scmp.lt.s32.totalorder %s16, 15
        %s148 = scalar_select %p147, %s16, 15
        %p149 = scmp.lt.s32.totalorder %s17, 0
        %s150 = scalar_select %p149, %s17, 0
        %s151 = sadd.s32 %s150, %s148
        %s152 = smul.addr %s151, 8
        %s153 = scalar_lea.vmem %s0, %s152
      $region28: #{generator_forward.12} parent=23 // pred_fallthru
        _
    $region24: #{generator_forward.12} parent=5 // pred_fallthru
      _
    %p154 = scmp.le.s32.totalorder 1, %s9
    %p155 = scmp.lt.s32.totalorder %s9, 17
    %p156 = pnand %p154, %p155
    %p157 = pneg %p156
    // Predicated region
    $region29: #{generator_forward.12} parent=5 // pred_check
      _
    $region30: #{generator_forward.12} parent=5 // pred_check_branch
      %159 = sbr.rel (%p156) target = $region32
    $region31: #{generator_forward.12} parent=5 // pred_region
      %s160 = ssub.s32 %s9, 1
      %p161 = scmp.lt.s32.totalorder %s18, 15
      %s162 = scalar_select %p161, %s18, 15
      %p163 = scmp.lt.s32.totalorder %s19, 0
      %s164 = scalar_select %p163, %s19, 0
      %s165 = sadd.s32 %s164, %s162
      %s166 = smul.addr %s165, 8
      %s167 = scalar_lea.vmem %s0, %s166
      %p168 = pneg %p49
      %p169 = pneg %p46
      %p170 = pneg %p70
      %p171 = pneg %p67
      %p172 = pneg %p91
      %p173 = pneg %p88
      %p174 = pneg %p119
      %p175 = pneg %p116
      %p176 = scmp.lt.s32.totalorder %s18, 15
      %s177 = scalar_select %p176, %s18, 15
      %p178 = scmp.lt.s32.totalorder %s19, 0
      %s179 = scalar_select %p178, %s19, 0
      %s180 = sadd.s32 %s179, %s177
      %s181 = smul.addr %s180, 4
      %s182 = scalar_lea.vmem %s3, %s181
      %p183 = scmp.lt.s32.totalorder %s18, 15
      %s184 = scalar_select %p183, %s18, 15
      %p185 = scmp.lt.s32.totalorder %s19, 0
      %s186 = scalar_select %p185, %s19, 0
      %s187 = sadd.s32 %s186, %s184
      %s188 = smul.addr %s187, 8
      %s189 = scalar_lea.vmem %s0, %s188
      %p190 = scmp.lt.s32.totalorder %s18, 15
      %s191 = scalar_select %p190, %s18, 15
      %p192 = scmp.lt.s32.totalorder %s19, 0
      %s193 = scalar_select %p192, %s19, 0
      %s194 = sadd.s32 %s193, %s191
      %s195 = smul.addr %s194, 4
      %s196 = scalar_lea.vmem %s3, %s195
      %v197 = vld [vmem:[%s189] sm:$0xff]
      %v198 = vld [vmem:[%s1] sm:$0x1]
      %v200 = vlaneseq
      %v201 = vshrl.u32 %v200, 7
      %v202 = vsub.s32 0, %v201
      %v203 = vrot.slane %v198, %v202
      %v205 = vsub.f32 %v197, %v203
      %v206 = vld [vmem:[%s2] sm:$0x1]
      %v208 = vlaneseq
      %v209 = vshrl.u32 %v208, 7
      %v210 = vsub.s32 0, %v209
      %v211 = vrot.slane %v206, %v210
      %v213 = vmul.f32 %v205, %v211
      %vm214 = vcmp.gt.f32.partialorder %v213, 0.0
      %v215 = vmul.f32 %v213, 0.2
      %v216 = vsel %vm214, %v213, %v215
      %v217 = vpack.c.bf16 %v216, %v216
      %218 = vst [vmem:[%s196] sm:$0xf] %v217
      %p219 = scmp.lt.s32.totalorder %s18, 15
      %s220 = scalar_select %p219, %s18, 15
      %p221 = scmp.lt.s32.totalorder %s19, 0
      %s222 = scalar_select %p221, %s19, 0
      %s223 = sadd.s32 %s222, %s220
      %s224 = smul.addr %s223, 4
      %s225 = scalar_lea.vmem %s3, %s224
      // Predicated region
      $region33: #{generator_forward.12} parent=31 // pred_check
        %p226 = pneg %p116
      $region34: #{generator_forward.12} parent=31 // pred_check_branch
        %228 = sbr.rel (%p226) target = $region36
      $region35: #{generator_forward.12} parent=31 // pred_region
        _
      $region36: #{generator_forward.12} parent=31 // pred_fallthru
        _
    $region32: #{generator_forward.12} parent=5 // pred_fallthru
      _
    %p229 = scmp.le.s32.totalorder 2, %s9
    // Predicated region
    $region37: #{generator_forward.12} parent=5 // pred_check
      %p230 = pneg %p229
    $region38: #{generator_forward.12} parent=5 // pred_check_branch
      %232 = sbr.rel (%p230) target = $region40
    $region39: #{generator_forward.12} parent=5 // pred_region
      %s233 = ssub.s32 %s9, 2
      // Predicated region
      $region41: #{generator_forward.12} parent=39 // pred_check
        %p234 = pneg %p122
      $region42: #{generator_forward.12} parent=39 // pred_check_branch
        %236 = sbr.rel (%p234) target = $region44
      $region43: #{generator_forward.12} parent=39 // pred_region
        %p237 = scmp.lt.s32.totalorder %s20, 15
        %s238 = scalar_select %p237, %s20, 15
        %p239 = scmp.lt.s32.totalorder %s21, 0
        %s240 = scalar_select %p239, %s21, 0
        %s241 = sadd.s32 %s240, %s238
        %s242 = smul.addr %s241, 4
        %s243 = scalar_lea.vmem %s3, %s242
      $region44: #{generator_forward.12} parent=39 // pred_fallthru
        _
    $region40: #{generator_forward.12} parent=5 // pred_fallthru
      _
  $region6: #{generator_forward.12} parent=0 // loop_footer
    %s13 = sadd.s32 1, %s9
  $region7: #{generator_forward.12} parent=0 // loop_footer_branch
    %8 = sbr.rel target = $region3
  $region8: #{generator_forward.12} parent=0 // loop_exit
    _

// kernel: generator_forward.10
$region0: #{generator_forward.10}
  #allocation0 [shape = 'u32[]', space=smem, size = 0x4, offset = 0x4, fixed_abs, tag = 'smem constant byte address 0x4 - core index']
  #allocation1 [shape = 'u32[144,128]{1,0:T(1,128)}', space=vmem, size = 0x12000, scoped, tag = 'internal scratch']
  %s0 = inlined_call_operand.vmem [shape: bf16[2,8], index: 0, kind: input, shape index: {}]
  %s1 = inlined_call_operand.vmem [shape: bf16[2,8], index: 1, kind: input, shape index: {}]
  %s2 = inlined_call_operand.hbm [shape: bf16[8,128], index: 2, kind: input, shape index: {}]
  %s3 = inlined_call_operand.hbm [shape: bf16[8,128], index: 3, kind: input, shape index: {}]
  %s4 = inlined_call_operand.vmem [shape: bf16[2,256], index: 4, kind: output, shape index: {}]
  %s5 = sld [smem:[#allocation0]]
  $region34: #{generator_forward.10} parent=0
    _
  %s7 = ssub.s32 1, %s5
  %s8 = scalar_select 0, %s7, %s5
  $region1: #{generator_forward.10} parent=0
    #allocation2 [shape = 'u8[2048]{0}', space=vmem, size = 0x800, scoped, tag = 'input window, operand 2, single buffered']
    #allocation3 [shape = 's32[1]{0}', space=sflag, size = 0x4, scoped, tag = 'scoped memory for generator_forward.10']
    #allocation4 [shape = 'u8[2048]{0}', space=vmem, size = 0x800, scoped, tag = 'input window, operand 3, single buffered']
    #allocation5 [shape = 's32[1]{0}', space=sflag, size = 0x4, scoped, tag = 'scoped memory for generator_forward.10']
    %9 = vsyncpa [#allocation3], 0
    %10 = vsyncpa [#allocation5], 0
    // Predicated region
    $region2: #{generator_forward.10} parent=1 // pred_check
      _
    $region3: #{generator_forward.10} parent=1 // pred_check_branch
      %12 = sbr.rel (0) target = $region5
    $region4: #{generator_forward.10} parent=1 // pred_region
      _
    $region5: #{generator_forward.10} parent=1 // pred_fallthru
      _
    // Predicated region
    $region6: #{generator_forward.10} parent=1 // pred_check
      _
    $region7: #{generator_forward.10} parent=1 // pred_check_branch
      %14 = sbr.rel (0) target = $region9
    $region8: #{generator_forward.10} parent=1 // pred_region
      _
    $region9: #{generator_forward.10} parent=1 // pred_fallthru
      _
    // Predicated region
    $region10: #{generator_forward.10} parent=1 // pred_check
      _
    $region11: #{generator_forward.10} parent=1 // pred_check_branch
      %16 = sbr.rel (0) target = $region13
    $region12: #{generator_forward.10} parent=1 // pred_region
      %s18 = ssub.s32 64, 64
      %19 = vsyncadd [#allocation3], %s18
      %s21 = sshll.u32 [#allocation2], 4
      %s22 = int_to_ptr.vmem [resolvable:$true] %s21
      %24 = dma.hbm_to_vmem [thread:$0]  %s2, 64, %s22, [#allocation3]
    $region13: #{generator_forward.10} parent=1 // pred_fallthru
      _
    // Predicated region
    $region14: #{generator_forward.10} parent=1 // pred_check
      _
    $region15: #{generator_forward.10} parent=1 // pred_check_branch
      %26 = sbr.rel (0) target = $region17
    $region16: #{generator_forward.10} parent=1 // pred_region
      %s28 = ssub.s32 64, 64
      %29 = vsyncadd [#allocation5], %s28
      %s31 = sshll.u32 [#allocation4], 4
      %s32 = int_to_ptr.vmem [resolvable:$true] %s31
      %34 = dma.hbm_to_vmem [thread:$0]  %s3, 64, %s32, [#allocation5]
    $region17: #{generator_forward.10} parent=1 // pred_fallthru
      _
    // Predicated region
    $region18: #{generator_forward.10} parent=1 // pred_check
      _
    $region19: #{generator_forward.10} parent=1 // pred_check_branch
      %36 = sbr.rel (0) target = $region21
    $region20: #{generator_forward.10} parent=1 // pred_region
      %37 = dma.done [#allocation3], 64
    $region21: #{generator_forward.10} parent=1 // pred_fallthru
      _
    // Predicated region
    $region22: #{generator_forward.10} parent=1 // pred_check
      _
    $region23: #{generator_forward.10} parent=1 // pred_check_branch
      %39 = sbr.rel (0) target = $region25
    $region24: #{generator_forward.10} parent=1 // pred_region
      %40 = dma.done [#allocation5], 64
    $region25: #{generator_forward.10} parent=1 // pred_fallthru
      _
    %v42 = vld [vmem:[%s0] sm:$0x1]
    %v43 = vld [vmem:[#allocation2] sm:$0xf]
    %vm44 = vcmask 64512
    %v46 = vsel %vm44, %v42, 0
    %vm48 = vcmask 1043456
    %v50 = vsel %vm48, %v43, 0
    %52 = vmatprep.subr.bf16.mxu0 0
    %53 = vmatpush1.bf16.msra.mxu0 %v50
    %54 = vmatprep.subr.bf16.mxu0 0
    %55 = vmatpush1.bf16.msra.mxu0 0
    %56 = vmatprep.subr.bf16.mxu0 0
    %57 = vmatpush1.bf16.msra.mxu0 0
    %58 = vmatprep.subr.bf16.mxu0 0
    %59 = vmatpush1.bf16.msra.mxu0 0
    %60 = vmatprep.subr.bf16.mxu0 0
    %61 = vmatpush1.bf16.msra.mxu0 0
    %62 = vmatprep.subr.bf16.mxu0 0
    %63 = vmatpush1.bf16.msra.mxu0 0
    %64 = vmatprep.subr.bf16.mxu0 0
    %65 = vmatpush1.bf16.msra.mxu0 0
    %66 = vmatprep.subr.bf16.mxu0 0
    %67 = vmatpush1.bf16.msra.mxu0 0
    %68 = vmatprep.subr.bf16.mxu0 0
    %69 = vmatpush1.bf16.msra.mxu0 0
    %70 = vmatprep.subr.bf16.mxu0 0
    %71 = vmatpush1.bf16.msra.mxu0 0
    %72 = vmatprep.subr.bf16.mxu0 0
    %73 = vmatpush1.bf16.msra.mxu0 0
    %74 = vmatprep.subr.bf16.mxu0 0
    %75 = vmatpush1.bf16.msra.mxu0 0
    %76 = vmatprep.subr.bf16.mxu0 0
    %77 = vmatpush1.bf16.msra.mxu0 0
    %78 = vmatprep.subr.bf16.mxu0 0
    %79 = vmatpush1.bf16.msra.mxu0 0
    %80 = vmatprep.subr.bf16.mxu0 0
    %81 = vmatpush1.bf16.msra.mxu0 0
    %82 = vmatprep.subr.bf16.mxu0 0
    %83 = vmatpush1.bf16.msra.mxu0 0
    %84 = vmatprep.mubr.bf16.mxu0 0
    %85 = vmatmul.mubr.bf16.gmra.mrb[0].mxu0 %v46
    %v86 = vpop.f32.mrb[0].mxu0
    %v87 = vadd.f32 0.0, %v86
    %v88 = vpop.f32.mrb[0].mxu0
    %v89 = vpop.f32.mrb[0].mxu0
    %v90 = vpop.f32.mrb[0].mxu0
    %91 = vdwg.mxu0
    %v92 = vld [vmem:[%s1] sm:$0x1]
    %v93 = vld [vmem:[#allocation4] sm:$0xf]
    %v95 = vsel %vm44, %v92, 0
    %v98 = vsel %vm48, %v93, 0
    %100 = vmatprep.subr.bf16.mxu0 0
    %101 = vmatpush1.bf16.msra.mxu0 %v98
    %102 = vmatprep.subr.bf16.mxu0 0
    %103 = vmatpush1.bf16.msra.mxu0 0
    %104 = vmatprep.subr.bf16.mxu0 0
    %105 = vmatpush1.bf16.msra.mxu0 0
    %106 = vmatprep.subr.bf16.mxu0 0
    %107 = vmatpush1.bf16.msra.mxu0 0
    %108 = vmatprep.subr.bf16.mxu0 0
    %109 = vmatpush1.bf16.msra.mxu0 0
    %110 = vmatprep.subr.bf16.mxu0 0
    %111 = vmatpush1.bf16.msra.mxu0 0
    %112 = vmatprep.subr.bf16.mxu0 0
    %113 = vmatpush1.bf16.msra.mxu0 0
    %114 = vmatprep.subr.bf16.mxu0 0
    %115 = vmatpush1.bf16.msra.mxu0 0
    %116 = vmatprep.subr.bf16.mxu0 0
    %117 = vmatpush1.bf16.msra.mxu0 0
    %118 = vmatprep.subr.bf16.mxu0 0
    %119 = vmatpush1.bf16.msra.mxu0 0
    %120 = vmatprep.subr.bf16.mxu0 0
    %121 = vmatpush1.bf16.msra.mxu0 0
    %122 = vmatprep.subr.bf16.mxu0 0
    %123 = vmatpush1.bf16.msra.mxu0 0
    %124 = vmatprep.subr.bf16.mxu0 0
    %125 = vmatpush1.bf16.msra.mxu0 0
    %126 = vmatprep.subr.bf16.mxu0 0
    %127 = vmatpush1.bf16.msra.mxu0 0
    %128 = vmatprep.subr.bf16.mxu0 0
    %129 = vmatpush1.bf16.msra.mxu0 0
    %130 = vmatprep.subr.bf16.mxu0 0
    %131 = vmatpush1.bf16.msra.mxu0 0
    %132 = vmatprep.mubr.bf16.mxu0 0
    %133 = vmatmul.mubr.bf16.gmra.mrb[0].mxu0 %v95
    %v134 = vpop.f32.mrb[0].mxu0
    %v135 = vadd.f32 0.0, %v134
    %v136 = vpop.f32.mrb[0].mxu0
    %v137 = vpop.f32.mrb[0].mxu0
    %v138 = vpop.f32.mrb[0].mxu0
    %139 = vdwg.mxu0
    %vm140 = vcmp.gt.f32.partialorder %v87, 0.0
    %v141 = vmul.f32 %v87, 0.2
    %v142 = vsel %vm140, %v87, %v141
    %vm143 = vcmp.gt.f32.partialorder %v135, 0.0
    %v144 = vmul.f32 %v135, 0.2
    %v145 = vsel %vm143, %v135, %v144
    %v146 = vpack.c.bf16 %v142, %v142
    %v147 = vpack.c.bf16 %v145, %v145
    %v150 = vcombine.low %v146, %v147
    %v152 = vunpack.c.l.s4 1966171168
    %v153 = vunpack.c.0.s8 %v152
    %v154 = vlaneseq
    %v155 = vshrl.u32 %v154, 7
    %v156 = vsub.s32 %v153, %v155
    %v157 = vrot.slane %v150, %v156
    %v159 = vunpack.c.l.s4 1966171168
    %v160 = vunpack.c.0.s8 %v159
    %v161 = vlaneseq
    %v162 = vshrl.u32 %v161, 7
    %v163 = vsub.s32 %v160, %v162
    %v164 = vrot.slane %v157, %v163
    %166 = vst [vmem:[%s4] sm:$0x3] %v164
    // Predicated region
    $region26: #{generator_forward.10} parent=1 // pred_check
      _
    $region27: #{generator_forward.10} parent=1 // pred_check_branch
      %168 = sbr.rel (0) target = $region29
    $region28: #{generator_forward.10} parent=1 // pred_region
      _
    $region29: #{generator_forward.10} parent=1 // pred_fallthru
      _
    // Predicated region
    $region30: #{generator_forward.10} parent=1 // pred_check
      _
    $region31: #{generator_forward.10} parent=1 // pred_check_branch
      %170 = sbr.rel (0) target = $region33
    $region32: #{generator_forward.10} parent=1 // pred_region
      _
    $region33: #{generator_forward.10} parent=1 // pred_fallthru
      _
    %171 = vsyncpa [#allocation3], 1
    %172 = vsyncpa [#allocation5], 1

// kernel: generator_forward.11
$region0: #{generator_forward.11}
  #allocation0 [shape = 'u32[]', space=smem, size = 0x4, offset = 0x4, fixed_abs, tag = 'smem constant byte address 0x4 - core index']
  #allocation1 [shape = 'u32[144,128]{1,0:T(1,128)}', space=vmem, size = 0x12000, scoped, tag = 'internal scratch']
  %s0 = inlined_call_operand.vmem [shape: bf16[8,384], index: 0, kind: input, shape index: {}]
  %s1 = inlined_call_operand.hbm [shape: bf16[16,384,128], index: 1, kind: input, shape index: {}]
  %s2 = inlined_call_operand.vmem [shape: f32[16,8,128], index: 2, kind: output, shape index: {0}]
  %s3 = inlined_call_operand.vmem [shape: f32[16,1,2,128], index: 3, kind: output, shape index: {1}]
  %4 = xla_tuple %s2, %s3
  %s5 = sld [smem:[#allocation0]]
  $region53: #{generator_forward.11} parent=0
    _
  %s7 = ssub.s32 1, %s5
  %s8 = scalar_select 0, %s7, %s5
  $region1: #{generator_forward.11} parent=0
    #allocation2 [shape = 'u8[196608]{0}', space=vmem, size = 0x30000, scoped, tag = 'input window, operand 1']
    #allocation3 [shape = 's32[2]{0}', space=sflag, size = 0x8, scoped, tag = 'scoped memory for generator_forward.11']
    %9 = vsyncpa [#allocation3], 0
    %s10 = scalar_lea.sflag [#allocation3], 1
    %11 = vsyncpa %s10, 0
    loop: start=0, step=1, limit=18
    $region2: #{generator_forward.11} parent=1 // loop_pre_header
      _
    $region3: #{generator_forward.11} parent=1 // loop_header
      %s13 = sphi 0, %s17
      %p14 = scmp.ge.s32.totalorder %s13, 18
      %s20 = sphi 0, %s32
      %s21 = sphi 0, %s28
      %s22 = sphi 0, %s20
      %s23 = sphi 0, %s21
      %s24 = sphi 0, %s22
      %s25 = sphi 0, %s23
      %s35 = sphi 0, %s37
      %s38 = sphi 0, %s35
      %s39 = sphi 0, %s38
      %s55 = sphi 0, %s39
      %s61 = sphi 0, %s63
      %s64 = sphi 0, %s61
      %s65 = sphi 0, %s64
      %s81 = sphi 0, %s65
      %s89 = sphi 0, %s91
      %s92 = sphi 0, %s89
      %s93 = sphi 0, %s92
      %s109 = sphi 0, %s93
      %s117 = sphi 0, %s119
      %s120 = sphi 0, %s117
      %s121 = sphi 0, %s120
      %s137 = sphi 0, %s121
    $region4: #{generator_forward.11} parent=1 // loop_header_branch
      %16 = sbr.rel (%p14) target = $region8
    $region5: #{generator_forward.11} parent=1 // loop_body
      %s18 = ssub.s32 %s13, 1
      %s19 = ssub.s32 %s13, 2
      %s26 = sadd.s32 1, %s21
      %p27 = scmp.ge.s32.totalorder %s26, 1
      %s28 = scalar_select %p27, 0, %s26
      %s29 = sadd.s32 1, %s20
      %s30 = scalar_select %p27, %s29, %s20
      %p31 = scmp.ge.s32.totalorder %s30, 16
      %s32 = scalar_select %p31, 0, %s30
      %s33 = ssub.s32 %s21, %s28
      %p34 = scmp.eq.s32.totalorder %s33, 0
      %s36 = sadd.s32 %s35, 1
      %s37 = scalar_select %p34, %s35, %s36
      %p40 = pneg %p34
      %p41 = scmp.eq.s32.totalorder %s13, 15
      %p42 = por %p40, %p41
      %p43 = scmp.ne.s32.totalorder %s35, %s38
      %p44 = scmp.eq.s32.totalorder %s13, 0
      %p45 = por %p43, %p44
      %p46 = scmp.ne.s32.totalorder %s35, %s38
      %p47 = scmp.eq.s32.totalorder %s18, 15
      %p48 = por %p46, %p47
      %p49 = scmp.ne.s32.totalorder %s38, %s39
      %p50 = scmp.eq.s32.totalorder %s18, 0
      %p51 = por %p49, %p50
      %p52 = scmp.ne.s32.totalorder %s38, %s39
      %p53 = scmp.eq.s32.totalorder %s19, 15
      %p54 = por %p52, %p53
      %p56 = scmp.ne.s32.totalorder %s39, %s55
      %p57 = scmp.eq.s32.totalorder %s19, 0
      %p58 = por %p56, %p57
      %s59 = ssub.s32 %s20, %s32
      %p60 = scmp.eq.s32.totalorder %s59, 0
      %s62 = sadd.s32 %s61, 1
      %s63 = scalar_select %p60, %s61, %s62
      %p66 = pneg %p60
      %p67 = scmp.eq.s32.totalorder %s13, 15
      %p68 = por %p66, %p67
      %p69 = scmp.ne.s32.totalorder %s61, %s64
      %p70 = scmp.eq.s32.totalorder %s13, 0
      %p71 = por %p69, %p70
      %p72 = scmp.ne.s32.totalorder %s61, %s64
      %p73 = scmp.eq.s32.totalorder %s18, 15
      %p74 = por %p72, %p73
      %p75 = scmp.ne.s32.totalorder %s64, %s65
      %p76 = scmp.eq.s32.totalorder %s18, 0
      %p77 = por %p75, %p76
      %p78 = scmp.ne.s32.totalorder %s64, %s65
      %p79 = scmp.eq.s32.totalorder %s19, 15
      %p80 = por %p78, %p79
      %p82 = scmp.ne.s32.totalorder %s65, %s81
      %p83 = scmp.eq.s32.totalorder %s19, 0
      %p84 = por %p82, %p83
      %s85 = ssub.s32 %s20, %s32
      %s86 = ssub.s32 %s21, %s28
      %s87 = sor.u32 %s85, %s86
      %p88 = scmp.eq.s32.totalorder %s87, 0
      %s90 = sadd.s32 %s89, 1
      %s91 = scalar_select %p88, %s89, %s90
      %p94 = pneg %p88
      %p95 = scmp.eq.s32.totalorder %s13, 15
      %p96 = por %p94, %p95
      %p97 = scmp.ne.s32.totalorder %s89, %s92
      %p98 = scmp.eq.s32.totalorder %s13, 0
      %p99 = por %p97, %p98
      %p100 = scmp.ne.s32.totalorder %s89, %s92
      %p101 = scmp.eq.s32.totalorder %s18, 15
      %p102 = por %p100, %p101
      %p103 = scmp.ne.s32.totalorder %s92, %s93
      %p104 = scmp.eq.s32.totalorder %s18, 0
      %p105 = por %p103, %p104
      %p106 = scmp.ne.s32.totalorder %s92, %s93
      %p107 = scmp.eq.s32.totalorder %s19, 15
      %p108 = por %p106, %p107
      %p110 = scmp.ne.s32.totalorder %s93, %s109
      %p111 = scmp.eq.s32.totalorder %s19, 0
      %p112 = por %p110, %p111
      %s113 = ssub.s32 %s20, %s32
      %s114 = ssub.s32 %s21, %s28
      %s115 = sor.u32 %s113, %s114
      %p116 = scmp.eq.s32.totalorder %s115, 0
      %s118 = sadd.s32 %s117, 1
      %s119 = scalar_select %p116, %s117, %s118
      %p122 = pneg %p116
      %p123 = scmp.eq.s32.totalorder %s13, 15
      %p124 = por %p122, %p123
      %p125 = scmp.ne.s32.totalorder %s117, %s120
      %p126 = scmp.eq.s32.totalorder %s13, 0
      %p127 = por %p125, %p126
      %p128 = scmp.ne.s32.totalorder %s117, %s120
      %p129 = scmp.eq.s32.totalorder %s18, 15
      %p130 = por %p128, %p129
      %p131 = scmp.ne.s32.totalorder %s120, %s121
      %p132 = scmp.eq.s32.totalorder %s18, 0
      %p133 = por %p131, %p132
      %p134 = scmp.ne.s32.totalorder %s120, %s121
      %p135 = scmp.eq.s32.totalorder %s19, 15
      %p136 = por %p134, %p135
      %p138 = scmp.ne.s32.totalorder %s121, %s137
      %p139 = scmp.eq.s32.totalorder %s19, 0
      %p140 = por %p138, %p139
      %p141 = scmp.le.s32.totalorder 1, %s13
      %p142 = scmp.lt.s32.totalorder %s13, 17
      %p143 = pnand %p141, %p142
      %p144 = pneg %p143
      // Predicated region
      $region9: #{generator_forward.11} parent=5 // pred_check
        _
      $region10: #{generator_forward.11} parent=5 // pred_check_branch
        %146 = sbr.rel (%p143) target = $region12
      $region11: #{generator_forward.11} parent=5 // pred_region
        %s147 = ssub.s32 %s13, 1
        // Predicated region
        $region13: #{generator_forward.11} parent=11 // pred_check
          %p148 = pneg %p51
        $region14: #{generator_forward.11} parent=11 // pred_check_branch
          %150 = sbr.rel (%p148) target = $region16
        $region15: #{generator_forward.11} parent=11 // pred_region
          %p151 = scmp.lt.s32.totalorder %s23, 0
          %s152 = scalar_select %p151, %s23, 0
          %s153 = smul.addr %s152, 3
          %s154 = smul.addr %s153, 4
          %s155 = scalar_lea.vmem %s0, %s154
        $region16: #{generator_forward.11} parent=11 // pred_fallthru
          _
      $region12: #{generator_forward.11} parent=5 // pred_fallthru
        _
      %p156 = scmp.lt.s32.totalorder %s13, 16
      // Predicated region
      $region17: #{generator_forward.11} parent=5 // pred_check
        %p157 = pneg %p156
      $region18: #{generator_forward.11} parent=5 // pred_check_branch
        %159 = sbr.rel (%p157) target = $region20
      $region19: #{generator_forward.11} parent=5 // pred_region
        // Predicated region
        $region21: #{generator_forward.11} parent=19 // pred_check
          %p160 = pneg %p71
        $region22: #{generator_forward.11} parent=19 // pred_check_branch
          %162 = sbr.rel (%p160) target = $region24
        $region23: #{generator_forward.11} parent=19 // pred_region
          %s163 = sand.u32 %s61, 1
          %s164 = scalar_lea.sflag [#allocation3], %s163
          %s165 = sand.u32 %s61, 1
          %s166 = smul.addr %s165, 192
          %s167 = scalar_lea.vmem [#allocation2], %s166
          %s169 = ssub.s32 3072, 3072
          %170 = vsyncadd %s164, %s169
          %s171 = smul.addr %s20, 48
          %s172 = smul.addr %s171, 64
          %s173 = scalar_lea.hbm %s1, %s172
          %s174 = sshll.u32 %s167, 4
          %s175 = int_to_ptr.vmem [resolvable:$true] %s174
          %180 = dma.hbm_to_vmem [thread:$0]  %s173, 3072, %s175, %s164, 64, 64, 4
        $region24: #{generator_forward.11} parent=19 // pred_fallthru
          _
      $region20: #{generator_forward.11} parent=5 // pred_fallthru
        _
      %p181 = scmp.le.s32.totalorder 1, %s13
      %p182 = scmp.lt.s32.totalorder %s13, 17
      %p183 = pnand %p181, %p182
      %p184 = pneg %p183
      // Predicated region
      $region25: #{generator_forward.11} parent=5 // pred_check
        _
      $region26: #{generator_forward.11} parent=5 // pred_check_branch
        %186 = sbr.rel (%p183) target = $region28
      $region27: #{generator_forward.11} parent=5 // pred_region
        %s187 = ssub.s32 %s13, 1
        %s188 = sand.u32 %s64, 1
        %s189 = scalar_lea.sflag [#allocation3], %s188
        %s190 = sand.u32 %s64, 1
        %s191 = smul.addr %s190, 192
        %s192 = scalar_lea.vmem [#allocation2], %s191
        // Predicated region
        $region29: #{generator_forward.11} parent=27 // pred_check
          %p193 = pneg %p77
        $region30: #{generator_forward.11} parent=27 // pred_check_branch
          %195 = sbr.rel (%p193) target = $region32
        $region31: #{generator_forward.11} parent=27 // pred_region
          %196 = dma.done %s189, 3072
        $region32: #{generator_forward.11} parent=27 // pred_fallthru
          _
        %p197 = scmp.lt.s32.totalorder %s23, 0
        %s198 = scalar_select %p197, %s23, 0
        %s199 = smul.addr %s198, 3
        %s200 = smul.addr %s199, 4
        %s201 = scalar_lea.vmem %s0, %s200
        %p202 = pneg %p51
        %p203 = pneg %p48
        %s204 = sand.u32 %s64, 1
        %s205 = scalar_lea.sflag [#allocation3], %s204
        %s206 = sand.u32 %s64, 1
        %s207 = smul.addr %s206, 192
        %s208 = scalar_lea.vmem [#allocation2], %s207
        %p209 = pneg %p77
        %p210 = pneg %p74
        %p211 = pneg %p105
        %p212 = pneg %p102
        %p213 = scmp.lt.s32.totalorder %s22, 15
        %s214 = scalar_select %p213, %s22, 15
        %p215 = scmp.lt.s32.totalorder %s23, 0
        %s216 = scalar_select %p215, %s23, 0
        %s217 = sadd.s32 %s216, %s214
        %s218 = smul.addr %s217, 8
        %s219 = scalar_lea.vmem %s2, %s218
        %p220 = pneg %p133
        %p221 = pneg %p130
        %p222 = scmp.lt.s32.totalorder %s22, 15
        %s223 = scalar_select %p222, %s22, 15
        %p224 = scmp.lt.s32.totalorder %s23, 0
        %s225 = scalar_select %p224, %s23, 0
        %s226 = sadd.s32 %s225, %s223
        %s227 = smul.addr %s226, 2
        %s228 = scalar_lea.vmem %s3, %s227
        %p229 = scmp.lt.s32.totalorder %s23, 0
        %s230 = scalar_select %p229, %s23, 0
        %s231 = smul.addr %s230, 3
        %s232 = smul.addr %s231, 4
        %s233 = scalar_lea.vmem %s0, %s232
        %p234 = scmp.lt.s32.totalorder %s22, 15
        %s235 = scalar_select %p234, %s22, 15
        %p236 = scmp.lt.s32.totalorder %s23, 0
        %s237 = scalar_select %p236, %s23, 0
        %s238 = sadd.s32 %s237, %s235
        %s239 = smul.addr %s238, 8
        %s240 = scalar_lea.vmem %s2, %s239
        %p241 = scmp.lt.s32.totalorder %s22, 15
        %s242 = scalar_select %p241, %s22, 15
        %p243 = scmp.lt.s32.totalorder %s23, 0
        %s244 = scalar_select %p243, %s23, 0
        %s245 = sadd.s32 %s244, %s242
        %s246 = smul.addr %s245, 2
        %s247 = scalar_lea.vmem %s3, %s246
        %v249 = vld [vmem:[%s233] sm:$0xff]
        %v250 = vld [vmem:[%s233 + $0x8] sm:$0xf]
        %v251 = vld [vmem:[%s192] sm:$0xf]
        %v252 = vld [vmem:[%s192 + $0x4] sm:$0xf]
        %v253 = vld [vmem:[%s192 + $0x8] sm:$0xf]
        %v254 = vld [vmem:[%s192 + $0xc] sm:$0xf]
        %v255 = vld [vmem:[%s192 + $0x10] sm:$0xf]
        %v256 = vld [vmem:[%s192 + $0x14] sm:$0xf]
        %v257 = vld [vmem:[%s192 + $0x18] sm:$0xf]
        %v258 = vld [vmem:[%s192 + $0x1c] sm:$0xf]
        %v259 = vld [vmem:[%s192 + $0x20] sm:$0xf]
        %v260 = vld [vmem:[%s192 + $0x24] sm:$0xf]
        %v261 = vld [vmem:[%s192 + $0x28] sm:$0xf]
        %v262 = vld [vmem:[%s192 + $0x2c] sm:$0xf]
        %v263 = vld [vmem:[%s192 + $0x30] sm:$0xf]
        %v264 = vld [vmem:[%s192 + $0x34] sm:$0xf]
        %v265 = vld [vmem:[%s192 + $0x38] sm:$0xf]
        %v266 = vld [vmem:[%s192 + $0x3c] sm:$0xf]
        %v267 = vld [vmem:[%s192 + $0x40] sm:$0xf]
        %v268 = vld [vmem:[%s192 + $0x44] sm:$0xf]
        %v269 = vld [vmem:[%s192 + $0x48] sm:$0xf]
        %v270 = vld [vmem:[%s192 + $0x4c] sm:$0xf]
        %v271 = vld [vmem:[%s192 + $0x50] sm:$0xf]
        %v272 = vld [vmem:[%s192 + $0x54] sm:$0xf]
        %v273 = vld [vmem:[%s192 + $0x58] sm:$0xf]
        %v274 = vld [vmem:[%s192 + $0x5c] sm:$0xf]
        %v275 = vld [vmem:[%s192 + $0x60] sm:$0xf]
        %v276 = vld [vmem:[%s192 + $0x64] sm:$0xf]
        %v277 = vld [vmem:[%s192 + $0x68] sm:$0xf]
        %v278 = vld [vmem:[%s192 + $0x6c] sm:$0xf]
        %v279 = vld [vmem:[%s192 + $0x70] sm:$0xf]
        %v280 = vld [vmem:[%s192 + $0x74] sm:$0xf]
        %v281 = vld [vmem:[%s192 + $0x78] sm:$0xf]
        %v282 = vld [vmem:[%s192 + $0x7c] sm:$0xf]
        %v283 = vld [vmem:[%s192 + $0x80] sm:$0xf]
        %v284 = vld [vmem:[%s192 + $0x84] sm:$0xf]
        %v285 = vld [vmem:[%s192 + $0x88] sm:$0xf]
        %v286 = vld [vmem:[%s192 + $0x8c] sm:$0xf]
        %v287 = vld [vmem:[%s192 + $0x90] sm:$0xf]
        %v288 = vld [vmem:[%s192 + $0x94] sm:$0xf]
        %v289 = vld [vmem:[%s192 + $0x98] sm:$0xf]
        %v290 = vld [vmem:[%s192 + $0x9c] sm:$0xf]
        %v291 = vld [vmem:[%s192 + $0xa0] sm:$0xf]
        %v292 = vld [vmem:[%s192 + $0xa4] sm:$0xf]
        %v293 = vld [vmem:[%s192 + $0xa8] sm:$0xf]
        %v294 = vld [vmem:[%s192 + $0xac] sm:$0xf]
        %v295 = vld [vmem:[%s192 + $0xb0] sm:$0xf]
        %v296 = vld [vmem:[%s192 + $0xb4] sm:$0xf]
        %v297 = vld [vmem:[%s192 + $0xb8] sm:$0xf]
        %v298 = vld [vmem:[%s192 + $0xbc] sm:$0xf]
        %v301 = vunpack.c.l.b16 %v249
        %v302 = vunpack.c.h.b16 %v249
        %v303 = vunpack.c.l.b16 %v250
        %v304 = vpack.c.b16 %v301, %v301
        %v305 = vpack.c.b16 %v302, %v302
        %v306 = vpack.c.b16 %v303, %v303
        %v358 = vunpack.c.l.b16 %v251
        %v359 = vunpack.c.l.b16 %v252
        %v360 = vunpack.c.l.b16 %v253
        %v361 = vunpack.c.l.b16 %v254
        %v362 = vunpack.c.l.b16 %v255
        %v363 = vunpack.c.l.b16 %v256
        %v364 = vunpack.c.l.b16 %v257
        %v365 = vunpack.c.l.b16 %v258
        %v366 = vunpack.c.l.b16 %v259
        %v367 = vunpack.c.l.b16 %v260
        %v368 = vunpack.c.l.b16 %v261
        %v369 = vunpack.c.l.b16 %v262
        %v370 = vunpack.c.l.b16 %v263
        %v371 = vunpack.c.l.b16 %v264
        %v372 = vunpack.c.l.b16 %v265
        %v373 = vunpack.c.l.b16 %v266
        %v374 = vunpack.c.l.b16 %v267
        %v375 = vunpack.c.l.b16 %v268
        %v376 = vunpack.c.l.b16 %v269
        %v377 = vunpack.c.l.b16 %v270
        %v378 = vunpack.c.l.b16 %v271
        %v379 = vunpack.c.l.b16 %v272
        %v380 = vunpack.c.l.b16 %v273
        %v381 = vunpack.c.l.b16 %v274
        %v382 = vunpack.c.l.b16 %v275
        %v383 = vunpack.c.l.b16 %v276
        %v384 = vunpack.c.l.b16 %v277
        %v385 = vunpack.c.l.b16 %v278
        %v386 = vunpack.c.l.b16 %v279
        %v387 = vunpack.c.l.b16 %v280
        %v388 = vunpack.c.l.b16 %v281
        %v389 = vunpack.c.l.b16 %v282
        %v390 = vunpack.c.l.b16 %v283
        %v391 = vunpack.c.l.b16 %v284
        %v392 = vunpack.c.l.b16 %v285
        %v393 = vunpack.c.l.b16 %v286
        %v394 = vunpack.c.l.b16 %v287
        %v395 = vunpack.c.l.b16 %v288
        %v396 = vunpack.c.l.b16 %v289
        %v397 = vunpack.c.l.b16 %v290
        %v398 = vunpack.c.l.b16 %v291
        %v399 = vunpack.c.l.b16 %v292
        %v400 = vunpack.c.l.b16 %v293
        %v401 = vunpack.c.l.b16 %v294
        %v402 = vunpack.c.l.b16 %v295
        %v403 = vunpack.c.l.b16 %v296
        %v404 = vunpack.c.l.b16 %v297
        %v405 = vunpack.c.l.b16 %v298
        %v406 = vpack.c.b16 %v359, %v358
        %v407 = vpack.c.b16 %v361, %v360
        %v408 = vpack.c.b16 %v363, %v362
        %v409 = vpack.c.b16 %v365, %v364
        %v410 = vpack.c.b16 %v367, %v366
        %v411 = vpack.c.b16 %v369, %v368
        %v412 = vpack.c.b16 %v371, %v370
        %v413 = vpack.c.b16 %v373, %v372
        %v414 = vpack.c.b16 %v375, %v374
        %v415 = vpack.c.b16 %v377, %v376
        %v416 = vpack.c.b16 %v379, %v378
        %v417 = vpack.c.b16 %v381, %v380
        %v418 = vpack.c.b16 %v383, %v382
        %v419 = vpack.c.b16 %v385, %v384
        %v420 = vpack.c.b16 %v387, %v386
        %v421 = vpack.c.b16 %v389, %v388
        %v422 = vpack.c.b16 %v391, %v390
        %v423 = vpack.c.b16 %v393, %v392
        %v424 = vpack.c.b16 %v395, %v394
        %v425 = vpack.c.b16 %v397, %v396
        %v426 = vpack.c.b16 %v399, %v398
        %v427 = vpack.c.b16 %v401, %v400
        %v428 = vpack.c.b16 %v403, %v402
        %v429 = vpack.c.b16 %v405, %v404
        %454 = vmatprep.subr.bf16.mxu0 0
        %455 = vmatpush1.bf16.msra.mxu0 %v406
        %456 = vmatprep.subr.bf16.mxu0 0
        %457 = vmatpush1.bf16.msra.mxu0 %v407
        %458 = vmatprep.subr.bf16.mxu0 0
        %459 = vmatpush1.bf16.msra.mxu0 %v408
        %460 = vmatprep.subr.bf16.mxu0 0
        %461 = vmatpush1.bf16.msra.mxu0 %v409
        %462 = vmatprep.subr.bf16.mxu0 0
        %463 = vmatpush1.bf16.msra.mxu0 %v410
        %464 = vmatprep.subr.bf16.mxu0 0
        %465 = vmatpush1.bf16.msra.mxu0 %v411
        %466 = vmatprep.subr.bf16.mxu0 0
        %467 = vmatpush1.bf16.msra.mxu0 %v412
        %468 = vmatprep.subr.bf16.mxu0 0
        %469 = vmatpush1.bf16.msra.mxu0 %v413
        %470 = vmatprep.subr.bf16.mxu0 0
        %471 = vmatpush1.bf16.msra.mxu0 %v414
        %472 = vmatprep.subr.bf16.mxu0 0
        %473 = vmatpush1.bf16.msra.mxu0 %v415
        %474 = vmatprep.subr.bf16.mxu0 0
        %475 = vmatpush1.bf16.msra.mxu0 %v416
        %476 = vmatprep.subr.bf16.mxu0 0
        %477 = vmatpush1.bf16.msra.mxu0 %v417
        %478 = vmatprep.subr.bf16.mxu0 0
        %479 = vmatpush1.bf16.msra.mxu0 %v418
        %480 = vmatprep.subr.bf16.mxu0 0
        %481 = vmatpush1.bf16.msra.mxu0 %v419
        %482 = vmatprep.subr.bf16.mxu0 0
        %483 = vmatpush1.bf16.msra.mxu0 %v420
        %484 = vmatprep.subr.bf16.mxu0 0
        %485 = vmatpush1.bf16.msra.mxu0 %v421
        %486 = vmatprep.mubr.bf16.mxu0 %v305
        %487 = vmatmul.mubr.bf16.gmra.mrb[0].mxu0 %v304
        %v488 = vpop.f32.mrb[0].mxu0
        %v489 = vadd.f32 0.0, %v488
        %v490 = vpop.f32.mrb[0].mxu0
        %v491 = vpop.f32.mrb[0].mxu0
        %v492 = vpop.f32.mrb[0].mxu0
        %493 = vdwg.mxu0
        %494 = vmatprep.subr.bf16.mxu0 0
        %495 = vmatpush1.bf16.msra.mxu0 %v422
        %496 = vmatprep.subr.bf16.mxu0 0
        %497 = vmatpush1.bf16.msra.mxu0 %v423
        %498 = vmatprep.subr.bf16.mxu0 0
        %499 = vmatpush1.bf16.msra.mxu0 %v424
        %500 = vmatprep.subr.bf16.mxu0 0
        %501 = vmatpush1.bf16.msra.mxu0 %v425
        %502 = vmatprep.subr.bf16.mxu0 0
        %503 = vmatpush1.bf16.msra.mxu0 %v426
        %504 = vmatprep.subr.bf16.mxu0 0
        %505 = vmatpush1.bf16.msra.mxu0 %v427
        %506 = vmatprep.subr.bf16.mxu0 0
        %507 = vmatpush1.bf16.msra.mxu0 %v428
        %508 = vmatprep.subr.bf16.mxu0 0
        %509 = vmatpush1.bf16.msra.mxu0 %v429
        %510 = vmatprep.subr.bf16.mxu0 0
        %511 = vmatpush1.bf16.msra.mxu0 0
        %512 = vmatprep.subr.bf16.mxu0 0
        %513 = vmatpush1.bf16.msra.mxu0 0
        %514 = vmatprep.subr.bf16.mxu0 0
        %515 = vmatpush1.bf16.msra.mxu0 0
        %516 = vmatprep.subr.bf16.mxu0 0
        %517 = vmatpush1.bf16.msra.mxu0 0
        %518 = vmatprep.subr.bf16.mxu0 0
        %519 = vmatpush1.bf16.msra.mxu0 0
        %520 = vmatprep.subr.bf16.mxu0 0
        %521 = vmatpush1.bf16.msra.mxu0 0
        %522 = vmatprep.subr.bf16.mxu0 0
        %523 = vmatpush1.bf16.msra.mxu0 0
        %524 = vmatprep.subr.bf16.mxu0 0
        %525 = vmatpush1.bf16.msra.mxu0 0
        %526 = vmatprep.mubr.bf16.mxu0 0
        %527 = vmatmul.mubr.bf16.gmra.mrb[0].mxu0 %v306
        %v528 = vpop.f32.mrb[0].mxu0
        %v529 = vadd.f32 %v489, %v528
        %v530 = vpop.f32.mrb[0].mxu0
        %v531 = vpop.f32.mrb[0].mxu0
        %v532 = vpop.f32.mrb[0].mxu0
        %533 = vdwg.mxu0
        %534 = vst [vmem:[%s240] sm:$0xff] %v529
        %v535 = vrot.slane %v529, 4
        %v536 = vadd.f32 %v529, %v535
        %v537 = vrot.slane %v536, 2
        %v538 = vadd.f32 %v536, %v537
        %v539 = vrot.slane %v538, 1
        %v540 = vadd.f32 %v538, %v539
        %v541 = vmul.f32 %v529, %v529
        %v542 = vrot.slane %v541, 4
        %v543 = vadd.f32 %v541, %v542
        %v544 = vrot.slane %v543, 2
        %v545 = vadd.f32 %v543, %v544
        %v546 = vrot.slane %v545, 1
        %v547 = vadd.f32 %v545, %v546
        %vm548 = vcmask 1040384
        %v549 = vsel %vm548, %v540, %v547
        %550 = vst [vmem:[%s247] sm:$0x3] %v549
        %p551 = scmp.lt.s32.totalorder %s22, 15
        %s552 = scalar_select %p551, %s22, 15
        %p553 = scmp.lt.s32.totalorder %s23, 0
        %s554 = scalar_select %p553, %s23, 0
        %s555 = sadd.s32 %s554, %s552
        %s556 = smul.addr %s555, 8
        %s557 = scalar_lea.vmem %s2, %s556
        %p558 = scmp.lt.s32.totalorder %s22, 15
        %s559 = scalar_select %p558, %s22, 15
        %p560 = scmp.lt.s32.totalorder %s23, 0
        %s561 = scalar_select %p560, %s23, 0
        %s562 = sadd.s32 %s561, %s559
        %s563 = smul.addr %s562, 2
        %s564 = scalar_lea.vmem %s3, %s563
        // Predicated region
        $region33: #{generator_forward.11} parent=27 // pred_check
          %p565 = pneg %p102
        $region34: #{generator_forward.11} parent=27 // pred_check_branch
          %567 = sbr.rel (%p565) target = $region36
        $region35: #{generator_forward.11} parent=27 // pred_region
          _
        $region36: #{generator_forward.11} parent=27 // pred_fallthru
          _
        // Predicated region
        $region37: #{generator_forward.11} parent=27 // pred_check
          %p568 = pneg %p130
        $region38: #{generator_forward.11} parent=27 // pred_check_branch
          %570 = sbr.rel (%p568) target = $region40
        $region39: #{generator_forward.11} parent=27 // pred_region
          _
        $region40: #{generator_forward.11} parent=27 // pred_fallthru
          _
      $region28: #{generator_forward.11} parent=5 // pred_fallthru
        _
      %p571 = scmp.le.s32.totalorder 2, %s13
      // Predicated region
      $region41: #{generator_forward.11} parent=5 // pred_check
        %p572 = pneg %p571
      $region42: #{generator_forward.11} parent=5 // pred_check_branch
        %574 = sbr.rel (%p572) target = $region44
      $region43: #{generator_forward.11} parent=5 // pred_region
        %s575 = ssub.s32 %s13, 2
        // Predicated region
        $region45: #{generator_forward.11} parent=43 // pred_check
          %p576 = pneg %p108
        $region46: #{generator_forward.11} parent=43 // pred_check_branch
          %578 = sbr.rel (%p576) target = $region48
        $region47: #{generator_forward.11} parent=43 // pred_region
          %p579 = scmp.lt.s32.totalorder %s24, 15
          %s580 = scalar_select %p579, %s24, 15
          %p581 = scmp.lt.s32.totalorder %s25, 0
          %s582 = scalar_select %p581, %s25, 0
          %s583 = sadd.s32 %s582, %s580
          %s584 = smul.addr %s583, 8
          %s585 = scalar_lea.vmem %s2, %s584
        $region48: #{generator_forward.11} parent=43 // pred_fallthru
          _
        // Predicated region
        $region49: #{generator_forward.11} parent=43 // pred_check
          %p586 = pneg %p136
        $region50: #{generator_forward.11} parent=43 // pred_check_branch
          %588 = sbr.rel (%p586) target = $region52
        $region51: #{generator_forward.11} parent=43 // pred_region
          %p589 = scmp.lt.s32.totalorder %s24, 15
          %s590 = scalar_select %p589, %s24, 15
          %p591 = scmp.lt.s32.totalorder %s25, 0
          %s592 = scalar_select %p591, %s25, 0
          %s593 = sadd.s32 %s592, %s590
          %s594 = smul.addr %s593, 2
          %s595 = scalar_lea.vmem %s3, %s594
        $region52: #{generator_forward.11} parent=43 // pred_fallthru
          _
      $region44: #{generator_forward.11} parent=5 // pred_fallthru
        _
    $region6: #{generator_forward.11} parent=1 // loop_footer
      %s17 = sadd.s32 1, %s13
    $region7: #{generator_forward.11} parent=1 // loop_footer_branch
      %12 = sbr.rel target = $region3
    $region8: #{generator_forward.11} parent=1 // loop_exit
      _
    %596 = vsyncpa [#allocation3], 1
    %s597 = scalar_lea.sflag [#allocation3], 1
    %598 = vsyncpa %s597, 1

// kernel: generator_forward.13
$region0: #{generator_forward.13}
  #allocation0 [shape = 'u32[]', space=smem, size = 0x4, offset = 0x4, fixed_abs, tag = 'smem constant byte address 0x4 - core index']
  #allocation1 [shape = 'u32[144,128]{1,0:T(1,128)}', space=vmem, size = 0x12000, scoped, tag = 'internal scratch']
  %s0 = inlined_call_operand.vmem [shape: bf16[4,32,512], index: 0, kind: input, shape index: {}]
  %s1 = inlined_call_operand.hbm [shape: bf16[4,512,128], index: 1, kind: input, shape index: {}]
  %s2 = inlined_call_operand.vmem [shape: f32[4,32,128], index: 2, kind: output, shape index: {0}]
  %s3 = inlined_call_operand.vmem [shape: f32[4,1,2,128], index: 3, kind: output, shape index: {1}]
  %4 = xla_tuple %s2, %s3
  %s5 = sld [smem:[#allocation0]]
  $region53: #{generator_forward.13} parent=0
    _
  %s7 = ssub.s32 1, %s5
  %s8 = scalar_select 0, %s7, %s5
  $region1: #{generator_forward.13} parent=0
    #allocation2 [shape = 'u8[262144]{0}', space=vmem, size = 0x40000, scoped, tag = 'input window, operand 1']
    #allocation3 [shape = 's32[2]{0}', space=sflag, size = 0x8, scoped, tag = 'scoped memory for generator_forward.13']
    %9 = vsyncpa [#allocation3], 0
    %s10 = scalar_lea.sflag [#allocation3], 1
    %11 = vsyncpa %s10, 0
    loop: start=0, step=1, limit=6
    $region2: #{generator_forward.13} parent=1 // loop_pre_header
      _
    $region3: #{generator_forward.13} parent=1 // loop_header
      %s13 = sphi 0, %s17
      %p14 = scmp.ge.s32.totalorder %s13, 6
      %s20 = sphi 0, %s32
      %s21 = sphi 0, %s28
      %s22 = sphi 0, %s20
      %s23 = sphi 0, %s21
      %s24 = sphi 0, %s22
      %s25 = sphi 0, %s23
      %s37 = sphi 0, %s39
      %s40 = sphi 0, %s37
      %s41 = sphi 0, %s40
      %s57 = sphi 0, %s41
      %s63 = sphi 0, %s65
      %s66 = sphi 0, %s63
      %s67 = sphi 0, %s66
      %s83 = sphi 0, %s67
      %s91 = sphi 0, %s93
      %s94 = sphi 0, %s91
      %s95 = sphi 0, %s94
      %s111 = sphi 0, %s95
      %s119 = sphi 0, %s121
      %s122 = sphi 0, %s119
      %s123 = sphi 0, %s122
      %s139 = sphi 0, %s123
    $region4: #{generator_forward.13} parent=1 // loop_header_branch
      %16 = sbr.rel (%p14) target = $region8
    $region5: #{generator_forward.13} parent=1 // loop_body
      %s18 = ssub.s32 %s13, 1
      %s19 = ssub.s32 %s13, 2
      %s26 = sadd.s32 1, %s21
      %p27 = scmp.ge.s32.totalorder %s26, 1
      %s28 = scalar_select %p27, 0, %s26
      %s29 = sadd.s32 1, %s20
      %s30 = scalar_select %p27, %s29, %s20
      %p31 = scmp.ge.s32.totalorder %s30, 4
      %s32 = scalar_select %p31, 0, %s30
      %s33 = ssub.s32 %s20, %s32
      %s34 = ssub.s32 %s21, %s28
      %s35 = sor.u32 %s33, %s34
      %p36 = scmp.eq.s32.totalorder %s35, 0
      %s38 = sadd.s32 %s37, 1
      %s39 = scalar_select %p36, %s37, %s38
      %p42 = pneg %p36
      %p43 = scmp.eq.s32.totalorder %s13, 3
      %p44 = por %p42, %p43
      %p45 = scmp.ne.s32.totalorder %s37, %s40
      %p46 = scmp.eq.s32.totalorder %s13, 0
      %p47 = por %p45, %p46
      %p48 = scmp.ne.s32.totalorder %s37, %s40
      %p49 = scmp.eq.s32.totalorder %s18, 3
      %p50 = por %p48, %p49
      %p51 = scmp.ne.s32.totalorder %s40, %s41
      %p52 = scmp.eq.s32.totalorder %s18, 0
      %p53 = por %p51, %p52
      %p54 = scmp.ne.s32.totalorder %s40, %s41
      %p55 = scmp.eq.s32.totalorder %s19, 3
      %p56 = por %p54, %p55
      %p58 = scmp.ne.s32.totalorder %s41, %s57
      %p59 = scmp.eq.s32.totalorder %s19, 0
      %p60 = por %p58, %p59
      %s61 = ssub.s32 %s20, %s32
      %p62 = scmp.eq.s32.totalorder %s61, 0
      %s64 = sadd.s32 %s63, 1
      %s65 = scalar_select %p62, %s63, %s64
      %p68 = pneg %p62
      %p69 = scmp.eq.s32.totalorder %s13, 3
      %p70 = por %p68, %p69
      %p71 = scmp.ne.s32.totalorder %s63, %s66
      %p72 = scmp.eq.s32.totalorder %s13, 0
      %p73 = por %p71, %p72
      %p74 = scmp.ne.s32.totalorder %s63, %s66
      %p75 = scmp.eq.s32.totalorder %s18, 3
      %p76 = por %p74, %p75
      %p77 = scmp.ne.s32.totalorder %s66, %s67
      %p78 = scmp.eq.s32.totalorder %s18, 0
      %p79 = por %p77, %p78
      %p80 = scmp.ne.s32.totalorder %s66, %s67
      %p81 = scmp.eq.s32.totalorder %s19, 3
      %p82 = por %p80, %p81
      %p84 = scmp.ne.s32.totalorder %s67, %s83
      %p85 = scmp.eq.s32.totalorder %s19, 0
      %p86 = por %p84, %p85
      %s87 = ssub.s32 %s20, %s32
      %s88 = ssub.s32 %s21, %s28
      %s89 = sor.u32 %s87, %s88
      %p90 = scmp.eq.s32.totalorder %s89, 0
      %s92 = sadd.s32 %s91, 1
      %s93 = scalar_select %p90, %s91, %s92
      %p96 = pneg %p90
      %p97 = scmp.eq.s32.totalorder %s13, 3
      %p98 = por %p96, %p97
      %p99 = scmp.ne.s32.totalorder %s91, %s94
      %p100 = scmp.eq.s32.totalorder %s13, 0
      %p101 = por %p99, %p100
      %p102 = scmp.ne.s32.totalorder %s91, %s94
      %p103 = scmp.eq.s32.totalorder %s18, 3
      %p104 = por %p102, %p103
      %p105 = scmp.ne.s32.totalorder %s94, %s95
      %p106 = scmp.eq.s32.totalorder %s18, 0
      %p107 = por %p105, %p106
      %p108 = scmp.ne.s32.totalorder %s94, %s95
      %p109 = scmp.eq.s32.totalorder %s19, 3
      %p110 = por %p108, %p109
      %p112 = scmp.ne.s32.totalorder %s95, %s111
      %p113 = scmp.eq.s32.totalorder %s19, 0
      %p114 = por %p112, %p113
      %s115 = ssub.s32 %s20, %s32
      %s116 = ssub.s32 %s21, %s28
      %s117 = sor.u32 %s115, %s116
      %p118 = scmp.eq.s32.totalorder %s117, 0
      %s120 = sadd.s32 %s119, 1
      %s121 = scalar_select %p118, %s119, %s120
      %p124 = pneg %p118
      %p125 = scmp.eq.s32.totalorder %s13, 3
      %p126 = por %p124, %p125
      %p127 = scmp.ne.s32.totalorder %s119, %s122
      %p128 = scmp.eq.s32.totalorder %s13, 0
      %p129 = por %p127, %p128
      %p130 = scmp.ne.s32.totalorder %s119, %s122
      %p131 = scmp.eq.s32.totalorder %s18, 3
      %p132 = por %p130, %p131
      %p133 = scmp.ne.s32.totalorder %s122, %s123
      %p134 = scmp.eq.s32.totalorder %s18, 0
      %p135 = por %p133, %p134
      %p136 = scmp.ne.s32.totalorder %s122, %s123
      %p137 = scmp.eq.s32.totalorder %s19, 3
      %p138 = por %p136, %p137
      %p140 = scmp.ne.s32.totalorder %s123, %s139
      %p141 = scmp.eq.s32.totalorder %s19, 0
      %p142 = por %p140, %p141
      %p143 = scmp.le.s32.totalorder 1, %s13
      %p144 = scmp.lt.s32.totalorder %s13, 5
      %p145 = pnand %p143, %p144
      %p146 = pneg %p145
      // Predicated region
      $region9: #{generator_forward.13} parent=5 // pred_check
        _
      $region10: #{generator_forward.13} parent=5 // pred_check_branch
        %148 = sbr.rel (%p145) target = $region12
      $region11: #{generator_forward.13} parent=5 // pred_region
        %s149 = ssub.s32 %s13, 1
      $region12: #{generator_forward.13} parent=5 // pred_fallthru
        _
      %p150 = scmp.lt.s32.totalorder %s13, 4
      // Predicated region
      $region13: #{generator_forward.13} parent=5 // pred_check
        %p151 = pneg %p150
      $region14: #{generator_forward.13} parent=5 // pred_check_branch
        %153 = sbr.rel (%p151) target = $region16
      $region15: #{generator_forward.13} parent=5 // pred_region
        // Predicated region
        $region17: #{generator_forward.13} parent=15 // pred_check
          %p154 = pneg %p47
        $region18: #{generator_forward.13} parent=15 // pred_check_branch
          %156 = sbr.rel (%p154) target = $region20
        $region19: #{generator_forward.13} parent=15 // pred_region
          %s157 = smul.u32 4, %s21
          %p158 = scmp.lt.s32.totalorder %s20, 3
          %s159 = scalar_select %p158, %s20, 3
          %p160 = scmp.lt.s32.totalorder %s157, 3
          %s161 = scalar_select %p160, %s157, 3
          %s162 = smul.addr %s161, 4
          %s163 = smul.addr %s159, 16
          %s164 = sadd.s32 %s162, %s163
          %s165 = smul.addr %s164, 4
          %s166 = scalar_lea.vmem %s0, %s165
          %s167 = smul.u32 4, %s21
        $region20: #{generator_forward.13} parent=15 // pred_fallthru
          _
        // Predicated region
        $region21: #{generator_forward.13} parent=15 // pred_check
          %p168 = pneg %p73
        $region22: #{generator_forward.13} parent=15 // pred_check_branch
          %170 = sbr.rel (%p168) target = $region24
        $region23: #{generator_forward.13} parent=15 // pred_region
          %s171 = sand.u32 %s63, 1
          %s172 = scalar_lea.sflag [#allocation3], %s171
          %s173 = sand.u32 %s63, 1
          %s174 = smul.addr %s173, 256
          %s175 = scalar_lea.vmem [#allocation2], %s174
          %s177 = ssub.s32 4096, 4096
          %178 = vsyncadd %s172, %s177
          %s179 = smul.addr %s20, 64
          %s180 = smul.addr %s179, 64
          %s181 = scalar_lea.hbm %s1, %s180
          %s182 = sshll.u32 %s175, 4
          %s183 = int_to_ptr.vmem [resolvable:$true] %s182
          %188 = dma.hbm_to_vmem [thread:$0]  %s181, 4096, %s183, %s172, 64, 64, 4
        $region24: #{generator_forward.13} parent=15 // pred_fallthru
          _
      $region16: #{generator_forward.13} parent=5 // pred_fallthru
        _
      %p189 = scmp.le.s32.totalorder 1, %s13
      %p190 = scmp.lt.s32.totalorder %s13, 5
      %p191 = pnand %p189, %p190
      %p192 = pneg %p191
      // Predicated region
      $region25: #{generator_forward.13} parent=5 // pred_check
        _
      $region26: #{generator_forward.13} parent=5 // pred_check_branch
        %194 = sbr.rel (%p191) target = $region28
      $region27: #{generator_forward.13} parent=5 // pred_region
        %s195 = ssub.s32 %s13, 1
        %s196 = sand.u32 %s66, 1
        %s197 = scalar_lea.sflag [#allocation3], %s196
        %s198 = sand.u32 %s66, 1
        %s199 = smul.addr %s198, 256
        %s200 = scalar_lea.vmem [#allocation2], %s199
        // Predicated region
        $region29: #{generator_forward.13} parent=27 // pred_check
          %p201 = pneg %p79
        $region30: #{generator_forward.13} parent=27 // pred_check_branch
          %203 = sbr.rel (%p201) target = $region32
        $region31: #{generator_forward.13} parent=27 // pred_region
          %204 = dma.done %s197, 4096
        $region32: #{generator_forward.13} parent=27 // pred_fallthru
          _
        %s205 = smul.u32 4, %s23
        %p206 = scmp.lt.s32.totalorder %s22, 3
        %s207 = scalar_select %p206, %s22, 3
        %p208 = scmp.lt.s32.totalorder %s205, 3
        %s209 = scalar_select %p208, %s205, 3
        %s210 = smul.addr %s209, 4
        %s211 = smul.addr %s207, 16
        %s212 = sadd.s32 %s210, %s211
        %s213 = smul.addr %s212, 4
        %s214 = scalar_lea.vmem %s0, %s213
        %p215 = pneg %p53
        %p216 = pneg %p50
        %s217 = sand.u32 %s66, 1
        %s218 = scalar_lea.sflag [#allocation3], %s217
        %s219 = sand.u32 %s66, 1
        %s220 = smul.addr %s219, 256
        %s221 = scalar_lea.vmem [#allocation2], %s220
        %p222 = pneg %p79
        %p223 = pneg %p76
        %p224 = pneg %p107
        %p225 = pneg %p104
        %s226 = smul.u32 4, %s23
        %p227 = scmp.lt.s32.totalorder %s22, 3
        %s228 = scalar_select %p227, %s22, 3
        %p229 = scmp.lt.s32.totalorder %s226, 3
        %s230 = scalar_select %p229, %s226, 3
        %s231 = smul.addr %s228, 4
        %s232 = sadd.s32 %s230, %s231
        %s233 = smul.addr %s232, 8
        %s234 = scalar_lea.vmem %s2, %s233
        %p235 = pneg %p135
        %p236 = pneg %p132
        %p237 = scmp.lt.s32.totalorder %s22, 3
        %s238 = scalar_select %p237, %s22, 3
        %p239 = scmp.lt.s32.totalorder %s23, 0
        %s240 = scalar_select %p239, %s23, 0
        %s241 = sadd.s32 %s240, %s238
        %s242 = smul.addr %s241, 2
        %s243 = scalar_lea.vmem %s3, %s242
        %s244 = smul.u32 4, %s23
        %p245 = scmp.lt.s32.totalorder %s22, 3
        %s246 = scalar_select %p245, %s22, 3
        %p247 = scmp.lt.s32.totalorder %s244, 3
        %s248 = scalar_select %p247, %s244, 3
        %s249 = smul.addr %s248, 4
        %s250 = smul.addr %s246, 16
        %s251 = sadd.s32 %s249, %s250
        %s252 = smul.addr %s251, 4
        %s253 = scalar_lea.vmem %s0, %s252
        %s254 = smul.u32 4, %s23
        %s255 = smul.u32 4, %s23
        %p256 = scmp.lt.s32.totalorder %s22, 3
        %s257 = scalar_select %p256, %s22, 3
        %p258 = scmp.lt.s32.totalorder %s255, 3
        %s259 = scalar_select %p258, %s255, 3
        %s260 = smul.addr %s257, 4
        %s261 = sadd.s32 %s259, %s260
        %s262 = smul.addr %s261, 8
        %s263 = scalar_lea.vmem %s2, %s262
        %s264 = smul.u32 4, %s23
        %p265 = scmp.lt.s32.totalorder %s22, 3
        %s266 = scalar_select %p265, %s22, 3
        %p267 = scmp.lt.s32.totalorder %s23, 0
        %s268 = scalar_select %p267, %s23, 0
        %s269 = sadd.s32 %s268, %s266
        %s270 = smul.addr %s269, 2
        %s271 = scalar_lea.vmem %s3, %s270
        %v273 = vld [vmem:[%s253] sm:$0xff]
        %v274 = vld [vmem:[%s253 + $0x8] sm:$0xff]
        %v275 = vld [vmem:[%s253 + $0x10] sm:$0xff]
        %v276 = vld [vmem:[%s253 + $0x18] sm:$0xff]
        %v277 = vld [vmem:[%s253 + $0x20] sm:$0xff]
        %v278 = vld [vmem:[%s253 + $0x28] sm:$0xff]
        %v279 = vld [vmem:[%s253 + $0x30] sm:$0xff]
        %v280 = vld [vmem:[%s253 + $0x38] sm:$0xff]
        %v281 = vld [vmem:[%s200] sm:$0xf]
        %v282 = vld [vmem:[%s200 + $0x4] sm:$0xf]
        %v283 = vld [vmem:[%s200 + $0x8] sm:$0xf]
        %v284 = vld [vmem:[%s200 + $0xc] sm:$0xf]
        %v285 = vld [vmem:[%s200 + $0x10] sm:$0xf]
        %v286 = vld [vmem:[%s200 + $0x14] sm:$0xf]
        %v287 = vld [vmem:[%s200 + $0x18] sm:$0xf]
        %v288 = vld [vmem:[%s200 + $0x1c] sm:$0xf]
        %v289 = vld [vmem:[%s200 + $0x20] sm:$0xf]
        %v290 = vld [vmem:[%s200 + $0x24] sm:$0xf]
        %v291 = vld [vmem:[%s200 + $0x28] sm:$0xf]
        %v292 = vld [vmem:[%s200 + $0x2c] sm:$0xf]
        %v293 = vld [vmem:[%s200 + $0x30] sm:$0xf]
        %v294 = vld [vmem:[%s200 + $0x34] sm:$0xf]
        %v295 = vld [vmem:[%s200 + $0x38] sm:$0xf]
        %v296 = vld [vmem:[%s200 + $0x3c] sm:$0xf]
        %v297 = vld [vmem:[%s200 + $0x40] sm:$0xf]
        %v298 = vld [vmem:[%s200 + $0x44] sm:$0xf]
        %v299 = vld [vmem:[%s200 + $0x48] sm:$0xf]
        %v300 = vld [vmem:[%s200 + $0x4c] sm:$0xf]
        %v301 = vld [vmem:[%s200 + $0x50] sm:$0xf]
        %v302 = vld [vmem:[%s200 + $0x54] sm:$0xf]
        %v303 = vld [vmem:[%s200 + $0x58] sm:$0xf]
        %v304 = vld [vmem:[%s200 + $0x5c] sm:$0xf]
        %v305 = vld [vmem:[%s200 + $0x60] sm:$0xf]
        %v306 = vld [vmem:[%s200 + $0x64] sm:$0xf]
        %v307 = vld [vmem:[%s200 + $0x68] sm:$0xf]
        %v308 = vld [vmem:[%s200 + $0x6c] sm:$0xf]
        %v309 = vld [vmem:[%s200 + $0x70] sm:$0xf]
        %v310 = vld [vmem:[%s200 + $0x74] sm:$0xf]
        %v311 = vld [vmem:[%s200 + $0x78] sm:$0xf]
        %v312 = vld [vmem:[%s200 + $0x7c] sm:$0xf]
        %v313 = vld [vmem:[%s200 + $0x80] sm:$0xf]
        %v314 = vld [vmem:[%s200 + $0x84] sm:$0xf]
        %v315 = vld [vmem:[%s200 + $0x88] sm:$0xf]
        %v316 = vld [vmem:[%s200 + $0x8c] sm:$0xf]
        %v317 = vld [vmem:[%s200 + $0x90] sm:$0xf]
        %v318 = vld [vmem:[%s200 + $0x94] sm:$0xf]
        %v319 = vld [vmem:[%s200 + $0x98] sm:$0xf]
        %v320 = vld [vmem:[%s200 + $0x9c] sm:$0xf]
        %v321 = vld [vmem:[%s200 + $0xa0] sm:$0xf]
        %v322 = vld [vmem:[%s200 + $0xa4] sm:$0xf]
        %v323 = vld [vmem:[%s200 + $0xa8] sm:$0xf]
        %v324 = vld [vmem:[%s200 + $0xac] sm:$0xf]
        %v325 = vld [vmem:[%s200 + $0xb0] sm:$0xf]
        %v326 = vld [vmem:[%s200 + $0xb4] sm:$0xf]
        %v327 = vld [vmem:[%s200 + $0xb8] sm:$0xf]
        %v328 = vld [vmem:[%s200 + $0xbc] sm:$0xf]
        %v329 = vld [vmem:[%s200 + $0xc0] sm:$0xf]
        %v330 = vld [vmem:[%s200 + $0xc4] sm:$0xf]
        %v331 = vld [vmem:[%s200 + $0xc8] sm:$0xf]
        %v332 = vld [vmem:[%s200 + $0xcc] sm:$0xf]
        %v333 = vld [vmem:[%s200 + $0xd0] sm:$0xf]
        %v334 = vld [vmem:[%s200 + $0xd4] sm:$0xf]
        %v335 = vld [vmem:[%s200 + $0xd8] sm:$0xf]
        %v336 = vld [vmem:[%s200 + $0xdc] sm:$0xf]
        %v337 = vld [vmem:[%s200 + $0xe0] sm:$0xf]
        %v338 = vld [vmem:[%s200 + $0xe4] sm:$0xf]
        %v339 = vld [vmem:[%s200 + $0xe8] sm:$0xf]
        %v340 = vld [vmem:[%s200 + $0xec] sm:$0xf]
        %v341 = vld [vmem:[%s200 + $0xf0] sm:$0xf]
        %v342 = vld [vmem:[%s200 + $0xf4] sm:$0xf]
        %v343 = vld [vmem:[%s200 + $0xf8] sm:$0xf]
        %v344 = vld [vmem:[%s200 + $0xfc] sm:$0xf]
        %v353 = vunpack.c.l.b16 %v273
        %v354 = vunpack.c.h.b16 %v273
        %v355 = vunpack.c.l.b16 %v274
        %v356 = vunpack.c.h.b16 %v274
        %v357 = vunpack.c.l.b16 %v275
        %v358 = vunpack.c.h.b16 %v275
        %v359 = vunpack.c.l.b16 %v276
        %v360 = vunpack.c.h.b16 %v276
        %v361 = vunpack.c.l.b16 %v277
        %v362 = vunpack.c.h.b16 %v277
        %v363 = vunpack.c.l.b16 %v278
        %v364 = vunpack.c.h.b16 %v278
        %v365 = vunpack.c.l.b16 %v279
        %v366 = vunpack.c.h.b16 %v279
        %v367 = vunpack.c.l.b16 %v280
        %v368 = vunpack.c.h.b16 %v280
        %v369 = vpack.c.b16 %v357, %v353
        %v370 = vpack.c.b16 %v358, %v354
        %v371 = vpack.c.b16 %v359, %v355
        %v372 = vpack.c.b16 %v360, %v356
        %v373 = vpack.c.b16 %v365, %v361
        %v374 = vpack.c.b16 %v366, %v362
        %v375 = vpack.c.b16 %v367, %v363
        %v376 = vpack.c.b16 %v368, %v364
        %v449 = vunpack.c.l.b16 %v281
        %v450 = vunpack.c.l.b16 %v282
        %v451 = vunpack.c.l.b16 %v283
        %v452 = vunpack.c.l.b16 %v284
        %v453 = vunpack.c.l.b16 %v285
        %v454 = vunpack.c.l.b16 %v286
        %v455 = vunpack.c.l.b16 %v287
        %v456 = vunpack.c.l.b16 %v288
        %v457 = vunpack.c.l.b16 %v289
        %v458 = vunpack.c.l.b16 %v290
        %v459 = vunpack.c.l.b16 %v291
        %v460 = vunpack.c.l.b16 %v292
        %v461 = vunpack.c.l.b16 %v293
        %v462 = vunpack.c.l.b16 %v294
        %v463 = vunpack.c.l.b16 %v295
        %v464 = vunpack.c.l.b16 %v296
        %v465 = vunpack.c.l.b16 %v297
        %v466 = vunpack.c.l.b16 %v298
        %v467 = vunpack.c.l.b16 %v299
        %v468 = vunpack.c.l.b16 %v300
        %v469 = vunpack.c.l.b16 %v301
        %v470 = vunpack.c.l.b16 %v302
        %v471 = vunpack.c.l.b16 %v303
        %v472 = vunpack.c.l.b16 %v304
        %v473 = vunpack.c.l.b16 %v305
        %v474 = vunpack.c.l.b16 %v306
        %v475 = vunpack.c.l.b16 %v307
        %v476 = vunpack.c.l.b16 %v308
        %v477 = vunpack.c.l.b16 %v309
        %v478 = vunpack.c.l.b16 %v310
        %v479 = vunpack.c.l.b16 %v311
        %v480 = vunpack.c.l.b16 %v312
        %v481 = vunpack.c.l.b16 %v313
        %v482 = vunpack.c.l.b16 %v314
        %v483 = vunpack.c.l.b16 %v315
        %v484 = vunpack.c.l.b16 %v316
        %v485 = vunpack.c.l.b16 %v317
        %v486 = vunpack.c.l.b16 %v318
        %v487 = vunpack.c.l.b16 %v319
        %v488 = vunpack.c.l.b16 %v320
        %v489 = vunpack.c.l.b16 %v321
        %v490 = vunpack.c.l.b16 %v322
        %v491 = vunpack.c.l.b16 %v323
        %v492 = vunpack.c.l.b16 %v324
        %v493 = vunpack.c.l.b16 %v325
        %v494 = vunpack.c.l.b16 %v326
        %v495 = vunpack.c.l.b16 %v327
        %v496 = vunpack.c.l.b16 %v328
        %v497 = vunpack.c.l.b16 %v329
        %v498 = vunpack.c.l.b16 %v330
        %v499 = vunpack.c.l.b16 %v331
        %v500 = vunpack.c.l.b16 %v332
        %v501 = vunpack.c.l.b16 %v333
        %v502 = vunpack.c.l.b16 %v334
        %v503 = vunpack.c.l.b16 %v335
        %v504 = vunpack.c.l.b16 %v336
        %v505 = vunpack.c.l.b16 %v337
        %v506 = vunpack.c.l.b16 %v338
        %v507 = vunpack.c.l.b16 %v339
        %v508 = vunpack.c.l.b16 %v340
        %v509 = vunpack.c.l.b16 %v341
        %v510 = vunpack.c.l.b16 %v342
        %v511 = vunpack.c.l.b16 %v343
        %v512 = vunpack.c.l.b16 %v344
        %v513 = vpack.c.b16 %v450, %v449
        %v514 = vpack.c.b16 %v452, %v451
        %v515 = vpack.c.b16 %v454, %v453
        %v516 = vpack.c.b16 %v456, %v455
        %v517 = vpack.c.b16 %v458, %v457
        %v518 = vpack.c.b16 %v460, %v459
        %v519 = vpack.c.b16 %v462, %v461
        %v520 = vpack.c.b16 %v464, %v463
        %v521 = vpack.c.b16 %v466, %v465
        %v522 = vpack.c.b16 %v468, %v467
        %v523 = vpack.c.b16 %v470, %v469
        %v524 = vpack.c.b16 %v472, %v471
        %v525 = vpack.c.b16 %v474, %v473
        %v526 = vpack.c.b16 %v476, %v475
        %v527 = vpack.c.b16 %v478, %v477
        %v528 = vpack.c.b16 %v480, %v479
        %v529 = vpack.c.b16 %v482, %v481
        %v530 = vpack.c.b16 %v484, %v483
        %v531 = vpack.c.b16 %v486, %v485
        %v532 = vpack.c.b16 %v488, %v487
        %v533 = vpack.c.b16 %v490, %v489
        %v534 = vpack.c.b16 %v492, %v491
        %v535 = vpack.c.b16 %v494, %v493
        %v536 = vpack.c.b16 %v496, %v495
        %v537 = vpack.c.b16 %v498, %v497
        %v538 = vpack.c.b16 %v500, %v499
        %v539 = vpack.c.b16 %v502, %v501
        %v540 = vpack.c.b16 %v504, %v503
        %v541 = vpack.c.b16 %v506, %v505
        %v542 = vpack.c.b16 %v508, %v507
        %v543 = vpack.c.b16 %v510, %v509
        %v544 = vpack.c.b16 %v512, %v511
        %577 = vmatprep.subr.bf16.mxu0 0
        %578 = vmatpush1.bf16.msra.mxu0 %v513
        %579 = vmatprep.subr.bf16.mxu0 0
        %580 = vmatpush1.bf16.msra.mxu0 %v514
        %581 = vmatprep.subr.bf16.mxu0 0
        %582 = vmatpush1.bf16.msra.mxu0 %v515
        %583 = vmatprep.subr.bf16.mxu0 0
        %584 = vmatpush1.bf16.msra.mxu0 %v516
        %585 = vmatprep.subr.bf16.mxu0 0
        %586 = vmatpush1.bf16.msra.mxu0 %v517
        %587 = vmatprep.subr.bf16.mxu0 0
        %588 = vmatpush1.bf16.msra.mxu0 %v518
        %589 = vmatprep.subr.bf16.mxu0 0
        %590 = vmatpush1.bf16.msra.mxu0 %v519
        %591 = vmatprep.subr.bf16.mxu0 0
        %592 = vmatpush1.bf16.msra.mxu0 %v520
        %593 = vmatprep.subr.bf16.mxu0 0
        %594 = vmatpush1.bf16.msra.mxu0 %v521
        %595 = vmatprep.subr.bf16.mxu0 0
        %596 = vmatpush1.bf16.msra.mxu0 %v522
        %597 = vmatprep.subr.bf16.mxu0 0
        %598 = vmatpush1.bf16.msra.mxu0 %v523
        %599 = vmatprep.subr.bf16.mxu0 0
        %600 = vmatpush1.bf16.msra.mxu0 %v524
        %601 = vmatprep.subr.bf16.mxu0 0
        %602 = vmatpush1.bf16.msra.mxu0 %v525
        %603 = vmatprep.subr.bf16.mxu0 0
        %604 = vmatpush1.bf16.msra.mxu0 %v526
        %605 = vmatprep.subr.bf16.mxu0 0
        %606 = vmatpush1.bf16.msra.mxu0 %v527
        %607 = vmatprep.subr.bf16.mxu0 0
        %608 = vmatpush1.bf16.msra.mxu0 %v528
        %609 = vmatprep.mubr.bf16.mxu0 %v370
        %610 = vmatmul.mubr.bf16.gmra.mrb[0].mxu0 %v369
        %v611 = vpop.f32.mrb[0].mxu0
        %v612 = vadd.f32 0.0, %v611
        %v613 = vpop.f32.mrb[0].mxu0
        %v614 = vpop.f32.mrb[0].mxu0
        %v615 = vadd.f32 0.0, %v614
        %v616 = vpop.f32.mrb[0].mxu0
        %617 = vmatprep.mubr.bf16.mxu0 %v374
        %618 = vmatmul.mubr.bf16.gmra.mrb[0].mxu0 %v373
        %v619 = vpop.f32.mrb[0].mxu0
        %v620 = vadd.f32 0.0, %v619
        %v621 = vpop.f32.mrb[0].mxu0
        %v622 = vpop.f32.mrb[0].mxu0
        %v623 = vadd.f32 0.0, %v622
        %v624 = vpop.f32.mrb[0].mxu0
        %625 = vdwg.mxu0
        %626 = vmatprep.subr.bf16.mxu0 0
        %627 = vmatpush1.bf16.msra.mxu0 %v529
        %628 = vmatprep.subr.bf16.mxu0 0
        %629 = vmatpush1.bf16.msra.mxu0 %v530
        %630 = vmatprep.subr.bf16.mxu0 0
        %631 = vmatpush1.bf16.msra.mxu0 %v531
        %632 = vmatprep.subr.bf16.mxu0 0
        %633 = vmatpush1.bf16.msra.mxu0 %v532
        %634 = vmatprep.subr.bf16.mxu0 0
        %635 = vmatpush1.bf16.msra.mxu0 %v533
        %636 = vmatprep.subr.bf16.mxu0 0
        %637 = vmatpush1.bf16.msra.mxu0 %v534
        %638 = vmatprep.subr.bf16.mxu0 0
        %639 = vmatpush1.bf16.msra.mxu0 %v535
        %640 = vmatprep.subr.bf16.mxu0 0
        %641 = vmatpush1.bf16.msra.mxu0 %v536
        %642 = vmatprep.subr.bf16.mxu0 0
        %643 = vmatpush1.bf16.msra.mxu0 %v537
        %644 = vmatprep.subr.bf16.mxu0 0
        %645 = vmatpush1.bf16.msra.mxu0 %v538
        %646 = vmatprep.subr.bf16.mxu0 0
        %647 = vmatpush1.bf16.msra.mxu0 %v539
        %648 = vmatprep.subr.bf16.mxu0 0
        %649 = vmatpush1.bf16.msra.mxu0 %v540
        %650 = vmatprep.subr.bf16.mxu0 0
        %651 = vmatpush1.bf16.msra.mxu0 %v541
        %652 = vmatprep.subr.bf16.mxu0 0
        %653 = vmatpush1.bf16.msra.mxu0 %v542
        %654 = vmatprep.subr.bf16.mxu0 0
        %655 = vmatpush1.bf16.msra.mxu0 %v543
        %656 = vmatprep.subr.bf16.mxu0 0
        %657 = vmatpush1.bf16.msra.mxu0 %v544
        %658 = vmatprep.mubr.bf16.mxu0 %v372
        %659 = vmatmul.mubr.bf16.gmra.mrb[0].mxu0 %v371
        %v660 = vpop.f32.mrb[0].mxu0
        %v661 = vadd.f32 %v612, %v660
        %v662 = vpop.f32.mrb[0].mxu0
        %v663 = vpop.f32.mrb[0].mxu0
        %v664 = vadd.f32 %v615, %v663
        %v665 = vpop.f32.mrb[0].mxu0
        %666 = vmatprep.mubr.bf16.mxu0 %v376
        %667 = vmatmul.mubr.bf16.gmra.mrb[0].mxu0 %v375
        %v668 = vpop.f32.mrb[0].mxu0
        %v669 = vadd.f32 %v620, %v668
        %v670 = vpop.f32.mrb[0].mxu0
        %v671 = vpop.f32.mrb[0].mxu0
        %v672 = vadd.f32 %v623, %v671
        %v673 = vpop.f32.mrb[0].mxu0
        %674 = vdwg.mxu0
        %675 = vst [vmem:[%s263] sm:$0xff] %v661
        %676 = vst [vmem:[%s263 + $0x8] sm:$0xff] %v664
        %677 = vst [vmem:[%s263 + $0x10] sm:$0xff] %v669
        %678 = vst [vmem:[%s263 + $0x18] sm:$0xff] %v672
        %v679 = vadd.f32 %v661, %v664
        %v680 = vadd.f32 %v679, %v669
        %v681 = vadd.f32 %v680, %v672
        %v682 = vrot.slane %v681, 4
        %v683 = vadd.f32 %v681, %v682
        %v684 = vrot.slane %v683, 2
        %v685 = vadd.f32 %v683, %v684
        %v686 = vrot.slane %v685, 1
        %v687 = vadd.f32 %v685, %v686
        %v688 = vmul.f32 %v661, %v661
        %v689 = vmul.f32 %v664, %v664
        %v690 = vmul.f32 %v669, %v669
        %v691 = vmul.f32 %v672, %v672
        %v692 = vadd.f32 %v688, %v689
        %v693 = vadd.f32 %v692, %v690
        %v694 = vadd.f32 %v693, %v691
        %v695 = vrot.slane %v694, 4
        %v696 = vadd.f32 %v694, %v695
        %v697 = vrot.slane %v696, 2
        %v698 = vadd.f32 %v696, %v697
        %v699 = vrot.slane %v698, 1
        %v700 = vadd.f32 %v698, %v699
        %vm701 = vcmask 1040384
        %v702 = vsel %vm701, %v687, %v700
        %703 = vst [vmem:[%s271] sm:$0x3] %v702
        %s704 = smul.u32 4, %s23
        %p705 = scmp.lt.s32.totalorder %s22, 3
        %s706 = scalar_select %p705, %s22, 3
        %p707 = scmp.lt.s32.totalorder %s704, 3
        %s708 = scalar_select %p707, %s704, 3
        %s709 = smul.addr %s706, 4
        %s710 = sadd.s32 %s708, %s709
        %s711 = smul.addr %s710, 8
        %s712 = scalar_lea.vmem %s2, %s711
        %p713 = scmp.lt.s32.totalorder %s22, 3
        %s714 = scalar_select %p713, %s22, 3
        %p715 = scmp.lt.s32.totalorder %s23, 0
        %s716 = scalar_select %p715, %s23, 0
        %s717 = sadd.s32 %s716, %s714
        %s718 = smul.addr %s717, 2
        %s719 = scalar_lea.vmem %s3, %s718
        // Predicated region
        $region33: #{generator_forward.13} parent=27 // pred_check
          %p720 = pneg %p104
        $region34: #{generator_forward.13} parent=27 // pred_check_branch
          %722 = sbr.rel (%p720) target = $region36
        $region35: #{generator_forward.13} parent=27 // pred_region
          %s723 = smul.u32 4, %s23
        $region36: #{generator_forward.13} parent=27 // pred_fallthru
          _
        // Predicated region
        $region37: #{generator_forward.13} parent=27 // pred_check
          %p724 = pneg %p132
        $region38: #{generator_forward.13} parent=27 // pred_check_branch
          %726 = sbr.rel (%p724) target = $region40
        $region39: #{generator_forward.13} parent=27 // pred_region
          _
        $region40: #{generator_forward.13} parent=27 // pred_fallthru
          _
      $region28: #{generator_forward.13} parent=5 // pred_fallthru
        _
      %p727 = scmp.le.s32.totalorder 2, %s13
      // Predicated region
      $region41: #{generator_forward.13} parent=5 // pred_check
        %p728 = pneg %p727
      $region42: #{generator_forward.13} parent=5 // pred_check_branch
        %730 = sbr.rel (%p728) target = $region44
      $region43: #{generator_forward.13} parent=5 // pred_region
        %s731 = ssub.s32 %s13, 2
        // Predicated region
        $region45: #{generator_forward.13} parent=43 // pred_check
          %p732 = pneg %p110
        $region46: #{generator_forward.13} parent=43 // pred_check_branch
          %734 = sbr.rel (%p732) target = $region48
        $region47: #{generator_forward.13} parent=43 // pred_region
          %s735 = smul.u32 4, %s25
          %p736 = scmp.lt.s32.totalorder %s24, 3
          %s737 = scalar_select %p736, %s24, 3
          %p738 = scmp.lt.s32.totalorder %s735, 3
          %s739 = scalar_select %p738, %s735, 3
          %s740 = smul.addr %s737, 4
          %s741 = sadd.s32 %s739, %s740
          %s742 = smul.addr %s741, 8
          %s743 = scalar_lea.vmem %s2, %s742
        $region48: #{generator_forward.13} parent=43 // pred_fallthru
          _
        // Predicated region
        $region49: #{generator_forward.13} parent=43 // pred_check
          %p744 = pneg %p138
        $region50: #{generator_forward.13} parent=43 // pred_check_branch
          %746 = sbr.rel (%p744) target = $region52
        $region51: #{generator_forward.13} parent=43 // pred_region
          %p747 = scmp.lt.s32.totalorder %s24, 3
          %s748 = scalar_select %p747, %s24, 3
          %p749 = scmp.lt.s32.totalorder %s25, 0
          %s750 = scalar_select %p749, %s25, 0
          %s751 = sadd.s32 %s750, %s748
          %s752 = smul.addr %s751, 2
          %s753 = scalar_lea.vmem %s3, %s752
        $region52: #{generator_forward.13} parent=43 // pred_fallthru
          _
      $region44: #{generator_forward.13} parent=5 // pred_fallthru
        _
    $region6: #{generator_forward.13} parent=1 // loop_footer
      %s17 = sadd.s32 1, %s13
    $region7: #{generator_forward.13} parent=1 // loop_footer_branch
      %12 = sbr.rel target = $region3
    $region8: #{generator_forward.13} parent=1 // loop_exit
      _
    %754 = vsyncpa [#allocation3], 1
    %s755 = scalar_lea.sflag [#allocation3], 1
    %756 = vsyncpa %s755, 1

// kernel: generator_forward.14
$region0: #{generator_forward.14}
  #allocation0 [shape = 'u32[]', space=smem, size = 0x4, offset = 0x4, fixed_abs, tag = 'smem constant byte address 0x4 - core index']
  #allocation1 [shape = 'u32[144,128]{1,0:T(1,128)}', space=vmem, size = 0x12000, scoped, tag = 'internal scratch']
  %s0 = inlined_call_operand.vmem [shape: f32[4,32,128], index: 0, kind: input, shape index: {}]
  %s1 = inlined_call_operand.vmem [shape: f32[1,128], index: 1, kind: input, shape index: {}]
  %s2 = inlined_call_operand.vmem [shape: f32[1,128], index: 2, kind: input, shape index: {}]
  %s3 = inlined_call_operand.vmem [shape: bf16[4,32,128], index: 3, kind: output, shape index: {}]
  %s4 = sld [smem:[#allocation0]]
  $region45: #{generator_forward.14} parent=0
    _
  %s6 = ssub.s32 1, %s4
  %s7 = scalar_select 0, %s6, %s4
  loop: start=0, step=1, limit=6
  $region2: #{generator_forward.14} parent=0 // loop_pre_header
    _
  $region3: #{generator_forward.14} parent=0 // loop_header
    %s9 = sphi 0, %s13
    %p10 = scmp.ge.s32.totalorder %s9, 6
    %s16 = sphi 0, %s28
    %s17 = sphi 0, %s24
    %s18 = sphi 0, %s16
    %s19 = sphi 0, %s17
    %s20 = sphi 0, %s18
    %s21 = sphi 0, %s19
    %s33 = sphi 0, %s35
    %s36 = sphi 0, %s33
    %s37 = sphi 0, %s36
    %s53 = sphi 0, %s37
    %s57 = sphi 0, %s57
    %s59 = sphi 0, %s57
    %s60 = sphi 0, %s59
    %s74 = sphi 0, %s60
    %s78 = sphi 0, %s78
    %s80 = sphi 0, %s78
    %s81 = sphi 0, %s80
    %s95 = sphi 0, %s81
    %s103 = sphi 0, %s105
    %s106 = sphi 0, %s103
    %s107 = sphi 0, %s106
    %s123 = sphi 0, %s107
  $region4: #{generator_forward.14} parent=0 // loop_header_branch
    %12 = sbr.rel (%p10) target = $region8
  $region5: #{generator_forward.14} parent=0 // loop_body
    %s14 = ssub.s32 %s9, 1
    %s15 = ssub.s32 %s9, 2
    %s22 = sadd.s32 1, %s17
    %p23 = scmp.ge.s32.totalorder %s22, 1
    %s24 = scalar_select %p23, 0, %s22
    %s25 = sadd.s32 1, %s16
    %s26 = scalar_select %p23, %s25, %s16
    %p27 = scmp.ge.s32.totalorder %s26, 4
    %s28 = scalar_select %p27, 0, %s26
    %s29 = ssub.s32 %s16, %s28
    %s30 = ssub.s32 %s17, %s24
    %s31 = sor.u32 %s29, %s30
    %p32 = scmp.eq.s32.totalorder %s31, 0
    %s34 = sadd.s32 %s33, 1
    %s35 = scalar_select %p32, %s33, %s34
    %p38 = pneg %p32
    %p39 = scmp.eq.s32.totalorder %s9, 3
    %p40 = por %p38, %p39
    %p41 = scmp.ne.s32.totalorder %s33, %s36
    %p42 = scmp.eq.s32.totalorder %s9, 0
    %p43 = por %p41, %p42
    %p44 = scmp.ne.s32.totalorder %s33, %s36
    %p45 = scmp.eq.s32.totalorder %s14, 3
    %p46 = por %p44, %p45
    %p47 = scmp.ne.s32.totalorder %s36, %s37
    %p48 = scmp.eq.s32.totalorder %s14, 0
    %p49 = por %p47, %p48
    %p50 = scmp.ne.s32.totalorder %s36, %s37
    %p51 = scmp.eq.s32.totalorder %s15, 3
    %p52 = por %p50, %p51
    %p54 = scmp.ne.s32.totalorder %s37, %s53
    %p55 = scmp.eq.s32.totalorder %s15, 0
    %p56 = por %p54, %p55
    %s58 = sadd.s32 %s57, 1
    %p61 = scmp.eq.s32.totalorder %s9, 3
    %p62 = scmp.ne.s32.totalorder %s57, %s59
    %p63 = scmp.eq.s32.totalorder %s9, 0
    %p64 = por %p62, %p63
    %p65 = scmp.ne.s32.totalorder %s57, %s59
    %p66 = scmp.eq.s32.totalorder %s14, 3
    %p67 = por %p65, %p66
    %p68 = scmp.ne.s32.totalorder %s59, %s60
    %p69 = scmp.eq.s32.totalorder %s14, 0
    %p70 = por %p68, %p69
    %p71 = scmp.ne.s32.totalorder %s59, %s60
    %p72 = scmp.eq.s32.totalorder %s15, 3
    %p73 = por %p71, %p72
    %p75 = scmp.ne.s32.totalorder %s60, %s74
    %p76 = scmp.eq.s32.totalorder %s15, 0
    %p77 = por %p75, %p76
    %s79 = sadd.s32 %s78, 1
    %p82 = scmp.eq.s32.totalorder %s9, 3
    %p83 = scmp.ne.s32.totalorder %s78, %s80
    %p84 = scmp.eq.s32.totalorder %s9, 0
    %p85 = por %p83, %p84
    %p86 = scmp.ne.s32.totalorder %s78, %s80
    %p87 = scmp.eq.s32.totalorder %s14, 3
    %p88 = por %p86, %p87
    %p89 = scmp.ne.s32.totalorder %s80, %s81
    %p90 = scmp.eq.s32.totalorder %s14, 0
    %p91 = por %p89, %p90
    %p92 = scmp.ne.s32.totalorder %s80, %s81
    %p93 = scmp.eq.s32.totalorder %s15, 3
    %p94 = por %p92, %p93
    %p96 = scmp.ne.s32.totalorder %s81, %s95
    %p97 = scmp.eq.s32.totalorder %s15, 0
    %p98 = por %p96, %p97
    %s99 = ssub.s32 %s16, %s28
    %s100 = ssub.s32 %s17, %s24
    %s101 = sor.u32 %s99, %s100
    %p102 = scmp.eq.s32.totalorder %s101, 0
    %s104 = sadd.s32 %s103, 1
    %s105 = scalar_select %p102, %s103, %s104
    %p108 = pneg %p102
    %p109 = scmp.eq.s32.totalorder %s9, 3
    %p110 = por %p108, %p109
    %p111 = scmp.ne.s32.totalorder %s103, %s106
    %p112 = scmp.eq.s32.totalorder %s9, 0
    %p113 = por %p111, %p112
    %p114 = scmp.ne.s32.totalorder %s103, %s106
    %p115 = scmp.eq.s32.totalorder %s14, 3
    %p116 = por %p114, %p115
    %p117 = scmp.ne.s32.totalorder %s106, %s107
    %p118 = scmp.eq.s32.totalorder %s14, 0
    %p119 = por %p117, %p118
    %p120 = scmp.ne.s32.totalorder %s106, %s107
    %p121 = scmp.eq.s32.totalorder %s15, 3
    %p122 = por %p120, %p121
    %p124 = scmp.ne.s32.totalorder %s107, %s123
    %p125 = scmp.eq.s32.totalorder %s15, 0
    %p126 = por %p124, %p125
    %p127 = scmp.le.s32.totalorder 1, %s9
    %p128 = scmp.lt.s32.totalorder %s9, 5
    %p129 = pnand %p127, %p128
    %p130 = pneg %p129
    // Predicated region
    $region9: #{generator_forward.14} parent=5 // pred_check
      _
    $region10: #{generator_forward.14} parent=5 // pred_check_branch
      %132 = sbr.rel (%p129) target = $region12
    $region11: #{generator_forward.14} parent=5 // pred_region
      %s133 = ssub.s32 %s9, 1
      // Predicated region
      $region13: #{generator_forward.14} parent=11 // pred_check
        %p134 = pneg %p70
      $region14: #{generator_forward.14} parent=11 // pred_check_branch
        %136 = sbr.rel (%p134) target = $region16
      $region15: #{generator_forward.14} parent=11 // pred_region
        _
      $region16: #{generator_forward.14} parent=11 // pred_fallthru
        _
      // Predicated region
      $region17: #{generator_forward.14} parent=11 // pred_check
        %p137 = pneg %p91
      $region18: #{generator_forward.14} parent=11 // pred_check_branch
        %139 = sbr.rel (%p137) target = $region20
      $region19: #{generator_forward.14} parent=11 // pred_region
        _
      $region20: #{generator_forward.14} parent=11 // pred_fallthru
        _
    $region12: #{generator_forward.14} parent=5 // pred_fallthru
      _
    %p140 = scmp.lt.s32.totalorder %s9, 4
    // Predicated region
    $region21: #{generator_forward.14} parent=5 // pred_check
      %p141 = pneg %p140
    $region22: #{generator_forward.14} parent=5 // pred_check_branch
      %143 = sbr.rel (%p141) target = $region24
    $region23: #{generator_forward.14} parent=5 // pred_region
      // Predicated region
      $region25: #{generator_forward.14} parent=23 // pred_check
        %p144 = pneg %p43
      $region26: #{generator_forward.14} parent=23 // pred_check_branch
        %146 = sbr.rel (%p144) target = $region28
      $region27: #{generator_forward.14} parent=23 // pred_region
        %s147 = smul.u32 4, %s17
        %p148 = scmp.lt.s32.totalorder %s16, 3
        %s149 = scalar_select %p148, %s16, 3
        %p150 = scmp.lt.s32.totalorder %s147, 3
        %s151 = scalar_select %p150, %s147, 3
        %s152 = smul.addr %s149, 4
        %s153 = sadd.s32 %s151, %s152
        %s154 = smul.addr %s153, 8
        %s155 = scalar_lea.vmem %s0, %s154
        %s156 = smul.u32 4, %s17
      $region28: #{generator_forward.14} parent=23 // pred_fallthru
        _
    $region24: #{generator_forward.14} parent=5 // pred_fallthru
      _
    %p157 = scmp.le.s32.totalorder 1, %s9
    %p158 = scmp.lt.s32.totalorder %s9, 5
    %p159 = pnand %p157, %p158
    %p160 = pneg %p159
    // Predicated region
    $region29: #{generator_forward.14} parent=5 // pred_check
      _
    $region30: #{generator_forward.14} parent=5 // pred_check_branch
      %162 = sbr.rel (%p159) target = $region32
    $region31: #{generator_forward.14} parent=5 // pred_region
      %s163 = ssub.s32 %s9, 1
      %s164 = smul.u32 4, %s19
      %p165 = scmp.lt.s32.totalorder %s18, 3
      %s166 = scalar_select %p165, %s18, 3
      %p167 = scmp.lt.s32.totalorder %s164, 3
      %s168 = scalar_select %p167, %s164, 3
      %s169 = smul.addr %s166, 4
      %s170 = sadd.s32 %s168, %s169
      %s171 = smul.addr %s170, 8
      %s172 = scalar_lea.vmem %s0, %s171
      %p173 = pneg %p49
      %p174 = pneg %p46
      %p175 = pneg %p70
      %p176 = pneg %p67
      %p177 = pneg %p91
      %p178 = pneg %p88
      %p179 = pneg %p119
      %p180 = pneg %p116
      %s181 = smul.u32 4, %s19
      %p182 = scmp.lt.s32.totalorder %s18, 3
      %s183 = scalar_select %p182, %s18, 3
      %p184 = scmp.lt.s32.totalorder %s181, 3
      %s185 = scalar_select %p184, %s181, 3
      %s186 = smul.addr %s183, 4
      %s187 = sadd.s32 %s185, %s186
      %s188 = smul.addr %s187, 4
      %s189 = scalar_lea.vmem %s3, %s188
      %s190 = smul.u32 4, %s19
      %p191 = scmp.lt.s32.totalorder %s18, 3
      %s192 = scalar_select %p191, %s18, 3
      %p193 = scmp.lt.s32.totalorder %s190, 3
      %s194 = scalar_select %p193, %s190, 3
      %s195 = smul.addr %s192, 4
      %s196 = sadd.s32 %s194, %s195
      %s197 = smul.addr %s196, 8
      %s198 = scalar_lea.vmem %s0, %s197
      %s199 = smul.u32 4, %s19
      %s200 = smul.u32 4, %s19
      %p201 = scmp.lt.s32.totalorder %s18, 3
      %s202 = scalar_select %p201, %s18, 3
      %p203 = scmp.lt.s32.totalorder %s200, 3
      %s204 = scalar_select %p203, %s200, 3
      %s205 = smul.addr %s202, 4
      %s206 = sadd.s32 %s204, %s205
      %s207 = smul.addr %s206, 4
      %s208 = scalar_lea.vmem %s3, %s207
      %s209 = smul.u32 4, %s19
      %v210 = vld [vmem:[%s198] sm:$0xff]
      %v211 = vld [vmem:[%s198 + $0x8] sm:$0xff]
      %v212 = vld [vmem:[%s198 + $0x10] sm:$0xff]
      %v213 = vld [vmem:[%s198 + $0x18] sm:$0xff]
      %v214 = vld [vmem:[%s1] sm:$0x1]
      %v216 = vlaneseq
      %v217 = vshrl.u32 %v216, 7
      %v218 = vsub.s32 0, %v217
      %v219 = vrot.slane %v214, %v218
      %v221 = vsub.f32 %v210, %v219
      %v222 = vsub.f32 %v211, %v219
      %v223 = vsub.f32 %v212, %v219
      %v224 = vsub.f32 %v213, %v219
      %v225 = vld [vmem:[%s2] sm:$0x1]
      %v227 = vlaneseq
      %v228 = vshrl.u32 %v227, 7
      %v229 = vsub.s32 0, %v228
      %v230 = vrot.slane %v225, %v229
      %v232 = vmul.f32 %v221, %v230
      %v233 = vmul.f32 %v222, %v230
      %v234 = vmul.f32 %v223, %v230
      %v235 = vmul.f32 %v224, %v230
      %vm236 = vcmp.gt.f32.partialorder %v232, 0.0
      %vm237 = vcmp.gt.f32.partialorder %v233, 0.0
      %vm238 = vcmp.gt.f32.partialorder %v234, 0.0
      %vm239 = vcmp.gt.f32.partialorder %v235, 0.0
      %v240 = vmul.f32 %v232, 0.2
      %v241 = vmul.f32 %v233, 0.2
      %v242 = vmul.f32 %v234, 0.2
      %v243 = vmul.f32 %v235, 0.2
      %v244 = vsel %vm236, %v232, %v240
      %v245 = vsel %vm237, %v233, %v241
      %v246 = vsel %vm238, %v234, %v242
      %v247 = vsel %vm239, %v235, %v243
      %v248 = vpack.c.bf16 %v245, %v244
      %v249 = vpack.c.bf16 %v247, %v246
      %v252 = vunpack.c.l.b16 %v248
      %v253 = vunpack.c.h.b16 %v248
      %v254 = vunpack.c.l.b16 %v249
      %v255 = vunpack.c.h.b16 %v249
      %v256 = vpack.c.b16 %v252, %v252
      %v257 = vpack.c.b16 %v253, %v253
      %v258 = vpack.c.b16 %v254, %v254
      %v259 = vpack.c.b16 %v255, %v255
      %264 = vst [vmem:[%s208] sm:$0xf] %v256
      %265 = vst [vmem:[%s208 + $0x4] sm:$0xf] %v257
      %266 = vst [vmem:[%s208 + $0x8] sm:$0xf] %v258
      %267 = vst [vmem:[%s208 + $0xc] sm:$0xf] %v259
      %s268 = smul.u32 4, %s19
      %p269 = scmp.lt.s32.totalorder %s18, 3
      %s270 = scalar_select %p269, %s18, 3
      %p271 = scmp.lt.s32.totalorder %s268, 3
      %s272 = scalar_select %p271, %s268, 3
      %s273 = smul.addr %s270, 4
      %s274 = sadd.s32 %s272, %s273
      %s275 = smul.addr %s274, 4
      %s276 = scalar_lea.vmem %s3, %s275
      // Predicated region
      $region33: #{generator_forward.14} parent=31 // pred_check
        %p277 = pneg %p116
      $region34: #{generator_forward.14} parent=31 // pred_check_branch
        %279 = sbr.rel (%p277) target = $region36
      $region35: #{generator_forward.14} parent=31 // pred_region
        %s280 = smul.u32 4, %s19
      $region36: #{generator_forward.14} parent=31 // pred_fallthru
        _
    $region32: #{generator_forward.14} parent=5 // pred_fallthru
      _
    %p281 = scmp.le.s32.totalorder 2, %s9
    // Predicated region
    $region37: #{generator_forward.14} parent=5 // pred_check
      %p282 = pneg %p281
    $region38: #{generator_forward.14} parent=5 // pred_check_branch
      %284 = sbr.rel (%p282) target = $region40
    $region39: #{generator_forward.14} parent=5 // pred_region
      %s285 = ssub.s32 %s9, 2
      // Predicated region
      $region41: #{generator_forward.14} parent=39 // pred_check
        %p286 = pneg %p122
      $region42: #{generator_forward.14} parent=39 // pred_check_branch
        %288 = sbr.rel (%p286) target = $region44
      $region43: #{generator_forward.14} parent=39 // pred_region
        %s289 = smul.u32 4, %s21
        %p290 = scmp.lt.s32.totalorder %s20, 3
        %s291 = scalar_select %p290, %s20, 3
        %p292 = scmp.lt.s32.totalorder %s289, 3
        %s293 = scalar_select %p292, %s289, 3
        %s294 = smul.addr %s291, 4
        %s295 = sadd.s32 %s293, %s294
        %s296 = smul.addr %s295, 4
        %s297 = scalar_lea.vmem %s3, %s296
      $region44: #{generator_forward.14} parent=39 // pred_fallthru
        _
    $region40: #{generator_forward.14} parent=5 // pred_fallthru
      _
  $region6: #{generator_forward.14} parent=0 // loop_footer
    %s13 = sadd.s32 1, %s9
  $region7: #{generator_forward.14} parent=0 // loop_footer_branch
    %8 = sbr.rel target = $region3
  $region8: #{generator_forward.14} parent=0 // loop_exit
    _

// kernel: generator_forward.16
$region0: #{generator_forward.16}
  #allocation0 [shape = 'u32[]', space=smem, size = 0x4, offset = 0x4, fixed_abs, tag = 'smem constant byte address 0x4 - core index']
  #allocation1 [shape = 'u32[144,128]{1,0:T(1,128)}', space=vmem, size = 0x12000, scoped, tag = 'internal scratch']
  %s0 = inlined_call_operand.vmem [shape: f32[4,128,128], index: 0, kind: input, shape index: {}]
  %s1 = inlined_call_operand.vmem [shape: f32[1,128], index: 1, kind: input, shape index: {}]
  %s2 = inlined_call_operand.vmem [shape: f32[1,128], index: 2, kind: input, shape index: {}]
  %s3 = inlined_call_operand.vmem [shape: bf16[4,128,128], index: 3, kind: output, shape index: {}]
  %s4 = sld [smem:[#allocation0]]
  $region45: #{generator_forward.16} parent=0
    _
  %s6 = ssub.s32 1, %s4
  %s7 = scalar_select 0, %s6, %s4
  loop: start=0, step=1, limit=6
  $region2: #{generator_forward.16} parent=0 // loop_pre_header
    _
  $region3: #{generator_forward.16} parent=0 // loop_header
    %s9 = sphi 0, %s13
    %p10 = scmp.ge.s32.totalorder %s9, 6
    %s16 = sphi 0, %s28
    %s17 = sphi 0, %s24
    %s18 = sphi 0, %s16
    %s19 = sphi 0, %s17
    %s20 = sphi 0, %s18
    %s21 = sphi 0, %s19
    %s33 = sphi 0, %s35
    %s36 = sphi 0, %s33
    %s37 = sphi 0, %s36
    %s53 = sphi 0, %s37
    %s57 = sphi 0, %s57
    %s59 = sphi 0, %s57
    %s60 = sphi 0, %s59
    %s74 = sphi 0, %s60
    %s78 = sphi 0, %s78
    %s80 = sphi 0, %s78
    %s81 = sphi 0, %s80
    %s95 = sphi 0, %s81
    %s103 = sphi 0, %s105
    %s106 = sphi 0, %s103
    %s107 = sphi 0, %s106
    %s123 = sphi 0, %s107
  $region4: #{generator_forward.16} parent=0 // loop_header_branch
    %12 = sbr.rel (%p10) target = $region8
  $region5: #{generator_forward.16} parent=0 // loop_body
    %s14 = ssub.s32 %s9, 1
    %s15 = ssub.s32 %s9, 2
    %s22 = sadd.s32 1, %s17
    %p23 = scmp.ge.s32.totalorder %s22, 1
    %s24 = scalar_select %p23, 0, %s22
    %s25 = sadd.s32 1, %s16
    %s26 = scalar_select %p23, %s25, %s16
    %p27 = scmp.ge.s32.totalorder %s26, 4
    %s28 = scalar_select %p27, 0, %s26
    %s29 = ssub.s32 %s16, %s28
    %s30 = ssub.s32 %s17, %s24
    %s31 = sor.u32 %s29, %s30
    %p32 = scmp.eq.s32.totalorder %s31, 0
    %s34 = sadd.s32 %s33, 1
    %s35 = scalar_select %p32, %s33, %s34
    %p38 = pneg %p32
    %p39 = scmp.eq.s32.totalorder %s9, 3
    %p40 = por %p38, %p39
    %p41 = scmp.ne.s32.totalorder %s33, %s36
    %p42 = scmp.eq.s32.totalorder %s9, 0
    %p43 = por %p41, %p42
    %p44 = scmp.ne.s32.totalorder %s33, %s36
    %p45 = scmp.eq.s32.totalorder %s14, 3
    %p46 = por %p44, %p45
    %p47 = scmp.ne.s32.totalorder %s36, %s37
    %p48 = scmp.eq.s32.totalorder %s14, 0
    %p49 = por %p47, %p48
    %p50 = scmp.ne.s32.totalorder %s36, %s37
    %p51 = scmp.eq.s32.totalorder %s15, 3
    %p52 = por %p50, %p51
    %p54 = scmp.ne.s32.totalorder %s37, %s53
    %p55 = scmp.eq.s32.totalorder %s15, 0
    %p56 = por %p54, %p55
    %s58 = sadd.s32 %s57, 1
    %p61 = scmp.eq.s32.totalorder %s9, 3
    %p62 = scmp.ne.s32.totalorder %s57, %s59
    %p63 = scmp.eq.s32.totalorder %s9, 0
    %p64 = por %p62, %p63
    %p65 = scmp.ne.s32.totalorder %s57, %s59
    %p66 = scmp.eq.s32.totalorder %s14, 3
    %p67 = por %p65, %p66
    %p68 = scmp.ne.s32.totalorder %s59, %s60
    %p69 = scmp.eq.s32.totalorder %s14, 0
    %p70 = por %p68, %p69
    %p71 = scmp.ne.s32.totalorder %s59, %s60
    %p72 = scmp.eq.s32.totalorder %s15, 3
    %p73 = por %p71, %p72
    %p75 = scmp.ne.s32.totalorder %s60, %s74
    %p76 = scmp.eq.s32.totalorder %s15, 0
    %p77 = por %p75, %p76
    %s79 = sadd.s32 %s78, 1
    %p82 = scmp.eq.s32.totalorder %s9, 3
    %p83 = scmp.ne.s32.totalorder %s78, %s80
    %p84 = scmp.eq.s32.totalorder %s9, 0
    %p85 = por %p83, %p84
    %p86 = scmp.ne.s32.totalorder %s78, %s80
    %p87 = scmp.eq.s32.totalorder %s14, 3
    %p88 = por %p86, %p87
    %p89 = scmp.ne.s32.totalorder %s80, %s81
    %p90 = scmp.eq.s32.totalorder %s14, 0
    %p91 = por %p89, %p90
    %p92 = scmp.ne.s32.totalorder %s80, %s81
    %p93 = scmp.eq.s32.totalorder %s15, 3
    %p94 = por %p92, %p93
    %p96 = scmp.ne.s32.totalorder %s81, %s95
    %p97 = scmp.eq.s32.totalorder %s15, 0
    %p98 = por %p96, %p97
    %s99 = ssub.s32 %s16, %s28
    %s100 = ssub.s32 %s17, %s24
    %s101 = sor.u32 %s99, %s100
    %p102 = scmp.eq.s32.totalorder %s101, 0
    %s104 = sadd.s32 %s103, 1
    %s105 = scalar_select %p102, %s103, %s104
    %p108 = pneg %p102
    %p109 = scmp.eq.s32.totalorder %s9, 3
    %p110 = por %p108, %p109
    %p111 = scmp.ne.s32.totalorder %s103, %s106
    %p112 = scmp.eq.s32.totalorder %s9, 0
    %p113 = por %p111, %p112
    %p114 = scmp.ne.s32.totalorder %s103, %s106
    %p115 = scmp.eq.s32.totalorder %s14, 3
    %p116 = por %p114, %p115
    %p117 = scmp.ne.s32.totalorder %s106, %s107
    %p118 = scmp.eq.s32.totalorder %s14, 0
    %p119 = por %p117, %p118
    %p120 = scmp.ne.s32.totalorder %s106, %s107
    %p121 = scmp.eq.s32.totalorder %s15, 3
    %p122 = por %p120, %p121
    %p124 = scmp.ne.s32.totalorder %s107, %s123
    %p125 = scmp.eq.s32.totalorder %s15, 0
    %p126 = por %p124, %p125
    %p127 = scmp.le.s32.totalorder 1, %s9
    %p128 = scmp.lt.s32.totalorder %s9, 5
    %p129 = pnand %p127, %p128
    %p130 = pneg %p129
    // Predicated region
    $region9: #{generator_forward.16} parent=5 // pred_check
      _
    $region10: #{generator_forward.16} parent=5 // pred_check_branch
      %132 = sbr.rel (%p129) target = $region12
    $region11: #{generator_forward.16} parent=5 // pred_region
      %s133 = ssub.s32 %s9, 1
      // Predicated region
      $region13: #{generator_forward.16} parent=11 // pred_check
        %p134 = pneg %p70
      $region14: #{generator_forward.16} parent=11 // pred_check_branch
        %136 = sbr.rel (%p134) target = $region16
      $region15: #{generator_forward.16} parent=11 // pred_region
        _
      $region16: #{generator_forward.16} parent=11 // pred_fallthru
        _
      // Predicated region
      $region17: #{generator_forward.16} parent=11 // pred_check
        %p137 = pneg %p91
      $region18: #{generator_forward.16} parent=11 // pred_check_branch
        %139 = sbr.rel (%p137) target = $region20
      $region19: #{generator_forward.16} parent=11 // pred_region
        _
      $region20: #{generator_forward.16} parent=11 // pred_fallthru
        _
    $region12: #{generator_forward.16} parent=5 // pred_fallthru
      _
    %p140 = scmp.lt.s32.totalorder %s9, 4
    // Predicated region
    $region21: #{generator_forward.16} parent=5 // pred_check
      %p141 = pneg %p140
    $region22: #{generator_forward.16} parent=5 // pred_check_branch
      %143 = sbr.rel (%p141) target = $region24
    $region23: #{generator_forward.16} parent=5 // pred_region
      // Predicated region
      $region25: #{generator_forward.16} parent=23 // pred_check
        %p144 = pneg %p43
      $region26: #{generator_forward.16} parent=23 // pred_check_branch
        %146 = sbr.rel (%p144) target = $region28
      $region27: #{generator_forward.16} parent=23 // pred_region
        %s147 = smul.u32 16, %s17
        %p148 = scmp.lt.s32.totalorder %s16, 3
        %s149 = scalar_select %p148, %s16, 3
        %p150 = scmp.lt.s32.totalorder %s147, 15
        %s151 = scalar_select %p150, %s147, 15
        %s152 = smul.addr %s149, 16
        %s153 = sadd.s32 %s151, %s152
        %s154 = smul.addr %s153, 8
        %s155 = scalar_lea.vmem %s0, %s154
        %s156 = smul.u32 16, %s17
      $region28: #{generator_forward.16} parent=23 // pred_fallthru
        _
    $region24: #{generator_forward.16} parent=5 // pred_fallthru
      _
    %p157 = scmp.le.s32.totalorder 1, %s9
    %p158 = scmp.lt.s32.totalorder %s9, 5
    %p159 = pnand %p157, %p158
    %p160 = pneg %p159
    // Predicated region
    $region29: #{generator_forward.16} parent=5 // pred_check
      _
    $region30: #{generator_forward.16} parent=5 // pred_check_branch
      %162 = sbr.rel (%p159) target = $region32
    $region31: #{generator_forward.16} parent=5 // pred_region
      %s163 = ssub.s32 %s9, 1
      %s164 = smul.u32 16, %s19
      %p165 = scmp.lt.s32.totalorder %s18, 3
      %s166 = scalar_select %p165, %s18, 3
      %p167 = scmp.lt.s32.totalorder %s164, 15
      %s168 = scalar_select %p167, %s164, 15
      %s169 = smul.addr %s166, 16
      %s170 = sadd.s32 %s168, %s169
      %s171 = smul.addr %s170, 8
      %s172 = scalar_lea.vmem %s0, %s171
      %p173 = pneg %p49
      %p174 = pneg %p46
      %p175 = pneg %p70
      %p176 = pneg %p67
      %p177 = pneg %p91
      %p178 = pneg %p88
      %p179 = pneg %p119
      %p180 = pneg %p116
      %s181 = smul.u32 16, %s19
      %p182 = scmp.lt.s32.totalorder %s18, 3
      %s183 = scalar_select %p182, %s18, 3
      %p184 = scmp.lt.s32.totalorder %s181, 15
      %s185 = scalar_select %p184, %s181, 15
      %s186 = smul.addr %s183, 16
      %s187 = sadd.s32 %s185, %s186
      %s188 = smul.addr %s187, 4
      %s189 = scalar_lea.vmem %s3, %s188
      %s190 = smul.u32 16, %s19
      %p191 = scmp.lt.s32.totalorder %s18, 3
      %s192 = scalar_select %p191, %s18, 3
      %p193 = scmp.lt.s32.totalorder %s190, 15
      %s194 = scalar_select %p193, %s190, 15
      %s195 = smul.addr %s192, 16
      %s196 = sadd.s32 %s194, %s195
      %s197 = smul.addr %s196, 8
      %s198 = scalar_lea.vmem %s0, %s197
      %s199 = smul.u32 16, %s19
      %s200 = smul.u32 16, %s19
      %p201 = scmp.lt.s32.totalorder %s18, 3
      %s202 = scalar_select %p201, %s18, 3
      %p203 = scmp.lt.s32.totalorder %s200, 15
      %s204 = scalar_select %p203, %s200, 15
      %s205 = smul.addr %s202, 16
      %s206 = sadd.s32 %s204, %s205
      %s207 = smul.addr %s206, 4
      %s208 = scalar_lea.vmem %s3, %s207
      %s209 = smul.u32 16, %s19
      %v210 = vld [vmem:[%s198] sm:$0xff]
      %v211 = vld [vmem:[%s198 + $0x8] sm:$0xff]
      %v212 = vld [vmem:[%s198 + $0x10] sm:$0xff]
      %v213 = vld [vmem:[%s198 + $0x18] sm:$0xff]
      %v214 = vld [vmem:[%s198 + $0x20] sm:$0xff]
      %v215 = vld [vmem:[%s198 + $0x28] sm:$0xff]
      %v216 = vld [vmem:[%s198 + $0x30] sm:$0xff]
      %v217 = vld [vmem:[%s198 + $0x38] sm:$0xff]
      %v218 = vld [vmem:[%s198 + $0x40] sm:$0xff]
      %v219 = vld [vmem:[%s198 + $0x48] sm:$0xff]
      %v220 = vld [vmem:[%s198 + $0x50] sm:$0xff]
      %v221 = vld [vmem:[%s198 + $0x58] sm:$0xff]
      %v222 = vld [vmem:[%s198 + $0x60] sm:$0xff]
      %v223 = vld [vmem:[%s198 + $0x68] sm:$0xff]
      %v224 = vld [vmem:[%s198 + $0x70] sm:$0xff]
      %v225 = vld [vmem:[%s198 + $0x78] sm:$0xff]
      %v226 = vld [vmem:[%s1] sm:$0x1]
      %v228 = vlaneseq
      %v229 = vshrl.u32 %v228, 7
      %v230 = vsub.s32 0, %v229
      %v231 = vrot.slane %v226, %v230
      %v233 = vsub.f32 %v210, %v231
      %v234 = vsub.f32 %v211, %v231
      %v235 = vsub.f32 %v212, %v231
      %v236 = vsub.f32 %v213, %v231
      %v237 = vsub.f32 %v214, %v231
      %v238 = vsub.f32 %v215, %v231
      %v239 = vsub.f32 %v216, %v231
      %v240 = vsub.f32 %v217, %v231
      %v241 = vsub.f32 %v218, %v231
      %v242 = vsub.f32 %v219, %v231
      %v243 = vsub.f32 %v220, %v231
      %v244 = vsub.f32 %v221, %v231
      %v245 = vsub.f32 %v222, %v231
      %v246 = vsub.f32 %v223, %v231
      %v247 = vsub.f32 %v224, %v231
      %v248 = vsub.f32 %v225, %v231
      %v249 = vld [vmem:[%s2] sm:$0x1]
      %v251 = vlaneseq
      %v252 = vshrl.u32 %v251, 7
      %v253 = vsub.s32 0, %v252
      %v254 = vrot.slane %v249, %v253
      %v256 = vmul.f32 %v233, %v254
      %v257 = vmul.f32 %v234, %v254
      %v258 = vmul.f32 %v235, %v254
      %v259 = vmul.f32 %v236, %v254
      %v260 = vmul.f32 %v237, %v254
      %v261 = vmul.f32 %v238, %v254
      %v262 = vmul.f32 %v239, %v254
      %v263 = vmul.f32 %v240, %v254
      %v264 = vmul.f32 %v241, %v254
      %v265 = vmul.f32 %v242, %v254
      %v266 = vmul.f32 %v243, %v254
      %v267 = vmul.f32 %v244, %v254
      %v268 = vmul.f32 %v245, %v254
      %v269 = vmul.f32 %v246, %v254
      %v270 = vmul.f32 %v247, %v254
      %v271 = vmul.f32 %v248, %v254
      %vm272 = vcmp.gt.f32.partialorder %v256, 0.0
      %vm273 = vcmp.gt.f32.partialorder %v257, 0.0
      %vm274 = vcmp.gt.f32.partialorder %v258, 0.0
      %vm275 = vcmp.gt.f32.partialorder %v259, 0.0
      %vm276 = vcmp.gt.f32.partialorder %v260, 0.0
      %vm277 = vcmp.gt.f32.partialorder %v261, 0.0
      %vm278 = vcmp.gt.f32.partialorder %v262, 0.0
      %vm279 = vcmp.gt.f32.partialorder %v263, 0.0
      %vm280 = vcmp.gt.f32.partialorder %v264, 0.0
      %vm281 = vcmp.gt.f32.partialorder %v265, 0.0
      %vm282 = vcmp.gt.f32.partialorder %v266, 0.0
      %vm283 = vcmp.gt.f32.partialorder %v267, 0.0
      %vm284 = vcmp.gt.f32.partialorder %v268, 0.0
      %vm285 = vcmp.gt.f32.partialorder %v269, 0.0
      %vm286 = vcmp.gt.f32.partialorder %v270, 0.0
      %vm287 = vcmp.gt.f32.partialorder %v271, 0.0
      %v288 = vmul.f32 %v256, 0.2
      %v289 = vmul.f32 %v257, 0.2
      %v290 = vmul.f32 %v258, 0.2
      %v291 = vmul.f32 %v259, 0.2
      %v292 = vmul.f32 %v260, 0.2
      %v293 = vmul.f32 %v261, 0.2
      %v294 = vmul.f32 %v262, 0.2
      %v295 = vmul.f32 %v263, 0.2
      %v296 = vmul.f32 %v264, 0.2
      %v297 = vmul.f32 %v265, 0.2
      %v298 = vmul.f32 %v266, 0.2
      %v299 = vmul.f32 %v267, 0.2
      %v300 = vmul.f32 %v268, 0.2
      %v301 = vmul.f32 %v269, 0.2
      %v302 = vmul.f32 %v270, 0.2
      %v303 = vmul.f32 %v271, 0.2
      %v304 = vsel %vm272, %v256, %v288
      %v305 = vsel %vm273, %v257, %v289
      %v306 = vsel %vm274, %v258, %v290
      %v307 = vsel %vm275, %v259, %v291
      %v308 = vsel %vm276, %v260, %v292
      %v309 = vsel %vm277, %v261, %v293
      %v310 = vsel %vm278, %v262, %v294
      %v311 = vsel %vm279, %v263, %v295
      %v312 = vsel %vm280, %v264, %v296
      %v313 = vsel %vm281, %v265, %v297
      %v314 = vsel %vm282, %v266, %v298
      %v315 = vsel %vm283, %v267, %v299
      %v316 = vsel %vm284, %v268, %v300
      %v317 = vsel %vm285, %v269, %v301
      %v318 = vsel %vm286, %v270, %v302
      %v319 = vsel %vm287, %v271, %v303
      %v320 = vpack.c.bf16 %v305, %v304
      %v321 = vpack.c.bf16 %v307, %v306
      %v322 = vpack.c.bf16 %v309, %v308
      %v323 = vpack.c.bf16 %v311, %v310
      %v324 = vpack.c.bf16 %v313, %v312
      %v325 = vpack.c.bf16 %v315, %v314
      %v326 = vpack.c.bf16 %v317, %v316
      %v327 = vpack.c.bf16 %v319, %v318
      %v336 = vunpack.c.l.b16 %v320
      %v337 = vunpack.c.h.b16 %v320
      %v338 = vunpack.c.l.b16 %v321
      %v339 = vunpack.c.h.b16 %v321
      %v340 = vunpack.c.l.b16 %v322
      %v341 = vunpack.c.h.b16 %v322
      %v342 = vunpack.c.l.b16 %v323
      %v343 = vunpack.c.h.b16 %v323
      %v344 = vunpack.c.l.b16 %v324
      %v345 = vunpack.c.h.b16 %v324
      %v346 = vunpack.c.l.b16 %v325
      %v347 = vunpack.c.h.b16 %v325
      %v348 = vunpack.c.l.b16 %v326
      %v349 = vunpack.c.h.b16 %v326
      %v350 = vunpack.c.l.b16 %v327
      %v351 = vunpack.c.h.b16 %v327
      %v352 = vpack.c.b16 %v336, %v336
      %v353 = vpack.c.b16 %v337, %v337
      %v354 = vpack.c.b16 %v338, %v338
      %v355 = vpack.c.b16 %v339, %v339
      %v356 = vpack.c.b16 %v340, %v340
      %v357 = vpack.c.b16 %v341, %v341
      %v358 = vpack.c.b16 %v342, %v342
      %v359 = vpack.c.b16 %v343, %v343
      %v360 = vpack.c.b16 %v344, %v344
      %v361 = vpack.c.b16 %v345, %v345
      %v362 = vpack.c.b16 %v346, %v346
      %v363 = vpack.c.b16 %v347, %v347
      %v364 = vpack.c.b16 %v348, %v348
      %v365 = vpack.c.b16 %v349, %v349
      %v366 = vpack.c.b16 %v350, %v350
      %v367 = vpack.c.b16 %v351, %v351
      %384 = vst [vmem:[%s208] sm:$0xf] %v352
      %385 = vst [vmem:[%s208 + $0x4] sm:$0xf] %v353
      %386 = vst [vmem:[%s208 + $0x8] sm:$0xf] %v354
      %387 = vst [vmem:[%s208 + $0xc] sm:$0xf] %v355
      %388 = vst [vmem:[%s208 + $0x10] sm:$0xf] %v356
      %389 = vst [vmem:[%s208 + $0x14] sm:$0xf] %v357
      %390 = vst [vmem:[%s208 + $0x18] sm:$0xf] %v358
      %391 = vst [vmem:[%s208 + $0x1c] sm:$0xf] %v359
      %392 = vst [vmem:[%s208 + $0x20] sm:$0xf] %v360
      %393 = vst [vmem:[%s208 + $0x24] sm:$0xf] %v361
      %394 = vst [vmem:[%s208 + $0x28] sm:$0xf] %v362
      %395 = vst [vmem:[%s208 + $0x2c] sm:$0xf] %v363
      %396 = vst [vmem:[%s208 + $0x30] sm:$0xf] %v364
      %397 = vst [vmem:[%s208 + $0x34] sm:$0xf] %v365
      %398 = vst [vmem:[%s208 + $0x38] sm:$0xf] %v366
      %399 = vst [vmem:[%s208 + $0x3c] sm:$0xf] %v367
      %s400 = smul.u32 16, %s19
      %p401 = scmp.lt.s32.totalorder %s18, 3
      %s402 = scalar_select %p401, %s18, 3
      %p403 = scmp.lt.s32.totalorder %s400, 15
      %s404 = scalar_select %p403, %s400, 15
      %s405 = smul.addr %s402, 16
      %s406 = sadd.s32 %s404, %s405
      %s407 = smul.addr %s406, 4
      %s408 = scalar_lea.vmem %s3, %s407
      // Predicated region
      $region33: #{generator_forward.16} parent=31 // pred_check
        %p409 = pneg %p116
      $region34: #{generator_forward.16} parent=31 // pred_check_branch
        %411 = sbr.rel (%p409) target = $region36
      $region35: #{generator_forward.16} parent=31 // pred_region
        %s412 = smul.u32 16, %s19
      $region36: #{generator_forward.16} parent=31 // pred_fallthru
        _
    $region32: #{generator_forward.16} parent=5 // pred_fallthru
      _
    %p413 = scmp.le.s32.totalorder 2, %s9
    // Predicated region
    $region37: #{generator_forward.16} parent=5 // pred_check
      %p414 = pneg %p413
    $region38: #{generator_forward.16} parent=5 // pred_check_branch
      %416 = sbr.rel (%p414) target = $region40
    $region39: #{generator_forward.16} parent=5 // pred_region
      %s417 = ssub.s32 %s9, 2
      // Predicated region
      $region41: #{generator_forward.16} parent=39 // pred_check
        %p418 = pneg %p122
      $region42: #{generator_forward.16} parent=39 // pred_check_branch
        %420 = sbr.rel (%p418) target = $region44
      $region43: #{generator_forward.16} parent=39 // pred_region
        %s421 = smul.u32 16, %s21
        %p422 = scmp.lt.s32.totalorder %s20, 3
        %s423 = scalar_select %p422, %s20, 3
        %p424 = scmp.lt.s32.totalorder %s421, 15
        %s425 = scalar_select %p424, %s421, 15
        %s426 = smul.addr %s423, 16
        %s427 = sadd.s32 %s425, %s426
        %s428 = smul.addr %s427, 4
        %s429 = scalar_lea.vmem %s3, %s428
      $region44: #{generator_forward.16} parent=39 // pred_fallthru
        _
    $region40: #{generator_forward.16} parent=5 // pred_fallthru
      _
  $region6: #{generator_forward.16} parent=0 // loop_footer
    %s13 = sadd.s32 1, %s9
  $region7: #{generator_forward.16} parent=0 // loop_footer_branch
    %8 = sbr.rel target = $region3
  $region8: #{generator_forward.16} parent=0 // loop_exit
    _

// kernel: generator_forward.15
$region0: #{generator_forward.15}
  #allocation0 [shape = 'u32[]', space=smem, size = 0x4, offset = 0x4, fixed_abs, tag = 'smem constant byte address 0x4 - core index']
  #allocation1 [shape = 'u32[144,128]{1,0:T(1,128)}', space=vmem, size = 0x12000, scoped, tag = 'internal scratch']
  %s0 = inlined_call_operand.vmem [shape: bf16[4,128,512], index: 0, kind: input, shape index: {}]
  %s1 = inlined_call_operand.vmem [shape: bf16[4,512,128], index: 1, kind: input, shape index: {}]
  %s2 = inlined_call_operand.vmem [shape: f32[4,128,128], index: 2, kind: output, shape index: {0}]
  %s3 = inlined_call_operand.vmem [shape: f32[4,1,2,128], index: 3, kind: output, shape index: {1}]
  %4 = xla_tuple %s2, %s3
  %s5 = sld [smem:[#allocation0]]
  $region49: #{generator_forward.15} parent=0
    _
  %s7 = ssub.s32 1, %s5
  %s8 = scalar_select 0, %s7, %s5
  loop: start=0, step=1, limit=6
  $region2: #{generator_forward.15} parent=0 // loop_pre_header
    _
  $region3: #{generator_forward.15} parent=0 // loop_header
    %s10 = sphi 0, %s14
    %p11 = scmp.ge.s32.totalorder %s10, 6
    %s17 = sphi 0, %s29
    %s18 = sphi 0, %s25
    %s19 = sphi 0, %s17
    %s20 = sphi 0, %s18
    %s21 = sphi 0, %s19
    %s22 = sphi 0, %s20
    %s34 = sphi 0, %s36
    %s37 = sphi 0, %s34
    %s38 = sphi 0, %s37
    %s54 = sphi 0, %s38
    %s60 = sphi 0, %s62
    %s63 = sphi 0, %s60
    %s64 = sphi 0, %s63
    %s80 = sphi 0, %s64
    %s88 = sphi 0, %s90
    %s91 = sphi 0, %s88
    %s92 = sphi 0, %s91
    %s108 = sphi 0, %s92
    %s116 = sphi 0, %s118
    %s119 = sphi 0, %s116
    %s120 = sphi 0, %s119
    %s136 = sphi 0, %s120
  $region4: #{generator_forward.15} parent=0 // loop_header_branch
    %13 = sbr.rel (%p11) target = $region8
  $region5: #{generator_forward.15} parent=0 // loop_body
    %s15 = ssub.s32 %s10, 1
    %s16 = ssub.s32 %s10, 2
    %s23 = sadd.s32 1, %s18
    %p24 = scmp.ge.s32.totalorder %s23, 1
    %s25 = scalar_select %p24, 0, %s23
    %s26 = sadd.s32 1, %s17
    %s27 = scalar_select %p24, %s26, %s17
    %p28 = scmp.ge.s32.totalorder %s27, 4
    %s29 = scalar_select %p28, 0, %s27
    %s30 = ssub.s32 %s17, %s29
    %s31 = ssub.s32 %s18, %s25
    %s32 = sor.u32 %s30, %s31
    %p33 = scmp.eq.s32.totalorder %s32, 0
    %s35 = sadd.s32 %s34, 1
    %s36 = scalar_select %p33, %s34, %s35
    %p39 = pneg %p33
    %p40 = scmp.eq.s32.totalorder %s10, 3
    %p41 = por %p39, %p40
    %p42 = scmp.ne.s32.totalorder %s34, %s37
    %p43 = scmp.eq.s32.totalorder %s10, 0
    %p44 = por %p42, %p43
    %p45 = scmp.ne.s32.totalorder %s34, %s37
    %p46 = scmp.eq.s32.totalorder %s15, 3
    %p47 = por %p45, %p46
    %p48 = scmp.ne.s32.totalorder %s37, %s38
    %p49 = scmp.eq.s32.totalorder %s15, 0
    %p50 = por %p48, %p49
    %p51 = scmp.ne.s32.totalorder %s37, %s38
    %p52 = scmp.eq.s32.totalorder %s16, 3
    %p53 = por %p51, %p52
    %p55 = scmp.ne.s32.totalorder %s38, %s54
    %p56 = scmp.eq.s32.totalorder %s16, 0
    %p57 = por %p55, %p56
    %s58 = ssub.s32 %s17, %s29
    %p59 = scmp.eq.s32.totalorder %s58, 0
    %s61 = sadd.s32 %s60, 1
    %s62 = scalar_select %p59, %s60, %s61
    %p65 = pneg %p59
    %p66 = scmp.eq.s32.totalorder %s10, 3
    %p67 = por %p65, %p66
    %p68 = scmp.ne.s32.totalorder %s60, %s63
    %p69 = scmp.eq.s32.totalorder %s10, 0
    %p70 = por %p68, %p69
    %p71 = scmp.ne.s32.totalorder %s60, %s63
    %p72 = scmp.eq.s32.totalorder %s15, 3
    %p73 = por %p71, %p72
    %p74 = scmp.ne.s32.totalorder %s63, %s64
    %p75 = scmp.eq.s32.totalorder %s15, 0
    %p76 = por %p74, %p75
    %p77 = scmp.ne.s32.totalorder %s63, %s64
    %p78 = scmp.eq.s32.totalorder %s16, 3
    %p79 = por %p77, %p78
    %p81 = scmp.ne.s32.totalorder %s64, %s80
    %p82 = scmp.eq.s32.totalorder %s16, 0
    %p83 = por %p81, %p82
    %s84 = ssub.s32 %s17, %s29
    %s85 = ssub.s32 %s18, %s25
    %s86 = sor.u32 %s84, %s85
    %p87 = scmp.eq.s32.totalorder %s86, 0
    %s89 = sadd.s32 %s88, 1
    %s90 = scalar_select %p87, %s88, %s89
    %p93 = pneg %p87
    %p94 = scmp.eq.s32.totalorder %s10, 3
    %p95 = por %p93, %p94
    %p96 = scmp.ne.s32.totalorder %s88, %s91
    %p97 = scmp.eq.s32.totalorder %s10, 0
    %p98 = por %p96, %p97
    %p99 = scmp.ne.s32.totalorder %s88, %s91
    %p100 = scmp.eq.s32.totalorder %s15, 3
    %p101 = por %p99, %p100
    %p102 = scmp.ne.s32.totalorder %s91, %s92
    %p103 = scmp.eq.s32.totalorder %s15, 0
    %p104 = por %p102, %p103
    %p105 = scmp.ne.s32.totalorder %s91, %s92
    %p106 = scmp.eq.s32.totalorder %s16, 3
    %p107 = por %p105, %p106
    %p109 = scmp.ne.s32.totalorder %s92, %s108
    %p110 = scmp.eq.s32.totalorder %s16, 0
    %p111 = por %p109, %p110
    %s112 = ssub.s32 %s17, %s29
    %s113 = ssub.s32 %s18, %s25
    %s114 = sor.u32 %s112, %s113
    %p115 = scmp.eq.s32.totalorder %s114, 0
    %s117 = sadd.s32 %s116, 1
    %s118 = scalar_select %p115, %s116, %s117
    %p121 = pneg %p115
    %p122 = scmp.eq.s32.totalorder %s10, 3
    %p123 = por %p121, %p122
    %p124 = scmp.ne.s32.totalorder %s116, %s119
    %p125 = scmp.eq.s32.totalorder %s10, 0
    %p126 = por %p124, %p125
    %p127 = scmp.ne.s32.totalorder %s116, %s119
    %p128 = scmp.eq.s32.totalorder %s15, 3
    %p129 = por %p127, %p128
    %p130 = scmp.ne.s32.totalorder %s119, %s120
    %p131 = scmp.eq.s32.totalorder %s15, 0
    %p132 = por %p130, %p131
    %p133 = scmp.ne.s32.totalorder %s119, %s120
    %p134 = scmp.eq.s32.totalorder %s16, 3
    %p135 = por %p133, %p134
    %p137 = scmp.ne.s32.totalorder %s120, %s136
    %p138 = scmp.eq.s32.totalorder %s16, 0
    %p139 = por %p137, %p138
    %p140 = scmp.le.s32.totalorder 1, %s10
    %p141 = scmp.lt.s32.totalorder %s10, 5
    %p142 = pnand %p140, %p141
    %p143 = pneg %p142
    // Predicated region
    $region9: #{generator_forward.15} parent=5 // pred_check
      _
    $region10: #{generator_forward.15} parent=5 // pred_check_branch
      %145 = sbr.rel (%p142) target = $region12
    $region11: #{generator_forward.15} parent=5 // pred_region
      %s146 = ssub.s32 %s10, 1
    $region12: #{generator_forward.15} parent=5 // pred_fallthru
      _
    %p147 = scmp.lt.s32.totalorder %s10, 4
    // Predicated region
    $region13: #{generator_forward.15} parent=5 // pred_check
      %p148 = pneg %p147
    $region14: #{generator_forward.15} parent=5 // pred_check_branch
      %150 = sbr.rel (%p148) target = $region16
    $region15: #{generator_forward.15} parent=5 // pred_region
      // Predicated region
      $region17: #{generator_forward.15} parent=15 // pred_check
        %p151 = pneg %p44
      $region18: #{generator_forward.15} parent=15 // pred_check_branch
        %153 = sbr.rel (%p151) target = $region20
      $region19: #{generator_forward.15} parent=15 // pred_region
        %s154 = smul.u32 16, %s18
        %p155 = scmp.lt.s32.totalorder %s17, 3
        %s156 = scalar_select %p155, %s17, 3
        %p157 = scmp.lt.s32.totalorder %s154, 15
        %s158 = scalar_select %p157, %s154, 15
        %s159 = smul.addr %s158, 4
        %s160 = smul.addr %s156, 64
        %s161 = sadd.s32 %s159, %s160
        %s162 = smul.addr %s161, 4
        %s163 = scalar_lea.vmem %s0, %s162
        %s164 = smul.u32 16, %s18
      $region20: #{generator_forward.15} parent=15 // pred_fallthru
        _
      // Predicated region
      $region21: #{generator_forward.15} parent=15 // pred_check
        %p165 = pneg %p70
      $region22: #{generator_forward.15} parent=15 // pred_check_branch
        %167 = sbr.rel (%p165) target = $region24
      $region23: #{generator_forward.15} parent=15 // pred_region
        %p168 = scmp.lt.s32.totalorder %s17, 3
        %s169 = scalar_select %p168, %s17, 3
        %s170 = smul.addr %s169, 64
        %s171 = smul.addr %s170, 4
        %s172 = scalar_lea.vmem %s1, %s171
      $region24: #{generator_forward.15} parent=15 // pred_fallthru
        _
    $region16: #{generator_forward.15} parent=5 // pred_fallthru
      _
    %p173 = scmp.le.s32.totalorder 1, %s10
    %p174 = scmp.lt.s32.totalorder %s10, 5
    %p175 = pnand %p173, %p174
    %p176 = pneg %p175
    // Predicated region
    $region25: #{generator_forward.15} parent=5 // pred_check
      _
    $region26: #{generator_forward.15} parent=5 // pred_check_branch
      %178 = sbr.rel (%p175) target = $region28
    $region27: #{generator_forward.15} parent=5 // pred_region
      %s179 = ssub.s32 %s10, 1
      %s180 = smul.u32 16, %s20
      %p181 = scmp.lt.s32.totalorder %s19, 3
      %s182 = scalar_select %p181, %s19, 3
      %p183 = scmp.lt.s32.totalorder %s180, 15
      %s184 = scalar_select %p183, %s180, 15
      %s185 = smul.addr %s184, 4
      %s186 = smul.addr %s182, 64
      %s187 = sadd.s32 %s185, %s186
      %s188 = smul.addr %s187, 4
      %s189 = scalar_lea.vmem %s0, %s188
      %p190 = pneg %p50
      %p191 = pneg %p47
      %p192 = scmp.lt.s32.totalorder %s19, 3
      %s193 = scalar_select %p192, %s19, 3
      %s194 = smul.addr %s193, 64
      %s195 = smul.addr %s194, 4
      %s196 = scalar_lea.vmem %s1, %s195
      %p197 = pneg %p76
      %p198 = pneg %p73
      %p199 = pneg %p104
      %p200 = pneg %p101
      %s201 = smul.u32 16, %s20
      %p202 = scmp.lt.s32.totalorder %s19, 3
      %s203 = scalar_select %p202, %s19, 3
      %p204 = scmp.lt.s32.totalorder %s201, 15
      %s205 = scalar_select %p204, %s201, 15
      %s206 = smul.addr %s203, 16
      %s207 = sadd.s32 %s205, %s206
      %s208 = smul.addr %s207, 8
      %s209 = scalar_lea.vmem %s2, %s208
      %p210 = pneg %p132
      %p211 = pneg %p129
      %p212 = scmp.lt.s32.totalorder %s19, 3
      %s213 = scalar_select %p212, %s19, 3
      %p214 = scmp.lt.s32.totalorder %s20, 0
      %s215 = scalar_select %p214, %s20, 0
      %s216 = sadd.s32 %s215, %s213
      %s217 = smul.addr %s216, 2
      %s218 = scalar_lea.vmem %s3, %s217
      %s219 = smul.u32 16, %s20
      %p220 = scmp.lt.s32.totalorder %s19, 3
      %s221 = scalar_select %p220, %s19, 3
      %p222 = scmp.lt.s32.totalorder %s219, 15
      %s223 = scalar_select %p222, %s219, 15
      %s224 = smul.addr %s223, 4
      %s225 = smul.addr %s221, 64
      %s226 = sadd.s32 %s224, %s225
      %s227 = smul.addr %s226, 4
      %s228 = scalar_lea.vmem %s0, %s227
      %s229 = smul.u32 16, %s20
      %p230 = scmp.lt.s32.totalorder %s19, 3
      %s231 = scalar_select %p230, %s19, 3
      %s232 = smul.addr %s231, 64
      %s233 = smul.addr %s232, 4
      %s234 = scalar_lea.vmem %s1, %s233
      %s235 = smul.u32 16, %s20
      %p236 = scmp.lt.s32.totalorder %s19, 3
      %s237 = scalar_select %p236, %s19, 3
      %p238 = scmp.lt.s32.totalorder %s235, 15
      %s239 = scalar_select %p238, %s235, 15
      %s240 = smul.addr %s237, 16
      %s241 = sadd.s32 %s239, %s240
      %s242 = smul.addr %s241, 8
      %s243 = scalar_lea.vmem %s2, %s242
      %s244 = smul.u32 16, %s20
      %p245 = scmp.lt.s32.totalorder %s19, 3
      %s246 = scalar_select %p245, %s19, 3
      %p247 = scmp.lt.s32.totalorder %s20, 0
      %s248 = scalar_select %p247, %s20, 0
      %s249 = sadd.s32 %s248, %s246
      %s250 = smul.addr %s249, 2
      %s251 = scalar_lea.vmem %s3, %s250
      %v253 = vld [vmem:[%s228] sm:$0xff]
      %v254 = vld [vmem:[%s228 + $0x8] sm:$0xff]
      %v255 = vld [vmem:[%s228 + $0x10] sm:$0xff]
      %v256 = vld [vmem:[%s228 + $0x18] sm:$0xff]
      %v257 = vld [vmem:[%s228 + $0x20] sm:$0xff]
      %v258 = vld [vmem:[%s228 + $0x28] sm:$0xff]
      %v259 = vld [vmem:[%s228 + $0x30] sm:$0xff]
      %v260 = vld [vmem:[%s228 + $0x38] sm:$0xff]
      %v261 = vld [vmem:[%s228 + $0x40] sm:$0xff]
      %v262 = vld [vmem:[%s228 + $0x48] sm:$0xff]
      %v263 = vld [vmem:[%s228 + $0x50] sm:$0xff]
      %v264 = vld [vmem:[%s228 + $0x58] sm:$0xff]
      %v265 = vld [vmem:[%s228 + $0x60] sm:$0xff]
      %v266 = vld [vmem:[%s228 + $0x68] sm:$0xff]
      %v267 = vld [vmem:[%s228 + $0x70] sm:$0xff]
      %v268 = vld [vmem:[%s228 + $0x78] sm:$0xff]
      %v269 = vld [vmem:[%s228 + $0x80] sm:$0xff]
      %v270 = vld [vmem:[%s228 + $0x88] sm:$0xff]
      %v271 = vld [vmem:[%s228 + $0x90] sm:$0xff]
      %v272 = vld [vmem:[%s228 + $0x98] sm:$0xff]
      %v273 = vld [vmem:[%s228 + $0xa0] sm:$0xff]
      %v274 = vld [vmem:[%s228 + $0xa8] sm:$0xff]
      %v275 = vld [vmem:[%s228 + $0xb0] sm:$0xff]
      %v276 = vld [vmem:[%s228 + $0xb8] sm:$0xff]
      %v277 = vld [vmem:[%s228 + $0xc0] sm:$0xff]
      %v278 = vld [vmem:[%s228 + $0xc8] sm:$0xff]
      %v279 = vld [vmem:[%s228 + $0xd0] sm:$0xff]
      %v280 = vld [vmem:[%s228 + $0xd8] sm:$0xff]
      %v281 = vld [vmem:[%s228 + $0xe0] sm:$0xff]
      %v282 = vld [vmem:[%s228 + $0xe8] sm:$0xff]
      %v283 = vld [vmem:[%s228 + $0xf0] sm:$0xff]
      %v284 = vld [vmem:[%s228 + $0xf8] sm:$0xff]
      %v285 = vld [vmem:[%s234] sm:$0xf]
      %v286 = vld [vmem:[%s234 + $0x4] sm:$0xf]
      %v287 = vld [vmem:[%s234 + $0x8] sm:$0xf]
      %v288 = vld [vmem:[%s234 + $0xc] sm:$0xf]
      %v289 = vld [vmem:[%s234 + $0x10] sm:$0xf]
      %v290 = vld [vmem:[%s234 + $0x14] sm:$0xf]
      %v291 = vld [vmem:[%s234 + $0x18] sm:$0xf]
      %v292 = vld [vmem:[%s234 + $0x1c] sm:$0xf]
      %v293 = vld [vmem:[%s234 + $0x20] sm:$0xf]
      %v294 = vld [vmem:[%s234 + $0x24] sm:$0xf]
      %v295 = vld [vmem:[%s234 + $0x28] sm:$0xf]
      %v296 = vld [vmem:[%s234 + $0x2c] sm:$0xf]
      %v297 = vld [vmem:[%s234 + $0x30] sm:$0xf]
      %v298 = vld [vmem:[%s234 + $0x34] sm:$0xf]
      %v299 = vld [vmem:[%s234 + $0x38] sm:$0xf]
      %v300 = vld [vmem:[%s234 + $0x3c] sm:$0xf]
      %v301 = vld [vmem:[%s234 + $0x40] sm:$0xf]
      %v302 = vld [vmem:[%s234 + $0x44] sm:$0xf]
      %v303 = vld [vmem:[%s234 + $0x48] sm:$0xf]
      %v304 = vld [vmem:[%s234 + $0x4c] sm:$0xf]
      %v305 = vld [vmem:[%s234 + $0x50] sm:$0xf]
      %v306 = vld [vmem:[%s234 + $0x54] sm:$0xf]
      %v307 = vld [vmem:[%s234 + $0x58] sm:$0xf]
      %v308 = vld [vmem:[%s234 + $0x5c] sm:$0xf]
      %v309 = vld [vmem:[%s234 + $0x60] sm:$0xf]
      %v310 = vld [vmem:[%s234 + $0x64] sm:$0xf]
      %v311 = vld [vmem:[%s234 + $0x68] sm:$0xf]
      %v312 = vld [vmem:[%s234 + $0x6c] sm:$0xf]
      %v313 = vld [vmem:[%s234 + $0x70] sm:$0xf]
      %v314 = vld [vmem:[%s234 + $0x74] sm:$0xf]
      %v315 = vld [vmem:[%s234 + $0x78] sm:$0xf]
      %v316 = vld [vmem:[%s234 + $0x7c] sm:$0xf]
      %v317 = vld [vmem:[%s234 + $0x80] sm:$0xf]
      %v318 = vld [vmem:[%s234 + $0x84] sm:$0xf]
      %v319 = vld [vmem:[%s234 + $0x88] sm:$0xf]
      %v320 = vld [vmem:[%s234 + $0x8c] sm:$0xf]
      %v321 = vld [vmem:[%s234 + $0x90] sm:$0xf]
      %v322 = vld [vmem:[%s234 + $0x94] sm:$0xf]
      %v323 = vld [vmem:[%s234 + $0x98] sm:$0xf]
      %v324 = vld [vmem:[%s234 + $0x9c] sm:$0xf]
      %v325 = vld [vmem:[%s234 + $0xa0] sm:$0xf]
      %v326 = vld [vmem:[%s234 + $0xa4] sm:$0xf]
      %v327 = vld [vmem:[%s234 + $0xa8] sm:$0xf]
      %v328 = vld [vmem:[%s234 + $0xac] sm:$0xf]
      %v329 = vld [vmem:[%s234 + $0xb0] sm:$0xf]
      %v330 = vld [vmem:[%s234 + $0xb4] sm:$0xf]
      %v331 = vld [vmem:[%s234 + $0xb8] sm:$0xf]
      %v332 = vld [vmem:[%s234 + $0xbc] sm:$0xf]
      %v333 = vld [vmem:[%s234 + $0xc0] sm:$0xf]
      %v334 = vld [vmem:[%s234 + $0xc4] sm:$0xf]
      %v335 = vld [vmem:[%s234 + $0xc8] sm:$0xf]
      %v336 = vld [vmem:[%s234 + $0xcc] sm:$0xf]
      %v337 = vld [vmem:[%s234 + $0xd0] sm:$0xf]
      %v338 = vld [vmem:[%s234 + $0xd4] sm:$0xf]
      %v339 = vld [vmem:[%s234 + $0xd8] sm:$0xf]
      %v340 = vld [vmem:[%s234 + $0xdc] sm:$0xf]
      %v341 = vld [vmem:[%s234 + $0xe0] sm:$0xf]
      %v342 = vld [vmem:[%s234 + $0xe4] sm:$0xf]
      %v343 = vld [vmem:[%s234 + $0xe8] sm:$0xf]
      %v344 = vld [vmem:[%s234 + $0xec] sm:$0xf]
      %v345 = vld [vmem:[%s234 + $0xf0] sm:$0xf]
      %v346 = vld [vmem:[%s234 + $0xf4] sm:$0xf]
      %v347 = vld [vmem:[%s234 + $0xf8] sm:$0xf]
      %v348 = vld [vmem:[%s234 + $0xfc] sm:$0xf]
      %v381 = vunpack.c.l.b16 %v253
      %v382 = vunpack.c.h.b16 %v253
      %v383 = vunpack.c.l.b16 %v254
      %v384 = vunpack.c.h.b16 %v254
      %v385 = vunpack.c.l.b16 %v255
      %v386 = vunpack.c.h.b16 %v255
      %v387 = vunpack.c.l.b16 %v256
      %v388 = vunpack.c.h.b16 %v256
      %v389 = vunpack.c.l.b16 %v257
      %v390 = vunpack.c.h.b16 %v257
      %v391 = vunpack.c.l.b16 %v258
      %v392 = vunpack.c.h.b16 %v258
      %v393 = vunpack.c.l.b16 %v259
      %v394 = vunpack.c.h.b16 %v259
      %v395 = vunpack.c.l.b16 %v260
      %v396 = vunpack.c.h.b16 %v260
      %v397 = vunpack.c.l.b16 %v261
      %v398 = vunpack.c.h.b16 %v261
      %v399 = vunpack.c.l.b16 %v262
      %v400 = vunpack.c.h.b16 %v262
      %v401 = vunpack.c.l.b16 %v263
      %v402 = vunpack.c.h.b16 %v263
      %v403 = vunpack.c.l.b16 %v264
      %v404 = vunpack.c.h.b16 %v264
      %v405 = vunpack.c.l.b16 %v265
      %v406 = vunpack.c.h.b16 %v265
      %v407 = vunpack.c.l.b16 %v266
      %v408 = vunpack.c.h.b16 %v266
      %v409 = vunpack.c.l.b16 %v267
      %v410 = vunpack.c.h.b16 %v267
      %v411 = vunpack.c.l.b16 %v268
      %v412 = vunpack.c.h.b16 %v268
      %v413 = vunpack.c.l.b16 %v269
      %v414 = vunpack.c.h.b16 %v269
      %v415 = vunpack.c.l.b16 %v270
      %v416 = vunpack.c.h.b16 %v270
      %v417 = vunpack.c.l.b16 %v271
      %v418 = vunpack.c.h.b16 %v271
      %v419 = vunpack.c.l.b16 %v272
      %v420 = vunpack.c.h.b16 %v272
      %v421 = vunpack.c.l.b16 %v273
      %v422 = vunpack.c.h.b16 %v273
      %v423 = vunpack.c.l.b16 %v274
      %v424 = vunpack.c.h.b16 %v274
      %v425 = vunpack.c.l.b16 %v275
      %v426 = vunpack.c.h.b16 %v275
      %v427 = vunpack.c.l.b16 %v276
      %v428 = vunpack.c.h.b16 %v276
      %v429 = vunpack.c.l.b16 %v277
      %v430 = vunpack.c.h.b16 %v277
      %v431 = vunpack.c.l.b16 %v278
      %v432 = vunpack.c.h.b16 %v278
      %v433 = vunpack.c.l.b16 %v279
      %v434 = vunpack.c.h.b16 %v279
      %v435 = vunpack.c.l.b16 %v280
      %v436 = vunpack.c.h.b16 %v280
      %v437 = vunpack.c.l.b16 %v281
      %v438 = vunpack.c.h.b16 %v281
      %v439 = vunpack.c.l.b16 %v282
      %v440 = vunpack.c.h.b16 %v282
      %v441 = vunpack.c.l.b16 %v283
      %v442 = vunpack.c.h.b16 %v283
      %v443 = vunpack.c.l.b16 %v284
      %v444 = vunpack.c.h.b16 %v284
      %v445 = vpack.c.b16 %v385, %v381
      %v446 = vpack.c.b16 %v386, %v382
      %v447 = vpack.c.b16 %v387, %v383
      %v448 = vpack.c.b16 %v388, %v384
      %v449 = vpack.c.b16 %v393, %v389
      %v450 = vpack.c.b16 %v394, %v390
      %v451 = vpack.c.b16 %v395, %v391
      %v452 = vpack.c.b16 %v396, %v392
      %v453 = vpack.c.b16 %v401, %v397
      %v454 = vpack.c.b16 %v402, %v398
      %v455 = vpack.c.b16 %v403, %v399
      %v456 = vpack.c.b16 %v404, %v400
      %v457 = vpack.c.b16 %v409, %v405
      %v458 = vpack.c.b16 %v410, %v406
      %v459 = vpack.c.b16 %v411, %v407
      %v460 = vpack.c.b16 %v412, %v408
      %v461 = vpack.c.b16 %v417, %v413
      %v462 = vpack.c.b16 %v418, %v414
      %v463 = vpack.c.b16 %v419, %v415
      %v464 = vpack.c.b16 %v420, %v416
      %v465 = vpack.c.b16 %v425, %v421
      %v466 = vpack.c.b16 %v426, %v422
      %v467 = vpack.c.b16 %v427, %v423
      %v468 = vpack.c.b16 %v428, %v424
      %v469 = vpack.c.b16 %v433, %v429
      %v470 = vpack.c.b16 %v434, %v430
      %v471 = vpack.c.b16 %v435, %v431
      %v472 = vpack.c.b16 %v436, %v432
      %v473 = vpack.c.b16 %v441, %v437
      %v474 = vpack.c.b16 %v442, %v438
      %v475 = vpack.c.b16 %v443, %v439
      %v476 = vpack.c.b16 %v444, %v440
      %v573 = vunpack.c.l.b16 %v285
      %v574 = vunpack.c.l.b16 %v286
      %v575 = vunpack.c.l.b16 %v287
      %v576 = vunpack.c.l.b16 %v288
      %v577 = vunpack.c.l.b16 %v289
      %v578 = vunpack.c.l.b16 %v290
      %v579 = vunpack.c.l.b16 %v291
      %v580 = vunpack.c.l.b16 %v292
      %v581 = vunpack.c.l.b16 %v293
      %v582 = vunpack.c.l.b16 %v294
      %v583 = vunpack.c.l.b16 %v295
      %v584 = vunpack.c.l.b16 %v296
      %v585 = vunpack.c.l.b16 %v297
      %v586 = vunpack.c.l.b16 %v298
      %v587 = vunpack.c.l.b16 %v299
      %v588 = vunpack.c.l.b16 %v300
      %v589 = vunpack.c.l.b16 %v301
      %v590 = vunpack.c.l.b16 %v302
      %v591 = vunpack.c.l.b16 %v303
      %v592 = vunpack.c.l.b16 %v304
      %v593 = vunpack.c.l.b16 %v305
      %v594 = vunpack.c.l.b16 %v306
      %v595 = vunpack.c.l.b16 %v307
      %v596 = vunpack.c.l.b16 %v308
      %v597 = vunpack.c.l.b16 %v309
      %v598 = vunpack.c.l.b16 %v310
      %v599 = vunpack.c.l.b16 %v311
      %v600 = vunpack.c.l.b16 %v312
      %v601 = vunpack.c.l.b16 %v313
      %v602 = vunpack.c.l.b16 %v314
      %v603 = vunpack.c.l.b16 %v315
      %v604 = vunpack.c.l.b16 %v316
      %v605 = vunpack.c.l.b16 %v317
      %v606 = vunpack.c.l.b16 %v318
      %v607 = vunpack.c.l.b16 %v319
      %v608 = vunpack.c.l.b16 %v320
      %v609 = vunpack.c.l.b16 %v321
      %v610 = vunpack.c.l.b16 %v322
      %v611 = vunpack.c.l.b16 %v323
      %v612 = vunpack.c.l.b16 %v324
      %v613 = vunpack.c.l.b16 %v325
      %v614 = vunpack.c.l.b16 %v326
      %v615 = vunpack.c.l.b16 %v327
      %v616 = vunpack.c.l.b16 %v328
      %v617 = vunpack.c.l.b16 %v329
      %v618 = vunpack.c.l.b16 %v330
      %v619 = vunpack.c.l.b16 %v331
      %v620 = vunpack.c.l.b16 %v332
      %v621 = vunpack.c.l.b16 %v333
      %v622 = vunpack.c.l.b16 %v334
      %v623 = vunpack.c.l.b16 %v335
      %v624 = vunpack.c.l.b16 %v336
      %v625 = vunpack.c.l.b16 %v337
      %v626 = vunpack.c.l.b16 %v338
      %v627 = vunpack.c.l.b16 %v339
      %v628 = vunpack.c.l.b16 %v340
      %v629 = vunpack.c.l.b16 %v341
      %v630 = vunpack.c.l.b16 %v342
      %v631 = vunpack.c.l.b16 %v343
      %v632 = vunpack.c.l.b16 %v344
      %v633 = vunpack.c.l.b16 %v345
      %v634 = vunpack.c.l.b16 %v346
      %v635 = vunpack.c.l.b16 %v347
      %v636 = vunpack.c.l.b16 %v348
      %v637 = vpack.c.b16 %v574, %v573
      %v638 = vpack.c.b16 %v576, %v575
      %v639 = vpack.c.b16 %v578, %v577
      %v640 = vpack.c.b16 %v580, %v579
      %v641 = vpack.c.b16 %v582, %v581
      %v642 = vpack.c.b16 %v584, %v583
      %v643 = vpack.c.b16 %v586, %v585
      %v644 = vpack.c.b16 %v588, %v587
      %v645 = vpack.c.b16 %v590, %v589
      %v646 = vpack.c.b16 %v592, %v591
      %v647 = vpack.c.b16 %v594, %v593
      %v648 = vpack.c.b16 %v596, %v595
      %v649 = vpack.c.b16 %v598, %v597
      %v650 = vpack.c.b16 %v600, %v599
      %v651 = vpack.c.b16 %v602, %v601
      %v652 = vpack.c.b16 %v604, %v603
      %v653 = vpack.c.b16 %v606, %v605
      %v654 = vpack.c.b16 %v608, %v607
      %v655 = vpack.c.b16 %v610, %v609
      %v656 = vpack.c.b16 %v612, %v611
      %v657 = vpack.c.b16 %v614, %v613
      %v658 = vpack.c.b16 %v616, %v615
      %v659 = vpack.c.b16 %v618, %v617
      %v660 = vpack.c.b16 %v620, %v619
      %v661 = vpack.c.b16 %v622, %v621
      %v662 = vpack.c.b16 %v624, %v623
      %v663 = vpack.c.b16 %v626, %v625
      %v664 = vpack.c.b16 %v628, %v627
      %v665 = vpack.c.b16 %v630, %v629
      %v666 = vpack.c.b16 %v632, %v631
      %v667 = vpack.c.b16 %v634, %v633
      %v668 = vpack.c.b16 %v636, %v635
      %701 = vmatprep.subr.bf16.mxu0 0
      %702 = vmatpush1.bf16.msra.mxu0 %v637
      %703 = vmatprep.subr.bf16.mxu0 0
      %704 = vmatpush1.bf16.msra.mxu0 %v638
      %705 = vmatprep.subr.bf16.mxu0 0
      %706 = vmatpush1.bf16.msra.mxu0 %v639
      %707 = vmatprep.subr.bf16.mxu0 0
      %708 = vmatpush1.bf16.msra.mxu0 %v640
      %709 = vmatprep.subr.bf16.mxu0 0
      %710 = vmatpush1.bf16.msra.mxu0 %v641
      %711 = vmatprep.subr.bf16.mxu0 0
      %712 = vmatpush1.bf16.msra.mxu0 %v642
      %713 = vmatprep.subr.bf16.mxu0 0
      %714 = vmatpush1.bf16.msra.mxu0 %v643
      %715 = vmatprep.subr.bf16.mxu0 0
      %716 = vmatpush1.bf16.msra.mxu0 %v644
      %717 = vmatprep.subr.bf16.mxu0 0
      %718 = vmatpush1.bf16.msra.mxu0 %v645
      %719 = vmatprep.subr.bf16.mxu0 0
      %720 = vmatpush1.bf16.msra.mxu0 %v646
      %721 = vmatprep.subr.bf16.mxu0 0
      %722 = vmatpush1.bf16.msra.mxu0 %v647
      %723 = vmatprep.subr.bf16.mxu0 0
      %724 = vmatpush1.bf16.msra.mxu0 %v648
      %725 = vmatprep.subr.bf16.mxu0 0
      %726 = vmatpush1.bf16.msra.mxu0 %v649
      %727 = vmatprep.subr.bf16.mxu0 0
      %728 = vmatpush1.bf16.msra.mxu0 %v650
      %729 = vmatprep.subr.bf16.mxu0 0
      %730 = vmatpush1.bf16.msra.mxu0 %v651
      %731 = vmatprep.subr.bf16.mxu0 0
      %732 = vmatpush1.bf16.msra.mxu0 %v652
      %733 = vmatprep.mubr.bf16.mxu0 %v446
      %734 = vmatmul.mubr.bf16.gmra.mrb[0].mxu0 %v445
      %v735 = vpop.f32.mrb[0].mxu0
      %v736 = vadd.f32 0.0, %v735
      %v737 = vpop.f32.mrb[0].mxu0
      %v738 = vpop.f32.mrb[0].mxu0
      %v739 = vadd.f32 0.0, %v738
      %v740 = vpop.f32.mrb[0].mxu0
      %741 = vmatprep.mubr.bf16.mxu0 %v450
      %742 = vmatmul.mubr.bf16.gmra.mrb[0].mxu0 %v449
      %v743 = vpop.f32.mrb[0].mxu0
      %v744 = vadd.f32 0.0, %v743
      %v745 = vpop.f32.mrb[0].mxu0
      %v746 = vpop.f32.mrb[0].mxu0
      %v747 = vadd.f32 0.0, %v746
      %v748 = vpop.f32.mrb[0].mxu0
      %749 = vmatprep.mubr.bf16.mxu0 %v454
      %750 = vmatmul.mubr.bf16.gmra.mrb[0].mxu0 %v453
      %v751 = vpop.f32.mrb[0].mxu0
      %v752 = vadd.f32 0.0, %v751
      %v753 = vpop.f32.mrb[0].mxu0
      %v754 = vpop.f32.mrb[0].mxu0
      %v755 = vadd.f32 0.0, %v754
      %v756 = vpop.f32.mrb[0].mxu0
      %757 = vmatprep.mubr.bf16.mxu0 %v458
      %758 = vmatmul.mubr.bf16.gmra.mrb[0].mxu0 %v457
      %v759 = vpop.f32.mrb[0].mxu0
      %v760 = vadd.f32 0.0, %v759
      %v761 = vpop.f32.mrb[0].mxu0
      %v762 = vpop.f32.mrb[0].mxu0
      %v763 = vadd.f32 0.0, %v762
      %v764 = vpop.f32.mrb[0].mxu0
      %765 = vmatprep.mubr.bf16.mxu0 %v462
      %766 = vmatmul.mubr.bf16.gmra.mrb[0].mxu0 %v461
      %v767 = vpop.f32.mrb[0].mxu0
      %v768 = vadd.f32 0.0, %v767
      %v769 = vpop.f32.mrb[0].mxu0
      %v770 = vpop.f32.mrb[0].mxu0
      %v771 = vadd.f32 0.0, %v770
      %v772 = vpop.f32.mrb[0].mxu0
      %773 = vmatprep.mubr.bf16.mxu0 %v466
      %774 = vmatmul.mubr.bf16.gmra.mrb[0].mxu0 %v465
      %v775 = vpop.f32.mrb[0].mxu0
      %v776 = vadd.f32 0.0, %v775
      %v777 = vpop.f32.mrb[0].mxu0
      %v778 = vpop.f32.mrb[0].mxu0
      %v779 = vadd.f32 0.0, %v778
      %v780 = vpop.f32.mrb[0].mxu0
      %781 = vmatprep.mubr.bf16.mxu0 %v470
      %782 = vmatmul.mubr.bf16.gmra.mrb[0].mxu0 %v469
      %v783 = vpop.f32.mrb[0].mxu0
      %v784 = vadd.f32 0.0, %v783
      %v785 = vpop.f32.mrb[0].mxu0
      %v786 = vpop.f32.mrb[0].mxu0
      %v787 = vadd.f32 0.0, %v786
      %v788 = vpop.f32.mrb[0].mxu0
      %789 = vmatprep.mubr.bf16.mxu0 %v474
      %790 = vmatmul.mubr.bf16.gmra.mrb[0].mxu0 %v473
      %v791 = vpop.f32.mrb[0].mxu0
      %v792 = vadd.f32 0.0, %v791
      %v793 = vpop.f32.mrb[0].mxu0
      %v794 = vpop.f32.mrb[0].mxu0
      %v795 = vadd.f32 0.0, %v794
      %v796 = vpop.f32.mrb[0].mxu0
      %797 = vdwg.mxu0
      %798 = vmatprep.subr.bf16.mxu0 0
      %799 = vmatpush1.bf16.msra.mxu0 %v653
      %800 = vmatprep.subr.bf16.mxu0 0
      %801 = vmatpush1.bf16.msra.mxu0 %v654
      %802 = vmatprep.subr.bf16.mxu0 0
      %803 = vmatpush1.bf16.msra.mxu0 %v655
      %804 = vmatprep.subr.bf16.mxu0 0
      %805 = vmatpush1.bf16.msra.mxu0 %v656
      %806 = vmatprep.subr.bf16.mxu0 0
      %807 = vmatpush1.bf16.msra.mxu0 %v657
      %808 = vmatprep.subr.bf16.mxu0 0
      %809 = vmatpush1.bf16.msra.mxu0 %v658
      %810 = vmatprep.subr.bf16.mxu0 0
      %811 = vmatpush1.bf16.msra.mxu0 %v659
      %812 = vmatprep.subr.bf16.mxu0 0
      %813 = vmatpush1.bf16.msra.mxu0 %v660
      %814 = vmatprep.subr.bf16.mxu0 0
      %815 = vmatpush1.bf16.msra.mxu0 %v661
      %816 = vmatprep.subr.bf16.mxu0 0
      %817 = vmatpush1.bf16.msra.mxu0 %v662
      %818 = vmatprep.subr.bf16.mxu0 0
      %819 = vmatpush1.bf16.msra.mxu0 %v663
      %820 = vmatprep.subr.bf16.mxu0 0
      %821 = vmatpush1.bf16.msra.mxu0 %v664
      %822 = vmatprep.subr.bf16.mxu0 0
      %823 = vmatpush1.bf16.msra.mxu0 %v665
      %824 = vmatprep.subr.bf16.mxu0 0
      %825 = vmatpush1.bf16.msra.mxu0 %v666
      %826 = vmatprep.subr.bf16.mxu0 0
      %827 = vmatpush1.bf16.msra.mxu0 %v667
      %828 = vmatprep.subr.bf16.mxu0 0
      %829 = vmatpush1.bf16.msra.mxu0 %v668
      %830 = vmatprep.mubr.bf16.mxu0 %v448
      %831 = vmatmul.mubr.bf16.gmra.mrb[0].mxu0 %v447
      %v832 = vpop.f32.mrb[0].mxu0
      %v833 = vadd.f32 %v736, %v832
      %v834 = vpop.f32.mrb[0].mxu0
      %v835 = vpop.f32.mrb[0].mxu0
      %v836 = vadd.f32 %v739, %v835
      %v837 = vpop.f32.mrb[0].mxu0
      %838 = vmatprep.mubr.bf16.mxu0 %v452
      %839 = vmatmul.mubr.bf16.gmra.mrb[0].mxu0 %v451
      %v840 = vpop.f32.mrb[0].mxu0
      %v841 = vadd.f32 %v744, %v840
      %v842 = vpop.f32.mrb[0].mxu0
      %v843 = vpop.f32.mrb[0].mxu0
      %v844 = vadd.f32 %v747, %v843
      %v845 = vpop.f32.mrb[0].mxu0
      %846 = vmatprep.mubr.bf16.mxu0 %v456
      %847 = vmatmul.mubr.bf16.gmra.mrb[0].mxu0 %v455
      %v848 = vpop.f32.mrb[0].mxu0
      %v849 = vadd.f32 %v752, %v848
      %v850 = vpop.f32.mrb[0].mxu0
      %v851 = vpop.f32.mrb[0].mxu0
      %v852 = vadd.f32 %v755, %v851
      %v853 = vpop.f32.mrb[0].mxu0
      %854 = vmatprep.mubr.bf16.mxu0 %v460
      %855 = vmatmul.mubr.bf16.gmra.mrb[0].mxu0 %v459
      %v856 = vpop.f32.mrb[0].mxu0
      %v857 = vadd.f32 %v760, %v856
      %v858 = vpop.f32.mrb[0].mxu0
      %v859 = vpop.f32.mrb[0].mxu0
      %v860 = vadd.f32 %v763, %v859
      %v861 = vpop.f32.mrb[0].mxu0
      %862 = vmatprep.mubr.bf16.mxu0 %v464
      %863 = vmatmul.mubr.bf16.gmra.mrb[0].mxu0 %v463
      %v864 = vpop.f32.mrb[0].mxu0
      %v865 = vadd.f32 %v768, %v864
      %v866 = vpop.f32.mrb[0].mxu0
      %v867 = vpop.f32.mrb[0].mxu0
      %v868 = vadd.f32 %v771, %v867
      %v869 = vpop.f32.mrb[0].mxu0
      %870 = vmatprep.mubr.bf16.mxu0 %v468
      %871 = vmatmul.mubr.bf16.gmra.mrb[0].mxu0 %v467
      %v872 = vpop.f32.mrb[0].mxu0
      %v873 = vadd.f32 %v776, %v872
      %v874 = vpop.f32.mrb[0].mxu0
      %v875 = vpop.f32.mrb[0].mxu0
      %v876 = vadd.f32 %v779, %v875
      %v877 = vpop.f32.mrb[0].mxu0
      %878 = vmatprep.mubr.bf16.mxu0 %v472
      %879 = vmatmul.mubr.bf16.gmra.mrb[0].mxu0 %v471
      %v880 = vpop.f32.mrb[0].mxu0
      %v881 = vadd.f32 %v784, %v880
      %v882 = vpop.f32.mrb[0].mxu0
      %v883 = vpop.f32.mrb[0].mxu0
      %v884 = vadd.f32 %v787, %v883
      %v885 = vpop.f32.mrb[0].mxu0
      %886 = vmatprep.mubr.bf16.mxu0 %v476
      %887 = vmatmul.mubr.bf16.gmra.mrb[0].mxu0 %v475
      %v888 = vpop.f32.mrb[0].mxu0
      %v889 = vadd.f32 %v792, %v888
      %v890 = vpop.f32.mrb[0].mxu0
      %v891 = vpop.f32.mrb[0].mxu0
      %v892 = vadd.f32 %v795, %v891
      %v893 = vpop.f32.mrb[0].mxu0
      %894 = vdwg.mxu0
      %895 = vst [vmem:[%s243] sm:$0xff] %v833
      %896 = vst [vmem:[%s243 + $0x8] sm:$0xff] %v836
      %897 = vst [vmem:[%s243 + $0x10] sm:$0xff] %v841
      %898 = vst [vmem:[%s243 + $0x18] sm:$0xff] %v844
      %899 = vst [vmem:[%s243 + $0x20] sm:$0xff] %v849
      %900 = vst [vmem:[%s243 + $0x28] sm:$0xff] %v852
      %901 = vst [vmem:[%s243 + $0x30] sm:$0xff] %v857
      %902 = vst [vmem:[%s243 + $0x38] sm:$0xff] %v860
      %903 = vst [vmem:[%s243 + $0x40] sm:$0xff] %v865
      %904 = vst [vmem:[%s243 + $0x48] sm:$0xff] %v868
      %905 = vst [vmem:[%s243 + $0x50] sm:$0xff] %v873
      %906 = vst [vmem:[%s243 + $0x58] sm:$0xff] %v876
      %907 = vst [vmem:[%s243 + $0x60] sm:$0xff] %v881
      %908 = vst [vmem:[%s243 + $0x68] sm:$0xff] %v884
      %909 = vst [vmem:[%s243 + $0x70] sm:$0xff] %v889
      %910 = vst [vmem:[%s243 + $0x78] sm:$0xff] %v892
      %v911 = vadd.f32 %v833, %v836
      %v912 = vadd.f32 %v911, %v841
      %v913 = vadd.f32 %v912, %v844
      %v914 = vadd.f32 %v913, %v849
      %v915 = vadd.f32 %v914, %v852
      %v916 = vadd.f32 %v915, %v857
      %v917 = vadd.f32 %v916, %v860
      %v918 = vadd.f32 %v917, %v865
      %v919 = vadd.f32 %v918, %v868
      %v920 = vadd.f32 %v919, %v873
      %v921 = vadd.f32 %v920, %v876
      %v922 = vadd.f32 %v921, %v881
      %v923 = vadd.f32 %v922, %v884
      %v924 = vadd.f32 %v923, %v889
      %v925 = vadd.f32 %v924, %v892
      %v926 = vrot.slane %v925, 4
      %v927 = vadd.f32 %v925, %v926
      %v928 = vrot.slane %v927, 2
      %v929 = vadd.f32 %v927, %v928
      %v930 = vrot.slane %v929, 1
      %v931 = vadd.f32 %v929, %v930
      %v932 = vmul.f32 %v833, %v833
      %v933 = vmul.f32 %v836, %v836
      %v934 = vmul.f32 %v841, %v841
      %v935 = vmul.f32 %v844, %v844
      %v936 = vmul.f32 %v849, %v849
      %v937 = vmul.f32 %v852, %v852
      %v938 = vmul.f32 %v857, %v857
      %v939 = vmul.f32 %v860, %v860
      %v940 = vmul.f32 %v865, %v865
      %v941 = vmul.f32 %v868, %v868
      %v942 = vmul.f32 %v873, %v873
      %v943 = vmul.f32 %v876, %v876
      %v944 = vmul.f32 %v881, %v881
      %v945 = vmul.f32 %v884, %v884
      %v946 = vmul.f32 %v889, %v889
      %v947 = vmul.f32 %v892, %v892
      %v948 = vadd.f32 %v932, %v933
      %v949 = vadd.f32 %v948, %v934
      %v950 = vadd.f32 %v949, %v935
      %v951 = vadd.f32 %v950, %v936
      %v952 = vadd.f32 %v951, %v937
      %v953 = vadd.f32 %v952, %v938
      %v954 = vadd.f32 %v953, %v939
      %v955 = vadd.f32 %v954, %v940
      %v956 = vadd.f32 %v955, %v941
      %v957 = vadd.f32 %v956, %v942
      %v958 = vadd.f32 %v957, %v943
      %v959 = vadd.f32 %v958, %v944
      %v960 = vadd.f32 %v959, %v945
      %v961 = vadd.f32 %v960, %v946
      %v962 = vadd.f32 %v961, %v947
      %v963 = vrot.slane %v962, 4
      %v964 = vadd.f32 %v962, %v963
      %v965 = vrot.slane %v964, 2
      %v966 = vadd.f32 %v964, %v965
      %v967 = vrot.slane %v966, 1
      %v968 = vadd.f32 %v966, %v967
      %vm969 = vcmask 1040384
      %v970 = vsel %vm969, %v931, %v968
      %971 = vst [vmem:[%s251] sm:$0x3] %v970
      %s972 = smul.u32 16, %s20
      %p973 = scmp.lt.s32.totalorder %s19, 3
      %s974 = scalar_select %p973, %s19, 3
      %p975 = scmp.lt.s32.totalorder %s972, 15
      %s976 = scalar_select %p975, %s972, 15
      %s977 = smul.addr %s974, 16
      %s978 = sadd.s32 %s976, %s977
      %s979 = smul.addr %s978, 8
      %s980 = scalar_lea.vmem %s2, %s979
      %p981 = scmp.lt.s32.totalorder %s19, 3
      %s982 = scalar_select %p981, %s19, 3
      %p983 = scmp.lt.s32.totalorder %s20, 0
      %s984 = scalar_select %p983, %s20, 0
      %s985 = sadd.s32 %s984, %s982
      %s986 = smul.addr %s985, 2
      %s987 = scalar_lea.vmem %s3, %s986
      // Predicated region
      $region29: #{generator_forward.15} parent=27 // pred_check
        %p988 = pneg %p101
      $region30: #{generator_forward.15} parent=27 // pred_check_branch
        %990 = sbr.rel (%p988) target = $region32
      $region31: #{generator_forward.15} parent=27 // pred_region
        %s991 = smul.u32 16, %s20
      $region32: #{generator_forward.15} parent=27 // pred_fallthru
        _
      // Predicated region
      $region33: #{generator_forward.15} parent=27 // pred_check
        %p992 = pneg %p129
      $region34: #{generator_forward.15} parent=27 // pred_check_branch
        %994 = sbr.rel (%p992) target = $region36
      $region35: #{generator_forward.15} parent=27 // pred_region
        _
      $region36: #{generator_forward.15} parent=27 // pred_fallthru
        _
    $region28: #{generator_forward.15} parent=5 // pred_fallthru
      _
    %p995 = scmp.le.s32.totalorder 2, %s10
    // Predicated region
    $region37: #{generator_forward.15} parent=5 // pred_check
      %p996 = pneg %p995
    $region38: #{generator_forward.15} parent=5 // pred_check_branch
      %998 = sbr.rel (%p996) target = $region40
    $region39: #{generator_forward.15} parent=5 // pred_region
      %s999 = ssub.s32 %s10, 2
      // Predicated region
      $region41: #{generator_forward.15} parent=39 // pred_check
        %p1000 = pneg %p107
      $region42: #{generator_forward.15} parent=39 // pred_check_branch
        %1002 = sbr.rel (%p1000) target = $region44
      $region43: #{generator_forward.15} parent=39 // pred_region
        %s1003 = smul.u32 16, %s22
        %p1004 = scmp.lt.s32.totalorder %s21, 3
        %s1005 = scalar_select %p1004, %s21, 3
        %p1006 = scmp.lt.s32.totalorder %s1003, 15
        %s1007 = scalar_select %p1006, %s1003, 15
        %s1008 = smul.addr %s1005, 16
        %s1009 = sadd.s32 %s1007, %s1008
        %s1010 = smul.addr %s1009, 8
        %s1011 = scalar_lea.vmem %s2, %s1010
      $region44: #{generator_forward.15} parent=39 // pred_fallthru
        _
      // Predicated region
      $region45: #{generator_forward.15} parent=39 // pred_check
        %p1012 = pneg %p135
      $region46: #{generator_forward.15} parent=39 // pred_check_branch
        %1014 = sbr.rel (%p1012) target = $region48
      $region47: #{generator_forward.15} parent=39 // pred_region
        %p1015 = scmp.lt.s32.totalorder %s21, 3
        %s1016 = scalar_select %p1015, %s21, 3
        %p1017 = scmp.lt.s32.totalorder %s22, 0
        %s1018 = scalar_select %p1017, %s22, 0
        %s1019 = sadd.s32 %s1018, %s1016
        %s1020 = smul.addr %s1019, 2
        %s1021 = scalar_lea.vmem %s3, %s1020
      $region48: #{generator_forward.15} parent=39 // pred_fallthru
        _
    $region40: #{generator_forward.15} parent=5 // pred_fallthru
      _
  $region6: #{generator_forward.15} parent=0 // loop_footer
    %s14 = sadd.s32 1, %s10
  $region7: #{generator_forward.15} parent=0 // loop_footer_branch
    %9 = sbr.rel target = $region3
  $region8: #{generator_forward.15} parent=0 // loop_exit
    _

// kernel: generator_forward.17
$region0: #{generator_forward.17}
  #allocation0 [shape = 'u32[]', space=smem, size = 0x4, offset = 0x4, fixed_abs, tag = 'smem constant byte address 0x4 - core index']
  #allocation1 [shape = 'u32[144,128]{1,0:T(1,128)}', space=vmem, size = 0x12000, scoped, tag = 'internal scratch']
  %s0 = inlined_call_operand.vmem [shape: bf16[4,512,512], index: 0, kind: input, shape index: {}]
  %s1 = inlined_call_operand.vmem [shape: bf16[4,512,128], index: 1, kind: input, shape index: {}]
  %s2 = inlined_call_operand.vmem [shape: f32[4,512,128], index: 2, kind: output, shape index: {0}]
  %s3 = inlined_call_operand.vmem [shape: f32[4,1,2,128], index: 3, kind: output, shape index: {1}]
  %4 = xla_tuple %s2, %s3
  %s5 = sld [smem:[#allocation0]]
  $region49: #{generator_forward.17} parent=0
    _
  %s7 = ssub.s32 1, %s5
  %s8 = scalar_select 0, %s7, %s5
  loop: start=0, step=1, limit=6
  $region2: #{generator_forward.17} parent=0 // loop_pre_header
    _
  $region3: #{generator_forward.17} parent=0 // loop_header
    %s10 = sphi 0, %s14
    %p11 = scmp.ge.s32.totalorder %s10, 6
    %s17 = sphi 0, %s29
    %s18 = sphi 0, %s25
    %s19 = sphi 0, %s17
    %s20 = sphi 0, %s18
    %s21 = sphi 0, %s19
    %s22 = sphi 0, %s20
    %s34 = sphi 0, %s36
    %s37 = sphi 0, %s34
    %s38 = sphi 0, %s37
    %s54 = sphi 0, %s38
    %s60 = sphi 0, %s62
    %s63 = sphi 0, %s60
    %s64 = sphi 0, %s63
    %s80 = sphi 0, %s64
    %s88 = sphi 0, %s90
    %s91 = sphi 0, %s88
    %s92 = sphi 0, %s91
    %s108 = sphi 0, %s92
    %s116 = sphi 0, %s118
    %s119 = sphi 0, %s116
    %s120 = sphi 0, %s119
    %s136 = sphi 0, %s120
  $region4: #{generator_forward.17} parent=0 // loop_header_branch
    %13 = sbr.rel (%p11) target = $region8
  $region5: #{generator_forward.17} parent=0 // loop_body
    %s15 = ssub.s32 %s10, 1
    %s16 = ssub.s32 %s10, 2
    %s23 = sadd.s32 1, %s18
    %p24 = scmp.ge.s32.totalorder %s23, 1
    %s25 = scalar_select %p24, 0, %s23
    %s26 = sadd.s32 1, %s17
    %s27 = scalar_select %p24, %s26, %s17
    %p28 = scmp.ge.s32.totalorder %s27, 4
    %s29 = scalar_select %p28, 0, %s27
    %s30 = ssub.s32 %s17, %s29
    %s31 = ssub.s32 %s18, %s25
    %s32 = sor.u32 %s30, %s31
    %p33 = scmp.eq.s32.totalorder %s32, 0
    %s35 = sadd.s32 %s34, 1
    %s36 = scalar_select %p33, %s34, %s35
    %p39 = pneg %p33
    %p40 = scmp.eq.s32.totalorder %s10, 3
    %p41 = por %p39, %p40
    %p42 = scmp.ne.s32.totalorder %s34, %s37
    %p43 = scmp.eq.s32.totalorder %s10, 0
    %p44 = por %p42, %p43
    %p45 = scmp.ne.s32.totalorder %s34, %s37
    %p46 = scmp.eq.s32.totalorder %s15, 3
    %p47 = por %p45, %p46
    %p48 = scmp.ne.s32.totalorder %s37, %s38
    %p49 = scmp.eq.s32.totalorder %s15, 0
    %p50 = por %p48, %p49
    %p51 = scmp.ne.s32.totalorder %s37, %s38
    %p52 = scmp.eq.s32.totalorder %s16, 3
    %p53 = por %p51, %p52
    %p55 = scmp.ne.s32.totalorder %s38, %s54
    %p56 = scmp.eq.s32.totalorder %s16, 0
    %p57 = por %p55, %p56
    %s58 = ssub.s32 %s17, %s29
    %p59 = scmp.eq.s32.totalorder %s58, 0
    %s61 = sadd.s32 %s60, 1
    %s62 = scalar_select %p59, %s60, %s61
    %p65 = pneg %p59
    %p66 = scmp.eq.s32.totalorder %s10, 3
    %p67 = por %p65, %p66
    %p68 = scmp.ne.s32.totalorder %s60, %s63
    %p69 = scmp.eq.s32.totalorder %s10, 0
    %p70 = por %p68, %p69
    %p71 = scmp.ne.s32.totalorder %s60, %s63
    %p72 = scmp.eq.s32.totalorder %s15, 3
    %p73 = por %p71, %p72
    %p74 = scmp.ne.s32.totalorder %s63, %s64
    %p75 = scmp.eq.s32.totalorder %s15, 0
    %p76 = por %p74, %p75
    %p77 = scmp.ne.s32.totalorder %s63, %s64
    %p78 = scmp.eq.s32.totalorder %s16, 3
    %p79 = por %p77, %p78
    %p81 = scmp.ne.s32.totalorder %s64, %s80
    %p82 = scmp.eq.s32.totalorder %s16, 0
    %p83 = por %p81, %p82
    %s84 = ssub.s32 %s17, %s29
    %s85 = ssub.s32 %s18, %s25
    %s86 = sor.u32 %s84, %s85
    %p87 = scmp.eq.s32.totalorder %s86, 0
    %s89 = sadd.s32 %s88, 1
    %s90 = scalar_select %p87, %s88, %s89
    %p93 = pneg %p87
    %p94 = scmp.eq.s32.totalorder %s10, 3
    %p95 = por %p93, %p94
    %p96 = scmp.ne.s32.totalorder %s88, %s91
    %p97 = scmp.eq.s32.totalorder %s10, 0
    %p98 = por %p96, %p97
    %p99 = scmp.ne.s32.totalorder %s88, %s91
    %p100 = scmp.eq.s32.totalorder %s15, 3
    %p101 = por %p99, %p100
    %p102 = scmp.ne.s32.totalorder %s91, %s92
    %p103 = scmp.eq.s32.totalorder %s15, 0
    %p104 = por %p102, %p103
    %p105 = scmp.ne.s32.totalorder %s91, %s92
    %p106 = scmp.eq.s32.totalorder %s16, 3
    %p107 = por %p105, %p106
    %p109 = scmp.ne.s32.totalorder %s92, %s108
    %p110 = scmp.eq.s32.totalorder %s16, 0
    %p111 = por %p109, %p110
    %s112 = ssub.s32 %s17, %s29
    %s113 = ssub.s32 %s18, %s25
    %s114 = sor.u32 %s112, %s113
    %p115 = scmp.eq.s32.totalorder %s114, 0
    %s117 = sadd.s32 %s116, 1
    %s118 = scalar_select %p115, %s116, %s117
    %p121 = pneg %p115
    %p122 = scmp.eq.s32.totalorder %s10, 3
    %p123 = por %p121, %p122
    %p124 = scmp.ne.s32.totalorder %s116, %s119
    %p125 = scmp.eq.s32.totalorder %s10, 0
    %p126 = por %p124, %p125
    %p127 = scmp.ne.s32.totalorder %s116, %s119
    %p128 = scmp.eq.s32.totalorder %s15, 3
    %p129 = por %p127, %p128
    %p130 = scmp.ne.s32.totalorder %s119, %s120
    %p131 = scmp.eq.s32.totalorder %s15, 0
    %p132 = por %p130, %p131
    %p133 = scmp.ne.s32.totalorder %s119, %s120
    %p134 = scmp.eq.s32.totalorder %s16, 3
    %p135 = por %p133, %p134
    %p137 = scmp.ne.s32.totalorder %s120, %s136
    %p138 = scmp.eq.s32.totalorder %s16, 0
    %p139 = por %p137, %p138
    %p140 = scmp.le.s32.totalorder 1, %s10
    %p141 = scmp.lt.s32.totalorder %s10, 5
    %p142 = pnand %p140, %p141
    %p143 = pneg %p142
    // Predicated region
    $region9: #{generator_forward.17} parent=5 // pred_check
      _
    $region10: #{generator_forward.17} parent=5 // pred_check_branch
      %145 = sbr.rel (%p142) target = $region12
    $region11: #{generator_forward.17} parent=5 // pred_region
      %s146 = ssub.s32 %s10, 1
    $region12: #{generator_forward.17} parent=5 // pred_fallthru
      _
    %p147 = scmp.lt.s32.totalorder %s10, 4
    // Predicated region
    $region13: #{generator_forward.17} parent=5 // pred_check
      %p148 = pneg %p147
    $region14: #{generator_forward.17} parent=5 // pred_check_branch
      %150 = sbr.rel (%p148) target = $region16
    $region15: #{generator_forward.17} parent=5 // pred_region
      // Predicated region
      $region17: #{generator_forward.17} parent=15 // pred_check
        %p151 = pneg %p44
      $region18: #{generator_forward.17} parent=15 // pred_check_branch
        %153 = sbr.rel (%p151) target = $region20
      $region19: #{generator_forward.17} parent=15 // pred_region
        %s154 = smul.u32 64, %s18
        %p155 = scmp.lt.s32.totalorder %s17, 3
        %s156 = scalar_select %p155, %s17, 3
        %p157 = scmp.lt.s32.totalorder %s154, 63
        %s158 = scalar_select %p157, %s154, 63
        %s159 = smul.addr %s158, 4
        %s160 = smul.addr %s156, 256
        %s161 = sadd.s32 %s159, %s160
        %s162 = smul.addr %s161, 4
        %s163 = scalar_lea.vmem %s0, %s162
        %s164 = smul.u32 64, %s18
      $region20: #{generator_forward.17} parent=15 // pred_fallthru
        _
      // Predicated region
      $region21: #{generator_forward.17} parent=15 // pred_check
        %p165 = pneg %p70
      $region22: #{generator_forward.17} parent=15 // pred_check_branch
        %167 = sbr.rel (%p165) target = $region24
      $region23: #{generator_forward.17} parent=15 // pred_region
        %p168 = scmp.lt.s32.totalorder %s17, 3
        %s169 = scalar_select %p168, %s17, 3
        %s170 = smul.addr %s169, 64
        %s171 = smul.addr %s170, 4
        %s172 = scalar_lea.vmem %s1, %s171
      $region24: #{generator_forward.17} parent=15 // pred_fallthru
        _
    $region16: #{generator_forward.17} parent=5 // pred_fallthru
      _
    %p173 = scmp.le.s32.totalorder 1, %s10
    %p174 = scmp.lt.s32.totalorder %s10, 5
    %p175 = pnand %p173, %p174
    %p176 = pneg %p175
    // Predicated region
    $region25: #{generator_forward.17} parent=5 // pred_check
      _
    $region26: #{generator_forward.17} parent=5 // pred_check_branch
      %178 = sbr.rel (%p175) target = $region28
    $region27: #{generator_forward.17} parent=5 // pred_region
      %s179 = ssub.s32 %s10, 1
      %s180 = smul.u32 64, %s20
      %p181 = scmp.lt.s32.totalorder %s19, 3
      %s182 = scalar_select %p181, %s19, 3
      %p183 = scmp.lt.s32.totalorder %s180, 63
      %s184 = scalar_select %p183, %s180, 63
      %s185 = smul.addr %s184, 4
      %s186 = smul.addr %s182, 256
      %s187 = sadd.s32 %s185, %s186
      %s188 = smul.addr %s187, 4
      %s189 = scalar_lea.vmem %s0, %s188
      %p190 = pneg %p50
      %p191 = pneg %p47
      %p192 = scmp.lt.s32.totalorder %s19, 3
      %s193 = scalar_select %p192, %s19, 3
      %s194 = smul.addr %s193, 64
      %s195 = smul.addr %s194, 4
      %s196 = scalar_lea.vmem %s1, %s195
      %p197 = pneg %p76
      %p198 = pneg %p73
      %p199 = pneg %p104
      %p200 = pneg %p101
      %s201 = smul.u32 64, %s20
      %p202 = scmp.lt.s32.totalorder %s19, 3
      %s203 = scalar_select %p202, %s19, 3
      %p204 = scmp.lt.s32.totalorder %s201, 63
      %s205 = scalar_select %p204, %s201, 63
      %s206 = smul.addr %s203, 64
      %s207 = sadd.s32 %s205, %s206
      %s208 = smul.addr %s207, 8
      %s209 = scalar_lea.vmem %s2, %s208
      %p210 = pneg %p132
      %p211 = pneg %p129
      %p212 = scmp.lt.s32.totalorder %s19, 3
      %s213 = scalar_select %p212, %s19, 3
      %p214 = scmp.lt.s32.totalorder %s20, 0
      %s215 = scalar_select %p214, %s20, 0
      %s216 = sadd.s32 %s215, %s213
      %s217 = smul.addr %s216, 2
      %s218 = scalar_lea.vmem %s3, %s217
      %s219 = smul.u32 64, %s20
      %p220 = scmp.lt.s32.totalorder %s19, 3
      %s221 = scalar_select %p220, %s19, 3
      %p222 = scmp.lt.s32.totalorder %s219, 63
      %s223 = scalar_select %p222, %s219, 63
      %s224 = smul.addr %s223, 4
      %s225 = smul.addr %s221, 256
      %s226 = sadd.s32 %s224, %s225
      %s227 = smul.addr %s226, 4
      %s228 = scalar_lea.vmem %s0, %s227
      %s229 = smul.u32 64, %s20
      %p230 = scmp.lt.s32.totalorder %s19, 3
      %s231 = scalar_select %p230, %s19, 3
      %s232 = smul.addr %s231, 64
      %s233 = smul.addr %s232, 4
      %s234 = scalar_lea.vmem %s1, %s233
      %s235 = smul.u32 64, %s20
      %p236 = scmp.lt.s32.totalorder %s19, 3
      %s237 = scalar_select %p236, %s19, 3
      %p238 = scmp.lt.s32.totalorder %s235, 63
      %s239 = scalar_select %p238, %s235, 63
      %s240 = smul.addr %s237, 64
      %s241 = sadd.s32 %s239, %s240
      %s242 = smul.addr %s241, 8
      %s243 = scalar_lea.vmem %s2, %s242
      %s244 = smul.u32 64, %s20
      %p245 = scmp.lt.s32.totalorder %s19, 3
      %s246 = scalar_select %p245, %s19, 3
      %p247 = scmp.lt.s32.totalorder %s20, 0
      %s248 = scalar_select %p247, %s20, 0
      %s249 = sadd.s32 %s248, %s246
      %s250 = smul.addr %s249, 2
      %s251 = scalar_lea.vmem %s3, %s250
      %v253 = vld [vmem:[%s228] sm:$0xff]
      %v254 = vld [vmem:[%s228 + $0x8] sm:$0xff]
      %v255 = vld [vmem:[%s228 + $0x10] sm:$0xff]
      %v256 = vld [vmem:[%s228 + $0x18] sm:$0xff]
      %v257 = vld [vmem:[%s228 + $0x20] sm:$0xff]
      %v258 = vld [vmem:[%s228 + $0x28] sm:$0xff]
      %v259 = vld [vmem:[%s228 + $0x30] sm:$0xff]
      %v260 = vld [vmem:[%s228 + $0x38] sm:$0xff]
      %v261 = vld [vmem:[%s228 + $0x40] sm:$0xff]
      %v262 = vld [vmem:[%s228 + $0x48] sm:$0xff]
      %v263 = vld [vmem:[%s228 + $0x50] sm:$0xff]
      %v264 = vld [vmem:[%s228 + $0x58] sm:$0xff]
      %v265 = vld [vmem:[%s228 + $0x60] sm:$0xff]
      %v266 = vld [vmem:[%s228 + $0x68] sm:$0xff]
      %v267 = vld [vmem:[%s228 + $0x70] sm:$0xff]
      %v268 = vld [vmem:[%s228 + $0x78] sm:$0xff]
      %v269 = vld [vmem:[%s228 + $0x80] sm:$0xff]
      %v270 = vld [vmem:[%s228 + $0x88] sm:$0xff]
      %v271 = vld [vmem:[%s228 + $0x90] sm:$0xff]
      %v272 = vld [vmem:[%s228 + $0x98] sm:$0xff]
      %v273 = vld [vmem:[%s228 + $0xa0] sm:$0xff]
      %v274 = vld [vmem:[%s228 + $0xa8] sm:$0xff]
      %v275 = vld [vmem:[%s228 + $0xb0] sm:$0xff]
      %v276 = vld [vmem:[%s228 + $0xb8] sm:$0xff]
      %v277 = vld [vmem:[%s228 + $0xc0] sm:$0xff]
      %v278 = vld [vmem:[%s228 + $0xc8] sm:$0xff]
      %v279 = vld [vmem:[%s228 + $0xd0] sm:$0xff]
      %v280 = vld [vmem:[%s228 + $0xd8] sm:$0xff]
      %v281 = vld [vmem:[%s228 + $0xe0] sm:$0xff]
      %v282 = vld [vmem:[%s228 + $0xe8] sm:$0xff]
      %v283 = vld [vmem:[%s228 + $0xf0] sm:$0xff]
      %v284 = vld [vmem:[%s228 + $0xf8] sm:$0xff]
      %v285 = vld [vmem:[%s228 + $0x100] sm:$0xff]
      %v286 = vld [vmem:[%s228 + $0x108] sm:$0xff]
      %v287 = vld [vmem:[%s228 + $0x110] sm:$0xff]
      %v288 = vld [vmem:[%s228 + $0x118] sm:$0xff]
      %v289 = vld [vmem:[%s228 + $0x120] sm:$0xff]
      %v290 = vld [vmem:[%s228 + $0x128] sm:$0xff]
      %v291 = vld [vmem:[%s228 + $0x130] sm:$0xff]
      %v292 = vld [vmem:[%s228 + $0x138] sm:$0xff]
      %v293 = vld [vmem:[%s228 + $0x140] sm:$0xff]
      %v294 = vld [vmem:[%s228 + $0x148] sm:$0xff]
      %v295 = vld [vmem:[%s228 + $0x150] sm:$0xff]
      %v296 = vld [vmem:[%s228 + $0x158] sm:$0xff]
      %v297 = vld [vmem:[%s228 + $0x160] sm:$0xff]
      %v298 = vld [vmem:[%s228 + $0x168] sm:$0xff]
      %v299 = vld [vmem:[%s228 + $0x170] sm:$0xff]
      %v300 = vld [vmem:[%s228 + $0x178] sm:$0xff]
      %v301 = vld [vmem:[%s228 + $0x180] sm:$0xff]
      %v302 = vld [vmem:[%s228 + $0x188] sm:$0xff]
      %v303 = vld [vmem:[%s228 + $0x190] sm:$0xff]
      %v304 = vld [vmem:[%s228 + $0x198] sm:$0xff]
      %v305 = vld [vmem:[%s228 + $0x1a0] sm:$0xff]
      %v306 = vld [vmem:[%s228 + $0x1a8] sm:$0xff]
      %v307 = vld [vmem:[%s228 + $0x1b0] sm:$0xff]
      %v308 = vld [vmem:[%s228 + $0x1b8] sm:$0xff]
      %v309 = vld [vmem:[%s228 + $0x1c0] sm:$0xff]
      %v310 = vld [vmem:[%s228 + $0x1c8] sm:$0xff]
      %v311 = vld [vmem:[%s228 + $0x1d0] sm:$0xff]
      %v312 = vld [vmem:[%s228 + $0x1d8] sm:$0xff]
      %v313 = vld [vmem:[%s228 + $0x1e0] sm:$0xff]
      %v314 = vld [vmem:[%s228 + $0x1e8] sm:$0xff]
      %v315 = vld [vmem:[%s228 + $0x1f0] sm:$0xff]
      %v316 = vld [vmem:[%s228 + $0x1f8] sm:$0xff]
      %v317 = vld [vmem:[%s228 + $0x200] sm:$0xff]
      %v318 = vld [vmem:[%s228 + $0x208] sm:$0xff]
      %v319 = vld [vmem:[%s228 + $0x210] sm:$0xff]
      %v320 = vld [vmem:[%s228 + $0x218] sm:$0xff]
      %v321 = vld [vmem:[%s228 + $0x220] sm:$0xff]
      %v322 = vld [vmem:[%s228 + $0x228] sm:$0xff]
      %v323 = vld [vmem:[%s228 + $0x230] sm:$0xff]
      %v324 = vld [vmem:[%s228 + $0x238] sm:$0xff]
      %v325 = vld [vmem:[%s228 + $0x240] sm:$0xff]
      %v326 = vld [vmem:[%s228 + $0x248] sm:$0xff]
      %v327 = vld [vmem:[%s228 + $0x250] sm:$0xff]
      %v328 = vld [vmem:[%s228 + $0x258] sm:$0xff]
      %v329 = vld [vmem:[%s228 + $0x260] sm:$0xff]
      %v330 = vld [vmem:[%s228 + $0x268] sm:$0xff]
      %v331 = vld [vmem:[%s228 + $0x270] sm:$0xff]
      %v332 = vld [vmem:[%s228 + $0x278] sm:$0xff]
      %v333 = vld [vmem:[%s228 + $0x280] sm:$0xff]
      %v334 = vld [vmem:[%s228 + $0x288] sm:$0xff]
      %v335 = vld [vmem:[%s228 + $0x290] sm:$0xff]
      %v336 = vld [vmem:[%s228 + $0x298] sm:$0xff]
      %v337 = vld [vmem:[%s228 + $0x2a0] sm:$0xff]
      %v338 = vld [vmem:[%s228 + $0x2a8] sm:$0xff]
      %v339 = vld [vmem:[%s228 + $0x2b0] sm:$0xff]
      %v340 = vld [vmem:[%s228 + $0x2b8] sm:$0xff]
      %v341 = vld [vmem:[%s228 + $0x2c0] sm:$0xff]
      %v342 = vld [vmem:[%s228 + $0x2c8] sm:$0xff]
      %v343 = vld [vmem:[%s228 + $0x2d0] sm:$0xff]
      %v344 = vld [vmem:[%s228 + $0x2d8] sm:$0xff]
      %v345 = vld [vmem:[%s228 + $0x2e0] sm:$0xff]
      %v346 = vld [vmem:[%s228 + $0x2e8] sm:$0xff]
      %v347 = vld [vmem:[%s228 + $0x2f0] sm:$0xff]
      %v348 = vld [vmem:[%s228 + $0x2f8] sm:$0xff]
      %v349 = vld [vmem:[%s228 + $0x300] sm:$0xff]
      %v350 = vld [vmem:[%s228 + $0x308] sm:$0xff]
      %v351 = vld [vmem:[%s228 + $0x310] sm:$0xff]
      %v352 = vld [vmem:[%s228 + $0x318] sm:$0xff]
      %v353 = vld [vmem:[%s228 + $0x320] sm:$0xff]
      %v354 = vld [vmem:[%s228 + $0x328] sm:$0xff]
      %v355 = vld [vmem:[%s228 + $0x330] sm:$0xff]
      %v356 = vld [vmem:[%s228 + $0x338] sm:$0xff]
      %v357 = vld [vmem:[%s228 + $0x340] sm:$0xff]
      %v358 = vld [vmem:[%s228 + $0x348] sm:$0xff]
      %v359 = vld [vmem:[%s228 + $0x350] sm:$0xff]
      %v360 = vld [vmem:[%s228 + $0x358] sm:$0xff]
      %v361 = vld [vmem:[%s228 + $0x360] sm:$0xff]
      %v362 = vld [vmem:[%s228 + $0x368] sm:$0xff]
      %v363 = vld [vmem:[%s228 + $0x370] sm:$0xff]
      %v364 = vld [vmem:[%s228 + $0x378] sm:$0xff]
      %v365 = vld [vmem:[%s228 + $0x380] sm:$0xff]
      %v366 = vld [vmem:[%s228 + $0x388] sm:$0xff]
      %v367 = vld [vmem:[%s228 + $0x390] sm:$0xff]
      %v368 = vld [vmem:[%s228 + $0x398] sm:$0xff]
      %v369 = vld [vmem:[%s228 + $0x3a0] sm:$0xff]
      %v370 = vld [vmem:[%s228 + $0x3a8] sm:$0xff]
      %v371 = vld [vmem:[%s228 + $0x3b0] sm:$0xff]
      %v372 = vld [vmem:[%s228 + $0x3b8] sm:$0xff]
      %v373 = vld [vmem:[%s228 + $0x3c0] sm:$0xff]
      %v374 = vld [vmem:[%s228 + $0x3c8] sm:$0xff]
      %v375 = vld [vmem:[%s228 + $0x3d0] sm:$0xff]
      %v376 = vld [vmem:[%s228 + $0x3d8] sm:$0xff]
      %v377 = vld [vmem:[%s228 + $0x3e0] sm:$0xff]
      %v378 = vld [vmem:[%s228 + $0x3e8] sm:$0xff]
      %v379 = vld [vmem:[%s228 + $0x3f0] sm:$0xff]
      %v380 = vld [vmem:[%s228 + $0x3f8] sm:$0xff]
      %v381 = vld [vmem:[%s234] sm:$0xf]
      %v382 = vld [vmem:[%s234 + $0x4] sm:$0xf]
      %v383 = vld [vmem:[%s234 + $0x8] sm:$0xf]
      %v384 = vld [vmem:[%s234 + $0xc] sm:$0xf]
      %v385 = vld [vmem:[%s234 + $0x10] sm:$0xf]
      %v386 = vld [vmem:[%s234 + $0x14] sm:$0xf]
      %v387 = vld [vmem:[%s234 + $0x18] sm:$0xf]
      %v388 = vld [vmem:[%s234 + $0x1c] sm:$0xf]
      %v389 = vld [vmem:[%s234 + $0x20] sm:$0xf]
      %v390 = vld [vmem:[%s234 + $0x24] sm:$0xf]
      %v391 = vld [vmem:[%s234 + $0x28] sm:$0xf]
      %v392 = vld [vmem:[%s234 + $0x2c] sm:$0xf]
      %v393 = vld [vmem:[%s234 + $0x30] sm:$0xf]
      %v394 = vld [vmem:[%s234 + $0x34] sm:$0xf]
      %v395 = vld [vmem:[%s234 + $0x38] sm:$0xf]
      %v396 = vld [vmem:[%s234 + $0x3c] sm:$0xf]
      %v397 = vld [vmem:[%s234 + $0x40] sm:$0xf]
      %v398 = vld [vmem:[%s234 + $0x44] sm:$0xf]
      %v399 = vld [vmem:[%s234 + $0x48] sm:$0xf]
      %v400 = vld [vmem:[%s234 + $0x4c] sm:$0xf]
      %v401 = vld [vmem:[%s234 + $0x50] sm:$0xf]
      %v402 = vld [vmem:[%s234 + $0x54] sm:$0xf]
      %v403 = vld [vmem:[%s234 + $0x58] sm:$0xf]
      %v404 = vld [vmem:[%s234 + $0x5c] sm:$0xf]
      %v405 = vld [vmem:[%s234 + $0x60] sm:$0xf]
      %v406 = vld [vmem:[%s234 + $0x64] sm:$0xf]
      %v407 = vld [vmem:[%s234 + $0x68] sm:$0xf]
      %v408 = vld [vmem:[%s234 + $0x6c] sm:$0xf]
      %v409 = vld [vmem:[%s234 + $0x70] sm:$0xf]
      %v410 = vld [vmem:[%s234 + $0x74] sm:$0xf]
      %v411 = vld [vmem:[%s234 + $0x78] sm:$0xf]
      %v412 = vld [vmem:[%s234 + $0x7c] sm:$0xf]
      %v413 = vld [vmem:[%s234 + $0x80] sm:$0xf]
      %v414 = vld [vmem:[%s234 + $0x84] sm:$0xf]
      %v415 = vld [vmem:[%s234 + $0x88] sm:$0xf]
      %v416 = vld [vmem:[%s234 + $0x8c] sm:$0xf]
      %v417 = vld [vmem:[%s234 + $0x90] sm:$0xf]
      %v418 = vld [vmem:[%s234 + $0x94] sm:$0xf]
      %v419 = vld [vmem:[%s234 + $0x98] sm:$0xf]
      %v420 = vld [vmem:[%s234 + $0x9c] sm:$0xf]
      %v421 = vld [vmem:[%s234 + $0xa0] sm:$0xf]
      %v422 = vld [vmem:[%s234 + $0xa4] sm:$0xf]
      %v423 = vld [vmem:[%s234 + $0xa8] sm:$0xf]
      %v424 = vld [vmem:[%s234 + $0xac] sm:$0xf]
      %v425 = vld [vmem:[%s234 + $0xb0] sm:$0xf]
      %v426 = vld [vmem:[%s234 + $0xb4] sm:$0xf]
      %v427 = vld [vmem:[%s234 + $0xb8] sm:$0xf]
      %v428 = vld [vmem:[%s234 + $0xbc] sm:$0xf]
      %v429 = vld [vmem:[%s234 + $0xc0] sm:$0xf]
      %v430 = vld [vmem:[%s234 + $0xc4] sm:$0xf]
      %v431 = vld [vmem:[%s234 + $0xc8] sm:$0xf]
      %v432 = vld [vmem:[%s234 + $0xcc] sm:$0xf]
      %v433 = vld [vmem:[%s234 + $0xd0] sm:$0xf]
      %v434 = vld [vmem:[%s234 + $0xd4] sm:$0xf]
      %v435 = vld [vmem:[%s234 + $0xd8] sm:$0xf]
      %v436 = vld [vmem:[%s234 + $0xdc] sm:$0xf]
      %v437 = vld [vmem:[%s234 + $0xe0] sm:$0xf]
      %v438 = vld [vmem:[%s234 + $0xe4] sm:$0xf]
      %v439 = vld [vmem:[%s234 + $0xe8] sm:$0xf]
      %v440 = vld [vmem:[%s234 + $0xec] sm:$0xf]
      %v441 = vld [vmem:[%s234 + $0xf0] sm:$0xf]
      %v442 = vld [vmem:[%s234 + $0xf4] sm:$0xf]
      %v443 = vld [vmem:[%s234 + $0xf8] sm:$0xf]
      %v444 = vld [vmem:[%s234 + $0xfc] sm:$0xf]
      %v573 = vunpack.c.l.b16 %v253
      %v574 = vunpack.c.h.b16 %v253
      %v575 = vunpack.c.l.b16 %v254
      %v576 = vunpack.c.h.b16 %v254
      %v577 = vunpack.c.l.b16 %v255
      %v578 = vunpack.c.h.b16 %v255
      %v579 = vunpack.c.l.b16 %v256
      %v580 = vunpack.c.h.b16 %v256
      %v581 = vunpack.c.l.b16 %v257
      %v582 = vunpack.c.h.b16 %v257
      %v583 = vunpack.c.l.b16 %v258
      %v584 = vunpack.c.h.b16 %v258
      %v585 = vunpack.c.l.b16 %v259
      %v586 = vunpack.c.h.b16 %v259
      %v587 = vunpack.c.l.b16 %v260
      %v588 = vunpack.c.h.b16 %v260
      %v589 = vunpack.c.l.b16 %v261
      %v590 = vunpack.c.h.b16 %v261
      %v591 = vunpack.c.l.b16 %v262
      %v592 = vunpack.c.h.b16 %v262
      %v593 = vunpack.c.l.b16 %v263
      %v594 = vunpack.c.h.b16 %v263
      %v595 = vunpack.c.l.b16 %v264
      %v596 = vunpack.c.h.b16 %v264
      %v597 = vunpack.c.l.b16 %v265
      %v598 = vunpack.c.h.b16 %v265
      %v599 = vunpack.c.l.b16 %v266
      %v600 = vunpack.c.h.b16 %v266
      %v601 = vunpack.c.l.b16 %v267
      %v602 = vunpack.c.h.b16 %v267
      %v603 = vunpack.c.l.b16 %v268
      %v604 = vunpack.c.h.b16 %v268
      %v605 = vunpack.c.l.b16 %v269
      %v606 = vunpack.c.h.b16 %v269
      %v607 = vunpack.c.l.b16 %v270
      %v608 = vunpack.c.h.b16 %v270
      %v609 = vunpack.c.l.b16 %v271
      %v610 = vunpack.c.h.b16 %v271
      %v611 = vunpack.c.l.b16 %v272
      %v612 = vunpack.c.h.b16 %v272
      %v613 = vunpack.c.l.b16 %v273
      %v614 = vunpack.c.h.b16 %v273
      %v615 = vunpack.c.l.b16 %v274
      %v616 = vunpack.c.h.b16 %v274
      %v617 = vunpack.c.l.b16 %v275
      %v618 = vunpack.c.h.b16 %v275
      %v619 = vunpack.c.l.b16 %v276
      %v620 = vunpack.c.h.b16 %v276
      %v621 = vunpack.c.l.b16 %v277
      %v622 = vunpack.c.h.b16 %v277
      %v623 = vunpack.c.l.b16 %v278
      %v624 = vunpack.c.h.b16 %v278
      %v625 = vunpack.c.l.b16 %v279
      %v626 = vunpack.c.h.b16 %v279
      %v627 = vunpack.c.l.b16 %v280
      %v628 = vunpack.c.h.b16 %v280
      %v629 = vunpack.c.l.b16 %v281
      %v630 = vunpack.c.h.b16 %v281
      %v631 = vunpack.c.l.b16 %v282
      %v632 = vunpack.c.h.b16 %v282
      %v633 = vunpack.c.l.b16 %v283
      %v634 = vunpack.c.h.b16 %v283
      %v635 = vunpack.c.l.b16 %v284
      %v636 = vunpack.c.h.b16 %v284
      %v637 = vunpack.c.l.b16 %v285
      %v638 = vunpack.c.h.b16 %v285
      %v639 = vunpack.c.l.b16 %v286
      %v640 = vunpack.c.h.b16 %v286
      %v641 = vunpack.c.l.b16 %v287
      %v642 = vunpack.c.h.b16 %v287
      %v643 = vunpack.c.l.b16 %v288
      %v644 = vunpack.c.h.b16 %v288
      %v645 = vunpack.c.l.b16 %v289
      %v646 = vunpack.c.h.b16 %v289
      %v647 = vunpack.c.l.b16 %v290
      %v648 = vunpack.c.h.b16 %v290
      %v649 = vunpack.c.l.b16 %v291
      %v650 = vunpack.c.h.b16 %v291
      %v651 = vunpack.c.l.b16 %v292
      %v652 = vunpack.c.h.b16 %v292
      %v653 = vunpack.c.l.b16 %v293
      %v654 = vunpack.c.h.b16 %v293
      %v655 = vunpack.c.l.b16 %v294
      %v656 = vunpack.c.h.b16 %v294
      %v657 = vunpack.c.l.b16 %v295
      %v658 = vunpack.c.h.b16 %v295
      %v659 = vunpack.c.l.b16 %v296
      %v660 = vunpack.c.h.b16 %v296
      %v661 = vunpack.c.l.b16 %v297
      %v662 = vunpack.c.h.b16 %v297
      %v663 = vunpack.c.l.b16 %v298
      %v664 = vunpack.c.h.b16 %v298
      %v665 = vunpack.c.l.b16 %v299
      %v666 = vunpack.c.h.b16 %v299
      %v667 = vunpack.c.l.b16 %v300
      %v668 = vunpack.c.h.b16 %v300
      %v669 = vunpack.c.l.b16 %v301
      %v670 = vunpack.c.h.b16 %v301
      %v671 = vunpack.c.l.b16 %v302
      %v672 = vunpack.c.h.b16 %v302
      %v673 = vunpack.c.l.b16 %v303
      %v674 = vunpack.c.h.b16 %v303
      %v675 = vunpack.c.l.b16 %v304
      %v676 = vunpack.c.h.b16 %v304
      %v677 = vunpack.c.l.b16 %v305
      %v678 = vunpack.c.h.b16 %v305
      %v679 = vunpack.c.l.b16 %v306
      %v680 = vunpack.c.h.b16 %v306
      %v681 = vunpack.c.l.b16 %v307
      %v682 = vunpack.c.h.b16 %v307
      %v683 = vunpack.c.l.b16 %v308
      %v684 = vunpack.c.h.b16 %v308
      %v685 = vunpack.c.l.b16 %v309
      %v686 = vunpack.c.h.b16 %v309
      %v687 = vunpack.c.l.b16 %v310
      %v688 = vunpack.c.h.b16 %v310
      %v689 = vunpack.c.l.b16 %v311
      %v690 = vunpack.c.h.b16 %v311
      %v691 = vunpack.c.l.b16 %v312
      %v692 = vunpack.c.h.b16 %v312
      %v693 = vunpack.c.l.b16 %v313
      %v694 = vunpack.c.h.b16 %v313
      %v695 = vunpack.c.l.b16 %v314
      %v696 = vunpack.c.h.b16 %v314
      %v697 = vunpack.c.l.b16 %v315
      %v698 = vunpack.c.h.b16 %v315
      %v699 = vunpack.c.l.b16 %v316
      %v700 = vunpack.c.h.b16 %v316
      %v701 = vunpack.c.l.b16 %v317
      %v702 = vunpack.c.h.b16 %v317
      %v703 = vunpack.c.l.b16 %v318
      %v704 = vunpack.c.h.b16 %v318
      %v705 = vunpack.c.l.b16 %v319
      %v706 = vunpack.c.h.b16 %v319
      %v707 = vunpack.c.l.b16 %v320
      %v708 = vunpack.c.h.b16 %v320
      %v709 = vunpack.c.l.b16 %v321
      %v710 = vunpack.c.h.b16 %v321
      %v711 = vunpack.c.l.b16 %v322
      %v712 = vunpack.c.h.b16 %v322
      %v713 = vunpack.c.l.b16 %v323
      %v714 = vunpack.c.h.b16 %v323
      %v715 = vunpack.c.l.b16 %v324
      %v716 = vunpack.c.h.b16 %v324
      %v717 = vunpack.c.l.b16 %v325
      %v718 = vunpack.c.h.b16 %v325
      %v719 = vunpack.c.l.b16 %v326
      %v720 = vunpack.c.h.b16 %v326
      %v721 = vunpack.c.l.b16 %v327
      %v722 = vunpack.c.h.b16 %v327
      %v723 = vunpack.c.l.b16 %v328
      %v724 = vunpack.c.h.b16 %v328
      %v725 = vunpack.c.l.b16 %v329
      %v726 = vunpack.c.h.b16 %v329
      %v727 = vunpack.c.l.b16 %v330
      %v728 = vunpack.c.h.b16 %v330
      %v729 = vunpack.c.l.b16 %v331
      %v730 = vunpack.c.h.b16 %v331
      %v731 = vunpack.c.l.b16 %v332
      %v732 = vunpack.c.h.b16 %v332
      %v733 = vunpack.c.l.b16 %v333
      %v734 = vunpack.c.h.b16 %v333
      %v735 = vunpack.c.l.b16 %v334
      %v736 = vunpack.c.h.b16 %v334
      %v737 = vunpack.c.l.b16 %v335
      %v738 = vunpack.c.h.b16 %v335
      %v739 = vunpack.c.l.b16 %v336
      %v740 = vunpack.c.h.b16 %v336
      %v741 = vunpack.c.l.b16 %v337
      %v742 = vunpack.c.h.b16 %v337
      %v743 = vunpack.c.l.b16 %v338
      %v744 = vunpack.c.h.b16 %v338
      %v745 = vunpack.c.l.b16 %v339
      %v746 = vunpack.c.h.b16 %v339
      %v747 = vunpack.c.l.b16 %v340
      %v748 = vunpack.c.h.b16 %v340
      %v749 = vunpack.c.l.b16 %v341
      %v750 = vunpack.c.h.b16 %v341
      %v751 = vunpack.c.l.b16 %v342
      %v752 = vunpack.c.h.b16 %v342
      %v753 = vunpack.c.l.b16 %v343
      %v754 = vunpack.c.h.b16 %v343
      %v755 = vunpack.c.l.b16 %v344
      %v756 = vunpack.c.h.b16 %v344
      %v757 = vunpack.c.l.b16 %v345
      %v758 = vunpack.c.h.b16 %v345
      %v759 = vunpack.c.l.b16 %v346
      %v760 = vunpack.c.h.b16 %v346
      %v761 = vunpack.c.l.b16 %v347
      %v762 = vunpack.c.h.b16 %v347
      %v763 = vunpack.c.l.b16 %v348
      %v764 = vunpack.c.h.b16 %v348
      %v765 = vunpack.c.l.b16 %v349
      %v766 = vunpack.c.h.b16 %v349
      %v767 = vunpack.c.l.b16 %v350
      %v768 = vunpack.c.h.b16 %v350
      %v769 = vunpack.c.l.b16 %v351
      %v770 = vunpack.c.h.b16 %v351
      %v771 = vunpack.c.l.b16 %v352
      %v772 = vunpack.c.h.b16 %v352
      %v773 = vunpack.c.l.b16 %v353
      %v774 = vunpack.c.h.b16 %v353
      %v775 = vunpack.c.l.b16 %v354
      %v776 = vunpack.c.h.b16 %v354
      %v777 = vunpack.c.l.b16 %v355
      %v778 = vunpack.c.h.b16 %v355
      %v779 = vunpack.c.l.b16 %v356
      %v780 = vunpack.c.h.b16 %v356
      %v781 = vunpack.c.l.b16 %v357
      %v782 = vunpack.c.h.b16 %v357
      %v783 = vunpack.c.l.b16 %v358
      %v784 = vunpack.c.h.b16 %v358
      %v785 = vunpack.c.l.b16 %v359
      %v786 = vunpack.c.h.b16 %v359
      %v787 = vunpack.c.l.b16 %v360
      %v788 = vunpack.c.h.b16 %v360
      %v789 = vunpack.c.l.b16 %v361
      %v790 = vunpack.c.h.b16 %v361
      %v791 = vunpack.c.l.b16 %v362
      %v792 = vunpack.c.h.b16 %v362
      %v793 = vunpack.c.l.b16 %v363
      %v794 = vunpack.c.h.b16 %v363
      %v795 = vunpack.c.l.b16 %v364
      %v796 = vunpack.c.h.b16 %v364
      %v797 = vunpack.c.l.b16 %v365
      %v798 = vunpack.c.h.b16 %v365
      %v799 = vunpack.c.l.b16 %v366
      %v800 = vunpack.c.h.b16 %v366
      %v801 = vunpack.c.l.b16 %v367
      %v802 = vunpack.c.h.b16 %v367
      %v803 = vunpack.c.l.b16 %v368
      %v804 = vunpack.c.h.b16 %v368
      %v805 = vunpack.c.l.b16 %v369
      %v806 = vunpack.c.h.b16 %v369
      %v807 = vunpack.c.l.b16 %v370
      %v808 = vunpack.c.h.b16 %v370
      %v809 = vunpack.c.l.b16 %v371
      %v810 = vunpack.c.h.b16 %v371
      %v811 = vunpack.c.l.b16 %v372
      %v812 = vunpack.c.h.b16 %v372
      %v813 = vunpack.c.l.b16 %v373
      %v814 = vunpack.c.h.b16 %v373
      %v815 = vunpack.c.l.b16 %v374
      %v816 = vunpack.c.h.b16 %v374
      %v817 = vunpack.c.l.b16 %v375
      %v818 = vunpack.c.h.b16 %v375
      %v819 = vunpack.c.l.b16 %v376
      %v820 = vunpack.c.h.b16 %v376
      %v821 = vunpack.c.l.b16 %v377
      %v822 = vunpack.c.h.b16 %v377
      %v823 = vunpack.c.l.b16 %v378
      %v824 = vunpack.c.h.b16 %v378
      %v825 = vunpack.c.l.b16 %v379
      %v826 = vunpack.c.h.b16 %v379
      %v827 = vunpack.c.l.b16 %v380
      %v828 = vunpack.c.h.b16 %v380
      %v829 = vpack.c.b16 %v577, %v573
      %v830 = vpack.c.b16 %v578, %v574
      %v831 = vpack.c.b16 %v579, %v575
      %v832 = vpack.c.b16 %v580, %v576
      %v833 = vpack.c.b16 %v585, %v581
      %v834 = vpack.c.b16 %v586, %v582
      %v835 = vpack.c.b16 %v587, %v583
      %v836 = vpack.c.b16 %v588, %v584
      %v837 = vpack.c.b16 %v593, %v589
      %v838 = vpack.c.b16 %v594, %v590
      %v839 = vpack.c.b16 %v595, %v591
      %v840 = vpack.c.b16 %v596, %v592
      %v841 = vpack.c.b16 %v601, %v597
      %v842 = vpack.c.b16 %v602, %v598
      %v843 = vpack.c.b16 %v603, %v599
      %v844 = vpack.c.b16 %v604, %v600
      %v845 = vpack.c.b16 %v609, %v605
      %v846 = vpack.c.b16 %v610, %v606
      %v847 = vpack.c.b16 %v611, %v607
      %v848 = vpack.c.b16 %v612, %v608
      %v849 = vpack.c.b16 %v617, %v613
      %v850 = vpack.c.b16 %v618, %v614
      %v851 = vpack.c.b16 %v619, %v615
      %v852 = vpack.c.b16 %v620, %v616
      %v853 = vpack.c.b16 %v625, %v621
      %v854 = vpack.c.b16 %v626, %v622
      %v855 = vpack.c.b16 %v627, %v623
      %v856 = vpack.c.b16 %v628, %v624
      %v857 = vpack.c.b16 %v633, %v629
      %v858 = vpack.c.b16 %v634, %v630
      %v859 = vpack.c.b16 %v635, %v631
      %v860 = vpack.c.b16 %v636, %v632
      %v861 = vpack.c.b16 %v641, %v637
      %v862 = vpack.c.b16 %v642, %v638
      %v863 = vpack.c.b16 %v643, %v639
      %v864 = vpack.c.b16 %v644, %v640
      %v865 = vpack.c.b16 %v649, %v645
      %v866 = vpack.c.b16 %v650, %v646
      %v867 = vpack.c.b16 %v651, %v647
      %v868 = vpack.c.b16 %v652, %v648
      %v869 = vpack.c.b16 %v657, %v653
      %v870 = vpack.c.b16 %v658, %v654
      %v871 = vpack.c.b16 %v659, %v655
      %v872 = vpack.c.b16 %v660, %v656
      %v873 = vpack.c.b16 %v665, %v661
      %v874 = vpack.c.b16 %v666, %v662
      %v875 = vpack.c.b16 %v667, %v663
      %v876 = vpack.c.b16 %v668, %v664
      %v877 = vpack.c.b16 %v673, %v669
      %v878 = vpack.c.b16 %v674, %v670
      %v879 = vpack.c.b16 %v675, %v671
      %v880 = vpack.c.b16 %v676, %v672
      %v881 = vpack.c.b16 %v681, %v677
      %v882 = vpack.c.b16 %v682, %v678
      %v883 = vpack.c.b16 %v683, %v679
      %v884 = vpack.c.b16 %v684, %v680
      %v885 = vpack.c.b16 %v689, %v685
      %v886 = vpack.c.b16 %v690, %v686
      %v887 = vpack.c.b16 %v691, %v687
      %v888 = vpack.c.b16 %v692, %v688
      %v889 = vpack.c.b16 %v697, %v693
      %v890 = vpack.c.b16 %v698, %v694
      %v891 = vpack.c.b16 %v699, %v695
      %v892 = vpack.c.b16 %v700, %v696
      %v893 = vpack.c.b16 %v705, %v701
      %v894 = vpack.c.b16 %v706, %v702
      %v895 = vpack.c.b16 %v707, %v703
      %v896 = vpack.c.b16 %v708, %v704
      %v897 = vpack.c.b16 %v713, %v709
      %v898 = vpack.c.b16 %v714, %v710
      %v899 = vpack.c.b16 %v715, %v711
      %v900 = vpack.c.b16 %v716, %v712
      %v901 = vpack.c.b16 %v721, %v717
      %v902 = vpack.c.b16 %v722, %v718
      %v903 = vpack.c.b16 %v723, %v719
      %v904 = vpack.c.b16 %v724, %v720
      %v905 = vpack.c.b16 %v729, %v725
      %v906 = vpack.c.b16 %v730, %v726
      %v907 = vpack.c.b16 %v731, %v727
      %v908 = vpack.c.b16 %v732, %v728
      %v909 = vpack.c.b16 %v737, %v733
      %v910 = vpack.c.b16 %v738, %v734
      %v911 = vpack.c.b16 %v739, %v735
      %v912 = vpack.c.b16 %v740, %v736
      %v913 = vpack.c.b16 %v745, %v741
      %v914 = vpack.c.b16 %v746, %v742
      %v915 = vpack.c.b16 %v747, %v743
      %v916 = vpack.c.b16 %v748, %v744
      %v917 = vpack.c.b16 %v753, %v749
      %v918 = vpack.c.b16 %v754, %v750
      %v919 = vpack.c.b16 %v755, %v751
      %v920 = vpack.c.b16 %v756, %v752
      %v921 = vpack.c.b16 %v761, %v757
      %v922 = vpack.c.b16 %v762, %v758
      %v923 = vpack.c.b16 %v763, %v759
      %v924 = vpack.c.b16 %v764, %v760
      %v925 = vpack.c.b16 %v769, %v765
      %v926 = vpack.c.b16 %v770, %v766
      %v927 = vpack.c.b16 %v771, %v767
      %v928 = vpack.c.b16 %v772, %v768
      %v929 = vpack.c.b16 %v777, %v773
      %v930 = vpack.c.b16 %v778, %v774
      %v931 = vpack.c.b16 %v779, %v775
      %v932 = vpack.c.b16 %v780, %v776
      %v933 = vpack.c.b16 %v785, %v781
      %v934 = vpack.c.b16 %v786, %v782
      %v935 = vpack.c.b16 %v787, %v783
      %v936 = vpack.c.b16 %v788, %v784
      %v937 = vpack.c.b16 %v793, %v789
      %v938 = vpack.c.b16 %v794, %v790
      %v939 = vpack.c.b16 %v795, %v791
      %v940 = vpack.c.b16 %v796, %v792
      %v941 = vpack.c.b16 %v801, %v797
      %v942 = vpack.c.b16 %v802, %v798
      %v943 = vpack.c.b16 %v803, %v799
      %v944 = vpack.c.b16 %v804, %v800
      %v945 = vpack.c.b16 %v809, %v805
      %v946 = vpack.c.b16 %v810, %v806
      %v947 = vpack.c.b16 %v811, %v807
      %v948 = vpack.c.b16 %v812, %v808
      %v949 = vpack.c.b16 %v817, %v813
      %v950 = vpack.c.b16 %v818, %v814
      %v951 = vpack.c.b16 %v819, %v815
      %v952 = vpack.c.b16 %v820, %v816
      %v953 = vpack.c.b16 %v825, %v821
      %v954 = vpack.c.b16 %v826, %v822
      %v955 = vpack.c.b16 %v827, %v823
      %v956 = vpack.c.b16 %v828, %v824
      %v1149 = vunpack.c.l.b16 %v381
      %v1150 = vunpack.c.l.b16 %v382
      %v1151 = vunpack.c.l.b16 %v383
      %v1152 = vunpack.c.l.b16 %v384
      %v1153 = vunpack.c.l.b16 %v385
      %v1154 = vunpack.c.l.b16 %v386
      %v1155 = vunpack.c.l.b16 %v387
      %v1156 = vunpack.c.l.b16 %v388
      %v1157 = vunpack.c.l.b16 %v389
      %v1158 = vunpack.c.l.b16 %v390
      %v1159 = vunpack.c.l.b16 %v391
      %v1160 = vunpack.c.l.b16 %v392
      %v1161 = vunpack.c.l.b16 %v393
      %v1162 = vunpack.c.l.b16 %v394
      %v1163 = vunpack.c.l.b16 %v395
      %v1164 = vunpack.c.l.b16 %v396
      %v1165 = vunpack.c.l.b16 %v397
      %v1166 = vunpack.c.l.b16 %v398
      %v1167 = vunpack.c.l.b16 %v399
      %v1168 = vunpack.c.l.b16 %v400
      %v1169 = vunpack.c.l.b16 %v401
      %v1170 = vunpack.c.l.b16 %v402
      %v1171 = vunpack.c.l.b16 %v403
      %v1172 = vunpack.c.l.b16 %v404
      %v1173 = vunpack.c.l.b16 %v405
      %v1174 = vunpack.c.l.b16 %v406
      %v1175 = vunpack.c.l.b16 %v407
      %v1176 = vunpack.c.l.b16 %v408
      %v1177 = vunpack.c.l.b16 %v409
      %v1178 = vunpack.c.l.b16 %v410
      %v1179 = vunpack.c.l.b16 %v411
      %v1180 = vunpack.c.l.b16 %v412
      %v1181 = vunpack.c.l.b16 %v413
      %v1182 = vunpack.c.l.b16 %v414
      %v1183 = vunpack.c.l.b16 %v415
      %v1184 = vunpack.c.l.b16 %v416
      %v1185 = vunpack.c.l.b16 %v417
      %v1186 = vunpack.c.l.b16 %v418
      %v1187 = vunpack.c.l.b16 %v419
      %v1188 = vunpack.c.l.b16 %v420
      %v1189 = vunpack.c.l.b16 %v421
      %v1190 = vunpack.c.l.b16 %v422
      %v1191 = vunpack.c.l.b16 %v423
      %v1192 = vunpack.c.l.b16 %v424
      %v1193 = vunpack.c.l.b16 %v425
      %v1194 = vunpack.c.l.b16 %v426
      %v1195 = vunpack.c.l.b16 %v427
      %v1196 = vunpack.c.l.b16 %v428
      %v1197 = vunpack.c.l.b16 %v429
      %v1198 = vunpack.c.l.b16 %v430
      %v1199 = vunpack.c.l.b16 %v431
      %v1200 = vunpack.c.l.b16 %v432
      %v1201 = vunpack.c.l.b16 %v433
      %v1202 = vunpack.c.l.b16 %v434
      %v1203 = vunpack.c.l.b16 %v435
      %v1204 = vunpack.c.l.b16 %v436
      %v1205 = vunpack.c.l.b16 %v437
      %v1206 = vunpack.c.l.b16 %v438
      %v1207 = vunpack.c.l.b16 %v439
      %v1208 = vunpack.c.l.b16 %v440
      %v1209 = vunpack.c.l.b16 %v441
      %v1210 = vunpack.c.l.b16 %v442
      %v1211 = vunpack.c.l.b16 %v443
      %v1212 = vunpack.c.l.b16 %v444
      %v1213 = vpack.c.b16 %v1150, %v1149
      %v1214 = vpack.c.b16 %v1152, %v1151
      %v1215 = vpack.c.b16 %v1154, %v1153
      %v1216 = vpack.c.b16 %v1156, %v1155
      %v1217 = vpack.c.b16 %v1158, %v1157
      %v1218 = vpack.c.b16 %v1160, %v1159
      %v1219 = vpack.c.b16 %v1162, %v1161
      %v1220 = vpack.c.b16 %v1164, %v1163
      %v1221 = vpack.c.b16 %v1166, %v1165
      %v1222 = vpack.c.b16 %v1168, %v1167
      %v1223 = vpack.c.b16 %v1170, %v1169
      %v1224 = vpack.c.b16 %v1172, %v1171
      %v1225 = vpack.c.b16 %v1174, %v1173
      %v1226 = vpack.c.b16 %v1176, %v1175
      %v1227 = vpack.c.b16 %v1178, %v1177
      %v1228 = vpack.c.b16 %v1180, %v1179
      %v1229 = vpack.c.b16 %v1182, %v1181
      %v1230 = vpack.c.b16 %v1184, %v1183
      %v1231 = vpack.c.b16 %v1186, %v1185
      %v1232 = vpack.c.b16 %v1188, %v1187
      %v1233 = vpack.c.b16 %v1190, %v1189
      %v1234 = vpack.c.b16 %v1192, %v1191
      %v1235 = vpack.c.b16 %v1194, %v1193
      %v1236 = vpack.c.b16 %v1196, %v1195
      %v1237 = vpack.c.b16 %v1198, %v1197
      %v1238 = vpack.c.b16 %v1200, %v1199
      %v1239 = vpack.c.b16 %v1202, %v1201
      %v1240 = vpack.c.b16 %v1204, %v1203
      %v1241 = vpack.c.b16 %v1206, %v1205
      %v1242 = vpack.c.b16 %v1208, %v1207
      %v1243 = vpack.c.b16 %v1210, %v1209
      %v1244 = vpack.c.b16 %v1212, %v1211
      %1277 = vmatprep.subr.bf16.mxu0 0
      %1278 = vmatpush1.bf16.msra.mxu0 %v1213
      %1279 = vmatprep.subr.bf16.mxu0 0
      %1280 = vmatpush1.bf16.msra.mxu0 %v1214
      %1281 = vmatprep.subr.bf16.mxu0 0
      %1282 = vmatpush1.bf16.msra.mxu0 %v1215
      %1283 = vmatprep.subr.bf16.mxu0 0
      %1284 = vmatpush1.bf16.msra.mxu0 %v1216
      %1285 = vmatprep.subr.bf16.mxu0 0
      %1286 = vmatpush1.bf16.msra.mxu0 %v1217
      %1287 = vmatprep.subr.bf16.mxu0 0
      %1288 = vmatpush1.bf16.msra.mxu0 %v1218
      %1289 = vmatprep.subr.bf16.mxu0 0
      %1290 = vmatpush1.bf16.msra.mxu0 %v1219
      %1291 = vmatprep.subr.bf16.mxu0 0
      %1292 = vmatpush1.bf16.msra.mxu0 %v1220
      %1293 = vmatprep.subr.bf16.mxu0 0
      %1294 = vmatpush1.bf16.msra.mxu0 %v1221
      %1295 = vmatprep.subr.bf16.mxu0 0
      %1296 = vmatpush1.bf16.msra.mxu0 %v1222
      %1297 = vmatprep.subr.bf16.mxu0 0
      %1298 = vmatpush1.bf16.msra.mxu0 %v1223
      %1299 = vmatprep.subr.bf16.mxu0 0
      %1300 = vmatpush1.bf16.msra.mxu0 %v1224
      %1301 = vmatprep.subr.bf16.mxu0 0
      %1302 = vmatpush1.bf16.msra.mxu0 %v1225
      %1303 = vmatprep.subr.bf16.mxu0 0
      %1304 = vmatpush1.bf16.msra.mxu0 %v1226
      %1305 = vmatprep.subr.bf16.mxu0 0
      %1306 = vmatpush1.bf16.msra.mxu0 %v1227
      %1307 = vmatprep.subr.bf16.mxu0 0
      %1308 = vmatpush1.bf16.msra.mxu0 %v1228
      %1309 = vmatprep.mubr.bf16.mxu0 %v830
      %1310 = vmatmul.mubr.bf16.gmra.mrb[0].mxu0 %v829
      %v1311 = vpop.f32.mrb[0].mxu0
      %v1312 = vadd.f32 0.0, %v1311
      %v1313 = vpop.f32.mrb[0].mxu0
      %v1314 = vpop.f32.mrb[0].mxu0
      %v1315 = vadd.f32 0.0, %v1314
      %v1316 = vpop.f32.mrb[0].mxu0
      %1317 = vmatprep.mubr.bf16.mxu0 %v834
      %1318 = vmatmul.mubr.bf16.gmra.mrb[0].mxu0 %v833
      %v1319 = vpop.f32.mrb[0].mxu0
      %v1320 = vadd.f32 0.0, %v1319
      %v1321 = vpop.f32.mrb[0].mxu0
      %v1322 = vpop.f32.mrb[0].mxu0
      %v1323 = vadd.f32 0.0, %v1322
      %v1324 = vpop.f32.mrb[0].mxu0
      %1325 = vmatprep.mubr.bf16.mxu0 %v838
      %1326 = vmatmul.mubr.bf16.gmra.mrb[0].mxu0 %v837
      %v1327 = vpop.f32.mrb[0].mxu0
      %v1328 = vadd.f32 0.0, %v1327
      %v1329 = vpop.f32.mrb[0].mxu0
      %v1330 = vpop.f32.mrb[0].mxu0
      %v1331 = vadd.f32 0.0, %v1330
      %v1332 = vpop.f32.mrb[0].mxu0
      %1333 = vmatprep.mubr.bf16.mxu0 %v842
      %1334 = vmatmul.mubr.bf16.gmra.mrb[0].mxu0 %v841
      %v1335 = vpop.f32.mrb[0].mxu0
      %v1336 = vadd.f32 0.0, %v1335
      %v1337 = vpop.f32.mrb[0].mxu0
      %v1338 = vpop.f32.mrb[0].mxu0
      %v1339 = vadd.f32 0.0, %v1338
      %v1340 = vpop.f32.mrb[0].mxu0
      %1341 = vmatprep.mubr.bf16.mxu0 %v846
      %1342 = vmatmul.mubr.bf16.gmra.mrb[0].mxu0 %v845
      %v1343 = vpop.f32.mrb[0].mxu0
      %v1344 = vadd.f32 0.0, %v1343
      %v1345 = vpop.f32.mrb[0].mxu0
      %v1346 = vpop.f32.mrb[0].mxu0
      %v1347 = vadd.f32 0.0, %v1346
      %v1348 = vpop.f32.mrb[0].mxu0
      %1349 = vmatprep.mubr.bf16.mxu0 %v850
      %1350 = vmatmul.mubr.bf16.gmra.mrb[0].mxu0 %v849
      %v1351 = vpop.f32.mrb[0].mxu0
      %v1352 = vadd.f32 0.0, %v1351
      %v1353 = vpop.f32.mrb[0].mxu0
      %v1354 = vpop.f32.mrb[0].mxu0
      %v1355 = vadd.f32 0.0, %v1354
      %v1356 = vpop.f32.mrb[0].mxu0
      %1357 = vmatprep.mubr.bf16.mxu0 %v854
      %1358 = vmatmul.mubr.bf16.gmra.mrb[0].mxu0 %v853
      %v1359 = vpop.f32.mrb[0].mxu0
      %v1360 = vadd.f32 0.0, %v1359
      %v1361 = vpop.f32.mrb[0].mxu0
      %v1362 = vpop.f32.mrb[0].mxu0
      %v1363 = vadd.f32 0.0, %v1362
      %v1364 = vpop.f32.mrb[0].mxu0
      %1365 = vmatprep.mubr.bf16.mxu0 %v858
      %1366 = vmatmul.mubr.bf16.gmra.mrb[0].mxu0 %v857
      %v1367 = vpop.f32.mrb[0].mxu0
      %v1368 = vadd.f32 0.0, %v1367
      %v1369 = vpop.f32.mrb[0].mxu0
      %v1370 = vpop.f32.mrb[0].mxu0
      %v1371 = vadd.f32 0.0, %v1370
      %v1372 = vpop.f32.mrb[0].mxu0
      %1373 = vmatprep.mubr.bf16.mxu0 %v862
      %1374 = vmatmul.mubr.bf16.gmra.mrb[0].mxu0 %v861
      %v1375 = vpop.f32.mrb[0].mxu0
      %v1376 = vadd.f32 0.0, %v1375
      %v1377 = vpop.f32.mrb[0].mxu0
      %v1378 = vpop.f32.mrb[0].mxu0
      %v1379 = vadd.f32 0.0, %v1378
      %v1380 = vpop.f32.mrb[0].mxu0
      %1381 = vmatprep.mubr.bf16.mxu0 %v866
      %1382 = vmatmul.mubr.bf16.gmra.mrb[0].mxu0 %v865
      %v1383 = vpop.f32.mrb[0].mxu0
      %v1384 = vadd.f32 0.0, %v1383
      %v1385 = vpop.f32.mrb[0].mxu0
      %v1386 = vpop.f32.mrb[0].mxu0
      %v1387 = vadd.f32 0.0, %v1386
      %v1388 = vpop.f32.mrb[0].mxu0
      %1389 = vmatprep.mubr.bf16.mxu0 %v870
      %1390 = vmatmul.mubr.bf16.gmra.mrb[0].mxu0 %v869
      %v1391 = vpop.f32.mrb[0].mxu0
      %v1392 = vadd.f32 0.0, %v1391
      %v1393 = vpop.f32.mrb[0].mxu0
      %v1394 = vpop.f32.mrb[0].mxu0
      %v1395 = vadd.f32 0.0, %v1394
      %v1396 = vpop.f32.mrb[0].mxu0
      %1397 = vmatprep.mubr.bf16.mxu0 %v874
      %1398 = vmatmul.mubr.bf16.gmra.mrb[0].mxu0 %v873
      %v1399 = vpop.f32.mrb[0].mxu0
      %v1400 = vadd.f32 0.0, %v1399
      %v1401 = vpop.f32.mrb[0].mxu0
      %v1402 = vpop.f32.mrb[0].mxu0
      %v1403 = vadd.f32 0.0, %v1402
      %v1404 = vpop.f32.mrb[0].mxu0
      %1405 = vmatprep.mubr.bf16.mxu0 %v878
      %1406 = vmatmul.mubr.bf16.gmra.mrb[0].mxu0 %v877
      %v1407 = vpop.f32.mrb[0].mxu0
      %v1408 = vadd.f32 0.0, %v1407
      %v1409 = vpop.f32.mrb[0].mxu0
      %v1410 = vpop.f32.mrb[0].mxu0
      %v1411 = vadd.f32 0.0, %v1410
      %v1412 = vpop.f32.mrb[0].mxu0
      %1413 = vmatprep.mubr.bf16.mxu0 %v882
      %1414 = vmatmul.mubr.bf16.gmra.mrb[0].mxu0 %v881
      %v1415 = vpop.f32.mrb[0].mxu0
      %v1416 = vadd.f32 0.0, %v1415
      %v1417 = vpop.f32.mrb[0].mxu0
      %v1418 = vpop.f32.mrb[0].mxu0
      %v1419 = vadd.f32 0.0, %v1418
      %v1420 = vpop.f32.mrb[0].mxu0
      %1421 = vmatprep.mubr.bf16.mxu0 %v886
      %1422 = vmatmul.mubr.bf16.gmra.mrb[0].mxu0 %v885
      %v1423 = vpop.f32.mrb[0].mxu0
      %v1424 = vadd.f32 0.0, %v1423
      %v1425 = vpop.f32.mrb[0].mxu0
      %v1426 = vpop.f32.mrb[0].mxu0
      %v1427 = vadd.f32 0.0, %v1426
      %v1428 = vpop.f32.mrb[0].mxu0
      %1429 = vmatprep.mubr.bf16.mxu0 %v890
      %1430 = vmatmul.mubr.bf16.gmra.mrb[0].mxu0 %v889
      %v1431 = vpop.f32.mrb[0].mxu0
      %v1432 = vadd.f32 0.0, %v1431
      %v1433 = vpop.f32.mrb[0].mxu0
      %v1434 = vpop.f32.mrb[0].mxu0
      %v1435 = vadd.f32 0.0, %v1434
      %v1436 = vpop.f32.mrb[0].mxu0
      %1437 = vmatprep.mubr.bf16.mxu0 %v894
      %1438 = vmatmul.mubr.bf16.gmra.mrb[0].mxu0 %v893
      %v1439 = vpop.f32.mrb[0].mxu0
      %v1440 = vadd.f32 0.0, %v1439
      %v1441 = vpop.f32.mrb[0].mxu0
      %v1442 = vpop.f32.mrb[0].mxu0
      %v1443 = vadd.f32 0.0, %v1442
      %v1444 = vpop.f32.mrb[0].mxu0
      %1445 = vmatprep.mubr.bf16.mxu0 %v898
      %1446 = vmatmul.mubr.bf16.gmra.mrb[0].mxu0 %v897
      %v1447 = vpop.f32.mrb[0].mxu0
      %v1448 = vadd.f32 0.0, %v1447
      %v1449 = vpop.f32.mrb[0].mxu0
      %v1450 = vpop.f32.mrb[0].mxu0
      %v1451 = vadd.f32 0.0, %v1450
      %v1452 = vpop.f32.mrb[0].mxu0
      %1453 = vmatprep.mubr.bf16.mxu0 %v902
      %1454 = vmatmul.mubr.bf16.gmra.mrb[0].mxu0 %v901
      %v1455 = vpop.f32.mrb[0].mxu0
      %v1456 = vadd.f32 0.0, %v1455
      %v1457 = vpop.f32.mrb[0].mxu0
      %v1458 = vpop.f32.mrb[0].mxu0
      %v1459 = vadd.f32 0.0, %v1458
      %v1460 = vpop.f32.mrb[0].mxu0
      %1461 = vmatprep.mubr.bf16.mxu0 %v906
      %1462 = vmatmul.mubr.bf16.gmra.mrb[0].mxu0 %v905
      %v1463 = vpop.f32.mrb[0].mxu0
      %v1464 = vadd.f32 0.0, %v1463
      %v1465 = vpop.f32.mrb[0].mxu0
      %v1466 = vpop.f32.mrb[0].mxu0
      %v1467 = vadd.f32 0.0, %v1466
      %v1468 = vpop.f32.mrb[0].mxu0
      %1469 = vmatprep.mubr.bf16.mxu0 %v910
      %1470 = vmatmul.mubr.bf16.gmra.mrb[0].mxu0 %v909
      %v1471 = vpop.f32.mrb[0].mxu0
      %v1472 = vadd.f32 0.0, %v1471
      %v1473 = vpop.f32.mrb[0].mxu0
      %v1474 = vpop.f32.mrb[0].mxu0
      %v1475 = vadd.f32 0.0, %v1474
      %v1476 = vpop.f32.mrb[0].mxu0
      %1477 = vmatprep.mubr.bf16.mxu0 %v914
      %1478 = vmatmul.mubr.bf16.gmra.mrb[0].mxu0 %v913
      %v1479 = vpop.f32.mrb[0].mxu0
      %v1480 = vadd.f32 0.0, %v1479
      %v1481 = vpop.f32.mrb[0].mxu0
      %v1482 = vpop.f32.mrb[0].mxu0
      %v1483 = vadd.f32 0.0, %v1482
      %v1484 = vpop.f32.mrb[0].mxu0
      %1485 = vmatprep.mubr.bf16.mxu0 %v918
      %1486 = vmatmul.mubr.bf16.gmra.mrb[0].mxu0 %v917
      %v1487 = vpop.f32.mrb[0].mxu0
      %v1488 = vadd.f32 0.0, %v1487
      %v1489 = vpop.f32.mrb[0].mxu0
      %v1490 = vpop.f32.mrb[0].mxu0
      %v1491 = vadd.f32 0.0, %v1490
      %v1492 = vpop.f32.mrb[0].mxu0
      %1493 = vmatprep.mubr.bf16.mxu0 %v922
      %1494 = vmatmul.mubr.bf16.gmra.mrb[0].mxu0 %v921
      %v1495 = vpop.f32.mrb[0].mxu0
      %v1496 = vadd.f32 0.0, %v1495
      %v1497 = vpop.f32.mrb[0].mxu0
      %v1498 = vpop.f32.mrb[0].mxu0
      %v1499 = vadd.f32 0.0, %v1498
      %v1500 = vpop.f32.mrb[0].mxu0
      %1501 = vmatprep.mubr.bf16.mxu0 %v926
      %1502 = vmatmul.mubr.bf16.gmra.mrb[0].mxu0 %v925
      %v1503 = vpop.f32.mrb[0].mxu0
      %v1504 = vadd.f32 0.0, %v1503
      %v1505 = vpop.f32.mrb[0].mxu0
      %v1506 = vpop.f32.mrb[0].mxu0
      %v1507 = vadd.f32 0.0, %v1506
      %v1508 = vpop.f32.mrb[0].mxu0
      %1509 = vmatprep.mubr.bf16.mxu0 %v930
      %1510 = vmatmul.mubr.bf16.gmra.mrb[0].mxu0 %v929
      %v1511 = vpop.f32.mrb[0].mxu0
      %v1512 = vadd.f32 0.0, %v1511
      %v1513 = vpop.f32.mrb[0].mxu0
      %v1514 = vpop.f32.mrb[0].mxu0
      %v1515 = vadd.f32 0.0, %v1514
      %v1516 = vpop.f32.mrb[0].mxu0
      %1517 = vmatprep.mubr.bf16.mxu0 %v934
      %1518 = vmatmul.mubr.bf16.gmra.mrb[0].mxu0 %v933
      %v1519 = vpop.f32.mrb[0].mxu0
      %v1520 = vadd.f32 0.0, %v1519
      %v1521 = vpop.f32.mrb[0].mxu0
      %v1522 = vpop.f32.mrb[0].mxu0
      %v1523 = vadd.f32 0.0, %v1522
      %v1524 = vpop.f32.mrb[0].mxu0
      %1525 = vmatprep.mubr.bf16.mxu0 %v938
      %1526 = vmatmul.mubr.bf16.gmra.mrb[0].mxu0 %v937
      %v1527 = vpop.f32.mrb[0].mxu0
      %v1528 = vadd.f32 0.0, %v1527
      %v1529 = vpop.f32.mrb[0].mxu0
      %v1530 = vpop.f32.mrb[0].mxu0
      %v1531 = vadd.f32 0.0, %v1530
      %v1532 = vpop.f32.mrb[0].mxu0
      %1533 = vmatprep.mubr.bf16.mxu0 %v942
      %1534 = vmatmul.mubr.bf16.gmra.mrb[0].mxu0 %v941
      %v1535 = vpop.f32.mrb[0].mxu0
      %v1536 = vadd.f32 0.0, %v1535
      %v1537 = vpop.f32.mrb[0].mxu0
      %v1538 = vpop.f32.mrb[0].mxu0
      %v1539 = vadd.f32 0.0, %v1538
      %v1540 = vpop.f32.mrb[0].mxu0
      %1541 = vmatprep.mubr.bf16.mxu0 %v946
      %1542 = vmatmul.mubr.bf16.gmra.mrb[0].mxu0 %v945
      %v1543 = vpop.f32.mrb[0].mxu0
      %v1544 = vadd.f32 0.0, %v1543
      %v1545 = vpop.f32.mrb[0].mxu0
      %v1546 = vpop.f32.mrb[0].mxu0
      %v1547 = vadd.f32 0.0, %v1546
      %v1548 = vpop.f32.mrb[0].mxu0
      %1549 = vmatprep.mubr.bf16.mxu0 %v950
      %1550 = vmatmul.mubr.bf16.gmra.mrb[0].mxu0 %v949
      %v1551 = vpop.f32.mrb[0].mxu0
      %v1552 = vadd.f32 0.0, %v1551
      %v1553 = vpop.f32.mrb[0].mxu0
      %v1554 = vpop.f32.mrb[0].mxu0
      %v1555 = vadd.f32 0.0, %v1554
      %v1556 = vpop.f32.mrb[0].mxu0
      %1557 = vmatprep.mubr.bf16.mxu0 %v954
      %1558 = vmatmul.mubr.bf16.gmra.mrb[0].mxu0 %v953
      %v1559 = vpop.f32.mrb[0].mxu0
      %v1560 = vadd.f32 0.0, %v1559
      %v1561 = vpop.f32.mrb[0].mxu0
      %v1562 = vpop.f32.mrb[0].mxu0
      %v1563 = vadd.f32 0.0, %v1562
      %v1564 = vpop.f32.mrb[0].mxu0
      %1565 = vdwg.mxu0
      %1566 = vmatprep.subr.bf16.mxu0 0
      %1567 = vmatpush1.bf16.msra.mxu0 %v1229
      %1568 = vmatprep.subr.bf16.mxu0 0
      %1569 = vmatpush1.bf16.msra.mxu0 %v1230
      %1570 = vmatprep.subr.bf16.mxu0 0
      %1571 = vmatpush1.bf16.msra.mxu0 %v1231
      %1572 = vmatprep.subr.bf16.mxu0 0
      %1573 = vmatpush1.bf16.msra.mxu0 %v1232
      %1574 = vmatprep.subr.bf16.mxu0 0
      %1575 = vmatpush1.bf16.msra.mxu0 %v1233
      %1576 = vmatprep.subr.bf16.mxu0 0
      %1577 = vmatpush1.bf16.msra.mxu0 %v1234
      %1578 = vmatprep.subr.bf16.mxu0 0
      %1579 = vmatpush1.bf16.msra.mxu0 %v1235
      %1580 = vmatprep.subr.bf16.mxu0 0
      %1581 = vmatpush1.bf16.msra.mxu0 %v1236
      %1582 = vmatprep.subr.bf16.mxu0 0
      %1583 = vmatpush1.bf16.msra.mxu0 %v1237
      %1584 = vmatprep.subr.bf16.mxu0 0
      %1585 = vmatpush1.bf16.msra.mxu0 %v1238
      %1586 = vmatprep.subr.bf16.mxu0 0
      %1587 = vmatpush1.bf16.msra.mxu0 %v1239
      %1588 = vmatprep.subr.bf16.mxu0 0
      %1589 = vmatpush1.bf16.msra.mxu0 %v1240
      %1590 = vmatprep.subr.bf16.mxu0 0
      %1591 = vmatpush1.bf16.msra.mxu0 %v1241
      %1592 = vmatprep.subr.bf16.mxu0 0
      %1593 = vmatpush1.bf16.msra.mxu0 %v1242
      %1594 = vmatprep.subr.bf16.mxu0 0
      %1595 = vmatpush1.bf16.msra.mxu0 %v1243
      %1596 = vmatprep.subr.bf16.mxu0 0
      %1597 = vmatpush1.bf16.msra.mxu0 %v1244
      %1598 = vmatprep.mubr.bf16.mxu0 %v832
      %1599 = vmatmul.mubr.bf16.gmra.mrb[0].mxu0 %v831
      %v1600 = vpop.f32.mrb[0].mxu0
      %v1601 = vadd.f32 %v1312, %v1600
      %v1602 = vpop.f32.mrb[0].mxu0
      %v1603 = vpop.f32.mrb[0].mxu0
      %v1604 = vadd.f32 %v1315, %v1603
      %v1605 = vpop.f32.mrb[0].mxu0
      %1606 = vmatprep.mubr.bf16.mxu0 %v836
      %1607 = vmatmul.mubr.bf16.gmra.mrb[0].mxu0 %v835
      %v1608 = vpop.f32.mrb[0].mxu0
      %v1609 = vadd.f32 %v1320, %v1608
      %v1610 = vpop.f32.mrb[0].mxu0
      %v1611 = vpop.f32.mrb[0].mxu0
      %v1612 = vadd.f32 %v1323, %v1611
      %v1613 = vpop.f32.mrb[0].mxu0
      %1614 = vmatprep.mubr.bf16.mxu0 %v840
      %1615 = vmatmul.mubr.bf16.gmra.mrb[0].mxu0 %v839
      %v1616 = vpop.f32.mrb[0].mxu0
      %v1617 = vadd.f32 %v1328, %v1616
      %v1618 = vpop.f32.mrb[0].mxu0
      %v1619 = vpop.f32.mrb[0].mxu0
      %v1620 = vadd.f32 %v1331, %v1619
      %v1621 = vpop.f32.mrb[0].mxu0
      %1622 = vmatprep.mubr.bf16.mxu0 %v844
      %1623 = vmatmul.mubr.bf16.gmra.mrb[0].mxu0 %v843
      %v1624 = vpop.f32.mrb[0].mxu0
      %v1625 = vadd.f32 %v1336, %v1624
      %v1626 = vpop.f32.mrb[0].mxu0
      %v1627 = vpop.f32.mrb[0].mxu0
      %v1628 = vadd.f32 %v1339, %v1627
      %v1629 = vpop.f32.mrb[0].mxu0
      %1630 = vmatprep.mubr.bf16.mxu0 %v848
      %1631 = vmatmul.mubr.bf16.gmra.mrb[0].mxu0 %v847
      %v1632 = vpop.f32.mrb[0].mxu0
      %v1633 = vadd.f32 %v1344, %v1632
      %v1634 = vpop.f32.mrb[0].mxu0
      %v1635 = vpop.f32.mrb[0].mxu0
      %v1636 = vadd.f32 %v1347, %v1635
      %v1637 = vpop.f32.mrb[0].mxu0
      %1638 = vmatprep.mubr.bf16.mxu0 %v852
      %1639 = vmatmul.mubr.bf16.gmra.mrb[0].mxu0 %v851
      %v1640 = vpop.f32.mrb[0].mxu0
      %v1641 = vadd.f32 %v1352, %v1640
      %v1642 = vpop.f32.mrb[0].mxu0
      %v1643 = vpop.f32.mrb[0].mxu0
      %v1644 = vadd.f32 %v1355, %v1643
      %v1645 = vpop.f32.mrb[0].mxu0
      %1646 = vmatprep.mubr.bf16.mxu0 %v856
      %1647 = vmatmul.mubr.bf16.gmra.mrb[0].mxu0 %v855
      %v1648 = vpop.f32.mrb[0].mxu0
      %v1649 = vadd.f32 %v1360, %v1648
      %v1650 = vpop.f32.mrb[0].mxu0
      %v1651 = vpop.f32.mrb[0].mxu0
      %v1652 = vadd.f32 %v1363, %v1651
      %v1653 = vpop.f32.mrb[0].mxu0
      %1654 = vmatprep.mubr.bf16.mxu0 %v860
      %1655 = vmatmul.mubr.bf16.gmra.mrb[0].mxu0 %v859
      %v1656 = vpop.f32.mrb[0].mxu0
      %v1657 = vadd.f32 %v1368, %v1656
      %v1658 = vpop.f32.mrb[0].mxu0
      %v1659 = vpop.f32.mrb[0].mxu0
      %v1660 = vadd.f32 %v1371, %v1659
      %v1661 = vpop.f32.mrb[0].mxu0
      %1662 = vmatprep.mubr.bf16.mxu0 %v864
      %1663 = vmatmul.mubr.bf16.gmra.mrb[0].mxu0 %v863
      %v1664 = vpop.f32.mrb[0].mxu0
      %v1665 = vadd.f32 %v1376, %v1664
      %v1666 = vpop.f32.mrb[0].mxu0
      %v1667 = vpop.f32.mrb[0].mxu0
      %v1668 = vadd.f32 %v1379, %v1667
      %v1669 = vpop.f32.mrb[0].mxu0
      %1670 = vmatprep.mubr.bf16.mxu0 %v868
      %1671 = vmatmul.mubr.bf16.gmra.mrb[0].mxu0 %v867
      %v1672 = vpop.f32.mrb[0].mxu0
      %v1673 = vadd.f32 %v1384, %v1672
      %v1674 = vpop.f32.mrb[0].mxu0
      %v1675 = vpop.f32.mrb[0].mxu0
      %v1676 = vadd.f32 %v1387, %v1675
      %v1677 = vpop.f32.mrb[0].mxu0
      %1678 = vmatprep.mubr.bf16.mxu0 %v872
      %1679 = vmatmul.mubr.bf16.gmra.mrb[0].mxu0 %v871
      %v1680 = vpop.f32.mrb[0].mxu0
      %v1681 = vadd.f32 %v1392, %v1680
      %v1682 = vpop.f32.mrb[0].mxu0
      %v1683 = vpop.f32.mrb[0].mxu0
      %v1684 = vadd.f32 %v1395, %v1683
      %v1685 = vpop.f32.mrb[0].mxu0
      %1686 = vmatprep.mubr.bf16.mxu0 %v876
      %1687 = vmatmul.mubr.bf16.gmra.mrb[0].mxu0 %v875
      %v1688 = vpop.f32.mrb[0].mxu0
      %v1689 = vadd.f32 %v1400, %v1688
      %v1690 = vpop.f32.mrb[0].mxu0
      %v1691 = vpop.f32.mrb[0].mxu0
      %v1692 = vadd.f32 %v1403, %v1691
      %v1693 = vpop.f32.mrb[0].mxu0
      %1694 = vmatprep.mubr.bf16.mxu0 %v880
      %1695 = vmatmul.mubr.bf16.gmra.mrb[0].mxu0 %v879
      %v1696 = vpop.f32.mrb[0].mxu0
      %v1697 = vadd.f32 %v1408, %v1696
      %v1698 = vpop.f32.mrb[0].mxu0
      %v1699 = vpop.f32.mrb[0].mxu0
      %v1700 = vadd.f32 %v1411, %v1699
      %v1701 = vpop.f32.mrb[0].mxu0
      %1702 = vmatprep.mubr.bf16.mxu0 %v884
      %1703 = vmatmul.mubr.bf16.gmra.mrb[0].mxu0 %v883
      %v1704 = vpop.f32.mrb[0].mxu0
      %v1705 = vadd.f32 %v1416, %v1704
      %v1706 = vpop.f32.mrb[0].mxu0
      %v1707 = vpop.f32.mrb[0].mxu0
      %v1708 = vadd.f32 %v1419, %v1707
      %v1709 = vpop.f32.mrb[0].mxu0
      %1710 = vmatprep.mubr.bf16.mxu0 %v888
      %1711 = vmatmul.mubr.bf16.gmra.mrb[0].mxu0 %v887
      %v1712 = vpop.f32.mrb[0].mxu0
      %v1713 = vadd.f32 %v1424, %v1712
      %v1714 = vpop.f32.mrb[0].mxu0
      %v1715 = vpop.f32.mrb[0].mxu0
      %v1716 = vadd.f32 %v1427, %v1715
      %v1717 = vpop.f32.mrb[0].mxu0
      %1718 = vmatprep.mubr.bf16.mxu0 %v892
      %1719 = vmatmul.mubr.bf16.gmra.mrb[0].mxu0 %v891
      %v1720 = vpop.f32.mrb[0].mxu0
      %v1721 = vadd.f32 %v1432, %v1720
      %v1722 = vpop.f32.mrb[0].mxu0
      %v1723 = vpop.f32.mrb[0].mxu0
      %v1724 = vadd.f32 %v1435, %v1723
      %v1725 = vpop.f32.mrb[0].mxu0
      %1726 = vmatprep.mubr.bf16.mxu0 %v896
      %1727 = vmatmul.mubr.bf16.gmra.mrb[0].mxu0 %v895
      %v1728 = vpop.f32.mrb[0].mxu0
      %v1729 = vadd.f32 %v1440, %v1728
      %v1730 = vpop.f32.mrb[0].mxu0
      %v1731 = vpop.f32.mrb[0].mxu0
      %v1732 = vadd.f32 %v1443, %v1731
      %v1733 = vpop.f32.mrb[0].mxu0
      %1734 = vmatprep.mubr.bf16.mxu0 %v900
      %1735 = vmatmul.mubr.bf16.gmra.mrb[0].mxu0 %v899
      %v1736 = vpop.f32.mrb[0].mxu0
      %v1737 = vadd.f32 %v1448, %v1736
      %v1738 = vpop.f32.mrb[0].mxu0
      %v1739 = vpop.f32.mrb[0].mxu0
      %v1740 = vadd.f32 %v1451, %v1739
      %v1741 = vpop.f32.mrb[0].mxu0
      %1742 = vmatprep.mubr.bf16.mxu0 %v904
      %1743 = vmatmul.mubr.bf16.gmra.mrb[0].mxu0 %v903
      %v1744 = vpop.f32.mrb[0].mxu0
      %v1745 = vadd.f32 %v1456, %v1744
      %v1746 = vpop.f32.mrb[0].mxu0
      %v1747 = vpop.f32.mrb[0].mxu0
      %v1748 = vadd.f32 %v1459, %v1747
      %v1749 = vpop.f32.mrb[0].mxu0
      %1750 = vmatprep.mubr.bf16.mxu0 %v908
      %1751 = vmatmul.mubr.bf16.gmra.mrb[0].mxu0 %v907
      %v1752 = vpop.f32.mrb[0].mxu0
      %v1753 = vadd.f32 %v1464, %v1752
      %v1754 = vpop.f32.mrb[0].mxu0
      %v1755 = vpop.f32.mrb[0].mxu0
      %v1756 = vadd.f32 %v1467, %v1755
      %v1757 = vpop.f32.mrb[0].mxu0
      %1758 = vmatprep.mubr.bf16.mxu0 %v912
      %1759 = vmatmul.mubr.bf16.gmra.mrb[0].mxu0 %v911
      %v1760 = vpop.f32.mrb[0].mxu0
      %v1761 = vadd.f32 %v1472, %v1760
      %v1762 = vpop.f32.mrb[0].mxu0
      %v1763 = vpop.f32.mrb[0].mxu0
      %v1764 = vadd.f32 %v1475, %v1763
      %v1765 = vpop.f32.mrb[0].mxu0
      %1766 = vmatprep.mubr.bf16.mxu0 %v916
      %1767 = vmatmul.mubr.bf16.gmra.mrb[0].mxu0 %v915
      %v1768 = vpop.f32.mrb[0].mxu0
      %v1769 = vadd.f32 %v1480, %v1768
      %v1770 = vpop.f32.mrb[0].mxu0
      %v1771 = vpop.f32.mrb[0].mxu0
      %v1772 = vadd.f32 %v1483, %v1771
      %v1773 = vpop.f32.mrb[0].mxu0
      %1774 = vmatprep.mubr.bf16.mxu0 %v920
      %1775 = vmatmul.mubr.bf16.gmra.mrb[0].mxu0 %v919
      %v1776 = vpop.f32.mrb[0].mxu0
      %v1777 = vadd.f32 %v1488, %v1776
      %v1778 = vpop.f32.mrb[0].mxu0
      %v1779 = vpop.f32.mrb[0].mxu0
      %v1780 = vadd.f32 %v1491, %v1779
      %v1781 = vpop.f32.mrb[0].mxu0
      %1782 = vmatprep.mubr.bf16.mxu0 %v924
      %1783 = vmatmul.mubr.bf16.gmra.mrb[0].mxu0 %v923
      %v1784 = vpop.f32.mrb[0].mxu0
      %v1785 = vadd.f32 %v1496, %v1784
      %v1786 = vpop.f32.mrb[0].mxu0
      %v1787 = vpop.f32.mrb[0].mxu0
      %v1788 = vadd.f32 %v1499, %v1787
      %v1789 = vpop.f32.mrb[0].mxu0
      %1790 = vmatprep.mubr.bf16.mxu0 %v928
      %1791 = vmatmul.mubr.bf16.gmra.mrb[0].mxu0 %v927
      %v1792 = vpop.f32.mrb[0].mxu0
      %v1793 = vadd.f32 %v1504, %v1792
      %v1794 = vpop.f32.mrb[0].mxu0
      %v1795 = vpop.f32.mrb[0].mxu0
      %v1796 = vadd.f32 %v1507, %v1795
      %v1797 = vpop.f32.mrb[0].mxu0
      %1798 = vmatprep.mubr.bf16.mxu0 %v932
      %1799 = vmatmul.mubr.bf16.gmra.mrb[0].mxu0 %v931
      %v1800 = vpop.f32.mrb[0].mxu0
      %v1801 = vadd.f32 %v1512, %v1800
      %v1802 = vpop.f32.mrb[0].mxu0
      %v1803 = vpop.f32.mrb[0].mxu0
      %v1804 = vadd.f32 %v1515, %v1803
      %v1805 = vpop.f32.mrb[0].mxu0
      %1806 = vmatprep.mubr.bf16.mxu0 %v936
      %1807 = vmatmul.mubr.bf16.gmra.mrb[0].mxu0 %v935
      %v1808 = vpop.f32.mrb[0].mxu0
      %v1809 = vadd.f32 %v1520, %v1808
      %v1810 = vpop.f32.mrb[0].mxu0
      %v1811 = vpop.f32.mrb[0].mxu0
      %v1812 = vadd.f32 %v1523, %v1811
      %v1813 = vpop.f32.mrb[0].mxu0
      %1814 = vmatprep.mubr.bf16.mxu0 %v940
      %1815 = vmatmul.mubr.bf16.gmra.mrb[0].mxu0 %v939
      %v1816 = vpop.f32.mrb[0].mxu0
      %v1817 = vadd.f32 %v1528, %v1816
      %v1818 = vpop.f32.mrb[0].mxu0
      %v1819 = vpop.f32.mrb[0].mxu0
      %v1820 = vadd.f32 %v1531, %v1819
      %v1821 = vpop.f32.mrb[0].mxu0
      %1822 = vmatprep.mubr.bf16.mxu0 %v944
      %1823 = vmatmul.mubr.bf16.gmra.mrb[0].mxu0 %v943
      %v1824 = vpop.f32.mrb[0].mxu0
      %v1825 = vadd.f32 %v1536, %v1824
      %v1826 = vpop.f32.mrb[0].mxu0
      %v1827 = vpop.f32.mrb[0].mxu0
      %v1828 = vadd.f32 %v1539, %v1827
      %v1829 = vpop.f32.mrb[0].mxu0
      %1830 = vmatprep.mubr.bf16.mxu0 %v948
      %1831 = vmatmul.mubr.bf16.gmra.mrb[0].mxu0 %v947
      %v1832 = vpop.f32.mrb[0].mxu0
      %v1833 = vadd.f32 %v1544, %v1832
      %v1834 = vpop.f32.mrb[0].mxu0
      %v1835 = vpop.f32.mrb[0].mxu0
      %v1836 = vadd.f32 %v1547, %v1835
      %v1837 = vpop.f32.mrb[0].mxu0
      %1838 = vmatprep.mubr.bf16.mxu0 %v952
      %1839 = vmatmul.mubr.bf16.gmra.mrb[0].mxu0 %v951
      %v1840 = vpop.f32.mrb[0].mxu0
      %v1841 = vadd.f32 %v1552, %v1840
      %v1842 = vpop.f32.mrb[0].mxu0
      %v1843 = vpop.f32.mrb[0].mxu0
      %v1844 = vadd.f32 %v1555, %v1843
      %v1845 = vpop.f32.mrb[0].mxu0
      %1846 = vmatprep.mubr.bf16.mxu0 %v956
      %1847 = vmatmul.mubr.bf16.gmra.mrb[0].mxu0 %v955
      %v1848 = vpop.f32.mrb[0].mxu0
      %v1849 = vadd.f32 %v1560, %v1848
      %v1850 = vpop.f32.mrb[0].mxu0
      %v1851 = vpop.f32.mrb[0].mxu0
      %v1852 = vadd.f32 %v1563, %v1851
      %v1853 = vpop.f32.mrb[0].mxu0
      %1854 = vdwg.mxu0
      %1855 = vst [vmem:[%s243] sm:$0xff] %v1601
      %1856 = vst [vmem:[%s243 + $0x8] sm:$0xff] %v1604
      %1857 = vst [vmem:[%s243 + $0x10] sm:$0xff] %v1609
      %1858 = vst [vmem:[%s243 + $0x18] sm:$0xff] %v1612
      %1859 = vst [vmem:[%s243 + $0x20] sm:$0xff] %v1617
      %1860 = vst [vmem:[%s243 + $0x28] sm:$0xff] %v1620
      %1861 = vst [vmem:[%s243 + $0x30] sm:$0xff] %v1625
      %1862 = vst [vmem:[%s243 + $0x38] sm:$0xff] %v1628
      %1863 = vst [vmem:[%s243 + $0x40] sm:$0xff] %v1633
      %1864 = vst [vmem:[%s243 + $0x48] sm:$0xff] %v1636
      %1865 = vst [vmem:[%s243 + $0x50] sm:$0xff] %v1641
      %1866 = vst [vmem:[%s243 + $0x58] sm:$0xff] %v1644
      %1867 = vst [vmem:[%s243 + $0x60] sm:$0xff] %v1649
      %1868 = vst [vmem:[%s243 + $0x68] sm:$0xff] %v1652
      %1869 = vst [vmem:[%s243 + $0x70] sm:$0xff] %v1657
      %1870 = vst [vmem:[%s243 + $0x78] sm:$0xff] %v1660
      %1871 = vst [vmem:[%s243 + $0x80] sm:$0xff] %v1665
      %1872 = vst [vmem:[%s243 + $0x88] sm:$0xff] %v1668
      %1873 = vst [vmem:[%s243 + $0x90] sm:$0xff] %v1673
      %1874 = vst [vmem:[%s243 + $0x98] sm:$0xff] %v1676
      %1875 = vst [vmem:[%s243 + $0xa0] sm:$0xff] %v1681
      %1876 = vst [vmem:[%s243 + $0xa8] sm:$0xff] %v1684
      %1877 = vst [vmem:[%s243 + $0xb0] sm:$0xff] %v1689
      %1878 = vst [vmem:[%s243 + $0xb8] sm:$0xff] %v1692
      %1879 = vst [vmem:[%s243 + $0xc0] sm:$0xff] %v1697
      %1880 = vst [vmem:[%s243 + $0xc8] sm:$0xff] %v1700
      %1881 = vst [vmem:[%s243 + $0xd0] sm:$0xff] %v1705
      %1882 = vst [vmem:[%s243 + $0xd8] sm:$0xff] %v1708
      %1883 = vst [vmem:[%s243 + $0xe0] sm:$0xff] %v1713
      %1884 = vst [vmem:[%s243 + $0xe8] sm:$0xff] %v1716
      %1885 = vst [vmem:[%s243 + $0xf0] sm:$0xff] %v1721
      %1886 = vst [vmem:[%s243 + $0xf8] sm:$0xff] %v1724
      %1887 = vst [vmem:[%s243 + $0x100] sm:$0xff] %v1729
      %1888 = vst [vmem:[%s243 + $0x108] sm:$0xff] %v1732
      %1889 = vst [vmem:[%s243 + $0x110] sm:$0xff] %v1737
      %1890 = vst [vmem:[%s243 + $0x118] sm:$0xff] %v1740
      %1891 = vst [vmem:[%s243 + $0x120] sm:$0xff] %v1745
      %1892 = vst [vmem:[%s243 + $0x128] sm:$0xff] %v1748
      %1893 = vst [vmem:[%s243 + $0x130] sm:$0xff] %v1753
      %1894 = vst [vmem:[%s243 + $0x138] sm:$0xff] %v1756
      %1895 = vst [vmem:[%s243 + $0x140] sm:$0xff] %v1761
      %1896 = vst [vmem:[%s243 + $0x148] sm:$0xff] %v1764
      %1897 = vst [vmem:[%s243 + $0x150] sm:$0xff] %v1769
      %1898 = vst [vmem:[%s243 + $0x158] sm:$0xff] %v1772
      %1899 = vst [vmem:[%s243 + $0x160] sm:$0xff] %v1777
      %1900 = vst [vmem:[%s243 + $0x168] sm:$0xff] %v1780
      %1901 = vst [vmem:[%s243 + $0x170] sm:$0xff] %v1785
      %1902 = vst [vmem:[%s243 + $0x178] sm:$0xff] %v1788
      %1903 = vst [vmem:[%s243 + $0x180] sm:$0xff] %v1793
      %1904 = vst [vmem:[%s243 + $0x188] sm:$0xff] %v1796
      %1905 = vst [vmem:[%s243 + $0x190] sm:$0xff] %v1801
      %1906 = vst [vmem:[%s243 + $0x198] sm:$0xff] %v1804
      %1907 = vst [vmem:[%s243 + $0x1a0] sm:$0xff] %v1809
      %1908 = vst [vmem:[%s243 + $0x1a8] sm:$0xff] %v1812
      %1909 = vst [vmem:[%s243 + $0x1b0] sm:$0xff] %v1817
      %1910 = vst [vmem:[%s243 + $0x1b8] sm:$0xff] %v1820
      %1911 = vst [vmem:[%s243 + $0x1c0] sm:$0xff] %v1825
      %1912 = vst [vmem:[%s243 + $0x1c8] sm:$0xff] %v1828
      %1913 = vst [vmem:[%s243 + $0x1d0] sm:$0xff] %v1833
      %1914 = vst [vmem:[%s243 + $0x1d8] sm:$0xff] %v1836
      %1915 = vst [vmem:[%s243 + $0x1e0] sm:$0xff] %v1841
      %1916 = vst [vmem:[%s243 + $0x1e8] sm:$0xff] %v1844
      %1917 = vst [vmem:[%s243 + $0x1f0] sm:$0xff] %v1849
      %1918 = vst [vmem:[%s243 + $0x1f8] sm:$0xff] %v1852
      %v1919 = vadd.f32 %v1601, %v1604
      %v1920 = vadd.f32 %v1919, %v1609
      %v1921 = vadd.f32 %v1920, %v1612
      %v1922 = vadd.f32 %v1921, %v1617
      %v1923 = vadd.f32 %v1922, %v1620
      %v1924 = vadd.f32 %v1923, %v1625
      %v1925 = vadd.f32 %v1924, %v1628
      %v1926 = vadd.f32 %v1925, %v1633
      %v1927 = vadd.f32 %v1926, %v1636
      %v1928 = vadd.f32 %v1927, %v1641
      %v1929 = vadd.f32 %v1928, %v1644
      %v1930 = vadd.f32 %v1929, %v1649
      %v1931 = vadd.f32 %v1930, %v1652
      %v1932 = vadd.f32 %v1931, %v1657
      %v1933 = vadd.f32 %v1932, %v1660
      %v1934 = vadd.f32 %v1933, %v1665
      %v1935 = vadd.f32 %v1934, %v1668
      %v1936 = vadd.f32 %v1935, %v1673
      %v1937 = vadd.f32 %v1936, %v1676
      %v1938 = vadd.f32 %v1937, %v1681
      %v1939 = vadd.f32 %v1938, %v1684
      %v1940 = vadd.f32 %v1939, %v1689
      %v1941 = vadd.f32 %v1940, %v1692
      %v1942 = vadd.f32 %v1941, %v1697
      %v1943 = vadd.f32 %v1942, %v1700
      %v1944 = vadd.f32 %v1943, %v1705
      %v1945 = vadd.f32 %v1944, %v1708
      %v1946 = vadd.f32 %v1945, %v1713
      %v1947 = vadd.f32 %v1946, %v1716
      %v1948 = vadd.f32 %v1947, %v1721
      %v1949 = vadd.f32 %v1948, %v1724
      %v1950 = vadd.f32 %v1949, %v1729
      %v1951 = vadd.f32 %v1950, %v1732
      %v1952 = vadd.f32 %v1951, %v1737
      %v1953 = vadd.f32 %v1952, %v1740
      %v1954 = vadd.f32 %v1953, %v1745
      %v1955 = vadd.f32 %v1954, %v1748
      %v1956 = vadd.f32 %v1955, %v1753
      %v1957 = vadd.f32 %v1956, %v1756
      %v1958 = vadd.f32 %v1957, %v1761
      %v1959 = vadd.f32 %v1958, %v1764
      %v1960 = vadd.f32 %v1959, %v1769
      %v1961 = vadd.f32 %v1960, %v1772
      %v1962 = vadd.f32 %v1961, %v1777
      %v1963 = vadd.f32 %v1962, %v1780
      %v1964 = vadd.f32 %v1963, %v1785
      %v1965 = vadd.f32 %v1964, %v1788
      %v1966 = vadd.f32 %v1965, %v1793
      %v1967 = vadd.f32 %v1966, %v1796
      %v1968 = vadd.f32 %v1967, %v1801
      %v1969 = vadd.f32 %v1968, %v1804
      %v1970 = vadd.f32 %v1969, %v1809
      %v1971 = vadd.f32 %v1970, %v1812
      %v1972 = vadd.f32 %v1971, %v1817
      %v1973 = vadd.f32 %v1972, %v1820
      %v1974 = vadd.f32 %v1973, %v1825
      %v1975 = vadd.f32 %v1974, %v1828
      %v1976 = vadd.f32 %v1975, %v1833
      %v1977 = vadd.f32 %v1976, %v1836
      %v1978 = vadd.f32 %v1977, %v1841
      %v1979 = vadd.f32 %v1978, %v1844
      %v1980 = vadd.f32 %v1979, %v1849
      %v1981 = vadd.f32 %v1980, %v1852
      %v1982 = vrot.slane %v1981, 4
      %v1983 = vadd.f32 %v1981, %v1982
      %v1984 = vrot.slane %v1983, 2
      %v1985 = vadd.f32 %v1983, %v1984
      %v1986 = vrot.slane %v1985, 1
      %v1987 = vadd.f32 %v1985, %v1986
      %v1988 = vmul.f32 %v1601, %v1601
      %v1989 = vmul.f32 %v1604, %v1604
      %v1990 = vmul.f32 %v1609, %v1609
      %v1991 = vmul.f32 %v1612, %v1612
      %v1992 = vmul.f32 %v1617, %v1617
      %v1993 = vmul.f32 %v1620, %v1620
      %v1994 = vmul.f32 %v1625, %v1625
      %v1995 = vmul.f32 %v1628, %v1628
      %v1996 = vmul.f32 %v1633, %v1633
      %v1997 = vmul.f32 %v1636, %v1636
      %v1998 = vmul.f32 %v1641, %v1641
      %v1999 = vmul.f32 %v1644, %v1644
      %v2000 = vmul.f32 %v1649, %v1649
      %v2001 = vmul.f32 %v1652, %v1652
      %v2002 = vmul.f32 %v1657, %v1657
      %v2003 = vmul.f32 %v1660, %v1660
      %v2004 = vmul.f32 %v1665, %v1665
      %v2005 = vmul.f32 %v1668, %v1668
      %v2006 = vmul.f32 %v1673, %v1673
      %v2007 = vmul.f32 %v1676, %v1676
      %v2008 = vmul.f32 %v1681, %v1681
      %v2009 = vmul.f32 %v1684, %v1684
      %v2010 = vmul.f32 %v1689, %v1689
      %v2011 = vmul.f32 %v1692, %v1692
      %v2012 = vmul.f32 %v1697, %v1697
      %v2013 = vmul.f32 %v1700, %v1700
      %v2014 = vmul.f32 %v1705, %v1705
      %v2015 = vmul.f32 %v1708, %v1708
      %v2016 = vmul.f32 %v1713, %v1713
      %v2017 = vmul.f32 %v1716, %v1716
      %v2018 = vmul.f32 %v1721, %v1721
      %v2019 = vmul.f32 %v1724, %v1724
      %v2020 = vmul.f32 %v1729, %v1729
      %v2021 = vmul.f32 %v1732, %v1732
      %v2022 = vmul.f32 %v1737, %v1737
      %v2023 = vmul.f32 %v1740, %v1740
      %v2024 = vmul.f32 %v1745, %v1745
      %v2025 = vmul.f32 %v1748, %v1748
      %v2026 = vmul.f32 %v1753, %v1753
      %v2027 = vmul.f32 %v1756, %v1756
      %v2028 = vmul.f32 %v1761, %v1761
      %v2029 = vmul.f32 %v1764, %v1764
      %v2030 = vmul.f32 %v1769, %v1769
      %v2031 = vmul.f32 %v1772, %v1772
      %v2032 = vmul.f32 %v1777, %v1777
      %v2033 = vmul.f32 %v1780, %v1780
      %v2034 = vmul.f32 %v1785, %v1785
      %v2035 = vmul.f32 %v1788, %v1788
      %v2036 = vmul.f32 %v1793, %v1793
      %v2037 = vmul.f32 %v1796, %v1796
      %v2038 = vmul.f32 %v1801, %v1801
      %v2039 = vmul.f32 %v1804, %v1804
      %v2040 = vmul.f32 %v1809, %v1809
      %v2041 = vmul.f32 %v1812, %v1812
      %v2042 = vmul.f32 %v1817, %v1817
      %v2043 = vmul.f32 %v1820, %v1820
      %v2044 = vmul.f32 %v1825, %v1825
      %v2045 = vmul.f32 %v1828, %v1828
      %v2046 = vmul.f32 %v1833, %v1833
      %v2047 = vmul.f32 %v1836, %v1836
      %v2048 = vmul.f32 %v1841, %v1841
      %v2049 = vmul.f32 %v1844, %v1844
      %v2050 = vmul.f32 %v1849, %v1849
      %v2051 = vmul.f32 %v1852, %v1852
      %v2052 = vadd.f32 %v1988, %v1989
      %v2053 = vadd.f32 %v2052, %v1990
      %v2054 = vadd.f32 %v2053, %v1991
      %v2055 = vadd.f32 %v2054, %v1992
      %v2056 = vadd.f32 %v2055, %v1993
      %v2057 = vadd.f32 %v2056, %v1994
      %v2058 = vadd.f32 %v2057, %v1995
      %v2059 = vadd.f32 %v2058, %v1996
      %v2060 = vadd.f32 %v2059, %v1997
      %v2061 = vadd.f32 %v2060, %v1998
      %v2062 = vadd.f32 %v2061, %v1999
      %v2063 = vadd.f32 %v2062, %v2000
      %v2064 = vadd.f32 %v2063, %v2001
      %v2065 = vadd.f32 %v2064, %v2002
      %v2066 = vadd.f32 %v2065, %v2003
      %v2067 = vadd.f32 %v2066, %v2004
      %v2068 = vadd.f32 %v2067, %v2005
      %v2069 = vadd.f32 %v2068, %v2006
      %v2070 = vadd.f32 %v2069, %v2007
      %v2071 = vadd.f32 %v2070, %v2008
      %v2072 = vadd.f32 %v2071, %v2009
      %v2073 = vadd.f32 %v2072, %v2010
      %v2074 = vadd.f32 %v2073, %v2011
      %v2075 = vadd.f32 %v2074, %v2012
      %v2076 = vadd.f32 %v2075, %v2013
      %v2077 = vadd.f32 %v2076, %v2014
      %v2078 = vadd.f32 %v2077, %v2015
      %v2079 = vadd.f32 %v2078, %v2016
      %v2080 = vadd.f32 %v2079, %v2017
      %v2081 = vadd.f32 %v2080, %v2018
      %v2082 = vadd.f32 %v2081, %v2019
      %v2083 = vadd.f32 %v2082, %v2020
      %v2084 = vadd.f32 %v2083, %v2021
      %v2085 = vadd.f32 %v2084, %v2022
      %v2086 = vadd.f32 %v2085, %v2023
      %v2087 = vadd.f32 %v2086, %v2024
      %v2088 = vadd.f32 %v2087, %v2025
      %v2089 = vadd.f32 %v2088, %v2026
      %v2090 = vadd.f32 %v2089, %v2027
      %v2091 = vadd.f32 %v2090, %v2028
      %v2092 = vadd.f32 %v2091, %v2029
      %v2093 = vadd.f32 %v2092, %v2030
      %v2094 = vadd.f32 %v2093, %v2031
      %v2095 = vadd.f32 %v2094, %v2032
      %v2096 = vadd.f32 %v2095, %v2033
      %v2097 = vadd.f32 %v2096, %v2034
      %v2098 = vadd.f32 %v2097, %v2035
      %v2099 = vadd.f32 %v2098, %v2036
      %v2100 = vadd.f32 %v2099, %v2037
      %v2101 = vadd.f32 %v2100, %v2038
      %v2102 = vadd.f32 %v2101, %v2039
      %v2103 = vadd.f32 %v2102, %v2040
      %v2104 = vadd.f32 %v2103, %v2041
      %v2105 = vadd.f32 %v2104, %v2042
      %v2106 = vadd.f32 %v2105, %v2043
      %v2107 = vadd.f32 %v2106, %v2044
      %v2108 = vadd.f32 %v2107, %v2045
      %v2109 = vadd.f32 %v2108, %v2046
      %v2110 = vadd.f32 %v2109, %v2047
      %v2111 = vadd.f32 %v2110, %v2048
      %v2112 = vadd.f32 %v2111, %v2049
      %v2113 = vadd.f32 %v2112, %v2050
      %v2114 = vadd.f32 %v2113, %v2051
      %v2115 = vrot.slane %v2114, 4
      %v2116 = vadd.f32 %v2114, %v2115
      %v2117 = vrot.slane %v2116, 2
      %v2118 = vadd.f32 %v2116, %v2117
      %v2119 = vrot.slane %v2118, 1
      %v2120 = vadd.f32 %v2118, %v2119
      %vm2121 = vcmask 1040384
      %v2122 = vsel %vm2121, %v1987, %v2120
      %2123 = vst [vmem:[%s251] sm:$0x3] %v2122
      %s2124 = smul.u32 64, %s20
      %p2125 = scmp.lt.s32.totalorder %s19, 3
      %s2126 = scalar_select %p2125, %s19, 3
      %p2127 = scmp.lt.s32.totalorder %s2124, 63
      %s2128 = scalar_select %p2127, %s2124, 63
      %s2129 = smul.addr %s2126, 64
      %s2130 = sadd.s32 %s2128, %s2129
      %s2131 = smul.addr %s2130, 8
      %s2132 = scalar_lea.vmem %s2, %s2131
      %p2133 = scmp.lt.s32.totalorder %s19, 3
      %s2134 = scalar_select %p2133, %s19, 3
      %p2135 = scmp.lt.s32.totalorder %s20, 0
      %s2136 = scalar_select %p2135, %s20, 0
      %s2137 = sadd.s32 %s2136, %s2134
      %s2138 = smul.addr %s2137, 2
      %s2139 = scalar_lea.vmem %s3, %s2138
      // Predicated region
      $region29: #{generator_forward.17} parent=27 // pred_check
        %p2140 = pneg %p101
      $region30: #{generator_forward.17} parent=27 // pred_check_branch
        %2142 = sbr.rel (%p2140) target = $region32
      $region31: #{generator_forward.17} parent=27 // pred_region
        %s2143 = smul.u32 64, %s20
      $region32: #{generator_forward.17} parent=27 // pred_fallthru
        _
      // Predicated region
      $region33: #{generator_forward.17} parent=27 // pred_check
        %p2144 = pneg %p129
      $region34: #{generator_forward.17} parent=27 // pred_check_branch
        %2146 = sbr.rel (%p2144) target = $region36
      $region35: #{generator_forward.17} parent=27 // pred_region
        _
      $region36: #{generator_forward.17} parent=27 // pred_fallthru
        _
    $region28: #{generator_forward.17} parent=5 // pred_fallthru
      _
    %p2147 = scmp.le.s32.totalorder 2, %s10
    // Predicated region
    $region37: #{generator_forward.17} parent=5 // pred_check
      %p2148 = pneg %p2147
    $region38: #{generator_forward.17} parent=5 // pred_check_branch
      %2150 = sbr.rel (%p2148) target = $region40
    $region39: #{generator_forward.17} parent=5 // pred_region
      %s2151 = ssub.s32 %s10, 2
      // Predicated region
      $region41: #{generator_forward.17} parent=39 // pred_check
        %p2152 = pneg %p107
      $region42: #{generator_forward.17} parent=39 // pred_check_branch
        %2154 = sbr.rel (%p2152) target = $region44
      $region43: #{generator_forward.17} parent=39 // pred_region
        %s2155 = smul.u32 64, %s22
        %p2156 = scmp.lt.s32.totalorder %s21, 3
        %s2157 = scalar_select %p2156, %s21, 3
        %p2158 = scmp.lt.s32.totalorder %s2155, 63
        %s2159 = scalar_select %p2158, %s2155, 63
        %s2160 = smul.addr %s2157, 64
        %s2161 = sadd.s32 %s2159, %s2160
        %s2162 = smul.addr %s2161, 8
        %s2163 = scalar_lea.vmem %s2, %s2162
      $region44: #{generator_forward.17} parent=39 // pred_fallthru
        _
      // Predicated region
      $region45: #{generator_forward.17} parent=39 // pred_check
        %p2164 = pneg %p135
      $region46: #{generator_forward.17} parent=39 // pred_check_branch
        %2166 = sbr.rel (%p2164) target = $region48
      $region47: #{generator_forward.17} parent=39 // pred_region
        %p2167 = scmp.lt.s32.totalorder %s21, 3
        %s2168 = scalar_select %p2167, %s21, 3
        %p2169 = scmp.lt.s32.totalorder %s22, 0
        %s2170 = scalar_select %p2169, %s22, 0
        %s2171 = sadd.s32 %s2170, %s2168
        %s2172 = smul.addr %s2171, 2
        %s2173 = scalar_lea.vmem %s3, %s2172
      $region48: #{generator_forward.17} parent=39 // pred_fallthru
        _
    $region40: #{generator_forward.17} parent=5 // pred_fallthru
      _
  $region6: #{generator_forward.17} parent=0 // loop_footer
    %s14 = sadd.s32 1, %s10
  $region7: #{generator_forward.17} parent=0 // loop_footer_branch
    %9 = sbr.rel target = $region3
  $region8: #{generator_forward.17} parent=0 // loop_exit
    _

// kernel: generator_forward.18
$region0: #{generator_forward.18}
  #allocation0 [shape = 'u32[]', space=smem, size = 0x4, offset = 0x4, fixed_abs, tag = 'smem constant byte address 0x4 - core index']
  #allocation1 [shape = 'u32[144,128]{1,0:T(1,128)}', space=vmem, size = 0x12000, scoped, tag = 'internal scratch']
  %s0 = inlined_call_operand.vmem [shape: f32[4,512,128], index: 0, kind: input, shape index: {}]
  %s1 = inlined_call_operand.vmem [shape: f32[1,128], index: 1, kind: input, shape index: {}]
  %s2 = inlined_call_operand.vmem [shape: f32[1,128], index: 2, kind: input, shape index: {}]
  %s3 = inlined_call_operand.vmem [shape: bf16[4,512,128], index: 3, kind: output, shape index: {}]
  %s4 = sld [smem:[#allocation0]]
  $region45: #{generator_forward.18} parent=0
    _
  %s6 = ssub.s32 1, %s4
  %s7 = scalar_select 0, %s6, %s4
  loop: start=0, step=1, limit=6
  $region2: #{generator_forward.18} parent=0 // loop_pre_header
    _
  $region3: #{generator_forward.18} parent=0 // loop_header
    %s9 = sphi 0, %s13
    %p10 = scmp.ge.s32.totalorder %s9, 6
    %s16 = sphi 0, %s28
    %s17 = sphi 0, %s24
    %s18 = sphi 0, %s16
    %s19 = sphi 0, %s17
    %s20 = sphi 0, %s18
    %s21 = sphi 0, %s19
    %s33 = sphi 0, %s35
    %s36 = sphi 0, %s33
    %s37 = sphi 0, %s36
    %s53 = sphi 0, %s37
    %s57 = sphi 0, %s57
    %s59 = sphi 0, %s57
    %s60 = sphi 0, %s59
    %s74 = sphi 0, %s60
    %s78 = sphi 0, %s78
    %s80 = sphi 0, %s78
    %s81 = sphi 0, %s80
    %s95 = sphi 0, %s81
    %s103 = sphi 0, %s105
    %s106 = sphi 0, %s103
    %s107 = sphi 0, %s106
    %s123 = sphi 0, %s107
  $region4: #{generator_forward.18} parent=0 // loop_header_branch
    %12 = sbr.rel (%p10) target = $region8
  $region5: #{generator_forward.18} parent=0 // loop_body
    %s14 = ssub.s32 %s9, 1
    %s15 = ssub.s32 %s9, 2
    %s22 = sadd.s32 1, %s17
    %p23 = scmp.ge.s32.totalorder %s22, 1
    %s24 = scalar_select %p23, 0, %s22
    %s25 = sadd.s32 1, %s16
    %s26 = scalar_select %p23, %s25, %s16
    %p27 = scmp.ge.s32.totalorder %s26, 4
    %s28 = scalar_select %p27, 0, %s26
    %s29 = ssub.s32 %s16, %s28
    %s30 = ssub.s32 %s17, %s24
    %s31 = sor.u32 %s29, %s30
    %p32 = scmp.eq.s32.totalorder %s31, 0
    %s34 = sadd.s32 %s33, 1
    %s35 = scalar_select %p32, %s33, %s34
    %p38 = pneg %p32
    %p39 = scmp.eq.s32.totalorder %s9, 3
    %p40 = por %p38, %p39
    %p41 = scmp.ne.s32.totalorder %s33, %s36
    %p42 = scmp.eq.s32.totalorder %s9, 0
    %p43 = por %p41, %p42
    %p44 = scmp.ne.s32.totalorder %s33, %s36
    %p45 = scmp.eq.s32.totalorder %s14, 3
    %p46 = por %p44, %p45
    %p47 = scmp.ne.s32.totalorder %s36, %s37
    %p48 = scmp.eq.s32.totalorder %s14, 0
    %p49 = por %p47, %p48
    %p50 = scmp.ne.s32.totalorder %s36, %s37
    %p51 = scmp.eq.s32.totalorder %s15, 3
    %p52 = por %p50, %p51
    %p54 = scmp.ne.s32.totalorder %s37, %s53
    %p55 = scmp.eq.s32.totalorder %s15, 0
    %p56 = por %p54, %p55
    %s58 = sadd.s32 %s57, 1
    %p61 = scmp.eq.s32.totalorder %s9, 3
    %p62 = scmp.ne.s32.totalorder %s57, %s59
    %p63 = scmp.eq.s32.totalorder %s9, 0
    %p64 = por %p62, %p63
    %p65 = scmp.ne.s32.totalorder %s57, %s59
    %p66 = scmp.eq.s32.totalorder %s14, 3
    %p67 = por %p65, %p66
    %p68 = scmp.ne.s32.totalorder %s59, %s60
    %p69 = scmp.eq.s32.totalorder %s14, 0
    %p70 = por %p68, %p69
    %p71 = scmp.ne.s32.totalorder %s59, %s60
    %p72 = scmp.eq.s32.totalorder %s15, 3
    %p73 = por %p71, %p72
    %p75 = scmp.ne.s32.totalorder %s60, %s74
    %p76 = scmp.eq.s32.totalorder %s15, 0
    %p77 = por %p75, %p76
    %s79 = sadd.s32 %s78, 1
    %p82 = scmp.eq.s32.totalorder %s9, 3
    %p83 = scmp.ne.s32.totalorder %s78, %s80
    %p84 = scmp.eq.s32.totalorder %s9, 0
    %p85 = por %p83, %p84
    %p86 = scmp.ne.s32.totalorder %s78, %s80
    %p87 = scmp.eq.s32.totalorder %s14, 3
    %p88 = por %p86, %p87
    %p89 = scmp.ne.s32.totalorder %s80, %s81
    %p90 = scmp.eq.s32.totalorder %s14, 0
    %p91 = por %p89, %p90
    %p92 = scmp.ne.s32.totalorder %s80, %s81
    %p93 = scmp.eq.s32.totalorder %s15, 3
    %p94 = por %p92, %p93
    %p96 = scmp.ne.s32.totalorder %s81, %s95
    %p97 = scmp.eq.s32.totalorder %s15, 0
    %p98 = por %p96, %p97
    %s99 = ssub.s32 %s16, %s28
    %s100 = ssub.s32 %s17, %s24
    %s101 = sor.u32 %s99, %s100
    %p102 = scmp.eq.s32.totalorder %s101, 0
    %s104 = sadd.s32 %s103, 1
    %s105 = scalar_select %p102, %s103, %s104
    %p108 = pneg %p102
    %p109 = scmp.eq.s32.totalorder %s9, 3
    %p110 = por %p108, %p109
    %p111 = scmp.ne.s32.totalorder %s103, %s106
    %p112 = scmp.eq.s32.totalorder %s9, 0
    %p113 = por %p111, %p112
    %p114 = scmp.ne.s32.totalorder %s103, %s106
    %p115 = scmp.eq.s32.totalorder %s14, 3
    %p116 = por %p114, %p115
    %p117 = scmp.ne.s32.totalorder %s106, %s107
    %p118 = scmp.eq.s32.totalorder %s14, 0
    %p119 = por %p117, %p118
    %p120 = scmp.ne.s32.totalorder %s106, %s107
    %p121 = scmp.eq.s32.totalorder %s15, 3
    %p122 = por %p120, %p121
    %p124 = scmp.ne.s32.totalorder %s107, %s123
    %p125 = scmp.eq.s32.totalorder %s15, 0
    %p126 = por %p124, %p125
    %p127 = scmp.le.s32.totalorder 1, %s9
    %p128 = scmp.lt.s32.totalorder %s9, 5
    %p129 = pnand %p127, %p128
    %p130 = pneg %p129
    // Predicated region
    $region9: #{generator_forward.18} parent=5 // pred_check
      _
    $region10: #{generator_forward.18} parent=5 // pred_check_branch
      %132 = sbr.rel (%p129) target = $region12
    $region11: #{generator_forward.18} parent=5 // pred_region
      %s133 = ssub.s32 %s9, 1
      // Predicated region
      $region13: #{generator_forward.18} parent=11 // pred_check
        %p134 = pneg %p70
      $region14: #{generator_forward.18} parent=11 // pred_check_branch
        %136 = sbr.rel (%p134) target = $region16
      $region15: #{generator_forward.18} parent=11 // pred_region
        _
      $region16: #{generator_forward.18} parent=11 // pred_fallthru
        _
      // Predicated region
      $region17: #{generator_forward.18} parent=11 // pred_check
        %p137 = pneg %p91
      $region18: #{generator_forward.18} parent=11 // pred_check_branch
        %139 = sbr.rel (%p137) target = $region20
      $region19: #{generator_forward.18} parent=11 // pred_region
        _
      $region20: #{generator_forward.18} parent=11 // pred_fallthru
        _
    $region12: #{generator_forward.18} parent=5 // pred_fallthru
      _
    %p140 = scmp.lt.s32.totalorder %s9, 4
    // Predicated region
    $region21: #{generator_forward.18} parent=5 // pred_check
      %p141 = pneg %p140
    $region22: #{generator_forward.18} parent=5 // pred_check_branch
      %143 = sbr.rel (%p141) target = $region24
    $region23: #{generator_forward.18} parent=5 // pred_region
      // Predicated region
      $region25: #{generator_forward.18} parent=23 // pred_check
        %p144 = pneg %p43
      $region26: #{generator_forward.18} parent=23 // pred_check_branch
        %146 = sbr.rel (%p144) target = $region28
      $region27: #{generator_forward.18} parent=23 // pred_region
        %s147 = smul.u32 64, %s17
        %p148 = scmp.lt.s32.totalorder %s16, 3
        %s149 = scalar_select %p148, %s16, 3
        %p150 = scmp.lt.s32.totalorder %s147, 63
        %s151 = scalar_select %p150, %s147, 63
        %s152 = smul.addr %s149, 64
        %s153 = sadd.s32 %s151, %s152
        %s154 = smul.addr %s153, 8
        %s155 = scalar_lea.vmem %s0, %s154
        %s156 = smul.u32 64, %s17
      $region28: #{generator_forward.18} parent=23 // pred_fallthru
        _
    $region24: #{generator_forward.18} parent=5 // pred_fallthru
      _
    %p157 = scmp.le.s32.totalorder 1, %s9
    %p158 = scmp.lt.s32.totalorder %s9, 5
    %p159 = pnand %p157, %p158
    %p160 = pneg %p159
    // Predicated region
    $region29: #{generator_forward.18} parent=5 // pred_check
      _
    $region30: #{generator_forward.18} parent=5 // pred_check_branch
      %162 = sbr.rel (%p159) target = $region32
    $region31: #{generator_forward.18} parent=5 // pred_region
      %s163 = ssub.s32 %s9, 1
      %s164 = smul.u32 64, %s19
      %p165 = scmp.lt.s32.totalorder %s18, 3
      %s166 = scalar_select %p165, %s18, 3
      %p167 = scmp.lt.s32.totalorder %s164, 63
      %s168 = scalar_select %p167, %s164, 63
      %s169 = smul.addr %s166, 64
      %s170 = sadd.s32 %s168, %s169
      %s171 = smul.addr %s170, 8
      %s172 = scalar_lea.vmem %s0, %s171
      %p173 = pneg %p49
      %p174 = pneg %p46
      %p175 = pneg %p70
      %p176 = pneg %p67
      %p177 = pneg %p91
      %p178 = pneg %p88
      %p179 = pneg %p119
      %p180 = pneg %p116
      %s181 = smul.u32 64, %s19
      %p182 = scmp.lt.s32.totalorder %s18, 3
      %s183 = scalar_select %p182, %s18, 3
      %p184 = scmp.lt.s32.totalorder %s181, 63
      %s185 = scalar_select %p184, %s181, 63
      %s186 = smul.addr %s183, 64
      %s187 = sadd.s32 %s185, %s186
      %s188 = smul.addr %s187, 4
      %s189 = scalar_lea.vmem %s3, %s188
      %s190 = smul.u32 64, %s19
      %p191 = scmp.lt.s32.totalorder %s18, 3
      %s192 = scalar_select %p191, %s18, 3
      %p193 = scmp.lt.s32.totalorder %s190, 63
      %s194 = scalar_select %p193, %s190, 63
      %s195 = smul.addr %s192, 64
      %s196 = sadd.s32 %s194, %s195
      %s197 = smul.addr %s196, 8
      %s198 = scalar_lea.vmem %s0, %s197
      %s199 = smul.u32 64, %s19
      %s200 = smul.u32 64, %s19
      %p201 = scmp.lt.s32.totalorder %s18, 3
      %s202 = scalar_select %p201, %s18, 3
      %p203 = scmp.lt.s32.totalorder %s200, 63
      %s204 = scalar_select %p203, %s200, 63
      %s205 = smul.addr %s202, 64
      %s206 = sadd.s32 %s204, %s205
      %s207 = smul.addr %s206, 4
      %s208 = scalar_lea.vmem %s3, %s207
      %s209 = smul.u32 64, %s19
      %v210 = vld [vmem:[%s198] sm:$0xff]
      %v211 = vld [vmem:[%s198 + $0x8] sm:$0xff]
      %v212 = vld [vmem:[%s198 + $0x10] sm:$0xff]
      %v213 = vld [vmem:[%s198 + $0x18] sm:$0xff]
      %v214 = vld [vmem:[%s198 + $0x20] sm:$0xff]
      %v215 = vld [vmem:[%s198 + $0x28] sm:$0xff]
      %v216 = vld [vmem:[%s198 + $0x30] sm:$0xff]
      %v217 = vld [vmem:[%s198 + $0x38] sm:$0xff]
      %v218 = vld [vmem:[%s198 + $0x40] sm:$0xff]
      %v219 = vld [vmem:[%s198 + $0x48] sm:$0xff]
      %v220 = vld [vmem:[%s198 + $0x50] sm:$0xff]
      %v221 = vld [vmem:[%s198 + $0x58] sm:$0xff]
      %v222 = vld [vmem:[%s198 + $0x60] sm:$0xff]
      %v223 = vld [vmem:[%s198 + $0x68] sm:$0xff]
      %v224 = vld [vmem:[%s198 + $0x70] sm:$0xff]
      %v225 = vld [vmem:[%s198 + $0x78] sm:$0xff]
      %v226 = vld [vmem:[%s198 + $0x80] sm:$0xff]
      %v227 = vld [vmem:[%s198 + $0x88] sm:$0xff]
      %v228 = vld [vmem:[%s198 + $0x90] sm:$0xff]
      %v229 = vld [vmem:[%s198 + $0x98] sm:$0xff]
      %v230 = vld [vmem:[%s198 + $0xa0] sm:$0xff]
      %v231 = vld [vmem:[%s198 + $0xa8] sm:$0xff]
      %v232 = vld [vmem:[%s198 + $0xb0] sm:$0xff]
      %v233 = vld [vmem:[%s198 + $0xb8] sm:$0xff]
      %v234 = vld [vmem:[%s198 + $0xc0] sm:$0xff]
      %v235 = vld [vmem:[%s198 + $0xc8] sm:$0xff]
      %v236 = vld [vmem:[%s198 + $0xd0] sm:$0xff]
      %v237 = vld [vmem:[%s198 + $0xd8] sm:$0xff]
      %v238 = vld [vmem:[%s198 + $0xe0] sm:$0xff]
      %v239 = vld [vmem:[%s198 + $0xe8] sm:$0xff]
      %v240 = vld [vmem:[%s198 + $0xf0] sm:$0xff]
      %v241 = vld [vmem:[%s198 + $0xf8] sm:$0xff]
      %v242 = vld [vmem:[%s198 + $0x100] sm:$0xff]
      %v243 = vld [vmem:[%s198 + $0x108] sm:$0xff]
      %v244 = vld [vmem:[%s198 + $0x110] sm:$0xff]
      %v245 = vld [vmem:[%s198 + $0x118] sm:$0xff]
      %v246 = vld [vmem:[%s198 + $0x120] sm:$0xff]
      %v247 = vld [vmem:[%s198 + $0x128] sm:$0xff]
      %v248 = vld [vmem:[%s198 + $0x130] sm:$0xff]
      %v249 = vld [vmem:[%s198 + $0x138] sm:$0xff]
      %v250 = vld [vmem:[%s198 + $0x140] sm:$0xff]
      %v251 = vld [vmem:[%s198 + $0x148] sm:$0xff]
      %v252 = vld [vmem:[%s198 + $0x150] sm:$0xff]
      %v253 = vld [vmem:[%s198 + $0x158] sm:$0xff]
      %v254 = vld [vmem:[%s198 + $0x160] sm:$0xff]
      %v255 = vld [vmem:[%s198 + $0x168] sm:$0xff]
      %v256 = vld [vmem:[%s198 + $0x170] sm:$0xff]
      %v257 = vld [vmem:[%s198 + $0x178] sm:$0xff]
      %v258 = vld [vmem:[%s198 + $0x180] sm:$0xff]
      %v259 = vld [vmem:[%s198 + $0x188] sm:$0xff]
      %v260 = vld [vmem:[%s198 + $0x190] sm:$0xff]
      %v261 = vld [vmem:[%s198 + $0x198] sm:$0xff]
      %v262 = vld [vmem:[%s198 + $0x1a0] sm:$0xff]
      %v263 = vld [vmem:[%s198 + $0x1a8] sm:$0xff]
      %v264 = vld [vmem:[%s198 + $0x1b0] sm:$0xff]
      %v265 = vld [vmem:[%s198 + $0x1b8] sm:$0xff]
      %v266 = vld [vmem:[%s198 + $0x1c0] sm:$0xff]
      %v267 = vld [vmem:[%s198 + $0x1c8] sm:$0xff]
      %v268 = vld [vmem:[%s198 + $0x1d0] sm:$0xff]
      %v269 = vld [vmem:[%s198 + $0x1d8] sm:$0xff]
      %v270 = vld [vmem:[%s198 + $0x1e0] sm:$0xff]
      %v271 = vld [vmem:[%s198 + $0x1e8] sm:$0xff]
      %v272 = vld [vmem:[%s198 + $0x1f0] sm:$0xff]
      %v273 = vld [vmem:[%s198 + $0x1f8] sm:$0xff]
      %v274 = vld [vmem:[%s1] sm:$0x1]
      %v276 = vlaneseq
      %v277 = vshrl.u32 %v276, 7
      %v278 = vsub.s32 0, %v277
      %v279 = vrot.slane %v274, %v278
      %v281 = vsub.f32 %v210, %v279
      %v282 = vsub.f32 %v211, %v279
      %v283 = vsub.f32 %v212, %v279
      %v284 = vsub.f32 %v213, %v279
      %v285 = vsub.f32 %v214, %v279
      %v286 = vsub.f32 %v215, %v279
      %v287 = vsub.f32 %v216, %v279
      %v288 = vsub.f32 %v217, %v279
      %v289 = vsub.f32 %v218, %v279
      %v290 = vsub.f32 %v219, %v279
      %v291 = vsub.f32 %v220, %v279
      %v292 = vsub.f32 %v221, %v279
      %v293 = vsub.f32 %v222, %v279
      %v294 = vsub.f32 %v223, %v279
      %v295 = vsub.f32 %v224, %v279
      %v296 = vsub.f32 %v225, %v279
      %v297 = vsub.f32 %v226, %v279
      %v298 = vsub.f32 %v227, %v279
      %v299 = vsub.f32 %v228, %v279
      %v300 = vsub.f32 %v229, %v279
      %v301 = vsub.f32 %v230, %v279
      %v302 = vsub.f32 %v231, %v279
      %v303 = vsub.f32 %v232, %v279
      %v304 = vsub.f32 %v233, %v279
      %v305 = vsub.f32 %v234, %v279
      %v306 = vsub.f32 %v235, %v279
      %v307 = vsub.f32 %v236, %v279
      %v308 = vsub.f32 %v237, %v279
      %v309 = vsub.f32 %v238, %v279
      %v310 = vsub.f32 %v239, %v279
      %v311 = vsub.f32 %v240, %v279
      %v312 = vsub.f32 %v241, %v279
      %v313 = vsub.f32 %v242, %v279
      %v314 = vsub.f32 %v243, %v279
      %v315 = vsub.f32 %v244, %v279
      %v316 = vsub.f32 %v245, %v279
      %v317 = vsub.f32 %v246, %v279
      %v318 = vsub.f32 %v247, %v279
      %v319 = vsub.f32 %v248, %v279
      %v320 = vsub.f32 %v249, %v279
      %v321 = vsub.f32 %v250, %v279
      %v322 = vsub.f32 %v251, %v279
      %v323 = vsub.f32 %v252, %v279
      %v324 = vsub.f32 %v253, %v279
      %v325 = vsub.f32 %v254, %v279
      %v326 = vsub.f32 %v255, %v279
      %v327 = vsub.f32 %v256, %v279
      %v328 = vsub.f32 %v257, %v279
      %v329 = vsub.f32 %v258, %v279
      %v330 = vsub.f32 %v259, %v279
      %v331 = vsub.f32 %v260, %v279
      %v332 = vsub.f32 %v261, %v279
      %v333 = vsub.f32 %v262, %v279
      %v334 = vsub.f32 %v263, %v279
      %v335 = vsub.f32 %v264, %v279
      %v336 = vsub.f32 %v265, %v279
      %v337 = vsub.f32 %v266, %v279
      %v338 = vsub.f32 %v267, %v279
      %v339 = vsub.f32 %v268, %v279
      %v340 = vsub.f32 %v269, %v279
      %v341 = vsub.f32 %v270, %v279
      %v342 = vsub.f32 %v271, %v279
      %v343 = vsub.f32 %v272, %v279
      %v344 = vsub.f32 %v273, %v279
      %v345 = vld [vmem:[%s2] sm:$0x1]
      %v347 = vlaneseq
      %v348 = vshrl.u32 %v347, 7
      %v349 = vsub.s32 0, %v348
      %v350 = vrot.slane %v345, %v349
      %v352 = vmul.f32 %v281, %v350
      %v353 = vmul.f32 %v282, %v350
      %v354 = vmul.f32 %v283, %v350
      %v355 = vmul.f32 %v284, %v350
      %v356 = vmul.f32 %v285, %v350
      %v357 = vmul.f32 %v286, %v350
      %v358 = vmul.f32 %v287, %v350
      %v359 = vmul.f32 %v288, %v350
      %v360 = vmul.f32 %v289, %v350
      %v361 = vmul.f32 %v290, %v350
      %v362 = vmul.f32 %v291, %v350
      %v363 = vmul.f32 %v292, %v350
      %v364 = vmul.f32 %v293, %v350
      %v365 = vmul.f32 %v294, %v350
      %v366 = vmul.f32 %v295, %v350
      %v367 = vmul.f32 %v296, %v350
      %v368 = vmul.f32 %v297, %v350
      %v369 = vmul.f32 %v298, %v350
      %v370 = vmul.f32 %v299, %v350
      %v371 = vmul.f32 %v300, %v350
      %v372 = vmul.f32 %v301, %v350
      %v373 = vmul.f32 %v302, %v350
      %v374 = vmul.f32 %v303, %v350
      %v375 = vmul.f32 %v304, %v350
      %v376 = vmul.f32 %v305, %v350
      %v377 = vmul.f32 %v306, %v350
      %v378 = vmul.f32 %v307, %v350
      %v379 = vmul.f32 %v308, %v350
      %v380 = vmul.f32 %v309, %v350
      %v381 = vmul.f32 %v310, %v350
      %v382 = vmul.f32 %v311, %v350
      %v383 = vmul.f32 %v312, %v350
      %v384 = vmul.f32 %v313, %v350
      %v385 = vmul.f32 %v314, %v350
      %v386 = vmul.f32 %v315, %v350
      %v387 = vmul.f32 %v316, %v350
      %v388 = vmul.f32 %v317, %v350
      %v389 = vmul.f32 %v318, %v350
      %v390 = vmul.f32 %v319, %v350
      %v391 = vmul.f32 %v320, %v350
      %v392 = vmul.f32 %v321, %v350
      %v393 = vmul.f32 %v322, %v350
      %v394 = vmul.f32 %v323, %v350
      %v395 = vmul.f32 %v324, %v350
      %v396 = vmul.f32 %v325, %v350
      %v397 = vmul.f32 %v326, %v350
      %v398 = vmul.f32 %v327, %v350
      %v399 = vmul.f32 %v328, %v350
      %v400 = vmul.f32 %v329, %v350
      %v401 = vmul.f32 %v330, %v350
      %v402 = vmul.f32 %v331, %v350
      %v403 = vmul.f32 %v332, %v350
      %v404 = vmul.f32 %v333, %v350
      %v405 = vmul.f32 %v334, %v350
      %v406 = vmul.f32 %v335, %v350
      %v407 = vmul.f32 %v336, %v350
      %v408 = vmul.f32 %v337, %v350
      %v409 = vmul.f32 %v338, %v350
      %v410 = vmul.f32 %v339, %v350
      %v411 = vmul.f32 %v340, %v350
      %v412 = vmul.f32 %v341, %v350
      %v413 = vmul.f32 %v342, %v350
      %v414 = vmul.f32 %v343, %v350
      %v415 = vmul.f32 %v344, %v350
      %vm416 = vcmp.gt.f32.partialorder %v352, 0.0
      %vm417 = vcmp.gt.f32.partialorder %v353, 0.0
      %vm418 = vcmp.gt.f32.partialorder %v354, 0.0
      %vm419 = vcmp.gt.f32.partialorder %v355, 0.0
      %vm420 = vcmp.gt.f32.partialorder %v356, 0.0
      %vm421 = vcmp.gt.f32.partialorder %v357, 0.0
      %vm422 = vcmp.gt.f32.partialorder %v358, 0.0
      %vm423 = vcmp.gt.f32.partialorder %v359, 0.0
      %vm424 = vcmp.gt.f32.partialorder %v360, 0.0
      %vm425 = vcmp.gt.f32.partialorder %v361, 0.0
      %vm426 = vcmp.gt.f32.partialorder %v362, 0.0
      %vm427 = vcmp.gt.f32.partialorder %v363, 0.0
      %vm428 = vcmp.gt.f32.partialorder %v364, 0.0
      %vm429 = vcmp.gt.f32.partialorder %v365, 0.0
      %vm430 = vcmp.gt.f32.partialorder %v366, 0.0
      %vm431 = vcmp.gt.f32.partialorder %v367, 0.0
      %vm432 = vcmp.gt.f32.partialorder %v368, 0.0
      %vm433 = vcmp.gt.f32.partialorder %v369, 0.0
      %vm434 = vcmp.gt.f32.partialorder %v370, 0.0
      %vm435 = vcmp.gt.f32.partialorder %v371, 0.0
      %vm436 = vcmp.gt.f32.partialorder %v372, 0.0
      %vm437 = vcmp.gt.f32.partialorder %v373, 0.0
      %vm438 = vcmp.gt.f32.partialorder %v374, 0.0
      %vm439 = vcmp.gt.f32.partialorder %v375, 0.0
      %vm440 = vcmp.gt.f32.partialorder %v376, 0.0
      %vm441 = vcmp.gt.f32.partialorder %v377, 0.0
      %vm442 = vcmp.gt.f32.partialorder %v378, 0.0
      %vm443 = vcmp.gt.f32.partialorder %v379, 0.0
      %vm444 = vcmp.gt.f32.partialorder %v380, 0.0
      %vm445 = vcmp.gt.f32.partialorder %v381, 0.0
      %vm446 = vcmp.gt.f32.partialorder %v382, 0.0
      %vm447 = vcmp.gt.f32.partialorder %v383, 0.0
      %vm448 = vcmp.gt.f32.partialorder %v384, 0.0
      %vm449 = vcmp.gt.f32.partialorder %v385, 0.0
      %vm450 = vcmp.gt.f32.partialorder %v386, 0.0
      %vm451 = vcmp.gt.f32.partialorder %v387, 0.0
      %vm452 = vcmp.gt.f32.partialorder %v388, 0.0
      %vm453 = vcmp.gt.f32.partialorder %v389, 0.0
      %vm454 = vcmp.gt.f32.partialorder %v390, 0.0
      %vm455 = vcmp.gt.f32.partialorder %v391, 0.0
      %vm456 = vcmp.gt.f32.partialorder %v392, 0.0
      %vm457 = vcmp.gt.f32.partialorder %v393, 0.0
      %vm458 = vcmp.gt.f32.partialorder %v394, 0.0
      %vm459 = vcmp.gt.f32.partialorder %v395, 0.0
      %vm460 = vcmp.gt.f32.partialorder %v396, 0.0
      %vm461 = vcmp.gt.f32.partialorder %v397, 0.0
      %vm462 = vcmp.gt.f32.partialorder %v398, 0.0
      %vm463 = vcmp.gt.f32.partialorder %v399, 0.0
      %vm464 = vcmp.gt.f32.partialorder %v400, 0.0
      %vm465 = vcmp.gt.f32.partialorder %v401, 0.0
      %vm466 = vcmp.gt.f32.partialorder %v402, 0.0
      %vm467 = vcmp.gt.f32.partialorder %v403, 0.0
      %vm468 = vcmp.gt.f32.partialorder %v404, 0.0
      %vm469 = vcmp.gt.f32.partialorder %v405, 0.0
      %vm470 = vcmp.gt.f32.partialorder %v406, 0.0
      %vm471 = vcmp.gt.f32.partialorder %v407, 0.0
      %vm472 = vcmp.gt.f32.partialorder %v408, 0.0
      %vm473 = vcmp.gt.f32.partialorder %v409, 0.0
      %vm474 = vcmp.gt.f32.partialorder %v410, 0.0
      %vm475 = vcmp.gt.f32.partialorder %v411, 0.0
      %vm476 = vcmp.gt.f32.partialorder %v412, 0.0
      %vm477 = vcmp.gt.f32.partialorder %v413, 0.0
      %vm478 = vcmp.gt.f32.partialorder %v414, 0.0
      %vm479 = vcmp.gt.f32.partialorder %v415, 0.0
      %v480 = vmul.f32 %v352, 0.2
      %v481 = vmul.f32 %v353, 0.2
      %v482 = vmul.f32 %v354, 0.2
      %v483 = vmul.f32 %v355, 0.2
      %v484 = vmul.f32 %v356, 0.2
      %v485 = vmul.f32 %v357, 0.2
      %v486 = vmul.f32 %v358, 0.2
      %v487 = vmul.f32 %v359, 0.2
      %v488 = vmul.f32 %v360, 0.2
      %v489 = vmul.f32 %v361, 0.2
      %v490 = vmul.f32 %v362, 0.2
      %v491 = vmul.f32 %v363, 0.2
      %v492 = vmul.f32 %v364, 0.2
      %v493 = vmul.f32 %v365, 0.2
      %v494 = vmul.f32 %v366, 0.2
      %v495 = vmul.f32 %v367, 0.2
      %v496 = vmul.f32 %v368, 0.2
      %v497 = vmul.f32 %v369, 0.2
      %v498 = vmul.f32 %v370, 0.2
      %v499 = vmul.f32 %v371, 0.2
      %v500 = vmul.f32 %v372, 0.2
      %v501 = vmul.f32 %v373, 0.2
      %v502 = vmul.f32 %v374, 0.2
      %v503 = vmul.f32 %v375, 0.2
      %v504 = vmul.f32 %v376, 0.2
      %v505 = vmul.f32 %v377, 0.2
      %v506 = vmul.f32 %v378, 0.2
      %v507 = vmul.f32 %v379, 0.2
      %v508 = vmul.f32 %v380, 0.2
      %v509 = vmul.f32 %v381, 0.2
      %v510 = vmul.f32 %v382, 0.2
      %v511 = vmul.f32 %v383, 0.2
      %v512 = vmul.f32 %v384, 0.2
      %v513 = vmul.f32 %v385, 0.2
      %v514 = vmul.f32 %v386, 0.2
      %v515 = vmul.f32 %v387, 0.2
      %v516 = vmul.f32 %v388, 0.2
      %v517 = vmul.f32 %v389, 0.2
      %v518 = vmul.f32 %v390, 0.2
      %v519 = vmul.f32 %v391, 0.2
      %v520 = vmul.f32 %v392, 0.2
      %v521 = vmul.f32 %v393, 0.2
      %v522 = vmul.f32 %v394, 0.2
      %v523 = vmul.f32 %v395, 0.2
      %v524 = vmul.f32 %v396, 0.2
      %v525 = vmul.f32 %v397, 0.2
      %v526 = vmul.f32 %v398, 0.2
      %v527 = vmul.f32 %v399, 0.2
      %v528 = vmul.f32 %v400, 0.2
      %v529 = vmul.f32 %v401, 0.2
      %v530 = vmul.f32 %v402, 0.2
      %v531 = vmul.f32 %v403, 0.2
      %v532 = vmul.f32 %v404, 0.2
      %v533 = vmul.f32 %v405, 0.2
      %v534 = vmul.f32 %v406, 0.2
      %v535 = vmul.f32 %v407, 0.2
      %v536 = vmul.f32 %v408, 0.2
      %v537 = vmul.f32 %v409, 0.2
      %v538 = vmul.f32 %v410, 0.2
      %v539 = vmul.f32 %v411, 0.2
      %v540 = vmul.f32 %v412, 0.2
      %v541 = vmul.f32 %v413, 0.2
      %v542 = vmul.f32 %v414, 0.2
      %v543 = vmul.f32 %v415, 0.2
      %v544 = vsel %vm416, %v352, %v480
      %v545 = vsel %vm417, %v353, %v481
      %v546 = vsel %vm418, %v354, %v482
      %v547 = vsel %vm419, %v355, %v483
      %v548 = vsel %vm420, %v356, %v484
      %v549 = vsel %vm421, %v357, %v485
      %v550 = vsel %vm422, %v358, %v486
      %v551 = vsel %vm423, %v359, %v487
      %v552 = vsel %vm424, %v360, %v488
      %v553 = vsel %vm425, %v361, %v489
      %v554 = vsel %vm426, %v362, %v490
      %v555 = vsel %vm427, %v363, %v491
      %v556 = vsel %vm428, %v364, %v492
      %v557 = vsel %vm429, %v365, %v493
      %v558 = vsel %vm430, %v366, %v494
      %v559 = vsel %vm431, %v367, %v495
      %v560 = vsel %vm432, %v368, %v496
      %v561 = vsel %vm433, %v369, %v497
      %v562 = vsel %vm434, %v370, %v498
      %v563 = vsel %vm435, %v371, %v499
      %v564 = vsel %vm436, %v372, %v500
      %v565 = vsel %vm437, %v373, %v501
      %v566 = vsel %vm438, %v374, %v502
      %v567 = vsel %vm439, %v375, %v503
      %v568 = vsel %vm440, %v376, %v504
      %v569 = vsel %vm441, %v377, %v505
      %v570 = vsel %vm442, %v378, %v506
      %v571 = vsel %vm443, %v379, %v507
      %v572 = vsel %vm444, %v380, %v508
      %v573 = vsel %vm445, %v381, %v509
      %v574 = vsel %vm446, %v382, %v510
      %v575 = vsel %vm447, %v383, %v511
      %v576 = vsel %vm448, %v384, %v512
      %v577 = vsel %vm449, %v385, %v513
      %v578 = vsel %vm450, %v386, %v514
      %v579 = vsel %vm451, %v387, %v515
      %v580 = vsel %vm452, %v388, %v516
      %v581 = vsel %vm453, %v389, %v517
      %v582 = vsel %vm454, %v390, %v518
      %v583 = vsel %vm455, %v391, %v519
      %v584 = vsel %vm456, %v392, %v520
      %v585 = vsel %vm457, %v393, %v521
      %v586 = vsel %vm458, %v394, %v522
      %v587 = vsel %vm459, %v395, %v523
      %v588 = vsel %vm460, %v396, %v524
      %v589 = vsel %vm461, %v397, %v525
      %v590 = vsel %vm462, %v398, %v526
      %v591 = vsel %vm463, %v399, %v527
      %v592 = vsel %vm464, %v400, %v528
      %v593 = vsel %vm465, %v401, %v529
      %v594 = vsel %vm466, %v402, %v530
      %v595 = vsel %vm467, %v403, %v531
      %v596 = vsel %vm468, %v404, %v532
      %v597 = vsel %vm469, %v405, %v533
      %v598 = vsel %vm470, %v406, %v534
      %v599 = vsel %vm471, %v407, %v535
      %v600 = vsel %vm472, %v408, %v536
      %v601 = vsel %vm473, %v409, %v537
      %v602 = vsel %vm474, %v410, %v538
      %v603 = vsel %vm475, %v411, %v539
      %v604 = vsel %vm476, %v412, %v540
      %v605 = vsel %vm477, %v413, %v541
      %v606 = vsel %vm478, %v414, %v542
      %v607 = vsel %vm479, %v415, %v543
      %v608 = vpack.c.bf16 %v545, %v544
      %v609 = vpack.c.bf16 %v547, %v546
      %v610 = vpack.c.bf16 %v549, %v548
      %v611 = vpack.c.bf16 %v551, %v550
      %v612 = vpack.c.bf16 %v553, %v552
      %v613 = vpack.c.bf16 %v555, %v554
      %v614 = vpack.c.bf16 %v557, %v556
      %v615 = vpack.c.bf16 %v559, %v558
      %v616 = vpack.c.bf16 %v561, %v560
      %v617 = vpack.c.bf16 %v563, %v562
      %v618 = vpack.c.bf16 %v565, %v564
      %v619 = vpack.c.bf16 %v567, %v566
      %v620 = vpack.c.bf16 %v569, %v568
      %v621 = vpack.c.bf16 %v571, %v570
      %v622 = vpack.c.bf16 %v573, %v572
      %v623 = vpack.c.bf16 %v575, %v574
      %v624 = vpack.c.bf16 %v577, %v576
      %v625 = vpack.c.bf16 %v579, %v578
      %v626 = vpack.c.bf16 %v581, %v580
      %v627 = vpack.c.bf16 %v583, %v582
      %v628 = vpack.c.bf16 %v585, %v584
      %v629 = vpack.c.bf16 %v587, %v586
      %v630 = vpack.c.bf16 %v589, %v588
      %v631 = vpack.c.bf16 %v591, %v590
      %v632 = vpack.c.bf16 %v593, %v592
      %v633 = vpack.c.bf16 %v595, %v594
      %v634 = vpack.c.bf16 %v597, %v596
      %v635 = vpack.c.bf16 %v599, %v598
      %v636 = vpack.c.bf16 %v601, %v600
      %v637 = vpack.c.bf16 %v603, %v602
      %v638 = vpack.c.bf16 %v605, %v604
      %v639 = vpack.c.bf16 %v607, %v606
      %v672 = vunpack.c.l.b16 %v608
      %v673 = vunpack.c.h.b16 %v608
      %v674 = vunpack.c.l.b16 %v609
      %v675 = vunpack.c.h.b16 %v609
      %v676 = vunpack.c.l.b16 %v610
      %v677 = vunpack.c.h.b16 %v610
      %v678 = vunpack.c.l.b16 %v611
      %v679 = vunpack.c.h.b16 %v611
      %v680 = vunpack.c.l.b16 %v612
      %v681 = vunpack.c.h.b16 %v612
      %v682 = vunpack.c.l.b16 %v613
      %v683 = vunpack.c.h.b16 %v613
      %v684 = vunpack.c.l.b16 %v614
      %v685 = vunpack.c.h.b16 %v614
      %v686 = vunpack.c.l.b16 %v615
      %v687 = vunpack.c.h.b16 %v615
      %v688 = vunpack.c.l.b16 %v616
      %v689 = vunpack.c.h.b16 %v616
      %v690 = vunpack.c.l.b16 %v617
      %v691 = vunpack.c.h.b16 %v617
      %v692 = vunpack.c.l.b16 %v618
      %v693 = vunpack.c.h.b16 %v618
      %v694 = vunpack.c.l.b16 %v619
      %v695 = vunpack.c.h.b16 %v619
      %v696 = vunpack.c.l.b16 %v620
      %v697 = vunpack.c.h.b16 %v620
      %v698 = vunpack.c.l.b16 %v621
      %v699 = vunpack.c.h.b16 %v621
      %v700 = vunpack.c.l.b16 %v622
      %v701 = vunpack.c.h.b16 %v622
      %v702 = vunpack.c.l.b16 %v623
      %v703 = vunpack.c.h.b16 %v623
      %v704 = vunpack.c.l.b16 %v624
      %v705 = vunpack.c.h.b16 %v624
      %v706 = vunpack.c.l.b16 %v625
      %v707 = vunpack.c.h.b16 %v625
      %v708 = vunpack.c.l.b16 %v626
      %v709 = vunpack.c.h.b16 %v626
      %v710 = vunpack.c.l.b16 %v627
      %v711 = vunpack.c.h.b16 %v627
      %v712 = vunpack.c.l.b16 %v628
      %v713 = vunpack.c.h.b16 %v628
      %v714 = vunpack.c.l.b16 %v629
      %v715 = vunpack.c.h.b16 %v629
      %v716 = vunpack.c.l.b16 %v630
      %v717 = vunpack.c.h.b16 %v630
      %v718 = vunpack.c.l.b16 %v631
      %v719 = vunpack.c.h.b16 %v631
      %v720 = vunpack.c.l.b16 %v632
      %v721 = vunpack.c.h.b16 %v632
      %v722 = vunpack.c.l.b16 %v633
      %v723 = vunpack.c.h.b16 %v633
      %v724 = vunpack.c.l.b16 %v634
      %v725 = vunpack.c.h.b16 %v634
      %v726 = vunpack.c.l.b16 %v635
      %v727 = vunpack.c.h.b16 %v635
      %v728 = vunpack.c.l.b16 %v636
      %v729 = vunpack.c.h.b16 %v636
      %v730 = vunpack.c.l.b16 %v637
      %v731 = vunpack.c.h.b16 %v637
      %v732 = vunpack.c.l.b16 %v638
      %v733 = vunpack.c.h.b16 %v638
      %v734 = vunpack.c.l.b16 %v639
      %v735 = vunpack.c.h.b16 %v639
      %v736 = vpack.c.b16 %v672, %v672
      %v737 = vpack.c.b16 %v673, %v673
      %v738 = vpack.c.b16 %v674, %v674
      %v739 = vpack.c.b16 %v675, %v675
      %v740 = vpack.c.b16 %v676, %v676
      %v741 = vpack.c.b16 %v677, %v677
      %v742 = vpack.c.b16 %v678, %v678
      %v743 = vpack.c.b16 %v679, %v679
      %v744 = vpack.c.b16 %v680, %v680
      %v745 = vpack.c.b16 %v681, %v681
      %v746 = vpack.c.b16 %v682, %v682
      %v747 = vpack.c.b16 %v683, %v683
      %v748 = vpack.c.b16 %v684, %v684
      %v749 = vpack.c.b16 %v685, %v685
      %v750 = vpack.c.b16 %v686, %v686
      %v751 = vpack.c.b16 %v687, %v687
      %v752 = vpack.c.b16 %v688, %v688
      %v753 = vpack.c.b16 %v689, %v689
      %v754 = vpack.c.b16 %v690, %v690
      %v755 = vpack.c.b16 %v691, %v691
      %v756 = vpack.c.b16 %v692, %v692
      %v757 = vpack.c.b16 %v693, %v693
      %v758 = vpack.c.b16 %v694, %v694
      %v759 = vpack.c.b16 %v695, %v695
      %v760 = vpack.c.b16 %v696, %v696
      %v761 = vpack.c.b16 %v697, %v697
      %v762 = vpack.c.b16 %v698, %v698
      %v763 = vpack.c.b16 %v699, %v699
      %v764 = vpack.c.b16 %v700, %v700
      %v765 = vpack.c.b16 %v701, %v701
      %v766 = vpack.c.b16 %v702, %v702
      %v767 = vpack.c.b16 %v703, %v703
      %v768 = vpack.c.b16 %v704, %v704
      %v769 = vpack.c.b16 %v705, %v705
      %v770 = vpack.c.b16 %v706, %v706
      %v771 = vpack.c.b16 %v707, %v707
      %v772 = vpack.c.b16 %v708, %v708
      %v773 = vpack.c.b16 %v709, %v709
      %v774 = vpack.c.b16 %v710, %v710
      %v775 = vpack.c.b16 %v711, %v711
      %v776 = vpack.c.b16 %v712, %v712
      %v777 = vpack.c.b16 %v713, %v713
      %v778 = vpack.c.b16 %v714, %v714
      %v779 = vpack.c.b16 %v715, %v715
      %v780 = vpack.c.b16 %v716, %v716
      %v781 = vpack.c.b16 %v717, %v717
      %v782 = vpack.c.b16 %v718, %v718
      %v783 = vpack.c.b16 %v719, %v719
      %v784 = vpack.c.b16 %v720, %v720
      %v785 = vpack.c.b16 %v721, %v721
      %v786 = vpack.c.b16 %v722, %v722
      %v787 = vpack.c.b16 %v723, %v723
      %v788 = vpack.c.b16 %v724, %v724
      %v789 = vpack.c.b16 %v725, %v725
      %v790 = vpack.c.b16 %v726, %v726
      %v791 = vpack.c.b16 %v727, %v727
      %v792 = vpack.c.b16 %v728, %v728
      %v793 = vpack.c.b16 %v729, %v729
      %v794 = vpack.c.b16 %v730, %v730
      %v795 = vpack.c.b16 %v731, %v731
      %v796 = vpack.c.b16 %v732, %v732
      %v797 = vpack.c.b16 %v733, %v733
      %v798 = vpack.c.b16 %v734, %v734
      %v799 = vpack.c.b16 %v735, %v735
      %864 = vst [vmem:[%s208] sm:$0xf] %v736
      %865 = vst [vmem:[%s208 + $0x4] sm:$0xf] %v737
      %866 = vst [vmem:[%s208 + $0x8] sm:$0xf] %v738
      %867 = vst [vmem:[%s208 + $0xc] sm:$0xf] %v739
      %868 = vst [vmem:[%s208 + $0x10] sm:$0xf] %v740
      %869 = vst [vmem:[%s208 + $0x14] sm:$0xf] %v741
      %870 = vst [vmem:[%s208 + $0x18] sm:$0xf] %v742
      %871 = vst [vmem:[%s208 + $0x1c] sm:$0xf] %v743
      %872 = vst [vmem:[%s208 + $0x20] sm:$0xf] %v744
      %873 = vst [vmem:[%s208 + $0x24] sm:$0xf] %v745
      %874 = vst [vmem:[%s208 + $0x28] sm:$0xf] %v746
      %875 = vst [vmem:[%s208 + $0x2c] sm:$0xf] %v747
      %876 = vst [vmem:[%s208 + $0x30] sm:$0xf] %v748
      %877 = vst [vmem:[%s208 + $0x34] sm:$0xf] %v749
      %878 = vst [vmem:[%s208 + $0x38] sm:$0xf] %v750
      %879 = vst [vmem:[%s208 + $0x3c] sm:$0xf] %v751
      %880 = vst [vmem:[%s208 + $0x40] sm:$0xf] %v752
      %881 = vst [vmem:[%s208 + $0x44] sm:$0xf] %v753
      %882 = vst [vmem:[%s208 + $0x48] sm:$0xf] %v754
      %883 = vst [vmem:[%s208 + $0x4c] sm:$0xf] %v755
      %884 = vst [vmem:[%s208 + $0x50] sm:$0xf] %v756
      %885 = vst [vmem:[%s208 + $0x54] sm:$0xf] %v757
      %886 = vst [vmem:[%s208 + $0x58] sm:$0xf] %v758
      %887 = vst [vmem:[%s208 + $0x5c] sm:$0xf] %v759
      %888 = vst [vmem:[%s208 + $0x60] sm:$0xf] %v760
      %889 = vst [vmem:[%s208 + $0x64] sm:$0xf] %v761
      %890 = vst [vmem:[%s208 + $0x68] sm:$0xf] %v762
      %891 = vst [vmem:[%s208 + $0x6c] sm:$0xf] %v763
      %892 = vst [vmem:[%s208 + $0x70] sm:$0xf] %v764
      %893 = vst [vmem:[%s208 + $0x74] sm:$0xf] %v765
      %894 = vst [vmem:[%s208 + $0x78] sm:$0xf] %v766
      %895 = vst [vmem:[%s208 + $0x7c] sm:$0xf] %v767
      %896 = vst [vmem:[%s208 + $0x80] sm:$0xf] %v768
      %897 = vst [vmem:[%s208 + $0x84] sm:$0xf] %v769
      %898 = vst [vmem:[%s208 + $0x88] sm:$0xf] %v770
      %899 = vst [vmem:[%s208 + $0x8c] sm:$0xf] %v771
      %900 = vst [vmem:[%s208 + $0x90] sm:$0xf] %v772
      %901 = vst [vmem:[%s208 + $0x94] sm:$0xf] %v773
      %902 = vst [vmem:[%s208 + $0x98] sm:$0xf] %v774
      %903 = vst [vmem:[%s208 + $0x9c] sm:$0xf] %v775
      %904 = vst [vmem:[%s208 + $0xa0] sm:$0xf] %v776
      %905 = vst [vmem:[%s208 + $0xa4] sm:$0xf] %v777
      %906 = vst [vmem:[%s208 + $0xa8] sm:$0xf] %v778
      %907 = vst [vmem:[%s208 + $0xac] sm:$0xf] %v779
      %908 = vst [vmem:[%s208 + $0xb0] sm:$0xf] %v780
      %909 = vst [vmem:[%s208 + $0xb4] sm:$0xf] %v781
      %910 = vst [vmem:[%s208 + $0xb8] sm:$0xf] %v782
      %911 = vst [vmem:[%s208 + $0xbc] sm:$0xf] %v783
      %912 = vst [vmem:[%s208 + $0xc0] sm:$0xf] %v784
      %913 = vst [vmem:[%s208 + $0xc4] sm:$0xf] %v785
      %914 = vst [vmem:[%s208 + $0xc8] sm:$0xf] %v786
      %915 = vst [vmem:[%s208 + $0xcc] sm:$0xf] %v787
      %916 = vst [vmem:[%s208 + $0xd0] sm:$0xf] %v788
      %917 = vst [vmem:[%s208 + $0xd4] sm:$0xf] %v789
      %918 = vst [vmem:[%s208 + $0xd8] sm:$0xf] %v790
      %919 = vst [vmem:[%s208 + $0xdc] sm:$0xf] %v791
      %920 = vst [vmem:[%s208 + $0xe0] sm:$0xf] %v792
      %921 = vst [vmem:[%s208 + $0xe4] sm:$0xf] %v793
      %922 = vst [vmem:[%s208 + $0xe8] sm:$0xf] %v794
      %923 = vst [vmem:[%s208 + $0xec] sm:$0xf] %v795
      %924 = vst [vmem:[%s208 + $0xf0] sm:$0xf] %v796
      %925 = vst [vmem:[%s208 + $0xf4] sm:$0xf] %v797
      %926 = vst [vmem:[%s208 + $0xf8] sm:$0xf] %v798
      %927 = vst [vmem:[%s208 + $0xfc] sm:$0xf] %v799
      %s928 = smul.u32 64, %s19
      %p929 = scmp.lt.s32.totalorder %s18, 3
      %s930 = scalar_select %p929, %s18, 3
      %p931 = scmp.lt.s32.totalorder %s928, 63
      %s932 = scalar_select %p931, %s928, 63
      %s933 = smul.addr %s930, 64
      %s934 = sadd.s32 %s932, %s933
      %s935 = smul.addr %s934, 4
      %s936 = scalar_lea.vmem %s3, %s935
      // Predicated region
      $region33: #{generator_forward.18} parent=31 // pred_check
        %p937 = pneg %p116
      $region34: #{generator_forward.18} parent=31 // pred_check_branch
        %939 = sbr.rel (%p937) target = $region36
      $region35: #{generator_forward.18} parent=31 // pred_region
        %s940 = smul.u32 64, %s19
      $region36: #{generator_forward.18} parent=31 // pred_fallthru
        _
    $region32: #{generator_forward.18} parent=5 // pred_fallthru
      _
    %p941 = scmp.le.s32.totalorder 2, %s9
    // Predicated region
    $region37: #{generator_forward.18} parent=5 // pred_check
      %p942 = pneg %p941
    $region38: #{generator_forward.18} parent=5 // pred_check_branch
      %944 = sbr.rel (%p942) target = $region40
    $region39: #{generator_forward.18} parent=5 // pred_region
      %s945 = ssub.s32 %s9, 2
      // Predicated region
      $region41: #{generator_forward.18} parent=39 // pred_check
        %p946 = pneg %p122
      $region42: #{generator_forward.18} parent=39 // pred_check_branch
        %948 = sbr.rel (%p946) target = $region44
      $region43: #{generator_forward.18} parent=39 // pred_region
        %s949 = smul.u32 64, %s21
        %p950 = scmp.lt.s32.totalorder %s20, 3
        %s951 = scalar_select %p950, %s20, 3
        %p952 = scmp.lt.s32.totalorder %s949, 63
        %s953 = scalar_select %p952, %s949, 63
        %s954 = smul.addr %s951, 64
        %s955 = sadd.s32 %s953, %s954
        %s956 = smul.addr %s955, 4
        %s957 = scalar_lea.vmem %s3, %s956
      $region44: #{generator_forward.18} parent=39 // pred_fallthru
        _
    $region40: #{generator_forward.18} parent=5 // pred_fallthru
      _
  $region6: #{generator_forward.18} parent=0 // loop_footer
    %s13 = sadd.s32 1, %s9
  $region7: #{generator_forward.18} parent=0 // loop_footer_branch
    %8 = sbr.rel target = $region3
  $region8: #{generator_forward.18} parent=0 // loop_exit
    _

// kernel: generator_forward.19
$region0: #{generator_forward.19}
  #allocation0 [shape = 'u32[]', space=smem, size = 0x4, offset = 0x4, fixed_abs, tag = 'smem constant byte address 0x4 - core index']
  #allocation1 [shape = 'u32[144,128]{1,0:T(1,128)}', space=vmem, size = 0x12000, scoped, tag = 'internal scratch']
  %s0 = inlined_call_operand.vmem [shape: bf16[4,2048,512], index: 0, kind: input, shape index: {}]
  %s1 = inlined_call_operand.vmem [shape: bf16[4,512,128], index: 1, kind: input, shape index: {}]
  %s2 = inlined_call_operand.vmem [shape: f32[4,2048,128], index: 2, kind: output, shape index: {}]
  %s3 = sld [smem:[#allocation0]]
  $region41: #{generator_forward.19} parent=0
    _
  %s5 = ssub.s32 1, %s3
  %s6 = scalar_select 0, %s5, %s3
  loop: start=0, step=1, limit=18
  $region2: #{generator_forward.19} parent=0 // loop_pre_header
    _
  $region3: #{generator_forward.19} parent=0 // loop_header
    %s8 = sphi 0, %s12
    %p9 = scmp.ge.s32.totalorder %s8, 18
    %s15 = sphi 0, %s27
    %s16 = sphi 0, %s23
    %s17 = sphi 0, %s15
    %s18 = sphi 0, %s16
    %s19 = sphi 0, %s17
    %s20 = sphi 0, %s18
    %s32 = sphi 0, %s34
    %s35 = sphi 0, %s32
    %s36 = sphi 0, %s35
    %s52 = sphi 0, %s36
    %s58 = sphi 0, %s60
    %s61 = sphi 0, %s58
    %s62 = sphi 0, %s61
    %s78 = sphi 0, %s62
    %s86 = sphi 0, %s88
    %s89 = sphi 0, %s86
    %s90 = sphi 0, %s89
    %s106 = sphi 0, %s90
  $region4: #{generator_forward.19} parent=0 // loop_header_branch
    %11 = sbr.rel (%p9) target = $region8
  $region5: #{generator_forward.19} parent=0 // loop_body
    %s13 = ssub.s32 %s8, 1
    %s14 = ssub.s32 %s8, 2
    %s21 = sadd.s32 1, %s16
    %p22 = scmp.ge.s32.totalorder %s21, 4
    %s23 = scalar_select %p22, 0, %s21
    %s24 = sadd.s32 1, %s15
    %s25 = scalar_select %p22, %s24, %s15
    %p26 = scmp.ge.s32.totalorder %s25, 4
    %s27 = scalar_select %p26, 0, %s25
    %s28 = ssub.s32 %s15, %s27
    %s29 = ssub.s32 %s16, %s23
    %s30 = sor.u32 %s28, %s29
    %p31 = scmp.eq.s32.totalorder %s30, 0
    %s33 = sadd.s32 %s32, 1
    %s34 = scalar_select %p31, %s32, %s33
    %p37 = pneg %p31
    %p38 = scmp.eq.s32.totalorder %s8, 15
    %p39 = por %p37, %p38
    %p40 = scmp.ne.s32.totalorder %s32, %s35
    %p41 = scmp.eq.s32.totalorder %s8, 0
    %p42 = por %p40, %p41
    %p43 = scmp.ne.s32.totalorder %s32, %s35
    %p44 = scmp.eq.s32.totalorder %s13, 15
    %p45 = por %p43, %p44
    %p46 = scmp.ne.s32.totalorder %s35, %s36
    %p47 = scmp.eq.s32.totalorder %s13, 0
    %p48 = por %p46, %p47
    %p49 = scmp.ne.s32.totalorder %s35, %s36
    %p50 = scmp.eq.s32.totalorder %s14, 15
    %p51 = por %p49, %p50
    %p53 = scmp.ne.s32.totalorder %s36, %s52
    %p54 = scmp.eq.s32.totalorder %s14, 0
    %p55 = por %p53, %p54
    %s56 = ssub.s32 %s15, %s27
    %p57 = scmp.eq.s32.totalorder %s56, 0
    %s59 = sadd.s32 %s58, 1
    %s60 = scalar_select %p57, %s58, %s59
    %p63 = pneg %p57
    %p64 = scmp.eq.s32.totalorder %s8, 15
    %p65 = por %p63, %p64
    %p66 = scmp.ne.s32.totalorder %s58, %s61
    %p67 = scmp.eq.s32.totalorder %s8, 0
    %p68 = por %p66, %p67
    %p69 = scmp.ne.s32.totalorder %s58, %s61
    %p70 = scmp.eq.s32.totalorder %s13, 15
    %p71 = por %p69, %p70
    %p72 = scmp.ne.s32.totalorder %s61, %s62
    %p73 = scmp.eq.s32.totalorder %s13, 0
    %p74 = por %p72, %p73
    %p75 = scmp.ne.s32.totalorder %s61, %s62
    %p76 = scmp.eq.s32.totalorder %s14, 15
    %p77 = por %p75, %p76
    %p79 = scmp.ne.s32.totalorder %s62, %s78
    %p80 = scmp.eq.s32.totalorder %s14, 0
    %p81 = por %p79, %p80
    %s82 = ssub.s32 %s15, %s27
    %s83 = ssub.s32 %s16, %s23
    %s84 = sor.u32 %s82, %s83
    %p85 = scmp.eq.s32.totalorder %s84, 0
    %s87 = sadd.s32 %s86, 1
    %s88 = scalar_select %p85, %s86, %s87
    %p91 = pneg %p85
    %p92 = scmp.eq.s32.totalorder %s8, 15
    %p93 = por %p91, %p92
    %p94 = scmp.ne.s32.totalorder %s86, %s89
    %p95 = scmp.eq.s32.totalorder %s8, 0
    %p96 = por %p94, %p95
    %p97 = scmp.ne.s32.totalorder %s86, %s89
    %p98 = scmp.eq.s32.totalorder %s13, 15
    %p99 = por %p97, %p98
    %p100 = scmp.ne.s32.totalorder %s89, %s90
    %p101 = scmp.eq.s32.totalorder %s13, 0
    %p102 = por %p100, %p101
    %p103 = scmp.ne.s32.totalorder %s89, %s90
    %p104 = scmp.eq.s32.totalorder %s14, 15
    %p105 = por %p103, %p104
    %p107 = scmp.ne.s32.totalorder %s90, %s106
    %p108 = scmp.eq.s32.totalorder %s14, 0
    %p109 = por %p107, %p108
    %p110 = scmp.le.s32.totalorder 1, %s8
    %p111 = scmp.lt.s32.totalorder %s8, 17
    %p112 = pnand %p110, %p111
    %p113 = pneg %p112
    // Predicated region
    $region9: #{generator_forward.19} parent=5 // pred_check
      _
    $region10: #{generator_forward.19} parent=5 // pred_check_branch
      %115 = sbr.rel (%p112) target = $region12
    $region11: #{generator_forward.19} parent=5 // pred_region
      %s116 = ssub.s32 %s8, 1
    $region12: #{generator_forward.19} parent=5 // pred_fallthru
      _
    %p117 = scmp.lt.s32.totalorder %s8, 16
    // Predicated region
    $region13: #{generator_forward.19} parent=5 // pred_check
      %p118 = pneg %p117
    $region14: #{generator_forward.19} parent=5 // pred_check_branch
      %120 = sbr.rel (%p118) target = $region16
    $region15: #{generator_forward.19} parent=5 // pred_region
      // Predicated region
      $region17: #{generator_forward.19} parent=15 // pred_check
        %p121 = pneg %p42
      $region18: #{generator_forward.19} parent=15 // pred_check_branch
        %123 = sbr.rel (%p121) target = $region20
      $region19: #{generator_forward.19} parent=15 // pred_region
        %s124 = smul.u32 64, %s16
        %p125 = scmp.lt.s32.totalorder %s15, 3
        %s126 = scalar_select %p125, %s15, 3
        %p127 = scmp.lt.s32.totalorder %s124, 255
        %s128 = scalar_select %p127, %s124, 255
        %s129 = smul.addr %s128, 4
        %s130 = smul.addr %s126, 1024
        %s131 = sadd.s32 %s129, %s130
        %s132 = smul.addr %s131, 4
        %s133 = scalar_lea.vmem %s0, %s132
        %s134 = smul.u32 64, %s16
      $region20: #{generator_forward.19} parent=15 // pred_fallthru
        _
      // Predicated region
      $region21: #{generator_forward.19} parent=15 // pred_check
        %p135 = pneg %p68
      $region22: #{generator_forward.19} parent=15 // pred_check_branch
        %137 = sbr.rel (%p135) target = $region24
      $region23: #{generator_forward.19} parent=15 // pred_region
        %p138 = scmp.lt.s32.totalorder %s15, 3
        %s139 = scalar_select %p138, %s15, 3
        %s140 = smul.addr %s139, 64
        %s141 = smul.addr %s140, 4
        %s142 = scalar_lea.vmem %s1, %s141
      $region24: #{generator_forward.19} parent=15 // pred_fallthru
        _
    $region16: #{generator_forward.19} parent=5 // pred_fallthru
      _
    %p143 = scmp.le.s32.totalorder 1, %s8
    %p144 = scmp.lt.s32.totalorder %s8, 17
    %p145 = pnand %p143, %p144
    %p146 = pneg %p145
    // Predicated region
    $region25: #{generator_forward.19} parent=5 // pred_check
      _
    $region26: #{generator_forward.19} parent=5 // pred_check_branch
      %148 = sbr.rel (%p145) target = $region28
    $region27: #{generator_forward.19} parent=5 // pred_region
      %s149 = ssub.s32 %s8, 1
      %s150 = smul.u32 64, %s18
      %p151 = scmp.lt.s32.totalorder %s17, 3
      %s152 = scalar_select %p151, %s17, 3
      %p153 = scmp.lt.s32.totalorder %s150, 255
      %s154 = scalar_select %p153, %s150, 255
      %s155 = smul.addr %s154, 4
      %s156 = smul.addr %s152, 1024
      %s157 = sadd.s32 %s155, %s156
      %s158 = smul.addr %s157, 4
      %s159 = scalar_lea.vmem %s0, %s158
      %p160 = pneg %p48
      %p161 = pneg %p45
      %p162 = scmp.lt.s32.totalorder %s17, 3
      %s163 = scalar_select %p162, %s17, 3
      %s164 = smul.addr %s163, 64
      %s165 = smul.addr %s164, 4
      %s166 = scalar_lea.vmem %s1, %s165
      %p167 = pneg %p74
      %p168 = pneg %p71
      %p169 = pneg %p102
      %p170 = pneg %p99
      %s171 = smul.u32 64, %s18
      %p172 = scmp.lt.s32.totalorder %s17, 3
      %s173 = scalar_select %p172, %s17, 3
      %p174 = scmp.lt.s32.totalorder %s171, 255
      %s175 = scalar_select %p174, %s171, 255
      %s176 = smul.addr %s173, 256
      %s177 = sadd.s32 %s175, %s176
      %s178 = smul.addr %s177, 8
      %s179 = scalar_lea.vmem %s2, %s178
      %s180 = smul.u32 64, %s18
      %p181 = scmp.lt.s32.totalorder %s17, 3
      %s182 = scalar_select %p181, %s17, 3
      %p183 = scmp.lt.s32.totalorder %s180, 255
      %s184 = scalar_select %p183, %s180, 255
      %s185 = smul.addr %s184, 4
      %s186 = smul.addr %s182, 1024
      %s187 = sadd.s32 %s185, %s186
      %s188 = smul.addr %s187, 4
      %s189 = scalar_lea.vmem %s0, %s188
      %s190 = smul.u32 64, %s18
      %p191 = scmp.lt.s32.totalorder %s17, 3
      %s192 = scalar_select %p191, %s17, 3
      %s193 = smul.addr %s192, 64
      %s194 = smul.addr %s193, 4
      %s195 = scalar_lea.vmem %s1, %s194
      %s196 = smul.u32 64, %s18
      %p197 = scmp.lt.s32.totalorder %s17, 3
      %s198 = scalar_select %p197, %s17, 3
      %p199 = scmp.lt.s32.totalorder %s196, 255
      %s200 = scalar_select %p199, %s196, 255
      %s201 = smul.addr %s198, 256
      %s202 = sadd.s32 %s200, %s201
      %s203 = smul.addr %s202, 8
      %s204 = scalar_lea.vmem %s2, %s203
      %s205 = smul.u32 64, %s18
      %v207 = vld [vmem:[%s189] sm:$0xff]
      %v208 = vld [vmem:[%s189 + $0x8] sm:$0xff]
      %v209 = vld [vmem:[%s189 + $0x10] sm:$0xff]
      %v210 = vld [vmem:[%s189 + $0x18] sm:$0xff]
      %v211 = vld [vmem:[%s189 + $0x20] sm:$0xff]
      %v212 = vld [vmem:[%s189 + $0x28] sm:$0xff]
      %v213 = vld [vmem:[%s189 + $0x30] sm:$0xff]
      %v214 = vld [vmem:[%s189 + $0x38] sm:$0xff]
      %v215 = vld [vmem:[%s189 + $0x40] sm:$0xff]
      %v216 = vld [vmem:[%s189 + $0x48] sm:$0xff]
      %v217 = vld [vmem:[%s189 + $0x50] sm:$0xff]
      %v218 = vld [vmem:[%s189 + $0x58] sm:$0xff]
      %v219 = vld [vmem:[%s189 + $0x60] sm:$0xff]
      %v220 = vld [vmem:[%s189 + $0x68] sm:$0xff]
      %v221 = vld [vmem:[%s189 + $0x70] sm:$0xff]
      %v222 = vld [vmem:[%s189 + $0x78] sm:$0xff]
      %v223 = vld [vmem:[%s189 + $0x80] sm:$0xff]
      %v224 = vld [vmem:[%s189 + $0x88] sm:$0xff]
      %v225 = vld [vmem:[%s189 + $0x90] sm:$0xff]
      %v226 = vld [vmem:[%s189 + $0x98] sm:$0xff]
      %v227 = vld [vmem:[%s189 + $0xa0] sm:$0xff]
      %v228 = vld [vmem:[%s189 + $0xa8] sm:$0xff]
      %v229 = vld [vmem:[%s189 + $0xb0] sm:$0xff]
      %v230 = vld [vmem:[%s189 + $0xb8] sm:$0xff]
      %v231 = vld [vmem:[%s189 + $0xc0] sm:$0xff]
      %v232 = vld [vmem:[%s189 + $0xc8] sm:$0xff]
      %v233 = vld [vmem:[%s189 + $0xd0] sm:$0xff]
      %v234 = vld [vmem:[%s189 + $0xd8] sm:$0xff]
      %v235 = vld [vmem:[%s189 + $0xe0] sm:$0xff]
      %v236 = vld [vmem:[%s189 + $0xe8] sm:$0xff]
      %v237 = vld [vmem:[%s189 + $0xf0] sm:$0xff]
      %v238 = vld [vmem:[%s189 + $0xf8] sm:$0xff]
      %v239 = vld [vmem:[%s189 + $0x100] sm:$0xff]
      %v240 = vld [vmem:[%s189 + $0x108] sm:$0xff]
      %v241 = vld [vmem:[%s189 + $0x110] sm:$0xff]
      %v242 = vld [vmem:[%s189 + $0x118] sm:$0xff]
      %v243 = vld [vmem:[%s189 + $0x120] sm:$0xff]
      %v244 = vld [vmem:[%s189 + $0x128] sm:$0xff]
      %v245 = vld [vmem:[%s189 + $0x130] sm:$0xff]
      %v246 = vld [vmem:[%s189 + $0x138] sm:$0xff]
      %v247 = vld [vmem:[%s189 + $0x140] sm:$0xff]
      %v248 = vld [vmem:[%s189 + $0x148] sm:$0xff]
      %v249 = vld [vmem:[%s189 + $0x150] sm:$0xff]
      %v250 = vld [vmem:[%s189 + $0x158] sm:$0xff]
      %v251 = vld [vmem:[%s189 + $0x160] sm:$0xff]
      %v252 = vld [vmem:[%s189 + $0x168] sm:$0xff]
      %v253 = vld [vmem:[%s189 + $0x170] sm:$0xff]
      %v254 = vld [vmem:[%s189 + $0x178] sm:$0xff]
      %v255 = vld [vmem:[%s189 + $0x180] sm:$0xff]
      %v256 = vld [vmem:[%s189 + $0x188] sm:$0xff]
      %v257 = vld [vmem:[%s189 + $0x190] sm:$0xff]
      %v258 = vld [vmem:[%s189 + $0x198] sm:$0xff]
      %v259 = vld [vmem:[%s189 + $0x1a0] sm:$0xff]
      %v260 = vld [vmem:[%s189 + $0x1a8] sm:$0xff]
      %v261 = vld [vmem:[%s189 + $0x1b0] sm:$0xff]
      %v262 = vld [vmem:[%s189 + $0x1b8] sm:$0xff]
      %v263 = vld [vmem:[%s189 + $0x1c0] sm:$0xff]
      %v264 = vld [vmem:[%s189 + $0x1c8] sm:$0xff]
      %v265 = vld [vmem:[%s189 + $0x1d0] sm:$0xff]
      %v266 = vld [vmem:[%s189 + $0x1d8] sm:$0xff]
      %v267 = vld [vmem:[%s189 + $0x1e0] sm:$0xff]
      %v268 = vld [vmem:[%s189 + $0x1e8] sm:$0xff]
      %v269 = vld [vmem:[%s189 + $0x1f0] sm:$0xff]
      %v270 = vld [vmem:[%s189 + $0x1f8] sm:$0xff]
      %v271 = vld [vmem:[%s189 + $0x200] sm:$0xff]
      %v272 = vld [vmem:[%s189 + $0x208] sm:$0xff]
      %v273 = vld [vmem:[%s189 + $0x210] sm:$0xff]
      %v274 = vld [vmem:[%s189 + $0x218] sm:$0xff]
      %v275 = vld [vmem:[%s189 + $0x220] sm:$0xff]
      %v276 = vld [vmem:[%s189 + $0x228] sm:$0xff]
      %v277 = vld [vmem:[%s189 + $0x230] sm:$0xff]
      %v278 = vld [vmem:[%s189 + $0x238] sm:$0xff]
      %v279 = vld [vmem:[%s189 + $0x240] sm:$0xff]
      %v280 = vld [vmem:[%s189 + $0x248] sm:$0xff]
      %v281 = vld [vmem:[%s189 + $0x250] sm:$0xff]
      %v282 = vld [vmem:[%s189 + $0x258] sm:$0xff]
      %v283 = vld [vmem:[%s189 + $0x260] sm:$0xff]
      %v284 = vld [vmem:[%s189 + $0x268] sm:$0xff]
      %v285 = vld [vmem:[%s189 + $0x270] sm:$0xff]
      %v286 = vld [vmem:[%s189 + $0x278] sm:$0xff]
      %v287 = vld [vmem:[%s189 + $0x280] sm:$0xff]
      %v288 = vld [vmem:[%s189 + $0x288] sm:$0xff]
      %v289 = vld [vmem:[%s189 + $0x290] sm:$0xff]
      %v290 = vld [vmem:[%s189 + $0x298] sm:$0xff]
      %v291 = vld [vmem:[%s189 + $0x2a0] sm:$0xff]
      %v292 = vld [vmem:[%s189 + $0x2a8] sm:$0xff]
      %v293 = vld [vmem:[%s189 + $0x2b0] sm:$0xff]
      %v294 = vld [vmem:[%s189 + $0x2b8] sm:$0xff]
      %v295 = vld [vmem:[%s189 + $0x2c0] sm:$0xff]
      %v296 = vld [vmem:[%s189 + $0x2c8] sm:$0xff]
      %v297 = vld [vmem:[%s189 + $0x2d0] sm:$0xff]
      %v298 = vld [vmem:[%s189 + $0x2d8] sm:$0xff]
      %v299 = vld [vmem:[%s189 + $0x2e0] sm:$0xff]
      %v300 = vld [vmem:[%s189 + $0x2e8] sm:$0xff]
      %v301 = vld [vmem:[%s189 + $0x2f0] sm:$0xff]
      %v302 = vld [vmem:[%s189 + $0x2f8] sm:$0xff]
      %v303 = vld [vmem:[%s189 + $0x300] sm:$0xff]
      %v304 = vld [vmem:[%s189 + $0x308] sm:$0xff]
      %v305 = vld [vmem:[%s189 + $0x310] sm:$0xff]
      %v306 = vld [vmem:[%s189 + $0x318] sm:$0xff]
      %v307 = vld [vmem:[%s189 + $0x320] sm:$0xff]
      %v308 = vld [vmem:[%s189 + $0x328] sm:$0xff]
      %v309 = vld [vmem:[%s189 + $0x330] sm:$0xff]
      %v310 = vld [vmem:[%s189 + $0x338] sm:$0xff]
      %v311 = vld [vmem:[%s189 + $0x340] sm:$0xff]
      %v312 = vld [vmem:[%s189 + $0x348] sm:$0xff]
      %v313 = vld [vmem:[%s189 + $0x350] sm:$0xff]
      %v314 = vld [vmem:[%s189 + $0x358] sm:$0xff]
      %v315 = vld [vmem:[%s189 + $0x360] sm:$0xff]
      %v316 = vld [vmem:[%s189 + $0x368] sm:$0xff]
      %v317 = vld [vmem:[%s189 + $0x370] sm:$0xff]
      %v318 = vld [vmem:[%s189 + $0x378] sm:$0xff]
      %v319 = vld [vmem:[%s189 + $0x380] sm:$0xff]
      %v320 = vld [vmem:[%s189 + $0x388] sm:$0xff]
      %v321 = vld [vmem:[%s189 + $0x390] sm:$0xff]
      %v322 = vld [vmem:[%s189 + $0x398] sm:$0xff]
      %v323 = vld [vmem:[%s189 + $0x3a0] sm:$0xff]
      %v324 = vld [vmem:[%s189 + $0x3a8] sm:$0xff]
      %v325 = vld [vmem:[%s189 + $0x3b0] sm:$0xff]
      %v326 = vld [vmem:[%s189 + $0x3b8] sm:$0xff]
      %v327 = vld [vmem:[%s189 + $0x3c0] sm:$0xff]
      %v328 = vld [vmem:[%s189 + $0x3c8] sm:$0xff]
      %v329 = vld [vmem:[%s189 + $0x3d0] sm:$0xff]
      %v330 = vld [vmem:[%s189 + $0x3d8] sm:$0xff]
      %v331 = vld [vmem:[%s189 + $0x3e0] sm:$0xff]
      %v332 = vld [vmem:[%s189 + $0x3e8] sm:$0xff]
      %v333 = vld [vmem:[%s189 + $0x3f0] sm:$0xff]
      %v334 = vld [vmem:[%s189 + $0x3f8] sm:$0xff]
      %v335 = vld [vmem:[%s195] sm:$0xf]
      %v336 = vld [vmem:[%s195 + $0x4] sm:$0xf]
      %v337 = vld [vmem:[%s195 + $0x8] sm:$0xf]
      %v338 = vld [vmem:[%s195 + $0xc] sm:$0xf]
      %v339 = vld [vmem:[%s195 + $0x10] sm:$0xf]
      %v340 = vld [vmem:[%s195 + $0x14] sm:$0xf]
      %v341 = vld [vmem:[%s195 + $0x18] sm:$0xf]
      %v342 = vld [vmem:[%s195 + $0x1c] sm:$0xf]
      %v343 = vld [vmem:[%s195 + $0x20] sm:$0xf]
      %v344 = vld [vmem:[%s195 + $0x24] sm:$0xf]
      %v345 = vld [vmem:[%s195 + $0x28] sm:$0xf]
      %v346 = vld [vmem:[%s195 + $0x2c] sm:$0xf]
      %v347 = vld [vmem:[%s195 + $0x30] sm:$0xf]
      %v348 = vld [vmem:[%s195 + $0x34] sm:$0xf]
      %v349 = vld [vmem:[%s195 + $0x38] sm:$0xf]
      %v350 = vld [vmem:[%s195 + $0x3c] sm:$0xf]
      %v351 = vld [vmem:[%s195 + $0x40] sm:$0xf]
      %v352 = vld [vmem:[%s195 + $0x44] sm:$0xf]
      %v353 = vld [vmem:[%s195 + $0x48] sm:$0xf]
      %v354 = vld [vmem:[%s195 + $0x4c] sm:$0xf]
      %v355 = vld [vmem:[%s195 + $0x50] sm:$0xf]
      %v356 = vld [vmem:[%s195 + $0x54] sm:$0xf]
      %v357 = vld [vmem:[%s195 + $0x58] sm:$0xf]
      %v358 = vld [vmem:[%s195 + $0x5c] sm:$0xf]
      %v359 = vld [vmem:[%s195 + $0x60] sm:$0xf]
      %v360 = vld [vmem:[%s195 + $0x64] sm:$0xf]
      %v361 = vld [vmem:[%s195 + $0x68] sm:$0xf]
      %v362 = vld [vmem:[%s195 + $0x6c] sm:$0xf]
      %v363 = vld [vmem:[%s195 + $0x70] sm:$0xf]
      %v364 = vld [vmem:[%s195 + $0x74] sm:$0xf]
      %v365 = vld [vmem:[%s195 + $0x78] sm:$0xf]
      %v366 = vld [vmem:[%s195 + $0x7c] sm:$0xf]
      %v367 = vld [vmem:[%s195 + $0x80] sm:$0xf]
      %v368 = vld [vmem:[%s195 + $0x84] sm:$0xf]
      %v369 = vld [vmem:[%s195 + $0x88] sm:$0xf]
      %v370 = vld [vmem:[%s195 + $0x8c] sm:$0xf]
      %v371 = vld [vmem:[%s195 + $0x90] sm:$0xf]
      %v372 = vld [vmem:[%s195 + $0x94] sm:$0xf]
      %v373 = vld [vmem:[%s195 + $0x98] sm:$0xf]
      %v374 = vld [vmem:[%s195 + $0x9c] sm:$0xf]
      %v375 = vld [vmem:[%s195 + $0xa0] sm:$0xf]
      %v376 = vld [vmem:[%s195 + $0xa4] sm:$0xf]
      %v377 = vld [vmem:[%s195 + $0xa8] sm:$0xf]
      %v378 = vld [vmem:[%s195 + $0xac] sm:$0xf]
      %v379 = vld [vmem:[%s195 + $0xb0] sm:$0xf]
      %v380 = vld [vmem:[%s195 + $0xb4] sm:$0xf]
      %v381 = vld [vmem:[%s195 + $0xb8] sm:$0xf]
      %v382 = vld [vmem:[%s195 + $0xbc] sm:$0xf]
      %v383 = vld [vmem:[%s195 + $0xc0] sm:$0xf]
      %v384 = vld [vmem:[%s195 + $0xc4] sm:$0xf]
      %v385 = vld [vmem:[%s195 + $0xc8] sm:$0xf]
      %v386 = vld [vmem:[%s195 + $0xcc] sm:$0xf]
      %v387 = vld [vmem:[%s195 + $0xd0] sm:$0xf]
      %v388 = vld [vmem:[%s195 + $0xd4] sm:$0xf]
      %v389 = vld [vmem:[%s195 + $0xd8] sm:$0xf]
      %v390 = vld [vmem:[%s195 + $0xdc] sm:$0xf]
      %v391 = vld [vmem:[%s195 + $0xe0] sm:$0xf]
      %v392 = vld [vmem:[%s195 + $0xe4] sm:$0xf]
      %v393 = vld [vmem:[%s195 + $0xe8] sm:$0xf]
      %v394 = vld [vmem:[%s195 + $0xec] sm:$0xf]
      %v395 = vld [vmem:[%s195 + $0xf0] sm:$0xf]
      %v396 = vld [vmem:[%s195 + $0xf4] sm:$0xf]
      %v397 = vld [vmem:[%s195 + $0xf8] sm:$0xf]
      %v398 = vld [vmem:[%s195 + $0xfc] sm:$0xf]
      %v527 = vunpack.c.l.b16 %v207
      %v528 = vunpack.c.h.b16 %v207
      %v529 = vunpack.c.l.b16 %v208
      %v530 = vunpack.c.h.b16 %v208
      %v531 = vunpack.c.l.b16 %v209
      %v532 = vunpack.c.h.b16 %v209
      %v533 = vunpack.c.l.b16 %v210
      %v534 = vunpack.c.h.b16 %v210
      %v535 = vunpack.c.l.b16 %v211
      %v536 = vunpack.c.h.b16 %v211
      %v537 = vunpack.c.l.b16 %v212
      %v538 = vunpack.c.h.b16 %v212
      %v539 = vunpack.c.l.b16 %v213
      %v540 = vunpack.c.h.b16 %v213
      %v541 = vunpack.c.l.b16 %v214
      %v542 = vunpack.c.h.b16 %v214
      %v543 = vunpack.c.l.b16 %v215
      %v544 = vunpack.c.h.b16 %v215
      %v545 = vunpack.c.l.b16 %v216
      %v546 = vunpack.c.h.b16 %v216
      %v547 = vunpack.c.l.b16 %v217
      %v548 = vunpack.c.h.b16 %v217
      %v549 = vunpack.c.l.b16 %v218
      %v550 = vunpack.c.h.b16 %v218
      %v551 = vunpack.c.l.b16 %v219
      %v552 = vunpack.c.h.b16 %v219
      %v553 = vunpack.c.l.b16 %v220
      %v554 = vunpack.c.h.b16 %v220
      %v555 = vunpack.c.l.b16 %v221
      %v556 = vunpack.c.h.b16 %v221
      %v557 = vunpack.c.l.b16 %v222
      %v558 = vunpack.c.h.b16 %v222
      %v559 = vunpack.c.l.b16 %v223
      %v560 = vunpack.c.h.b16 %v223
      %v561 = vunpack.c.l.b16 %v224
      %v562 = vunpack.c.h.b16 %v224
      %v563 = vunpack.c.l.b16 %v225
      %v564 = vunpack.c.h.b16 %v225
      %v565 = vunpack.c.l.b16 %v226
      %v566 = vunpack.c.h.b16 %v226
      %v567 = vunpack.c.l.b16 %v227
      %v568 = vunpack.c.h.b16 %v227
      %v569 = vunpack.c.l.b16 %v228
      %v570 = vunpack.c.h.b16 %v228
      %v571 = vunpack.c.l.b16 %v229
      %v572 = vunpack.c.h.b16 %v229
      %v573 = vunpack.c.l.b16 %v230
      %v574 = vunpack.c.h.b16 %v230
      %v575 = vunpack.c.l.b16 %v231
      %v576 = vunpack.c.h.b16 %v231
      %v577 = vunpack.c.l.b16 %v232
      %v578 = vunpack.c.h.b16 %v232
      %v579 = vunpack.c.l.b16 %v233
      %v580 = vunpack.c.h.b16 %v233
      %v581 = vunpack.c.l.b16 %v234
      %v582 = vunpack.c.h.b16 %v234
      %v583 = vunpack.c.l.b16 %v235
      %v584 = vunpack.c.h.b16 %v235
      %v585 = vunpack.c.l.b16 %v236
      %v586 = vunpack.c.h.b16 %v236
      %v587 = vunpack.c.l.b16 %v237
      %v588 = vunpack.c.h.b16 %v237
      %v589 = vunpack.c.l.b16 %v238
      %v590 = vunpack.c.h.b16 %v238
      %v591 = vunpack.c.l.b16 %v239
      %v592 = vunpack.c.h.b16 %v239
      %v593 = vunpack.c.l.b16 %v240
      %v594 = vunpack.c.h.b16 %v240
      %v595 = vunpack.c.l.b16 %v241
      %v596 = vunpack.c.h.b16 %v241
      %v597 = vunpack.c.l.b16 %v242
      %v598 = vunpack.c.h.b16 %v242
      %v599 = vunpack.c.l.b16 %v243
      %v600 = vunpack.c.h.b16 %v243
      %v601 = vunpack.c.l.b16 %v244
      %v602 = vunpack.c.h.b16 %v244
      %v603 = vunpack.c.l.b16 %v245
      %v604 = vunpack.c.h.b16 %v245
      %v605 = vunpack.c.l.b16 %v246
      %v606 = vunpack.c.h.b16 %v246
      %v607 = vunpack.c.l.b16 %v247
      %v608 = vunpack.c.h.b16 %v247
      %v609 = vunpack.c.l.b16 %v248
      %v610 = vunpack.c.h.b16 %v248
      %v611 = vunpack.c.l.b16 %v249
      %v612 = vunpack.c.h.b16 %v249
      %v613 = vunpack.c.l.b16 %v250
      %v614 = vunpack.c.h.b16 %v250
      %v615 = vunpack.c.l.b16 %v251
      %v616 = vunpack.c.h.b16 %v251
      %v617 = vunpack.c.l.b16 %v252
      %v618 = vunpack.c.h.b16 %v252
      %v619 = vunpack.c.l.b16 %v253
      %v620 = vunpack.c.h.b16 %v253
      %v621 = vunpack.c.l.b16 %v254
      %v622 = vunpack.c.h.b16 %v254
      %v623 = vunpack.c.l.b16 %v255
      %v624 = vunpack.c.h.b16 %v255
      %v625 = vunpack.c.l.b16 %v256
      %v626 = vunpack.c.h.b16 %v256
      %v627 = vunpack.c.l.b16 %v257
      %v628 = vunpack.c.h.b16 %v257
      %v629 = vunpack.c.l.b16 %v258
      %v630 = vunpack.c.h.b16 %v258
      %v631 = vunpack.c.l.b16 %v259
      %v632 = vunpack.c.h.b16 %v259
      %v633 = vunpack.c.l.b16 %v260
      %v634 = vunpack.c.h.b16 %v260
      %v635 = vunpack.c.l.b16 %v261
      %v636 = vunpack.c.h.b16 %v261
      %v637 = vunpack.c.l.b16 %v262
      %v638 = vunpack.c.h.b16 %v262
      %v639 = vunpack.c.l.b16 %v263
      %v640 = vunpack.c.h.b16 %v263
      %v641 = vunpack.c.l.b16 %v264
      %v642 = vunpack.c.h.b16 %v264
      %v643 = vunpack.c.l.b16 %v265
      %v644 = vunpack.c.h.b16 %v265
      %v645 = vunpack.c.l.b16 %v266
      %v646 = vunpack.c.h.b16 %v266
      %v647 = vunpack.c.l.b16 %v267
      %v648 = vunpack.c.h.b16 %v267
      %v649 = vunpack.c.l.b16 %v268
      %v650 = vunpack.c.h.b16 %v268
      %v651 = vunpack.c.l.b16 %v269
      %v652 = vunpack.c.h.b16 %v269
      %v653 = vunpack.c.l.b16 %v270
      %v654 = vunpack.c.h.b16 %v270
      %v655 = vunpack.c.l.b16 %v271
      %v656 = vunpack.c.h.b16 %v271
      %v657 = vunpack.c.l.b16 %v272
      %v658 = vunpack.c.h.b16 %v272
      %v659 = vunpack.c.l.b16 %v273
      %v660 = vunpack.c.h.b16 %v273
      %v661 = vunpack.c.l.b16 %v274
      %v662 = vunpack.c.h.b16 %v274
      %v663 = vunpack.c.l.b16 %v275
      %v664 = vunpack.c.h.b16 %v275
      %v665 = vunpack.c.l.b16 %v276
      %v666 = vunpack.c.h.b16 %v276
      %v667 = vunpack.c.l.b16 %v277
      %v668 = vunpack.c.h.b16 %v277
      %v669 = vunpack.c.l.b16 %v278
      %v670 = vunpack.c.h.b16 %v278
      %v671 = vunpack.c.l.b16 %v279
      %v672 = vunpack.c.h.b16 %v279
      %v673 = vunpack.c.l.b16 %v280
      %v674 = vunpack.c.h.b16 %v280
      %v675 = vunpack.c.l.b16 %v281
      %v676 = vunpack.c.h.b16 %v281
      %v677 = vunpack.c.l.b16 %v282
      %v678 = vunpack.c.h.b16 %v282
      %v679 = vunpack.c.l.b16 %v283
      %v680 = vunpack.c.h.b16 %v283
      %v681 = vunpack.c.l.b16 %v284
      %v682 = vunpack.c.h.b16 %v284
      %v683 = vunpack.c.l.b16 %v285
      %v684 = vunpack.c.h.b16 %v285
      %v685 = vunpack.c.l.b16 %v286
      %v686 = vunpack.c.h.b16 %v286
      %v687 = vunpack.c.l.b16 %v287
      %v688 = vunpack.c.h.b16 %v287
      %v689 = vunpack.c.l.b16 %v288
      %v690 = vunpack.c.h.b16 %v288
      %v691 = vunpack.c.l.b16 %v289
      %v692 = vunpack.c.h.b16 %v289
      %v693 = vunpack.c.l.b16 %v290
      %v694 = vunpack.c.h.b16 %v290
      %v695 = vunpack.c.l.b16 %v291
      %v696 = vunpack.c.h.b16 %v291
      %v697 = vunpack.c.l.b16 %v292
      %v698 = vunpack.c.h.b16 %v292
      %v699 = vunpack.c.l.b16 %v293
      %v700 = vunpack.c.h.b16 %v293
      %v701 = vunpack.c.l.b16 %v294
      %v702 = vunpack.c.h.b16 %v294
      %v703 = vunpack.c.l.b16 %v295
      %v704 = vunpack.c.h.b16 %v295
      %v705 = vunpack.c.l.b16 %v296
      %v706 = vunpack.c.h.b16 %v296
      %v707 = vunpack.c.l.b16 %v297
      %v708 = vunpack.c.h.b16 %v297
      %v709 = vunpack.c.l.b16 %v298
      %v710 = vunpack.c.h.b16 %v298
      %v711 = vunpack.c.l.b16 %v299
      %v712 = vunpack.c.h.b16 %v299
      %v713 = vunpack.c.l.b16 %v300
      %v714 = vunpack.c.h.b16 %v300
      %v715 = vunpack.c.l.b16 %v301
      %v716 = vunpack.c.h.b16 %v301
      %v717 = vunpack.c.l.b16 %v302
      %v718 = vunpack.c.h.b16 %v302
      %v719 = vunpack.c.l.b16 %v303
      %v720 = vunpack.c.h.b16 %v303
      %v721 = vunpack.c.l.b16 %v304
      %v722 = vunpack.c.h.b16 %v304
      %v723 = vunpack.c.l.b16 %v305
      %v724 = vunpack.c.h.b16 %v305
      %v725 = vunpack.c.l.b16 %v306
      %v726 = vunpack.c.h.b16 %v306
      %v727 = vunpack.c.l.b16 %v307
      %v728 = vunpack.c.h.b16 %v307
      %v729 = vunpack.c.l.b16 %v308
      %v730 = vunpack.c.h.b16 %v308
      %v731 = vunpack.c.l.b16 %v309
      %v732 = vunpack.c.h.b16 %v309
      %v733 = vunpack.c.l.b16 %v310
      %v734 = vunpack.c.h.b16 %v310
      %v735 = vunpack.c.l.b16 %v311
      %v736 = vunpack.c.h.b16 %v311
      %v737 = vunpack.c.l.b16 %v312
      %v738 = vunpack.c.h.b16 %v312
      %v739 = vunpack.c.l.b16 %v313
      %v740 = vunpack.c.h.b16 %v313
      %v741 = vunpack.c.l.b16 %v314
      %v742 = vunpack.c.h.b16 %v314
      %v743 = vunpack.c.l.b16 %v315
      %v744 = vunpack.c.h.b16 %v315
      %v745 = vunpack.c.l.b16 %v316
      %v746 = vunpack.c.h.b16 %v316
      %v747 = vunpack.c.l.b16 %v317
      %v748 = vunpack.c.h.b16 %v317
      %v749 = vunpack.c.l.b16 %v318
      %v750 = vunpack.c.h.b16 %v318
      %v751 = vunpack.c.l.b16 %v319
      %v752 = vunpack.c.h.b16 %v319
      %v753 = vunpack.c.l.b16 %v320
      %v754 = vunpack.c.h.b16 %v320
      %v755 = vunpack.c.l.b16 %v321
      %v756 = vunpack.c.h.b16 %v321
      %v757 = vunpack.c.l.b16 %v322
      %v758 = vunpack.c.h.b16 %v322
      %v759 = vunpack.c.l.b16 %v323
      %v760 = vunpack.c.h.b16 %v323
      %v761 = vunpack.c.l.b16 %v324
      %v762 = vunpack.c.h.b16 %v324
      %v763 = vunpack.c.l.b16 %v325
      %v764 = vunpack.c.h.b16 %v325
      %v765 = vunpack.c.l.b16 %v326
      %v766 = vunpack.c.h.b16 %v326
      %v767 = vunpack.c.l.b16 %v327
      %v768 = vunpack.c.h.b16 %v327
      %v769 = vunpack.c.l.b16 %v328
      %v770 = vunpack.c.h.b16 %v328
      %v771 = vunpack.c.l.b16 %v329
      %v772 = vunpack.c.h.b16 %v329
      %v773 = vunpack.c.l.b16 %v330
      %v774 = vunpack.c.h.b16 %v330
      %v775 = vunpack.c.l.b16 %v331
      %v776 = vunpack.c.h.b16 %v331
      %v777 = vunpack.c.l.b16 %v332
      %v778 = vunpack.c.h.b16 %v332
      %v779 = vunpack.c.l.b16 %v333
      %v780 = vunpack.c.h.b16 %v333
      %v781 = vunpack.c.l.b16 %v334
      %v782 = vunpack.c.h.b16 %v334
      %v783 = vpack.c.b16 %v531, %v527
      %v784 = vpack.c.b16 %v532, %v528
      %v785 = vpack.c.b16 %v533, %v529
      %v786 = vpack.c.b16 %v534, %v530
      %v787 = vpack.c.b16 %v539, %v535
      %v788 = vpack.c.b16 %v540, %v536
      %v789 = vpack.c.b16 %v541, %v537
      %v790 = vpack.c.b16 %v542, %v538
      %v791 = vpack.c.b16 %v547, %v543
      %v792 = vpack.c.b16 %v548, %v544
      %v793 = vpack.c.b16 %v549, %v545
      %v794 = vpack.c.b16 %v550, %v546
      %v795 = vpack.c.b16 %v555, %v551
      %v796 = vpack.c.b16 %v556, %v552
      %v797 = vpack.c.b16 %v557, %v553
      %v798 = vpack.c.b16 %v558, %v554
      %v799 = vpack.c.b16 %v563, %v559
      %v800 = vpack.c.b16 %v564, %v560
      %v801 = vpack.c.b16 %v565, %v561
      %v802 = vpack.c.b16 %v566, %v562
      %v803 = vpack.c.b16 %v571, %v567
      %v804 = vpack.c.b16 %v572, %v568
      %v805 = vpack.c.b16 %v573, %v569
      %v806 = vpack.c.b16 %v574, %v570
      %v807 = vpack.c.b16 %v579, %v575
      %v808 = vpack.c.b16 %v580, %v576
      %v809 = vpack.c.b16 %v581, %v577
      %v810 = vpack.c.b16 %v582, %v578
      %v811 = vpack.c.b16 %v587, %v583
      %v812 = vpack.c.b16 %v588, %v584
      %v813 = vpack.c.b16 %v589, %v585
      %v814 = vpack.c.b16 %v590, %v586
      %v815 = vpack.c.b16 %v595, %v591
      %v816 = vpack.c.b16 %v596, %v592
      %v817 = vpack.c.b16 %v597, %v593
      %v818 = vpack.c.b16 %v598, %v594
      %v819 = vpack.c.b16 %v603, %v599
      %v820 = vpack.c.b16 %v604, %v600
      %v821 = vpack.c.b16 %v605, %v601
      %v822 = vpack.c.b16 %v606, %v602
      %v823 = vpack.c.b16 %v611, %v607
      %v824 = vpack.c.b16 %v612, %v608
      %v825 = vpack.c.b16 %v613, %v609
      %v826 = vpack.c.b16 %v614, %v610
      %v827 = vpack.c.b16 %v619, %v615
      %v828 = vpack.c.b16 %v620, %v616
      %v829 = vpack.c.b16 %v621, %v617
      %v830 = vpack.c.b16 %v622, %v618
      %v831 = vpack.c.b16 %v627, %v623
      %v832 = vpack.c.b16 %v628, %v624
      %v833 = vpack.c.b16 %v629, %v625
      %v834 = vpack.c.b16 %v630, %v626
      %v835 = vpack.c.b16 %v635, %v631
      %v836 = vpack.c.b16 %v636, %v632
      %v837 = vpack.c.b16 %v637, %v633
      %v838 = vpack.c.b16 %v638, %v634
      %v839 = vpack.c.b16 %v643, %v639
      %v840 = vpack.c.b16 %v644, %v640
      %v841 = vpack.c.b16 %v645, %v641
      %v842 = vpack.c.b16 %v646, %v642
      %v843 = vpack.c.b16 %v651, %v647
      %v844 = vpack.c.b16 %v652, %v648
      %v845 = vpack.c.b16 %v653, %v649
      %v846 = vpack.c.b16 %v654, %v650
      %v847 = vpack.c.b16 %v659, %v655
      %v848 = vpack.c.b16 %v660, %v656
      %v849 = vpack.c.b16 %v661, %v657
      %v850 = vpack.c.b16 %v662, %v658
      %v851 = vpack.c.b16 %v667, %v663
      %v852 = vpack.c.b16 %v668, %v664
      %v853 = vpack.c.b16 %v669, %v665
      %v854 = vpack.c.b16 %v670, %v666
      %v855 = vpack.c.b16 %v675, %v671
      %v856 = vpack.c.b16 %v676, %v672
      %v857 = vpack.c.b16 %v677, %v673
      %v858 = vpack.c.b16 %v678, %v674
      %v859 = vpack.c.b16 %v683, %v679
      %v860 = vpack.c.b16 %v684, %v680
      %v861 = vpack.c.b16 %v685, %v681
      %v862 = vpack.c.b16 %v686, %v682
      %v863 = vpack.c.b16 %v691, %v687
      %v864 = vpack.c.b16 %v692, %v688
      %v865 = vpack.c.b16 %v693, %v689
      %v866 = vpack.c.b16 %v694, %v690
      %v867 = vpack.c.b16 %v699, %v695
      %v868 = vpack.c.b16 %v700, %v696
      %v869 = vpack.c.b16 %v701, %v697
      %v870 = vpack.c.b16 %v702, %v698
      %v871 = vpack.c.b16 %v707, %v703
      %v872 = vpack.c.b16 %v708, %v704
      %v873 = vpack.c.b16 %v709, %v705
      %v874 = vpack.c.b16 %v710, %v706
      %v875 = vpack.c.b16 %v715, %v711
      %v876 = vpack.c.b16 %v716, %v712
      %v877 = vpack.c.b16 %v717, %v713
      %v878 = vpack.c.b16 %v718, %v714
      %v879 = vpack.c.b16 %v723, %v719
      %v880 = vpack.c.b16 %v724, %v720
      %v881 = vpack.c.b16 %v725, %v721
      %v882 = vpack.c.b16 %v726, %v722
      %v883 = vpack.c.b16 %v731, %v727
      %v884 = vpack.c.b16 %v732, %v728
      %v885 = vpack.c.b16 %v733, %v729
      %v886 = vpack.c.b16 %v734, %v730
      %v887 = vpack.c.b16 %v739, %v735
      %v888 = vpack.c.b16 %v740, %v736
      %v889 = vpack.c.b16 %v741, %v737
      %v890 = vpack.c.b16 %v742, %v738
      %v891 = vpack.c.b16 %v747, %v743
      %v892 = vpack.c.b16 %v748, %v744
      %v893 = vpack.c.b16 %v749, %v745
      %v894 = vpack.c.b16 %v750, %v746
      %v895 = vpack.c.b16 %v755, %v751
      %v896 = vpack.c.b16 %v756, %v752
      %v897 = vpack.c.b16 %v757, %v753
      %v898 = vpack.c.b16 %v758, %v754
      %v899 = vpack.c.b16 %v763, %v759
      %v900 = vpack.c.b16 %v764, %v760
      %v901 = vpack.c.b16 %v765, %v761
      %v902 = vpack.c.b16 %v766, %v762
      %v903 = vpack.c.b16 %v771, %v767
      %v904 = vpack.c.b16 %v772, %v768
      %v905 = vpack.c.b16 %v773, %v769
      %v906 = vpack.c.b16 %v774, %v770
      %v907 = vpack.c.b16 %v779, %v775
      %v908 = vpack.c.b16 %v780, %v776
      %v909 = vpack.c.b16 %v781, %v777
      %v910 = vpack.c.b16 %v782, %v778
      %v1103 = vunpack.c.l.b16 %v335
      %v1104 = vunpack.c.l.b16 %v336
      %v1105 = vunpack.c.l.b16 %v337
      %v1106 = vunpack.c.l.b16 %v338
      %v1107 = vunpack.c.l.b16 %v339
      %v1108 = vunpack.c.l.b16 %v340
      %v1109 = vunpack.c.l.b16 %v341
      %v1110 = vunpack.c.l.b16 %v342
      %v1111 = vunpack.c.l.b16 %v343
      %v1112 = vunpack.c.l.b16 %v344
      %v1113 = vunpack.c.l.b16 %v345
      %v1114 = vunpack.c.l.b16 %v346
      %v1115 = vunpack.c.l.b16 %v347
      %v1116 = vunpack.c.l.b16 %v348
      %v1117 = vunpack.c.l.b16 %v349
      %v1118 = vunpack.c.l.b16 %v350
      %v1119 = vunpack.c.l.b16 %v351
      %v1120 = vunpack.c.l.b16 %v352
      %v1121 = vunpack.c.l.b16 %v353
      %v1122 = vunpack.c.l.b16 %v354
      %v1123 = vunpack.c.l.b16 %v355
      %v1124 = vunpack.c.l.b16 %v356
      %v1125 = vunpack.c.l.b16 %v357
      %v1126 = vunpack.c.l.b16 %v358
      %v1127 = vunpack.c.l.b16 %v359
      %v1128 = vunpack.c.l.b16 %v360
      %v1129 = vunpack.c.l.b16 %v361
      %v1130 = vunpack.c.l.b16 %v362
      %v1131 = vunpack.c.l.b16 %v363
      %v1132 = vunpack.c.l.b16 %v364
      %v1133 = vunpack.c.l.b16 %v365
      %v1134 = vunpack.c.l.b16 %v366
      %v1135 = vunpack.c.l.b16 %v367
      %v1136 = vunpack.c.l.b16 %v368
      %v1137 = vunpack.c.l.b16 %v369
      %v1138 = vunpack.c.l.b16 %v370
      %v1139 = vunpack.c.l.b16 %v371
      %v1140 = vunpack.c.l.b16 %v372
      %v1141 = vunpack.c.l.b16 %v373
      %v1142 = vunpack.c.l.b16 %v374
      %v1143 = vunpack.c.l.b16 %v375
      %v1144 = vunpack.c.l.b16 %v376
      %v1145 = vunpack.c.l.b16 %v377
      %v1146 = vunpack.c.l.b16 %v378
      %v1147 = vunpack.c.l.b16 %v379
      %v1148 = vunpack.c.l.b16 %v380
      %v1149 = vunpack.c.l.b16 %v381
      %v1150 = vunpack.c.l.b16 %v382
      %v1151 = vunpack.c.l.b16 %v383
      %v1152 = vunpack.c.l.b16 %v384
      %v1153 = vunpack.c.l.b16 %v385
      %v1154 = vunpack.c.l.b16 %v386
      %v1155 = vunpack.c.l.b16 %v387
      %v1156 = vunpack.c.l.b16 %v388
      %v1157 = vunpack.c.l.b16 %v389
      %v1158 = vunpack.c.l.b16 %v390
      %v1159 = vunpack.c.l.b16 %v391
      %v1160 = vunpack.c.l.b16 %v392
      %v1161 = vunpack.c.l.b16 %v393
      %v1162 = vunpack.c.l.b16 %v394
      %v1163 = vunpack.c.l.b16 %v395
      %v1164 = vunpack.c.l.b16 %v396
      %v1165 = vunpack.c.l.b16 %v397
      %v1166 = vunpack.c.l.b16 %v398
      %v1167 = vpack.c.b16 %v1104, %v1103
      %v1168 = vpack.c.b16 %v1106, %v1105
      %v1169 = vpack.c.b16 %v1108, %v1107
      %v1170 = vpack.c.b16 %v1110, %v1109
      %v1171 = vpack.c.b16 %v1112, %v1111
      %v1172 = vpack.c.b16 %v1114, %v1113
      %v1173 = vpack.c.b16 %v1116, %v1115
      %v1174 = vpack.c.b16 %v1118, %v1117
      %v1175 = vpack.c.b16 %v1120, %v1119
      %v1176 = vpack.c.b16 %v1122, %v1121
      %v1177 = vpack.c.b16 %v1124, %v1123
      %v1178 = vpack.c.b16 %v1126, %v1125
      %v1179 = vpack.c.b16 %v1128, %v1127
      %v1180 = vpack.c.b16 %v1130, %v1129
      %v1181 = vpack.c.b16 %v1132, %v1131
      %v1182 = vpack.c.b16 %v1134, %v1133
      %v1183 = vpack.c.b16 %v1136, %v1135
      %v1184 = vpack.c.b16 %v1138, %v1137
      %v1185 = vpack.c.b16 %v1140, %v1139
      %v1186 = vpack.c.b16 %v1142, %v1141
      %v1187 = vpack.c.b16 %v1144, %v1143
      %v1188 = vpack.c.b16 %v1146, %v1145
      %v1189 = vpack.c.b16 %v1148, %v1147
      %v1190 = vpack.c.b16 %v1150, %v1149
      %v1191 = vpack.c.b16 %v1152, %v1151
      %v1192 = vpack.c.b16 %v1154, %v1153
      %v1193 = vpack.c.b16 %v1156, %v1155
      %v1194 = vpack.c.b16 %v1158, %v1157
      %v1195 = vpack.c.b16 %v1160, %v1159
      %v1196 = vpack.c.b16 %v1162, %v1161
      %v1197 = vpack.c.b16 %v1164, %v1163
      %v1198 = vpack.c.b16 %v1166, %v1165
      %1231 = vmatprep.subr.bf16.mxu0 0
      %1232 = vmatpush1.bf16.msra.mxu0 %v1167
      %1233 = vmatprep.subr.bf16.mxu0 0
      %1234 = vmatpush1.bf16.msra.mxu0 %v1168
      %1235 = vmatprep.subr.bf16.mxu0 0
      %1236 = vmatpush1.bf16.msra.mxu0 %v1169
      %1237 = vmatprep.subr.bf16.mxu0 0
      %1238 = vmatpush1.bf16.msra.mxu0 %v1170
      %1239 = vmatprep.subr.bf16.mxu0 0
      %1240 = vmatpush1.bf16.msra.mxu0 %v1171
      %1241 = vmatprep.subr.bf16.mxu0 0
      %1242 = vmatpush1.bf16.msra.mxu0 %v1172
      %1243 = vmatprep.subr.bf16.mxu0 0
      %1244 = vmatpush1.bf16.msra.mxu0 %v1173
      %1245 = vmatprep.subr.bf16.mxu0 0
      %1246 = vmatpush1.bf16.msra.mxu0 %v1174
      %1247 = vmatprep.subr.bf16.mxu0 0
      %1248 = vmatpush1.bf16.msra.mxu0 %v1175
      %1249 = vmatprep.subr.bf16.mxu0 0
      %1250 = vmatpush1.bf16.msra.mxu0 %v1176
      %1251 = vmatprep.subr.bf16.mxu0 0
      %1252 = vmatpush1.bf16.msra.mxu0 %v1177
      %1253 = vmatprep.subr.bf16.mxu0 0
      %1254 = vmatpush1.bf16.msra.mxu0 %v1178
      %1255 = vmatprep.subr.bf16.mxu0 0
      %1256 = vmatpush1.bf16.msra.mxu0 %v1179
      %1257 = vmatprep.subr.bf16.mxu0 0
      %1258 = vmatpush1.bf16.msra.mxu0 %v1180
      %1259 = vmatprep.subr.bf16.mxu0 0
      %1260 = vmatpush1.bf16.msra.mxu0 %v1181
      %1261 = vmatprep.subr.bf16.mxu0 0
      %1262 = vmatpush1.bf16.msra.mxu0 %v1182
      %1263 = vmatprep.mubr.bf16.mxu0 %v784
      %1264 = vmatmul.mubr.bf16.gmra.mrb[0].mxu0 %v783
      %v1265 = vpop.f32.mrb[0].mxu0
      %v1266 = vadd.f32 0.0, %v1265
      %v1267 = vpop.f32.mrb[0].mxu0
      %v1268 = vpop.f32.mrb[0].mxu0
      %v1269 = vadd.f32 0.0, %v1268
      %v1270 = vpop.f32.mrb[0].mxu0
      %1271 = vmatprep.mubr.bf16.mxu0 %v788
      %1272 = vmatmul.mubr.bf16.gmra.mrb[0].mxu0 %v787
      %v1273 = vpop.f32.mrb[0].mxu0
      %v1274 = vadd.f32 0.0, %v1273
      %v1275 = vpop.f32.mrb[0].mxu0
      %v1276 = vpop.f32.mrb[0].mxu0
      %v1277 = vadd.f32 0.0, %v1276
      %v1278 = vpop.f32.mrb[0].mxu0
      %1279 = vmatprep.mubr.bf16.mxu0 %v792
      %1280 = vmatmul.mubr.bf16.gmra.mrb[0].mxu0 %v791
      %v1281 = vpop.f32.mrb[0].mxu0
      %v1282 = vadd.f32 0.0, %v1281
      %v1283 = vpop.f32.mrb[0].mxu0
      %v1284 = vpop.f32.mrb[0].mxu0
      %v1285 = vadd.f32 0.0, %v1284
      %v1286 = vpop.f32.mrb[0].mxu0
      %1287 = vmatprep.mubr.bf16.mxu0 %v796
      %1288 = vmatmul.mubr.bf16.gmra.mrb[0].mxu0 %v795
      %v1289 = vpop.f32.mrb[0].mxu0
      %v1290 = vadd.f32 0.0, %v1289
      %v1291 = vpop.f32.mrb[0].mxu0
      %v1292 = vpop.f32.mrb[0].mxu0
      %v1293 = vadd.f32 0.0, %v1292
      %v1294 = vpop.f32.mrb[0].mxu0
      %1295 = vmatprep.mubr.bf16.mxu0 %v800
      %1296 = vmatmul.mubr.bf16.gmra.mrb[0].mxu0 %v799
      %v1297 = vpop.f32.mrb[0].mxu0
      %v1298 = vadd.f32 0.0, %v1297
      %v1299 = vpop.f32.mrb[0].mxu0
      %v1300 = vpop.f32.mrb[0].mxu0
      %v1301 = vadd.f32 0.0, %v1300
      %v1302 = vpop.f32.mrb[0].mxu0
      %1303 = vmatprep.mubr.bf16.mxu0 %v804
      %1304 = vmatmul.mubr.bf16.gmra.mrb[0].mxu0 %v803
      %v1305 = vpop.f32.mrb[0].mxu0
      %v1306 = vadd.f32 0.0, %v1305
      %v1307 = vpop.f32.mrb[0].mxu0
      %v1308 = vpop.f32.mrb[0].mxu0
      %v1309 = vadd.f32 0.0, %v1308
      %v1310 = vpop.f32.mrb[0].mxu0
      %1311 = vmatprep.mubr.bf16.mxu0 %v808
      %1312 = vmatmul.mubr.bf16.gmra.mrb[0].mxu0 %v807
      %v1313 = vpop.f32.mrb[0].mxu0
      %v1314 = vadd.f32 0.0, %v1313
      %v1315 = vpop.f32.mrb[0].mxu0
      %v1316 = vpop.f32.mrb[0].mxu0
      %v1317 = vadd.f32 0.0, %v1316
      %v1318 = vpop.f32.mrb[0].mxu0
      %1319 = vmatprep.mubr.bf16.mxu0 %v812
      %1320 = vmatmul.mubr.bf16.gmra.mrb[0].mxu0 %v811
      %v1321 = vpop.f32.mrb[0].mxu0
      %v1322 = vadd.f32 0.0, %v1321
      %v1323 = vpop.f32.mrb[0].mxu0
      %v1324 = vpop.f32.mrb[0].mxu0
      %v1325 = vadd.f32 0.0, %v1324
      %v1326 = vpop.f32.mrb[0].mxu0
      %1327 = vmatprep.mubr.bf16.mxu0 %v816
      %1328 = vmatmul.mubr.bf16.gmra.mrb[0].mxu0 %v815
      %v1329 = vpop.f32.mrb[0].mxu0
      %v1330 = vadd.f32 0.0, %v1329
      %v1331 = vpop.f32.mrb[0].mxu0
      %v1332 = vpop.f32.mrb[0].mxu0
      %v1333 = vadd.f32 0.0, %v1332
      %v1334 = vpop.f32.mrb[0].mxu0
      %1335 = vmatprep.mubr.bf16.mxu0 %v820
      %1336 = vmatmul.mubr.bf16.gmra.mrb[0].mxu0 %v819
      %v1337 = vpop.f32.mrb[0].mxu0
      %v1338 = vadd.f32 0.0, %v1337
      %v1339 = vpop.f32.mrb[0].mxu0
      %v1340 = vpop.f32.mrb[0].mxu0
      %v1341 = vadd.f32 0.0, %v1340
      %v1342 = vpop.f32.mrb[0].mxu0
      %1343 = vmatprep.mubr.bf16.mxu0 %v824
      %1344 = vmatmul.mubr.bf16.gmra.mrb[0].mxu0 %v823
      %v1345 = vpop.f32.mrb[0].mxu0
      %v1346 = vadd.f32 0.0, %v1345
      %v1347 = vpop.f32.mrb[0].mxu0
      %v1348 = vpop.f32.mrb[0].mxu0
      %v1349 = vadd.f32 0.0, %v1348
      %v1350 = vpop.f32.mrb[0].mxu0
      %1351 = vmatprep.mubr.bf16.mxu0 %v828
      %1352 = vmatmul.mubr.bf16.gmra.mrb[0].mxu0 %v827
      %v1353 = vpop.f32.mrb[0].mxu0
      %v1354 = vadd.f32 0.0, %v1353
      %v1355 = vpop.f32.mrb[0].mxu0
      %v1356 = vpop.f32.mrb[0].mxu0
      %v1357 = vadd.f32 0.0, %v1356
      %v1358 = vpop.f32.mrb[0].mxu0
      %1359 = vmatprep.mubr.bf16.mxu0 %v832
      %1360 = vmatmul.mubr.bf16.gmra.mrb[0].mxu0 %v831
      %v1361 = vpop.f32.mrb[0].mxu0
      %v1362 = vadd.f32 0.0, %v1361
      %v1363 = vpop.f32.mrb[0].mxu0
      %v1364 = vpop.f32.mrb[0].mxu0
      %v1365 = vadd.f32 0.0, %v1364
      %v1366 = vpop.f32.mrb[0].mxu0
      %1367 = vmatprep.mubr.bf16.mxu0 %v836
      %1368 = vmatmul.mubr.bf16.gmra.mrb[0].mxu0 %v835
      %v1369 = vpop.f32.mrb[0].mxu0
      %v1370 = vadd.f32 0.0, %v1369
      %v1371 = vpop.f32.mrb[0].mxu0
      %v1372 = vpop.f32.mrb[0].mxu0
      %v1373 = vadd.f32 0.0, %v1372
      %v1374 = vpop.f32.mrb[0].mxu0
      %1375 = vmatprep.mubr.bf16.mxu0 %v840
      %1376 = vmatmul.mubr.bf16.gmra.mrb[0].mxu0 %v839
      %v1377 = vpop.f32.mrb[0].mxu0
      %v1378 = vadd.f32 0.0, %v1377
      %v1379 = vpop.f32.mrb[0].mxu0
      %v1380 = vpop.f32.mrb[0].mxu0
      %v1381 = vadd.f32 0.0, %v1380
      %v1382 = vpop.f32.mrb[0].mxu0
      %1383 = vmatprep.mubr.bf16.mxu0 %v844
      %1384 = vmatmul.mubr.bf16.gmra.mrb[0].mxu0 %v843
      %v1385 = vpop.f32.mrb[0].mxu0
      %v1386 = vadd.f32 0.0, %v1385
      %v1387 = vpop.f32.mrb[0].mxu0
      %v1388 = vpop.f32.mrb[0].mxu0
      %v1389 = vadd.f32 0.0, %v1388
      %v1390 = vpop.f32.mrb[0].mxu0
      %1391 = vmatprep.mubr.bf16.mxu0 %v848
      %1392 = vmatmul.mubr.bf16.gmra.mrb[0].mxu0 %v847
      %v1393 = vpop.f32.mrb[0].mxu0
      %v1394 = vadd.f32 0.0, %v1393
      %v1395 = vpop.f32.mrb[0].mxu0
      %v1396 = vpop.f32.mrb[0].mxu0
      %v1397 = vadd.f32 0.0, %v1396
      %v1398 = vpop.f32.mrb[0].mxu0
      %1399 = vmatprep.mubr.bf16.mxu0 %v852
      %1400 = vmatmul.mubr.bf16.gmra.mrb[0].mxu0 %v851
      %v1401 = vpop.f32.mrb[0].mxu0
      %v1402 = vadd.f32 0.0, %v1401
      %v1403 = vpop.f32.mrb[0].mxu0
      %v1404 = vpop.f32.mrb[0].mxu0
      %v1405 = vadd.f32 0.0, %v1404
      %v1406 = vpop.f32.mrb[0].mxu0
      %1407 = vmatprep.mubr.bf16.mxu0 %v856
      %1408 = vmatmul.mubr.bf16.gmra.mrb[0].mxu0 %v855
      %v1409 = vpop.f32.mrb[0].mxu0
      %v1410 = vadd.f32 0.0, %v1409
      %v1411 = vpop.f32.mrb[0].mxu0
      %v1412 = vpop.f32.mrb[0].mxu0
      %v1413 = vadd.f32 0.0, %v1412
      %v1414 = vpop.f32.mrb[0].mxu0
      %1415 = vmatprep.mubr.bf16.mxu0 %v860
      %1416 = vmatmul.mubr.bf16.gmra.mrb[0].mxu0 %v859
      %v1417 = vpop.f32.mrb[0].mxu0
      %v1418 = vadd.f32 0.0, %v1417
      %v1419 = vpop.f32.mrb[0].mxu0
      %v1420 = vpop.f32.mrb[0].mxu0
      %v1421 = vadd.f32 0.0, %v1420
      %v1422 = vpop.f32.mrb[0].mxu0
      %1423 = vmatprep.mubr.bf16.mxu0 %v864
      %1424 = vmatmul.mubr.bf16.gmra.mrb[0].mxu0 %v863
      %v1425 = vpop.f32.mrb[0].mxu0
      %v1426 = vadd.f32 0.0, %v1425
      %v1427 = vpop.f32.mrb[0].mxu0
      %v1428 = vpop.f32.mrb[0].mxu0
      %v1429 = vadd.f32 0.0, %v1428
      %v1430 = vpop.f32.mrb[0].mxu0
      %1431 = vmatprep.mubr.bf16.mxu0 %v868
      %1432 = vmatmul.mubr.bf16.gmra.mrb[0].mxu0 %v867
      %v1433 = vpop.f32.mrb[0].mxu0
      %v1434 = vadd.f32 0.0, %v1433
      %v1435 = vpop.f32.mrb[0].mxu0
      %v1436 = vpop.f32.mrb[0].mxu0
      %v1437 = vadd.f32 0.0, %v1436
      %v1438 = vpop.f32.mrb[0].mxu0
      %1439 = vmatprep.mubr.bf16.mxu0 %v872
      %1440 = vmatmul.mubr.bf16.gmra.mrb[0].mxu0 %v871
      %v1441 = vpop.f32.mrb[0].mxu0
      %v1442 = vadd.f32 0.0, %v1441
      %v1443 = vpop.f32.mrb[0].mxu0
      %v1444 = vpop.f32.mrb[0].mxu0
      %v1445 = vadd.f32 0.0, %v1444
      %v1446 = vpop.f32.mrb[0].mxu0
      %1447 = vmatprep.mubr.bf16.mxu0 %v876
      %1448 = vmatmul.mubr.bf16.gmra.mrb[0].mxu0 %v875
      %v1449 = vpop.f32.mrb[0].mxu0
      %v1450 = vadd.f32 0.0, %v1449
      %v1451 = vpop.f32.mrb[0].mxu0
      %v1452 = vpop.f32.mrb[0].mxu0
      %v1453 = vadd.f32 0.0, %v1452
      %v1454 = vpop.f32.mrb[0].mxu0
      %1455 = vmatprep.mubr.bf16.mxu0 %v880
      %1456 = vmatmul.mubr.bf16.gmra.mrb[0].mxu0 %v879
      %v1457 = vpop.f32.mrb[0].mxu0
      %v1458 = vadd.f32 0.0, %v1457
      %v1459 = vpop.f32.mrb[0].mxu0
      %v1460 = vpop.f32.mrb[0].mxu0
      %v1461 = vadd.f32 0.0, %v1460
      %v1462 = vpop.f32.mrb[0].mxu0
      %1463 = vmatprep.mubr.bf16.mxu0 %v884
      %1464 = vmatmul.mubr.bf16.gmra.mrb[0].mxu0 %v883
      %v1465 = vpop.f32.mrb[0].mxu0
      %v1466 = vadd.f32 0.0, %v1465
      %v1467 = vpop.f32.mrb[0].mxu0
      %v1468 = vpop.f32.mrb[0].mxu0
      %v1469 = vadd.f32 0.0, %v1468
      %v1470 = vpop.f32.mrb[0].mxu0
      %1471 = vmatprep.mubr.bf16.mxu0 %v888
      %1472 = vmatmul.mubr.bf16.gmra.mrb[0].mxu0 %v887
      %v1473 = vpop.f32.mrb[0].mxu0
      %v1474 = vadd.f32 0.0, %v1473
      %v1475 = vpop.f32.mrb[0].mxu0
      %v1476 = vpop.f32.mrb[0].mxu0
      %v1477 = vadd.f32 0.0, %v1476
      %v1478 = vpop.f32.mrb[0].mxu0
      %1479 = vmatprep.mubr.bf16.mxu0 %v892
      %1480 = vmatmul.mubr.bf16.gmra.mrb[0].mxu0 %v891
      %v1481 = vpop.f32.mrb[0].mxu0
      %v1482 = vadd.f32 0.0, %v1481
      %v1483 = vpop.f32.mrb[0].mxu0
      %v1484 = vpop.f32.mrb[0].mxu0
      %v1485 = vadd.f32 0.0, %v1484
      %v1486 = vpop.f32.mrb[0].mxu0
      %1487 = vmatprep.mubr.bf16.mxu0 %v896
      %1488 = vmatmul.mubr.bf16.gmra.mrb[0].mxu0 %v895
      %v1489 = vpop.f32.mrb[0].mxu0
      %v1490 = vadd.f32 0.0, %v1489
      %v1491 = vpop.f32.mrb[0].mxu0
      %v1492 = vpop.f32.mrb[0].mxu0
      %v1493 = vadd.f32 0.0, %v1492
      %v1494 = vpop.f32.mrb[0].mxu0
      %1495 = vmatprep.mubr.bf16.mxu0 %v900
      %1496 = vmatmul.mubr.bf16.gmra.mrb[0].mxu0 %v899
      %v1497 = vpop.f32.mrb[0].mxu0
      %v1498 = vadd.f32 0.0, %v1497
      %v1499 = vpop.f32.mrb[0].mxu0
      %v1500 = vpop.f32.mrb[0].mxu0
      %v1501 = vadd.f32 0.0, %v1500
      %v1502 = vpop.f32.mrb[0].mxu0
      %1503 = vmatprep.mubr.bf16.mxu0 %v904
      %1504 = vmatmul.mubr.bf16.gmra.mrb[0].mxu0 %v903
      %v1505 = vpop.f32.mrb[0].mxu0
      %v1506 = vadd.f32 0.0, %v1505
      %v1507 = vpop.f32.mrb[0].mxu0
      %v1508 = vpop.f32.mrb[0].mxu0
      %v1509 = vadd.f32 0.0, %v1508
      %v1510 = vpop.f32.mrb[0].mxu0
      %1511 = vmatprep.mubr.bf16.mxu0 %v908
      %1512 = vmatmul.mubr.bf16.gmra.mrb[0].mxu0 %v907
      %v1513 = vpop.f32.mrb[0].mxu0
      %v1514 = vadd.f32 0.0, %v1513
      %v1515 = vpop.f32.mrb[0].mxu0
      %v1516 = vpop.f32.mrb[0].mxu0
      %v1517 = vadd.f32 0.0, %v1516
      %v1518 = vpop.f32.mrb[0].mxu0
      %1519 = vdwg.mxu0
      %1520 = vmatprep.subr.bf16.mxu0 0
      %1521 = vmatpush1.bf16.msra.mxu0 %v1183
      %1522 = vmatprep.subr.bf16.mxu0 0
      %1523 = vmatpush1.bf16.msra.mxu0 %v1184
      %1524 = vmatprep.subr.bf16.mxu0 0
      %1525 = vmatpush1.bf16.msra.mxu0 %v1185
      %1526 = vmatprep.subr.bf16.mxu0 0
      %1527 = vmatpush1.bf16.msra.mxu0 %v1186
      %1528 = vmatprep.subr.bf16.mxu0 0
      %1529 = vmatpush1.bf16.msra.mxu0 %v1187
      %1530 = vmatprep.subr.bf16.mxu0 0
      %1531 = vmatpush1.bf16.msra.mxu0 %v1188
      %1532 = vmatprep.subr.bf16.mxu0 0
      %1533 = vmatpush1.bf16.msra.mxu0 %v1189
      %1534 = vmatprep.subr.bf16.mxu0 0
      %1535 = vmatpush1.bf16.msra.mxu0 %v1190
      %1536 = vmatprep.subr.bf16.mxu0 0
      %1537 = vmatpush1.bf16.msra.mxu0 %v1191
      %1538 = vmatprep.subr.bf16.mxu0 0
      %1539 = vmatpush1.bf16.msra.mxu0 %v1192
      %1540 = vmatprep.subr.bf16.mxu0 0
      %1541 = vmatpush1.bf16.msra.mxu0 %v1193
      %1542 = vmatprep.subr.bf16.mxu0 0
      %1543 = vmatpush1.bf16.msra.mxu0 %v1194
      %1544 = vmatprep.subr.bf16.mxu0 0
      %1545 = vmatpush1.bf16.msra.mxu0 %v1195
      %1546 = vmatprep.subr.bf16.mxu0 0
      %1547 = vmatpush1.bf16.msra.mxu0 %v1196
      %1548 = vmatprep.subr.bf16.mxu0 0
      %1549 = vmatpush1.bf16.msra.mxu0 %v1197
      %1550 = vmatprep.subr.bf16.mxu0 0
      %1551 = vmatpush1.bf16.msra.mxu0 %v1198
      %1552 = vmatprep.mubr.bf16.mxu0 %v786
      %1553 = vmatmul.mubr.bf16.gmra.mrb[0].mxu0 %v785
      %v1554 = vpop.f32.mrb[0].mxu0
      %v1555 = vadd.f32 %v1266, %v1554
      %v1556 = vpop.f32.mrb[0].mxu0
      %v1557 = vpop.f32.mrb[0].mxu0
      %v1558 = vadd.f32 %v1269, %v1557
      %v1559 = vpop.f32.mrb[0].mxu0
      %1560 = vmatprep.mubr.bf16.mxu0 %v790
      %1561 = vmatmul.mubr.bf16.gmra.mrb[0].mxu0 %v789
      %v1562 = vpop.f32.mrb[0].mxu0
      %v1563 = vadd.f32 %v1274, %v1562
      %v1564 = vpop.f32.mrb[0].mxu0
      %v1565 = vpop.f32.mrb[0].mxu0
      %v1566 = vadd.f32 %v1277, %v1565
      %v1567 = vpop.f32.mrb[0].mxu0
      %1568 = vmatprep.mubr.bf16.mxu0 %v794
      %1569 = vmatmul.mubr.bf16.gmra.mrb[0].mxu0 %v793
      %v1570 = vpop.f32.mrb[0].mxu0
      %v1571 = vadd.f32 %v1282, %v1570
      %v1572 = vpop.f32.mrb[0].mxu0
      %v1573 = vpop.f32.mrb[0].mxu0
      %v1574 = vadd.f32 %v1285, %v1573
      %v1575 = vpop.f32.mrb[0].mxu0
      %1576 = vmatprep.mubr.bf16.mxu0 %v798
      %1577 = vmatmul.mubr.bf16.gmra.mrb[0].mxu0 %v797
      %v1578 = vpop.f32.mrb[0].mxu0
      %v1579 = vadd.f32 %v1290, %v1578
      %v1580 = vpop.f32.mrb[0].mxu0
      %v1581 = vpop.f32.mrb[0].mxu0
      %v1582 = vadd.f32 %v1293, %v1581
      %v1583 = vpop.f32.mrb[0].mxu0
      %1584 = vmatprep.mubr.bf16.mxu0 %v802
      %1585 = vmatmul.mubr.bf16.gmra.mrb[0].mxu0 %v801
      %v1586 = vpop.f32.mrb[0].mxu0
      %v1587 = vadd.f32 %v1298, %v1586
      %v1588 = vpop.f32.mrb[0].mxu0
      %v1589 = vpop.f32.mrb[0].mxu0
      %v1590 = vadd.f32 %v1301, %v1589
      %v1591 = vpop.f32.mrb[0].mxu0
      %1592 = vmatprep.mubr.bf16.mxu0 %v806
      %1593 = vmatmul.mubr.bf16.gmra.mrb[0].mxu0 %v805
      %v1594 = vpop.f32.mrb[0].mxu0
      %v1595 = vadd.f32 %v1306, %v1594
      %v1596 = vpop.f32.mrb[0].mxu0
      %v1597 = vpop.f32.mrb[0].mxu0
      %v1598 = vadd.f32 %v1309, %v1597
      %v1599 = vpop.f32.mrb[0].mxu0
      %1600 = vmatprep.mubr.bf16.mxu0 %v810
      %1601 = vmatmul.mubr.bf16.gmra.mrb[0].mxu0 %v809
      %v1602 = vpop.f32.mrb[0].mxu0
      %v1603 = vadd.f32 %v1314, %v1602
      %v1604 = vpop.f32.mrb[0].mxu0
      %v1605 = vpop.f32.mrb[0].mxu0
      %v1606 = vadd.f32 %v1317, %v1605
      %v1607 = vpop.f32.mrb[0].mxu0
      %1608 = vmatprep.mubr.bf16.mxu0 %v814
      %1609 = vmatmul.mubr.bf16.gmra.mrb[0].mxu0 %v813
      %v1610 = vpop.f32.mrb[0].mxu0
      %v1611 = vadd.f32 %v1322, %v1610
      %v1612 = vpop.f32.mrb[0].mxu0
      %v1613 = vpop.f32.mrb[0].mxu0
      %v1614 = vadd.f32 %v1325, %v1613
      %v1615 = vpop.f32.mrb[0].mxu0
      %1616 = vmatprep.mubr.bf16.mxu0 %v818
      %1617 = vmatmul.mubr.bf16.gmra.mrb[0].mxu0 %v817
      %v1618 = vpop.f32.mrb[0].mxu0
      %v1619 = vadd.f32 %v1330, %v1618
      %v1620 = vpop.f32.mrb[0].mxu0
      %v1621 = vpop.f32.mrb[0].mxu0
      %v1622 = vadd.f32 %v1333, %v1621
      %v1623 = vpop.f32.mrb[0].mxu0
      %1624 = vmatprep.mubr.bf16.mxu0 %v822
      %1625 = vmatmul.mubr.bf16.gmra.mrb[0].mxu0 %v821
      %v1626 = vpop.f32.mrb[0].mxu0
      %v1627 = vadd.f32 %v1338, %v1626
      %v1628 = vpop.f32.mrb[0].mxu0
      %v1629 = vpop.f32.mrb[0].mxu0
      %v1630 = vadd.f32 %v1341, %v1629
      %v1631 = vpop.f32.mrb[0].mxu0
      %1632 = vmatprep.mubr.bf16.mxu0 %v826
      %1633 = vmatmul.mubr.bf16.gmra.mrb[0].mxu0 %v825
      %v1634 = vpop.f32.mrb[0].mxu0
      %v1635 = vadd.f32 %v1346, %v1634
      %v1636 = vpop.f32.mrb[0].mxu0
      %v1637 = vpop.f32.mrb[0].mxu0
      %v1638 = vadd.f32 %v1349, %v1637
      %v1639 = vpop.f32.mrb[0].mxu0
      %1640 = vmatprep.mubr.bf16.mxu0 %v830
      %1641 = vmatmul.mubr.bf16.gmra.mrb[0].mxu0 %v829
      %v1642 = vpop.f32.mrb[0].mxu0
      %v1643 = vadd.f32 %v1354, %v1642
      %v1644 = vpop.f32.mrb[0].mxu0
      %v1645 = vpop.f32.mrb[0].mxu0
      %v1646 = vadd.f32 %v1357, %v1645
      %v1647 = vpop.f32.mrb[0].mxu0
      %1648 = vmatprep.mubr.bf16.mxu0 %v834
      %1649 = vmatmul.mubr.bf16.gmra.mrb[0].mxu0 %v833
      %v1650 = vpop.f32.mrb[0].mxu0
      %v1651 = vadd.f32 %v1362, %v1650
      %v1652 = vpop.f32.mrb[0].mxu0
      %v1653 = vpop.f32.mrb[0].mxu0
      %v1654 = vadd.f32 %v1365, %v1653
      %v1655 = vpop.f32.mrb[0].mxu0
      %1656 = vmatprep.mubr.bf16.mxu0 %v838
      %1657 = vmatmul.mubr.bf16.gmra.mrb[0].mxu0 %v837
      %v1658 = vpop.f32.mrb[0].mxu0
      %v1659 = vadd.f32 %v1370, %v1658
      %v1660 = vpop.f32.mrb[0].mxu0
      %v1661 = vpop.f32.mrb[0].mxu0
      %v1662 = vadd.f32 %v1373, %v1661
      %v1663 = vpop.f32.mrb[0].mxu0
      %1664 = vmatprep.mubr.bf16.mxu0 %v842
      %1665 = vmatmul.mubr.bf16.gmra.mrb[0].mxu0 %v841
      %v1666 = vpop.f32.mrb[0].mxu0
      %v1667 = vadd.f32 %v1378, %v1666
      %v1668 = vpop.f32.mrb[0].mxu0
      %v1669 = vpop.f32.mrb[0].mxu0
      %v1670 = vadd.f32 %v1381, %v1669
      %v1671 = vpop.f32.mrb[0].mxu0
      %1672 = vmatprep.mubr.bf16.mxu0 %v846
      %1673 = vmatmul.mubr.bf16.gmra.mrb[0].mxu0 %v845
      %v1674 = vpop.f32.mrb[0].mxu0
      %v1675 = vadd.f32 %v1386, %v1674
      %v1676 = vpop.f32.mrb[0].mxu0
      %v1677 = vpop.f32.mrb[0].mxu0
      %v1678 = vadd.f32 %v1389, %v1677
      %v1679 = vpop.f32.mrb[0].mxu0
      %1680 = vmatprep.mubr.bf16.mxu0 %v850
      %1681 = vmatmul.mubr.bf16.gmra.mrb[0].mxu0 %v849
      %v1682 = vpop.f32.mrb[0].mxu0
      %v1683 = vadd.f32 %v1394, %v1682
      %v1684 = vpop.f32.mrb[0].mxu0
      %v1685 = vpop.f32.mrb[0].mxu0
      %v1686 = vadd.f32 %v1397, %v1685
      %v1687 = vpop.f32.mrb[0].mxu0
      %1688 = vmatprep.mubr.bf16.mxu0 %v854
      %1689 = vmatmul.mubr.bf16.gmra.mrb[0].mxu0 %v853
      %v1690 = vpop.f32.mrb[0].mxu0
      %v1691 = vadd.f32 %v1402, %v1690
      %v1692 = vpop.f32.mrb[0].mxu0
      %v1693 = vpop.f32.mrb[0].mxu0
      %v1694 = vadd.f32 %v1405, %v1693
      %v1695 = vpop.f32.mrb[0].mxu0
      %1696 = vmatprep.mubr.bf16.mxu0 %v858
      %1697 = vmatmul.mubr.bf16.gmra.mrb[0].mxu0 %v857
      %v1698 = vpop.f32.mrb[0].mxu0
      %v1699 = vadd.f32 %v1410, %v1698
      %v1700 = vpop.f32.mrb[0].mxu0
      %v1701 = vpop.f32.mrb[0].mxu0
      %v1702 = vadd.f32 %v1413, %v1701
      %v1703 = vpop.f32.mrb[0].mxu0
      %1704 = vmatprep.mubr.bf16.mxu0 %v862
      %1705 = vmatmul.mubr.bf16.gmra.mrb[0].mxu0 %v861
      %v1706 = vpop.f32.mrb[0].mxu0
      %v1707 = vadd.f32 %v1418, %v1706
      %v1708 = vpop.f32.mrb[0].mxu0
      %v1709 = vpop.f32.mrb[0].mxu0
      %v1710 = vadd.f32 %v1421, %v1709
      %v1711 = vpop.f32.mrb[0].mxu0
      %1712 = vmatprep.mubr.bf16.mxu0 %v866
      %1713 = vmatmul.mubr.bf16.gmra.mrb[0].mxu0 %v865
      %v1714 = vpop.f32.mrb[0].mxu0
      %v1715 = vadd.f32 %v1426, %v1714
      %v1716 = vpop.f32.mrb[0].mxu0
      %v1717 = vpop.f32.mrb[0].mxu0
      %v1718 = vadd.f32 %v1429, %v1717
      %v1719 = vpop.f32.mrb[0].mxu0
      %1720 = vmatprep.mubr.bf16.mxu0 %v870
      %1721 = vmatmul.mubr.bf16.gmra.mrb[0].mxu0 %v869
      %v1722 = vpop.f32.mrb[0].mxu0
      %v1723 = vadd.f32 %v1434, %v1722
      %v1724 = vpop.f32.mrb[0].mxu0
      %v1725 = vpop.f32.mrb[0].mxu0
      %v1726 = vadd.f32 %v1437, %v1725
      %v1727 = vpop.f32.mrb[0].mxu0
      %1728 = vmatprep.mubr.bf16.mxu0 %v874
      %1729 = vmatmul.mubr.bf16.gmra.mrb[0].mxu0 %v873
      %v1730 = vpop.f32.mrb[0].mxu0
      %v1731 = vadd.f32 %v1442, %v1730
      %v1732 = vpop.f32.mrb[0].mxu0
      %v1733 = vpop.f32.mrb[0].mxu0
      %v1734 = vadd.f32 %v1445, %v1733
      %v1735 = vpop.f32.mrb[0].mxu0
      %1736 = vmatprep.mubr.bf16.mxu0 %v878
      %1737 = vmatmul.mubr.bf16.gmra.mrb[0].mxu0 %v877
      %v1738 = vpop.f32.mrb[0].mxu0
      %v1739 = vadd.f32 %v1450, %v1738
      %v1740 = vpop.f32.mrb[0].mxu0
      %v1741 = vpop.f32.mrb[0].mxu0
      %v1742 = vadd.f32 %v1453, %v1741
      %v1743 = vpop.f32.mrb[0].mxu0
      %1744 = vmatprep.mubr.bf16.mxu0 %v882
      %1745 = vmatmul.mubr.bf16.gmra.mrb[0].mxu0 %v881
      %v1746 = vpop.f32.mrb[0].mxu0
      %v1747 = vadd.f32 %v1458, %v1746
      %v1748 = vpop.f32.mrb[0].mxu0
      %v1749 = vpop.f32.mrb[0].mxu0
      %v1750 = vadd.f32 %v1461, %v1749
      %v1751 = vpop.f32.mrb[0].mxu0
      %1752 = vmatprep.mubr.bf16.mxu0 %v886
      %1753 = vmatmul.mubr.bf16.gmra.mrb[0].mxu0 %v885
      %v1754 = vpop.f32.mrb[0].mxu0
      %v1755 = vadd.f32 %v1466, %v1754
      %v1756 = vpop.f32.mrb[0].mxu0
      %v1757 = vpop.f32.mrb[0].mxu0
      %v1758 = vadd.f32 %v1469, %v1757
      %v1759 = vpop.f32.mrb[0].mxu0
      %1760 = vmatprep.mubr.bf16.mxu0 %v890
      %1761 = vmatmul.mubr.bf16.gmra.mrb[0].mxu0 %v889
      %v1762 = vpop.f32.mrb[0].mxu0
      %v1763 = vadd.f32 %v1474, %v1762
      %v1764 = vpop.f32.mrb[0].mxu0
      %v1765 = vpop.f32.mrb[0].mxu0
      %v1766 = vadd.f32 %v1477, %v1765
      %v1767 = vpop.f32.mrb[0].mxu0
      %1768 = vmatprep.mubr.bf16.mxu0 %v894
      %1769 = vmatmul.mubr.bf16.gmra.mrb[0].mxu0 %v893
      %v1770 = vpop.f32.mrb[0].mxu0
      %v1771 = vadd.f32 %v1482, %v1770
      %v1772 = vpop.f32.mrb[0].mxu0
      %v1773 = vpop.f32.mrb[0].mxu0
      %v1774 = vadd.f32 %v1485, %v1773
      %v1775 = vpop.f32.mrb[0].mxu0
      %1776 = vmatprep.mubr.bf16.mxu0 %v898
      %1777 = vmatmul.mubr.bf16.gmra.mrb[0].mxu0 %v897
      %v1778 = vpop.f32.mrb[0].mxu0
      %v1779 = vadd.f32 %v1490, %v1778
      %v1780 = vpop.f32.mrb[0].mxu0
      %v1781 = vpop.f32.mrb[0].mxu0
      %v1782 = vadd.f32 %v1493, %v1781
      %v1783 = vpop.f32.mrb[0].mxu0
      %1784 = vmatprep.mubr.bf16.mxu0 %v902
      %1785 = vmatmul.mubr.bf16.gmra.mrb[0].mxu0 %v901
      %v1786 = vpop.f32.mrb[0].mxu0
      %v1787 = vadd.f32 %v1498, %v1786
      %v1788 = vpop.f32.mrb[0].mxu0
      %v1789 = vpop.f32.mrb[0].mxu0
      %v1790 = vadd.f32 %v1501, %v1789
      %v1791 = vpop.f32.mrb[0].mxu0
      %1792 = vmatprep.mubr.bf16.mxu0 %v906
      %1793 = vmatmul.mubr.bf16.gmra.mrb[0].mxu0 %v905
      %v1794 = vpop.f32.mrb[0].mxu0
      %v1795 = vadd.f32 %v1506, %v1794
      %v1796 = vpop.f32.mrb[0].mxu0
      %v1797 = vpop.f32.mrb[0].mxu0
      %v1798 = vadd.f32 %v1509, %v1797
      %v1799 = vpop.f32.mrb[0].mxu0
      %1800 = vmatprep.mubr.bf16.mxu0 %v910
      %1801 = vmatmul.mubr.bf16.gmra.mrb[0].mxu0 %v909
      %v1802 = vpop.f32.mrb[0].mxu0
      %v1803 = vadd.f32 %v1514, %v1802
      %v1804 = vpop.f32.mrb[0].mxu0
      %v1805 = vpop.f32.mrb[0].mxu0
      %v1806 = vadd.f32 %v1517, %v1805
      %v1807 = vpop.f32.mrb[0].mxu0
      %1808 = vdwg.mxu0
      %v1809 = vtanh.pop %v1555
      %v1810 = vtanh.pop %v1558
      %v1811 = vtanh.pop %v1563
      %v1812 = vtanh.pop %v1566
      %v1813 = vtanh.pop %v1571
      %v1814 = vtanh.pop %v1574
      %v1815 = vtanh.pop %v1579
      %v1816 = vtanh.pop %v1582
      %v1817 = vtanh.pop %v1587
      %v1818 = vtanh.pop %v1590
      %v1819 = vtanh.pop %v1595
      %v1820 = vtanh.pop %v1598
      %v1821 = vtanh.pop %v1603
      %v1822 = vtanh.pop %v1606
      %v1823 = vtanh.pop %v1611
      %v1824 = vtanh.pop %v1614
      %v1825 = vtanh.pop %v1619
      %v1826 = vtanh.pop %v1622
      %v1827 = vtanh.pop %v1627
      %v1828 = vtanh.pop %v1630
      %v1829 = vtanh.pop %v1635
      %v1830 = vtanh.pop %v1638
      %v1831 = vtanh.pop %v1643
      %v1832 = vtanh.pop %v1646
      %v1833 = vtanh.pop %v1651
      %v1834 = vtanh.pop %v1654
      %v1835 = vtanh.pop %v1659
      %v1836 = vtanh.pop %v1662
      %v1837 = vtanh.pop %v1667
      %v1838 = vtanh.pop %v1670
      %v1839 = vtanh.pop %v1675
      %v1840 = vtanh.pop %v1678
      %v1841 = vtanh.pop %v1683
      %v1842 = vtanh.pop %v1686
      %v1843 = vtanh.pop %v1691
      %v1844 = vtanh.pop %v1694
      %v1845 = vtanh.pop %v1699
      %v1846 = vtanh.pop %v1702
      %v1847 = vtanh.pop %v1707
      %v1848 = vtanh.pop %v1710
      %v1849 = vtanh.pop %v1715
      %v1850 = vtanh.pop %v1718
      %v1851 = vtanh.pop %v1723
      %v1852 = vtanh.pop %v1726
      %v1853 = vtanh.pop %v1731
      %v1854 = vtanh.pop %v1734
      %v1855 = vtanh.pop %v1739
      %v1856 = vtanh.pop %v1742
      %v1857 = vtanh.pop %v1747
      %v1858 = vtanh.pop %v1750
      %v1859 = vtanh.pop %v1755
      %v1860 = vtanh.pop %v1758
      %v1861 = vtanh.pop %v1763
      %v1862 = vtanh.pop %v1766
      %v1863 = vtanh.pop %v1771
      %v1864 = vtanh.pop %v1774
      %v1865 = vtanh.pop %v1779
      %v1866 = vtanh.pop %v1782
      %v1867 = vtanh.pop %v1787
      %v1868 = vtanh.pop %v1790
      %v1869 = vtanh.pop %v1795
      %v1870 = vtanh.pop %v1798
      %v1871 = vtanh.pop %v1803
      %v1872 = vtanh.pop %v1806
      %1873 = vst [vmem:[%s204] sm:$0xff] %v1809
      %1874 = vst [vmem:[%s204 + $0x8] sm:$0xff] %v1810
      %1875 = vst [vmem:[%s204 + $0x10] sm:$0xff] %v1811
      %1876 = vst [vmem:[%s204 + $0x18] sm:$0xff] %v1812
      %1877 = vst [vmem:[%s204 + $0x20] sm:$0xff] %v1813
      %1878 = vst [vmem:[%s204 + $0x28] sm:$0xff] %v1814
      %1879 = vst [vmem:[%s204 + $0x30] sm:$0xff] %v1815
      %1880 = vst [vmem:[%s204 + $0x38] sm:$0xff] %v1816
      %1881 = vst [vmem:[%s204 + $0x40] sm:$0xff] %v1817
      %1882 = vst [vmem:[%s204 + $0x48] sm:$0xff] %v1818
      %1883 = vst [vmem:[%s204 + $0x50] sm:$0xff] %v1819
      %1884 = vst [vmem:[%s204 + $0x58] sm:$0xff] %v1820
      %1885 = vst [vmem:[%s204 + $0x60] sm:$0xff] %v1821
      %1886 = vst [vmem:[%s204 + $0x68] sm:$0xff] %v1822
      %1887 = vst [vmem:[%s204 + $0x70] sm:$0xff] %v1823
      %1888 = vst [vmem:[%s204 + $0x78] sm:$0xff] %v1824
      %1889 = vst [vmem:[%s204 + $0x80] sm:$0xff] %v1825
      %1890 = vst [vmem:[%s204 + $0x88] sm:$0xff] %v1826
      %1891 = vst [vmem:[%s204 + $0x90] sm:$0xff] %v1827
      %1892 = vst [vmem:[%s204 + $0x98] sm:$0xff] %v1828
      %1893 = vst [vmem:[%s204 + $0xa0] sm:$0xff] %v1829
      %1894 = vst [vmem:[%s204 + $0xa8] sm:$0xff] %v1830
      %1895 = vst [vmem:[%s204 + $0xb0] sm:$0xff] %v1831
      %1896 = vst [vmem:[%s204 + $0xb8] sm:$0xff] %v1832
      %1897 = vst [vmem:[%s204 + $0xc0] sm:$0xff] %v1833
      %1898 = vst [vmem:[%s204 + $0xc8] sm:$0xff] %v1834
      %1899 = vst [vmem:[%s204 + $0xd0] sm:$0xff] %v1835
      %1900 = vst [vmem:[%s204 + $0xd8] sm:$0xff] %v1836
      %1901 = vst [vmem:[%s204 + $0xe0] sm:$0xff] %v1837
      %1902 = vst [vmem:[%s204 + $0xe8] sm:$0xff] %v1838
      %1903 = vst [vmem:[%s204 + $0xf0] sm:$0xff] %v1839
      %1904 = vst [vmem:[%s204 + $0xf8] sm:$0xff] %v1840
      %1905 = vst [vmem:[%s204 + $0x100] sm:$0xff] %v1841
      %1906 = vst [vmem:[%s204 + $0x108] sm:$0xff] %v1842
      %1907 = vst [vmem:[%s204 + $0x110] sm:$0xff] %v1843
      %1908 = vst [vmem:[%s204 + $0x118] sm:$0xff] %v1844
      %1909 = vst [vmem:[%s204 + $0x120] sm:$0xff] %v1845
      %1910 = vst [vmem:[%s204 + $0x128] sm:$0xff] %v1846
      %1911 = vst [vmem:[%s204 + $0x130] sm:$0xff] %v1847
      %1912 = vst [vmem:[%s204 + $0x138] sm:$0xff] %v1848
      %1913 = vst [vmem:[%s204 + $0x140] sm:$0xff] %v1849
      %1914 = vst [vmem:[%s204 + $0x148] sm:$0xff] %v1850
      %1915 = vst [vmem:[%s204 + $0x150] sm:$0xff] %v1851
      %1916 = vst [vmem:[%s204 + $0x158] sm:$0xff] %v1852
      %1917 = vst [vmem:[%s204 + $0x160] sm:$0xff] %v1853
      %1918 = vst [vmem:[%s204 + $0x168] sm:$0xff] %v1854
      %1919 = vst [vmem:[%s204 + $0x170] sm:$0xff] %v1855
      %1920 = vst [vmem:[%s204 + $0x178] sm:$0xff] %v1856
      %1921 = vst [vmem:[%s204 + $0x180] sm:$0xff] %v1857
      %1922 = vst [vmem:[%s204 + $0x188] sm:$0xff] %v1858
      %1923 = vst [vmem:[%s204 + $0x190] sm:$0xff] %v1859
      %1924 = vst [vmem:[%s204 + $0x198] sm:$0xff] %v1860
      %1925 = vst [vmem:[%s204 + $0x1a0] sm:$0xff] %v1861
      %1926 = vst [vmem:[%s204 + $0x1a8] sm:$0xff] %v1862
      %1927 = vst [vmem:[%s204 + $0x1b0] sm:$0xff] %v1863
      %1928 = vst [vmem:[%s204 + $0x1b8] sm:$0xff] %v1864
      %1929 = vst [vmem:[%s204 + $0x1c0] sm:$0xff] %v1865
      %1930 = vst [vmem:[%s204 + $0x1c8] sm:$0xff] %v1866
      %1931 = vst [vmem:[%s204 + $0x1d0] sm:$0xff] %v1867
      %1932 = vst [vmem:[%s204 + $0x1d8] sm:$0xff] %v1868
      %1933 = vst [vmem:[%s204 + $0x1e0] sm:$0xff] %v1869
      %1934 = vst [vmem:[%s204 + $0x1e8] sm:$0xff] %v1870
      %1935 = vst [vmem:[%s204 + $0x1f0] sm:$0xff] %v1871
      %1936 = vst [vmem:[%s204 + $0x1f8] sm:$0xff] %v1872
      %s1937 = smul.u32 64, %s18
      %p1938 = scmp.lt.s32.totalorder %s17, 3
      %s1939 = scalar_select %p1938, %s17, 3
      %p1940 = scmp.lt.s32.totalorder %s1937, 255
      %s1941 = scalar_select %p1940, %s1937, 255
      %s1942 = smul.addr %s1939, 256
      %s1943 = sadd.s32 %s1941, %s1942
      %s1944 = smul.addr %s1943, 8
      %s1945 = scalar_lea.vmem %s2, %s1944
      // Predicated region
      $region29: #{generator_forward.19} parent=27 // pred_check
        %p1946 = pneg %p99
      $region30: #{generator_forward.19} parent=27 // pred_check_branch
        %1948 = sbr.rel (%p1946) target = $region32
      $region31: #{generator_forward.19} parent=27 // pred_region
        %s1949 = smul.u32 64, %s18
      $region32: #{generator_forward.19} parent=27 // pred_fallthru
        _
    $region28: #{generator_forward.19} parent=5 // pred_fallthru
      _
    %p1950 = scmp.le.s32.totalorder 2, %s8
    // Predicated region
    $region33: #{generator_forward.19} parent=5 // pred_check
      %p1951 = pneg %p1950
    $region34: #{generator_forward.19} parent=5 // pred_check_branch
      %1953 = sbr.rel (%p1951) target = $region36
    $region35: #{generator_forward.19} parent=5 // pred_region
      %s1954 = ssub.s32 %s8, 2
      // Predicated region
      $region37: #{generator_forward.19} parent=35 // pred_check
        %p1955 = pneg %p105
      $region38: #{generator_forward.19} parent=35 // pred_check_branch
        %1957 = sbr.rel (%p1955) target = $region40
      $region39: #{generator_forward.19} parent=35 // pred_region
        %s1958 = smul.u32 64, %s20
        %p1959 = scmp.lt.s32.totalorder %s19, 3
        %s1960 = scalar_select %p1959, %s19, 3
        %p1961 = scmp.lt.s32.totalorder %s1958, 255
        %s1962 = scalar_select %p1961, %s1958, 255
        %s1963 = smul.addr %s1960, 256
        %s1964 = sadd.s32 %s1962, %s1963
        %s1965 = smul.addr %s1964, 8
        %s1966 = scalar_lea.vmem %s2, %s1965
      $region40: #{generator_forward.19} parent=35 // pred_fallthru
        _
    $region36: #{generator_forward.19} parent=5 // pred_fallthru
      _
  $region6: #{generator_forward.19} parent=0 // loop_footer
    %s12 = sadd.s32 1, %s8
  $region7: #{generator_forward.19} parent=0 // loop_footer_branch
    %7 = sbr.rel target = $region3
  $region8: #{generator_forward.19} parent=0 // loop_exit
    _

</llo_original>
